<compile_context>
chip_gen: v5e
topology: v5e:2x2
jax: 0.10.0
libtpu: 0.0.40
codegen_flags: <defaults>
</compile_context>

<pallas_src>
import jax
import jax.numpy as jnp
from jax.experimental import pallas as pl
from jax.experimental.pallas import tpu as pltpu

_PADL = 8  # sublane-aligned left pad along W so the interior store is tile-aligned


def _resblock_kernel(x_ref, w1_ref, g1_ref, bt1_ref, w2_ref, g2_ref, bt2_ref,
                     o_ref, pad_ref):
    N, H, W, C = x_ref.shape
    NHW = N * H * W
    eps = jnp.float32(1e-5)
    inv_n = jnp.float32(1.0 / NHW)

    # Zero the padded scratch ONCE: only the halo ring ever needs to be zero,
    # and the interior is fully overwritten before each conv.
    pad_ref[...] = jnp.zeros_like(pad_ref)

    def conv_bn_relu(w_ref, g_ref, bt_ref):
        # im2col: gather the 9 shifted (N, H, W, C) windows into one
        # (N*H*W, 9*C) patch matrix, then a single matmul with K = 9*C.
        patch = jnp.concatenate(
            [pad_ref[:, dy:dy + H, _PADL - 1 + dx:_PADL - 1 + dx + W, :]
             .reshape(NHW, C)
             for dy in range(3) for dx in range(3)],
            axis=-1)
        y = jnp.dot(patch, w_ref[...], preferred_element_type=jnp.float32)

        # Training-mode BN folded to a per-channel FMA (biased variance via
        # E[y^2] - mean^2).  The conv bias is omitted: the mean subtraction
        # cancels it exactly.
        s = jnp.sum(y, axis=0, keepdims=True)
        ss = jnp.sum(y * y, axis=0, keepdims=True)
        mean = s * inv_n
        var = ss * inv_n - mean * mean
        scale = g_ref[...] * jax.lax.rsqrt(var + eps)      # EUP rsqrt, (1, C)
        shift = bt_ref[...] - mean * scale
        return jnp.maximum(y * scale + shift, 0.0)         # FMA + ReLU

    # conv1 -> bn1 -> relu, result written straight back into the pad
    # interior for conv2 (no intermediate activation buffer).
    pad_ref[:, 1:H + 1, _PADL:_PADL + W, :] = x_ref[...]
    h1 = conv_bn_relu(w1_ref, g1_ref, bt1_ref)
    pad_ref[:, 1:H + 1, _PADL:_PADL + W, :] = h1.reshape(N, H, W, C)
    h2 = conv_bn_relu(w2_ref, g2_ref, bt2_ref)

    o_ref[...] = h2.reshape(N, H, W, C) + x_ref[...]       # residual add


def resblock_forward(x_nchw, params):
    N, C, H, W = x_nchw.shape
    x = jnp.transpose(x_nchw, (0, 2, 3, 1)).astype(jnp.float32)   # -> NHWC

    def prep_w(w):   # (Cout, Cin, 3, 3) -> (9*Cin, Cout), rows ordered (dy, dx, ci)
        return jnp.transpose(w, (2, 3, 1, 0)).reshape(9 * C, C).astype(jnp.float32)

    # Conv biases b1/b2 are intentionally NOT passed to the kernel: training-
    # mode BatchNorm's mean subtraction cancels a per-channel bias exactly.
    args = (
        x,
        prep_w(params["w1"]),
        params["gamma1"].reshape(1, C).astype(jnp.float32),
        params["beta1"].reshape(1, C).astype(jnp.float32),
        prep_w(params["w2"]),
        params["gamma2"].reshape(1, C).astype(jnp.float32),
        params["beta2"].reshape(1, C).astype(jnp.float32),
    )

    out_nhwc = pl.pallas_call(
        _resblock_kernel,
        out_shape=jax.ShapeDtypeStruct((N, H, W, C), jnp.float32),
        in_specs=[pl.BlockSpec(memory_space=pltpu.MemorySpace.VMEM)] * len(args),
        out_specs=pl.BlockSpec(memory_space=pltpu.MemorySpace.VMEM),
        scratch_shapes=[
            pltpu.VMEM((N, H + 2, _PADL + W + 1, C), jnp.float32),  # halo pad
        ],
        compiler_params=pltpu.CompilerParams(vmem_limit_bytes=32 * 1024 * 1024),
    )(*args)
    return jnp.transpose(out_nhwc, (0, 3, 1, 2))                  # -> NCHW


def resblock_reference(x_nchw, params):
    """Pure-JAX reference (XLA conv, bias included) for correctness checking."""
    x = jnp.transpose(x_nchw, (0, 2, 3, 1)).astype(jnp.float32)

    def conv(h, w, b):
        w_hwio = jnp.transpose(w, (2, 3, 1, 0))
        return jax.lax.conv_general_dilated(
            h, w_hwio, window_strides=(1, 1), padding="SAME",
            dimension_numbers=("NHWC", "HWIO", "NHWC")) + b

    def bn_relu(h, g, b):
        mean = jnp.mean(h, axis=(0, 1, 2), keepdims=True)
        var = jnp.mean(jnp.square(h - mean), axis=(0, 1, 2), keepdims=True)
        return jnp.maximum((h - mean) / jnp.sqrt(var + 1e-5) * g + b, 0.0)

    h = bn_relu(conv(x, params["w1"], params["b1"]), params["gamma1"], params["beta1"])
    h = bn_relu(conv(h, params["w2"], params["b2"]), params["gamma2"], params["beta2"])
    return jnp.transpose(h + x, (0, 3, 1, 2))


if __name__ == "__main__":
    N, C, H, W = 2, 4, 16, 16
    key = jax.random.PRNGKey(0)
    kx, kw1, kb1, kw2, kb2 = jax.random.split(key, 5)
    bound = 1.0 / (C * 9) ** 0.5   # kaiming-uniform-style bound, deterministic
    params = {
        "w1": jax.random.uniform(kw1, (C, C, 3, 3), jnp.float32, -bound, bound),
        "b1": jax.random.uniform(kb1, (C,), jnp.float32, -bound, bound),
        "gamma1": jnp.ones((C,), jnp.float32),   # nn.BatchNorm2d default init
        "beta1": jnp.zeros((C,), jnp.float32),
        "w2": jax.random.uniform(kw2, (C, C, 3, 3), jnp.float32, -bound, bound),
        "b2": jax.random.uniform(kb2, (C,), jnp.float32, -bound, bound),
        "gamma2": jnp.ones((C,), jnp.float32),
        "beta2": jnp.zeros((C,), jnp.float32),
    }
    x = jax.random.normal(kx, (N, C, H, W), jnp.float32)

    out = jax.jit(resblock_forward)(x, params)
    jax.block_until_ready(out)

    ref = resblock_reference(x, params)
    assert out.shape == (N, C, H, W)
    err = float(jnp.max(jnp.abs(out - ref)))
    assert err < 1e-3, f"mismatch vs reference: {err}"
    print("KERNEL_OK")
</pallas_src>

<mosaic_0001>
module attributes {stable_mosaic.version = 11 : i64} {
  func.func @_resblock_kernel(%arg0: memref<2x16x16x4xf32, #tpu.memory_space<vmem>>, %arg1: memref<36x4xf32, #tpu.memory_space<vmem>>, %arg2: memref<1x4xf32, #tpu.memory_space<vmem>>, %arg3: memref<1x4xf32, #tpu.memory_space<vmem>>, %arg4: memref<36x4xf32, #tpu.memory_space<vmem>>, %arg5: memref<1x4xf32, #tpu.memory_space<vmem>>, %arg6: memref<1x4xf32, #tpu.memory_space<vmem>>, %arg7: memref<2x16x16x4xf32, #tpu.memory_space<vmem>>, %arg8: memref<2x18x25x4xf32, #tpu.memory_space<vmem>>) attributes {dimension_semantics = [], scalar_prefetch = 0 : i64, scratch_operands = 1 : i64, tpu.core_type = #tpu.core_type<tc>} {
    %cst = arith.constant 0.000000e+00 : f32
    %0 = vector.broadcast %cst : f32 to vector<2x18x25x4xf32>
    %c0 = arith.constant 0 : index
    %c0_0 = arith.constant 0 : index
    %c0_1 = arith.constant 0 : index
    %c0_2 = arith.constant 0 : index
    %1 = vector.load %arg8[%c0, %c0_0, %c0_1, %c0_2] : memref<2x18x25x4xf32, #tpu.memory_space<vmem>>, vector<2x18x25x4xf32>
    tpu.vector_store %arg8[%c0, %c0_0, %c0_1, %c0_2], %0 {strides = array<i32>} : memref<2x18x25x4xf32, #tpu.memory_space<vmem>>, vector<2x18x25x4xf32>,
    %c0_3 = arith.constant 0 : index
    %c0_4 = arith.constant 0 : index
    %c0_5 = arith.constant 0 : index
    %c0_6 = arith.constant 0 : index
    %2 = vector.load %arg0[%c0_3, %c0_4, %c0_5, %c0_6] : memref<2x16x16x4xf32, #tpu.memory_space<vmem>>, vector<2x16x16x4xf32>
    %c0_7 = arith.constant 0 : index
    %c1 = arith.constant 1 : index
    %c8 = arith.constant 8 : index
    %c0_8 = arith.constant 0 : index
    %3 = vector.load %arg8[%c0_7, %c1, %c8, %c0_8] : memref<2x18x25x4xf32, #tpu.memory_space<vmem>>, vector<2x16x16x4xf32>
    tpu.vector_store %arg8[%c0_7, %c1, %c8, %c0_8], %2 {strides = array<i32>} : memref<2x18x25x4xf32, #tpu.memory_space<vmem>>, vector<2x16x16x4xf32>,
    %c0_9 = arith.constant 0 : index
    %c0_10 = arith.constant 0 : index
    %c7 = arith.constant 7 : index
    %c0_11 = arith.constant 0 : index
    %4 = vector.load %arg8[%c0_9, %c0_10, %c7, %c0_11] : memref<2x18x25x4xf32, #tpu.memory_space<vmem>>, vector<2x16x16x4xf32>
    %5 = vector.shape_cast %4 : vector<2x16x16x4xf32> to vector<512x4xf32>
    %c0_12 = arith.constant 0 : index
    %c0_13 = arith.constant 0 : index
    %c8_14 = arith.constant 8 : index
    %c0_15 = arith.constant 0 : index
    %6 = vector.load %arg8[%c0_12, %c0_13, %c8_14, %c0_15] : memref<2x18x25x4xf32, #tpu.memory_space<vmem>>, vector<2x16x16x4xf32>
    %7 = vector.shape_cast %6 : vector<2x16x16x4xf32> to vector<512x4xf32>
    %c0_16 = arith.constant 0 : index
    %c0_17 = arith.constant 0 : index
    %c9 = arith.constant 9 : index
    %c0_18 = arith.constant 0 : index
    %8 = vector.load %arg8[%c0_16, %c0_17, %c9, %c0_18] : memref<2x18x25x4xf32, #tpu.memory_space<vmem>>, vector<2x16x16x4xf32>
    %9 = vector.shape_cast %8 : vector<2x16x16x4xf32> to vector<512x4xf32>
    %c0_19 = arith.constant 0 : index
    %c1_20 = arith.constant 1 : index
    %c7_21 = arith.constant 7 : index
    %c0_22 = arith.constant 0 : index
    %10 = vector.load %arg8[%c0_19, %c1_20, %c7_21, %c0_22] : memref<2x18x25x4xf32, #tpu.memory_space<vmem>>, vector<2x16x16x4xf32>
    %11 = vector.shape_cast %10 : vector<2x16x16x4xf32> to vector<512x4xf32>
    %c0_23 = arith.constant 0 : index
    %c1_24 = arith.constant 1 : index
    %c8_25 = arith.constant 8 : index
    %c0_26 = arith.constant 0 : index
    %12 = vector.load %arg8[%c0_23, %c1_24, %c8_25, %c0_26] : memref<2x18x25x4xf32, #tpu.memory_space<vmem>>, vector<2x16x16x4xf32>
    %13 = vector.shape_cast %12 : vector<2x16x16x4xf32> to vector<512x4xf32>
    %c0_27 = arith.constant 0 : index
    %c1_28 = arith.constant 1 : index
    %c9_29 = arith.constant 9 : index
    %c0_30 = arith.constant 0 : index
    %14 = vector.load %arg8[%c0_27, %c1_28, %c9_29, %c0_30] : memref<2x18x25x4xf32, #tpu.memory_space<vmem>>, vector<2x16x16x4xf32>
    %15 = vector.shape_cast %14 : vector<2x16x16x4xf32> to vector<512x4xf32>
    %c0_31 = arith.constant 0 : index
    %c2 = arith.constant 2 : index
    %c7_32 = arith.constant 7 : index
    %c0_33 = arith.constant 0 : index
    %16 = vector.load %arg8[%c0_31, %c2, %c7_32, %c0_33] : memref<2x18x25x4xf32, #tpu.memory_space<vmem>>, vector<2x16x16x4xf32>
    %17 = vector.shape_cast %16 : vector<2x16x16x4xf32> to vector<512x4xf32>
    %c0_34 = arith.constant 0 : index
    %c2_35 = arith.constant 2 : index
    %c8_36 = arith.constant 8 : index
    %c0_37 = arith.constant 0 : index
    %18 = vector.load %arg8[%c0_34, %c2_35, %c8_36, %c0_37] : memref<2x18x25x4xf32, #tpu.memory_space<vmem>>, vector<2x16x16x4xf32>
    %19 = vector.shape_cast %18 : vector<2x16x16x4xf32> to vector<512x4xf32>
    %c0_38 = arith.constant 0 : index
    %c2_39 = arith.constant 2 : index
    %c9_40 = arith.constant 9 : index
    %c0_41 = arith.constant 0 : index
    %20 = vector.load %arg8[%c0_38, %c2_39, %c9_40, %c0_41] : memref<2x18x25x4xf32, #tpu.memory_space<vmem>>, vector<2x16x16x4xf32>
    %21 = vector.shape_cast %20 : vector<2x16x16x4xf32> to vector<512x4xf32>
    %22 = tpu.concatenate %5, %7, %9, %11, %13, %15, %17, %19, %21 in 1 : vector<512x4xf32>, vector<512x4xf32>, vector<512x4xf32>, vector<512x4xf32>, vector<512x4xf32>, vector<512x4xf32>, vector<512x4xf32>, vector<512x4xf32>, vector<512x4xf32> -> vector<512x36xf32>
    %c0_42 = arith.constant 0 : index
    %c0_43 = arith.constant 0 : index
    %23 = vector.load %arg1[%c0_42, %c0_43] : memref<36x4xf32, #tpu.memory_space<vmem>>, vector<36x4xf32>
    %cst_44 = arith.constant dense<0.000000e+00> : vector<512x4xf32>
    %24 = tpu.matmul %22, %23, %cst_44 {dimension_numbers = #tpu.dot_dimension_numbers<[1], [0], [0], [1], [0, 0, 1, 1], [], []>} : vector<512x36xf32>, vector<36x4xf32>, vector<512x4xf32> -> vector<512x4xf32>
    %cst_45 = arith.constant dense<0.000000e+00> : vector<4xf32>
    %25 = vector.multi_reduction <add>, %24, %cst_45 [0] : vector<512x4xf32> to vector<4xf32>
    %26 = vector.shape_cast %25 : vector<4xf32> to vector<1x4xf32>
    %27 = arith.mulf %24, %24 : vector<512x4xf32>
    %cst_46 = arith.constant dense<0.000000e+00> : vector<4xf32>
    %28 = vector.multi_reduction <add>, %27, %cst_46 [0] : vector<512x4xf32> to vector<4xf32>
    %29 = vector.shape_cast %28 : vector<4xf32> to vector<1x4xf32>
    %cst_47 = arith.constant 0.001953125 : f32
    %30 = vector.broadcast %cst_47 : f32 to vector<1x4xf32>
    %31 = arith.mulf %26, %30 : vector<1x4xf32>
    %cst_48 = arith.constant 0.001953125 : f32
    %32 = vector.broadcast %cst_48 : f32 to vector<1x4xf32>
    %33 = arith.mulf %29, %32 : vector<1x4xf32>
    %34 = arith.mulf %31, %31 : vector<1x4xf32>
    %35 = arith.subf %33, %34 : vector<1x4xf32>
    %c0_49 = arith.constant 0 : index
    %c0_50 = arith.constant 0 : index
    %36 = vector.load %arg2[%c0_49, %c0_50] : memref<1x4xf32, #tpu.memory_space<vmem>>, vector<1x4xf32>
    %cst_51 = arith.constant 9.99999974E-6 : f32
    %37 = vector.broadcast %cst_51 : f32 to vector<1x4xf32>
    %38 = arith.addf %35, %37 : vector<1x4xf32>
    %39 = math.rsqrt %38 : vector<1x4xf32>
    %40 = arith.mulf %36, %39 : vector<1x4xf32>
    %c0_52 = arith.constant 0 : index
    %c0_53 = arith.constant 0 : index
    %41 = vector.load %arg3[%c0_52, %c0_53] : memref<1x4xf32, #tpu.memory_space<vmem>>, vector<1x4xf32>
    %42 = arith.mulf %31, %40 : vector<1x4xf32>
    %43 = arith.subf %41, %42 : vector<1x4xf32>
    %44 = vector.broadcast %40 : vector<1x4xf32> to vector<512x4xf32>
    %45 = arith.mulf %24, %44 : vector<512x4xf32>
    %46 = vector.broadcast %43 : vector<1x4xf32> to vector<512x4xf32>
    %47 = arith.addf %45, %46 : vector<512x4xf32>
    %cst_54 = arith.constant 0.000000e+00 : f32
    %48 = vector.broadcast %cst_54 : f32 to vector<512x4xf32>
    %49 = arith.maximumf %47, %48 : vector<512x4xf32>
    %50 = vector.shape_cast %49 : vector<512x4xf32> to vector<2x16x16x4xf32>
    %c0_55 = arith.constant 0 : index
    %c1_56 = arith.constant 1 : index
    %c8_57 = arith.constant 8 : index
    %c0_58 = arith.constant 0 : index
    %51 = vector.load %arg8[%c0_55, %c1_56, %c8_57, %c0_58] : memref<2x18x25x4xf32, #tpu.memory_space<vmem>>, vector<2x16x16x4xf32>
    tpu.vector_store %arg8[%c0_55, %c1_56, %c8_57, %c0_58], %50 {strides = array<i32>} : memref<2x18x25x4xf32, #tpu.memory_space<vmem>>, vector<2x16x16x4xf32>,
    %c0_59 = arith.constant 0 : index
    %c0_60 = arith.constant 0 : index
    %c7_61 = arith.constant 7 : index
    %c0_62 = arith.constant 0 : index
    %52 = vector.load %arg8[%c0_59, %c0_60, %c7_61, %c0_62] : memref<2x18x25x4xf32, #tpu.memory_space<vmem>>, vector<2x16x16x4xf32>
    %53 = vector.shape_cast %52 : vector<2x16x16x4xf32> to vector<512x4xf32>
    %c0_63 = arith.constant 0 : index
    %c0_64 = arith.constant 0 : index
    %c8_65 = arith.constant 8 : index
    %c0_66 = arith.constant 0 : index
    %54 = vector.load %arg8[%c0_63, %c0_64, %c8_65, %c0_66] : memref<2x18x25x4xf32, #tpu.memory_space<vmem>>, vector<2x16x16x4xf32>
    %55 = vector.shape_cast %54 : vector<2x16x16x4xf32> to vector<512x4xf32>
    %c0_67 = arith.constant 0 : index
    %c0_68 = arith.constant 0 : index
    %c9_69 = arith.constant 9 : index
    %c0_70 = arith.constant 0 : index
    %56 = vector.load %arg8[%c0_67, %c0_68, %c9_69, %c0_70] : memref<2x18x25x4xf32, #tpu.memory_space<vmem>>, vector<2x16x16x4xf32>
    %57 = vector.shape_cast %56 : vector<2x16x16x4xf32> to vector<512x4xf32>
    %c0_71 = arith.constant 0 : index
    %c1_72 = arith.constant 1 : index
    %c7_73 = arith.constant 7 : index
    %c0_74 = arith.constant 0 : index
    %58 = vector.load %arg8[%c0_71, %c1_72, %c7_73, %c0_74] : memref<2x18x25x4xf32, #tpu.memory_space<vmem>>, vector<2x16x16x4xf32>
    %59 = vector.shape_cast %58 : vector<2x16x16x4xf32> to vector<512x4xf32>
    %c0_75 = arith.constant 0 : index
    %c1_76 = arith.constant 1 : index
    %c8_77 = arith.constant 8 : index
    %c0_78 = arith.constant 0 : index
    %60 = vector.load %arg8[%c0_75, %c1_76, %c8_77, %c0_78] : memref<2x18x25x4xf32, #tpu.memory_space<vmem>>, vector<2x16x16x4xf32>
    %61 = vector.shape_cast %60 : vector<2x16x16x4xf32> to vector<512x4xf32>
    %c0_79 = arith.constant 0 : index
    %c1_80 = arith.constant 1 : index
    %c9_81 = arith.constant 9 : index
    %c0_82 = arith.constant 0 : index
    %62 = vector.load %arg8[%c0_79, %c1_80, %c9_81, %c0_82] : memref<2x18x25x4xf32, #tpu.memory_space<vmem>>, vector<2x16x16x4xf32>
    %63 = vector.shape_cast %62 : vector<2x16x16x4xf32> to vector<512x4xf32>
    %c0_83 = arith.constant 0 : index
    %c2_84 = arith.constant 2 : index
    %c7_85 = arith.constant 7 : index
    %c0_86 = arith.constant 0 : index
    %64 = vector.load %arg8[%c0_83, %c2_84, %c7_85, %c0_86] : memref<2x18x25x4xf32, #tpu.memory_space<vmem>>, vector<2x16x16x4xf32>
    %65 = vector.shape_cast %64 : vector<2x16x16x4xf32> to vector<512x4xf32>
    %c0_87 = arith.constant 0 : index
    %c2_88 = arith.constant 2 : index
    %c8_89 = arith.constant 8 : index
    %c0_90 = arith.constant 0 : index
    %66 = vector.load %arg8[%c0_87, %c2_88, %c8_89, %c0_90] : memref<2x18x25x4xf32, #tpu.memory_space<vmem>>, vector<2x16x16x4xf32>
    %67 = vector.shape_cast %66 : vector<2x16x16x4xf32> to vector<512x4xf32>
    %c0_91 = arith.constant 0 : index
    %c2_92 = arith.constant 2 : index
    %c9_93 = arith.constant 9 : index
    %c0_94 = arith.constant 0 : index
    %68 = vector.load %arg8[%c0_91, %c2_92, %c9_93, %c0_94] : memref<2x18x25x4xf32, #tpu.memory_space<vmem>>, vector<2x16x16x4xf32>
    %69 = vector.shape_cast %68 : vector<2x16x16x4xf32> to vector<512x4xf32>
    %70 = tpu.concatenate %53, %55, %57, %59, %61, %63, %65, %67, %69 in 1 : vector<512x4xf32>, vector<512x4xf32>, vector<512x4xf32>, vector<512x4xf32>, vector<512x4xf32>, vector<512x4xf32>, vector<512x4xf32>, vector<512x4xf32>, vector<512x4xf32> -> vector<512x36xf32>
    %c0_95 = arith.constant 0 : index
    %c0_96 = arith.constant 0 : index
    %71 = vector.load %arg4[%c0_95, %c0_96] : memref<36x4xf32, #tpu.memory_space<vmem>>, vector<36x4xf32>
    %cst_97 = arith.constant dense<0.000000e+00> : vector<512x4xf32>
    %72 = tpu.matmul %70, %71, %cst_97 {dimension_numbers = #tpu.dot_dimension_numbers<[1], [0], [0], [1], [0, 0, 1, 1], [], []>} : vector<512x36xf32>, vector<36x4xf32>, vector<512x4xf32> -> vector<512x4xf32>
    %cst_98 = arith.constant dense<0.000000e+00> : vector<4xf32>
    %73 = vector.multi_reduction <add>, %72, %cst_98 [0] : vector<512x4xf32> to vector<4xf32>
    %74 = vector.shape_cast %73 : vector<4xf32> to vector<1x4xf32>
    %75 = arith.mulf %72, %72 : vector<512x4xf32>
    %cst_99 = arith.constant dense<0.000000e+00> : vector<4xf32>
    %76 = vector.multi_reduction <add>, %75, %cst_99 [0] : vector<512x4xf32> to vector<4xf32>
    %77 = vector.shape_cast %76 : vector<4xf32> to vector<1x4xf32>
    %cst_100 = arith.constant 0.001953125 : f32
    %78 = vector.broadcast %cst_100 : f32 to vector<1x4xf32>
    %79 = arith.mulf %74, %78 : vector<1x4xf32>
    %cst_101 = arith.constant 0.001953125 : f32
    %80 = vector.broadcast %cst_101 : f32 to vector<1x4xf32>
    %81 = arith.mulf %77, %80 : vector<1x4xf32>
    %82 = arith.mulf %79, %79 : vector<1x4xf32>
    %83 = arith.subf %81, %82 : vector<1x4xf32>
    %c0_102 = arith.constant 0 : index
    %c0_103 = arith.constant 0 : index
    %84 = vector.load %arg5[%c0_102, %c0_103] : memref<1x4xf32, #tpu.memory_space<vmem>>, vector<1x4xf32>
    %cst_104 = arith.constant 9.99999974E-6 : f32
    %85 = vector.broadcast %cst_104 : f32 to vector<1x4xf32>
    %86 = arith.addf %83, %85 : vector<1x4xf32>
    %87 = math.rsqrt %86 : vector<1x4xf32>
    %88 = arith.mulf %84, %87 : vector<1x4xf32>
    %c0_105 = arith.constant 0 : index
    %c0_106 = arith.constant 0 : index
    %89 = vector.load %arg6[%c0_105, %c0_106] : memref<1x4xf32, #tpu.memory_space<vmem>>, vector<1x4xf32>
    %90 = arith.mulf %79, %88 : vector<1x4xf32>
    %91 = arith.subf %89, %90 : vector<1x4xf32>
    %92 = vector.broadcast %88 : vector<1x4xf32> to vector<512x4xf32>
    %93 = arith.mulf %72, %92 : vector<512x4xf32>
    %94 = vector.broadcast %91 : vector<1x4xf32> to vector<512x4xf32>
    %95 = arith.addf %93, %94 : vector<512x4xf32>
    %cst_107 = arith.constant 0.000000e+00 : f32
    %96 = vector.broadcast %cst_107 : f32 to vector<512x4xf32>
    %97 = arith.maximumf %95, %96 : vector<512x4xf32>
    %98 = vector.shape_cast %97 : vector<512x4xf32> to vector<2x16x16x4xf32>
    %c0_108 = arith.constant 0 : index
    %c0_109 = arith.constant 0 : index
    %c0_110 = arith.constant 0 : index
    %c0_111 = arith.constant 0 : index
    %99 = vector.load %arg0[%c0_108, %c0_109, %c0_110, %c0_111] : memref<2x16x16x4xf32, #tpu.memory_space<vmem>>, vector<2x16x16x4xf32>
    %100 = arith.addf %98, %99 : vector<2x16x16x4xf32>
    %c0_112 = arith.constant 0 : index
    %c0_113 = arith.constant 0 : index
    %c0_114 = arith.constant 0 : index
    %c0_115 = arith.constant 0 : index
    %101 = vector.load %arg7[%c0_112, %c0_113, %c0_114, %c0_115] : memref<2x16x16x4xf32, #tpu.memory_space<vmem>>, vector<2x16x16x4xf32>
    tpu.vector_store %arg7[%c0_112, %c0_113, %c0_114, %c0_115], %100 {strides = array<i32>} : memref<2x16x16x4xf32, #tpu.memory_space<vmem>>, vector<2x16x16x4xf32>,
    return
  }
}

</mosaic_0001>

<llo_original>
// kernel: resblock_forward.1
$region0: #{resblock_forward.1}
  #allocation0 [shape = 'u32[]', space=smem, size = 0x4, offset = 0x4, fixed_abs, tag = 'smem constant byte address 0x4 - core index']
  #allocation1 [shape = 'u32[72,128]{1,0:T(1,128)}', space=vmem, size = 0x9000, scoped, tag = 'internal scratch']
  #allocation2 [shape = 'f32[2,18,25,4]{3,2,1,0:T(8,128)}', space=vmem, size = 0x90000, scoped, tag = 'scratch operand']
  %s0 = inlined_call_operand.vmem [shape: f32[2,16,16,4], index: 0, kind: input, shape index: {}]
  %s1 = inlined_call_operand.vmem [shape: f32[36,4], index: 1, kind: input, shape index: {}]
  %s2 = inlined_call_operand.vmem [shape: f32[1,4], index: 2, kind: input, shape index: {}]
  %s3 = inlined_call_operand.vmem [shape: f32[1,4], index: 3, kind: input, shape index: {}]
  %s4 = inlined_call_operand.vmem [shape: f32[36,4], index: 4, kind: input, shape index: {}]
  %s5 = inlined_call_operand.vmem [shape: f32[1,4], index: 5, kind: input, shape index: {}]
  %s6 = inlined_call_operand.vmem [shape: f32[1,4], index: 6, kind: input, shape index: {}]
  %s7 = inlined_call_operand.vmem [shape: f32[2,16,16,4], index: 7, kind: output, shape index: {}]
  %s8 = sld [smem:[#allocation0]]
  $region38: #{resblock_forward.1} parent=0
    _
  %s10 = ssub.s32 1, %s8
  %s11 = scalar_select 0, %s10, %s8
  // Predicated region
  $region2: #{resblock_forward.1} parent=0 // pred_check
    _
  $region3: #{resblock_forward.1} parent=0 // pred_check_branch
    %13 = sbr.rel (0) target = $region5
  $region4: #{resblock_forward.1} parent=0 // pred_region
    _
  $region5: #{resblock_forward.1} parent=0 // pred_fallthru
    _
  // Predicated region
  $region6: #{resblock_forward.1} parent=0 // pred_check
    _
  $region7: #{resblock_forward.1} parent=0 // pred_check_branch
    %15 = sbr.rel (0) target = $region9
  $region8: #{resblock_forward.1} parent=0 // pred_region
    _
  $region9: #{resblock_forward.1} parent=0 // pred_fallthru
    _
  // Predicated region
  $region10: #{resblock_forward.1} parent=0 // pred_check
    _
  $region11: #{resblock_forward.1} parent=0 // pred_check_branch
    %17 = sbr.rel (0) target = $region13
  $region12: #{resblock_forward.1} parent=0 // pred_region
    _
  $region13: #{resblock_forward.1} parent=0 // pred_fallthru
    _
  // Predicated region
  $region14: #{resblock_forward.1} parent=0 // pred_check
    _
  $region15: #{resblock_forward.1} parent=0 // pred_check_branch
    %19 = sbr.rel (0) target = $region17
  $region16: #{resblock_forward.1} parent=0 // pred_region
    _
  $region17: #{resblock_forward.1} parent=0 // pred_fallthru
    _
  // Predicated region
  $region18: #{resblock_forward.1} parent=0 // pred_check
    _
  $region19: #{resblock_forward.1} parent=0 // pred_check_branch
    %21 = sbr.rel (0) target = $region21
  $region20: #{resblock_forward.1} parent=0 // pred_region
    _
  $region21: #{resblock_forward.1} parent=0 // pred_fallthru
    _
  // Predicated region
  $region22: #{resblock_forward.1} parent=0 // pred_check
    _
  $region23: #{resblock_forward.1} parent=0 // pred_check_branch
    %23 = sbr.rel (0) target = $region25
  $region24: #{resblock_forward.1} parent=0 // pred_region
    _
  $region25: #{resblock_forward.1} parent=0 // pred_fallthru
    _
  // Predicated region
  $region26: #{resblock_forward.1} parent=0 // pred_check
    _
  $region27: #{resblock_forward.1} parent=0 // pred_check_branch
    %25 = sbr.rel (0) target = $region29
  $region28: #{resblock_forward.1} parent=0 // pred_region
    _
  $region29: #{resblock_forward.1} parent=0 // pred_fallthru
    _
  %vm26 = vcmask 31744
  %27 = vst.msk [vmem:[#allocation2] sm:$0xff] %vm26, 0.0
  %28 = vst.msk [vmem:[#allocation2 + $0x8] sm:$0xff] %vm26, 0.0
  %29 = vst.msk [vmem:[#allocation2 + $0x10] sm:$0xff] %vm26, 0.0
  %vm30 = vcmask 24576
  %31 = vst.msk [vmem:[#allocation2 + $0x18] sm:$0x1] %vm30, 0.0
  %32 = vst.msk [vmem:[#allocation2 + $0x20] sm:$0xff] %vm26, 0.0
  %33 = vst.msk [vmem:[#allocation2 + $0x28] sm:$0xff] %vm26, 0.0
  %34 = vst.msk [vmem:[#allocation2 + $0x30] sm:$0xff] %vm26, 0.0
  %35 = vst.msk [vmem:[#allocation2 + $0x38] sm:$0x1] %vm30, 0.0
  %36 = vst.msk [vmem:[#allocation2 + $0x40] sm:$0xff] %vm26, 0.0
  %37 = vst.msk [vmem:[#allocation2 + $0x48] sm:$0xff] %vm26, 0.0
  %38 = vst.msk [vmem:[#allocation2 + $0x50] sm:$0xff] %vm26, 0.0
  %39 = vst.msk [vmem:[#allocation2 + $0x58] sm:$0x1] %vm30, 0.0
  %40 = vst.msk [vmem:[#allocation2 + $0x60] sm:$0xff] %vm26, 0.0
  %41 = vst.msk [vmem:[#allocation2 + $0x68] sm:$0xff] %vm26, 0.0
  %42 = vst.msk [vmem:[#allocation2 + $0x70] sm:$0xff] %vm26, 0.0
  %43 = vst.msk [vmem:[#allocation2 + $0x78] sm:$0x1] %vm30, 0.0
  %44 = vst.msk [vmem:[#allocation2 + $0x80] sm:$0xff] %vm26, 0.0
  %45 = vst.msk [vmem:[#allocation2 + $0x88] sm:$0xff] %vm26, 0.0
  %46 = vst.msk [vmem:[#allocation2 + $0x90] sm:$0xff] %vm26, 0.0
  %47 = vst.msk [vmem:[#allocation2 + $0x98] sm:$0x1] %vm30, 0.0
  %48 = vst.msk [vmem:[#allocation2 + $0xa0] sm:$0xff] %vm26, 0.0
  %49 = vst.msk [vmem:[#allocation2 + $0xa8] sm:$0xff] %vm26, 0.0
  %50 = vst.msk [vmem:[#allocation2 + $0xb0] sm:$0xff] %vm26, 0.0
  %51 = vst.msk [vmem:[#allocation2 + $0xb8] sm:$0x1] %vm30, 0.0
  %52 = vst.msk [vmem:[#allocation2 + $0xc0] sm:$0xff] %vm26, 0.0
  %53 = vst.msk [vmem:[#allocation2 + $0xc8] sm:$0xff] %vm26, 0.0
  %54 = vst.msk [vmem:[#allocation2 + $0xd0] sm:$0xff] %vm26, 0.0
  %55 = vst.msk [vmem:[#allocation2 + $0xd8] sm:$0x1] %vm30, 0.0
  %56 = vst.msk [vmem:[#allocation2 + $0xe0] sm:$0xff] %vm26, 0.0
  %57 = vst.msk [vmem:[#allocation2 + $0xe8] sm:$0xff] %vm26, 0.0
  %58 = vst.msk [vmem:[#allocation2 + $0xf0] sm:$0xff] %vm26, 0.0
  %59 = vst.msk [vmem:[#allocation2 + $0xf8] sm:$0x1] %vm30, 0.0
  %60 = vst.msk [vmem:[#allocation2 + $0x100] sm:$0xff] %vm26, 0.0
  %61 = vst.msk [vmem:[#allocation2 + $0x108] sm:$0xff] %vm26, 0.0
  %62 = vst.msk [vmem:[#allocation2 + $0x110] sm:$0xff] %vm26, 0.0
  %63 = vst.msk [vmem:[#allocation2 + $0x118] sm:$0x1] %vm30, 0.0
  %64 = vst.msk [vmem:[#allocation2 + $0x120] sm:$0xff] %vm26, 0.0
  %65 = vst.msk [vmem:[#allocation2 + $0x128] sm:$0xff] %vm26, 0.0
  %66 = vst.msk [vmem:[#allocation2 + $0x130] sm:$0xff] %vm26, 0.0
  %67 = vst.msk [vmem:[#allocation2 + $0x138] sm:$0x1] %vm30, 0.0
  %68 = vst.msk [vmem:[#allocation2 + $0x140] sm:$0xff] %vm26, 0.0
  %69 = vst.msk [vmem:[#allocation2 + $0x148] sm:$0xff] %vm26, 0.0
  %70 = vst.msk [vmem:[#allocation2 + $0x150] sm:$0xff] %vm26, 0.0
  %71 = vst.msk [vmem:[#allocation2 + $0x158] sm:$0x1] %vm30, 0.0
  %72 = vst.msk [vmem:[#allocation2 + $0x160] sm:$0xff] %vm26, 0.0
  %73 = vst.msk [vmem:[#allocation2 + $0x168] sm:$0xff] %vm26, 0.0
  %74 = vst.msk [vmem:[#allocation2 + $0x170] sm:$0xff] %vm26, 0.0
  %75 = vst.msk [vmem:[#allocation2 + $0x178] sm:$0x1] %vm30, 0.0
  %76 = vst.msk [vmem:[#allocation2 + $0x180] sm:$0xff] %vm26, 0.0
  %77 = vst.msk [vmem:[#allocation2 + $0x188] sm:$0xff] %vm26, 0.0
  %78 = vst.msk [vmem:[#allocation2 + $0x190] sm:$0xff] %vm26, 0.0
  %79 = vst.msk [vmem:[#allocation2 + $0x198] sm:$0x1] %vm30, 0.0
  %80 = vst.msk [vmem:[#allocation2 + $0x1a0] sm:$0xff] %vm26, 0.0
  %81 = vst.msk [vmem:[#allocation2 + $0x1a8] sm:$0xff] %vm26, 0.0
  %82 = vst.msk [vmem:[#allocation2 + $0x1b0] sm:$0xff] %vm26, 0.0
  %83 = vst.msk [vmem:[#allocation2 + $0x1b8] sm:$0x1] %vm30, 0.0
  %84 = vst.msk [vmem:[#allocation2 + $0x1c0] sm:$0xff] %vm26, 0.0
  %85 = vst.msk [vmem:[#allocation2 + $0x1c8] sm:$0xff] %vm26, 0.0
  %86 = vst.msk [vmem:[#allocation2 + $0x1d0] sm:$0xff] %vm26, 0.0
  %87 = vst.msk [vmem:[#allocation2 + $0x1d8] sm:$0x1] %vm30, 0.0
  %88 = vst.msk [vmem:[#allocation2 + $0x1e0] sm:$0xff] %vm26, 0.0
  %89 = vst.msk [vmem:[#allocation2 + $0x1e8] sm:$0xff] %vm26, 0.0
  %90 = vst.msk [vmem:[#allocation2 + $0x1f0] sm:$0xff] %vm26, 0.0
  %91 = vst.msk [vmem:[#allocation2 + $0x1f8] sm:$0x1] %vm30, 0.0
  %92 = vst.msk [vmem:[#allocation2 + $0x200] sm:$0xff] %vm26, 0.0
  %93 = vst.msk [vmem:[#allocation2 + $0x208] sm:$0xff] %vm26, 0.0
  %94 = vst.msk [vmem:[#allocation2 + $0x210] sm:$0xff] %vm26, 0.0
  %95 = vst.msk [vmem:[#allocation2 + $0x218] sm:$0x1] %vm30, 0.0
  %96 = vst.msk [vmem:[#allocation2 + $0x220] sm:$0xff] %vm26, 0.0
  %97 = vst.msk [vmem:[#allocation2 + $0x228] sm:$0xff] %vm26, 0.0
  %98 = vst.msk [vmem:[#allocation2 + $0x230] sm:$0xff] %vm26, 0.0
  %99 = vst.msk [vmem:[#allocation2 + $0x238] sm:$0x1] %vm30, 0.0
  %100 = vst.msk [vmem:[#allocation2 + $0x240] sm:$0xff] %vm26, 0.0
  %101 = vst.msk [vmem:[#allocation2 + $0x248] sm:$0xff] %vm26, 0.0
  %102 = vst.msk [vmem:[#allocation2 + $0x250] sm:$0xff] %vm26, 0.0
  %103 = vst.msk [vmem:[#allocation2 + $0x258] sm:$0x1] %vm30, 0.0
  %104 = vst.msk [vmem:[#allocation2 + $0x260] sm:$0xff] %vm26, 0.0
  %105 = vst.msk [vmem:[#allocation2 + $0x268] sm:$0xff] %vm26, 0.0
  %106 = vst.msk [vmem:[#allocation2 + $0x270] sm:$0xff] %vm26, 0.0
  %107 = vst.msk [vmem:[#allocation2 + $0x278] sm:$0x1] %vm30, 0.0
  %108 = vst.msk [vmem:[#allocation2 + $0x280] sm:$0xff] %vm26, 0.0
  %109 = vst.msk [vmem:[#allocation2 + $0x288] sm:$0xff] %vm26, 0.0
  %110 = vst.msk [vmem:[#allocation2 + $0x290] sm:$0xff] %vm26, 0.0
  %111 = vst.msk [vmem:[#allocation2 + $0x298] sm:$0x1] %vm30, 0.0
  %112 = vst.msk [vmem:[#allocation2 + $0x2a0] sm:$0xff] %vm26, 0.0
  %113 = vst.msk [vmem:[#allocation2 + $0x2a8] sm:$0xff] %vm26, 0.0
  %114 = vst.msk [vmem:[#allocation2 + $0x2b0] sm:$0xff] %vm26, 0.0
  %115 = vst.msk [vmem:[#allocation2 + $0x2b8] sm:$0x1] %vm30, 0.0
  %116 = vst.msk [vmem:[#allocation2 + $0x2c0] sm:$0xff] %vm26, 0.0
  %117 = vst.msk [vmem:[#allocation2 + $0x2c8] sm:$0xff] %vm26, 0.0
  %118 = vst.msk [vmem:[#allocation2 + $0x2d0] sm:$0xff] %vm26, 0.0
  %119 = vst.msk [vmem:[#allocation2 + $0x2d8] sm:$0x1] %vm30, 0.0
  %120 = vst.msk [vmem:[#allocation2 + $0x2e0] sm:$0xff] %vm26, 0.0
  %121 = vst.msk [vmem:[#allocation2 + $0x2e8] sm:$0xff] %vm26, 0.0
  %122 = vst.msk [vmem:[#allocation2 + $0x2f0] sm:$0xff] %vm26, 0.0
  %123 = vst.msk [vmem:[#allocation2 + $0x2f8] sm:$0x1] %vm30, 0.0
  %124 = vst.msk [vmem:[#allocation2 + $0x300] sm:$0xff] %vm26, 0.0
  %125 = vst.msk [vmem:[#allocation2 + $0x308] sm:$0xff] %vm26, 0.0
  %126 = vst.msk [vmem:[#allocation2 + $0x310] sm:$0xff] %vm26, 0.0
  %127 = vst.msk [vmem:[#allocation2 + $0x318] sm:$0x1] %vm30, 0.0
  %128 = vst.msk [vmem:[#allocation2 + $0x320] sm:$0xff] %vm26, 0.0
  %129 = vst.msk [vmem:[#allocation2 + $0x328] sm:$0xff] %vm26, 0.0
  %130 = vst.msk [vmem:[#allocation2 + $0x330] sm:$0xff] %vm26, 0.0
  %131 = vst.msk [vmem:[#allocation2 + $0x338] sm:$0x1] %vm30, 0.0
  %132 = vst.msk [vmem:[#allocation2 + $0x340] sm:$0xff] %vm26, 0.0
  %133 = vst.msk [vmem:[#allocation2 + $0x348] sm:$0xff] %vm26, 0.0
  %134 = vst.msk [vmem:[#allocation2 + $0x350] sm:$0xff] %vm26, 0.0
  %135 = vst.msk [vmem:[#allocation2 + $0x358] sm:$0x1] %vm30, 0.0
  %136 = vst.msk [vmem:[#allocation2 + $0x360] sm:$0xff] %vm26, 0.0
  %137 = vst.msk [vmem:[#allocation2 + $0x368] sm:$0xff] %vm26, 0.0
  %138 = vst.msk [vmem:[#allocation2 + $0x370] sm:$0xff] %vm26, 0.0
  %139 = vst.msk [vmem:[#allocation2 + $0x378] sm:$0x1] %vm30, 0.0
  %140 = vst.msk [vmem:[#allocation2 + $0x380] sm:$0xff] %vm26, 0.0
  %141 = vst.msk [vmem:[#allocation2 + $0x388] sm:$0xff] %vm26, 0.0
  %142 = vst.msk [vmem:[#allocation2 + $0x390] sm:$0xff] %vm26, 0.0
  %143 = vst.msk [vmem:[#allocation2 + $0x398] sm:$0x1] %vm30, 0.0
  %144 = vst.msk [vmem:[#allocation2 + $0x3a0] sm:$0xff] %vm26, 0.0
  %145 = vst.msk [vmem:[#allocation2 + $0x3a8] sm:$0xff] %vm26, 0.0
  %146 = vst.msk [vmem:[#allocation2 + $0x3b0] sm:$0xff] %vm26, 0.0
  %147 = vst.msk [vmem:[#allocation2 + $0x3b8] sm:$0x1] %vm30, 0.0
  %148 = vst.msk [vmem:[#allocation2 + $0x3c0] sm:$0xff] %vm26, 0.0
  %149 = vst.msk [vmem:[#allocation2 + $0x3c8] sm:$0xff] %vm26, 0.0
  %150 = vst.msk [vmem:[#allocation2 + $0x3d0] sm:$0xff] %vm26, 0.0
  %151 = vst.msk [vmem:[#allocation2 + $0x3d8] sm:$0x1] %vm30, 0.0
  %152 = vst.msk [vmem:[#allocation2 + $0x3e0] sm:$0xff] %vm26, 0.0
  %153 = vst.msk [vmem:[#allocation2 + $0x3e8] sm:$0xff] %vm26, 0.0
  %154 = vst.msk [vmem:[#allocation2 + $0x3f0] sm:$0xff] %vm26, 0.0
  %155 = vst.msk [vmem:[#allocation2 + $0x3f8] sm:$0x1] %vm30, 0.0
  %156 = vst.msk [vmem:[#allocation2 + $0x400] sm:$0xff] %vm26, 0.0
  %157 = vst.msk [vmem:[#allocation2 + $0x408] sm:$0xff] %vm26, 0.0
  %158 = vst.msk [vmem:[#allocation2 + $0x410] sm:$0xff] %vm26, 0.0
  %159 = vst.msk [vmem:[#allocation2 + $0x418] sm:$0x1] %vm30, 0.0
  %160 = vst.msk [vmem:[#allocation2 + $0x420] sm:$0xff] %vm26, 0.0
  %161 = vst.msk [vmem:[#allocation2 + $0x428] sm:$0xff] %vm26, 0.0
  %162 = vst.msk [vmem:[#allocation2 + $0x430] sm:$0xff] %vm26, 0.0
  %163 = vst.msk [vmem:[#allocation2 + $0x438] sm:$0x1] %vm30, 0.0
  %164 = vst.msk [vmem:[#allocation2 + $0x440] sm:$0xff] %vm26, 0.0
  %165 = vst.msk [vmem:[#allocation2 + $0x448] sm:$0xff] %vm26, 0.0
  %166 = vst.msk [vmem:[#allocation2 + $0x450] sm:$0xff] %vm26, 0.0
  %167 = vst.msk [vmem:[#allocation2 + $0x458] sm:$0x1] %vm30, 0.0
  %168 = vst.msk [vmem:[#allocation2 + $0x460] sm:$0xff] %vm26, 0.0
  %169 = vst.msk [vmem:[#allocation2 + $0x468] sm:$0xff] %vm26, 0.0
  %170 = vst.msk [vmem:[#allocation2 + $0x470] sm:$0xff] %vm26, 0.0
  %171 = vst.msk [vmem:[#allocation2 + $0x478] sm:$0x1] %vm30, 0.0
  %v172 = vld [vmem:[%s0] sm:$0xff]
  %v173 = vld [vmem:[%s0 + $0x8] sm:$0xff]
  %v174 = vld [vmem:[%s0 + $0x10] sm:$0xff]
  %v175 = vld [vmem:[%s0 + $0x18] sm:$0xff]
  %v176 = vld [vmem:[%s0 + $0x20] sm:$0xff]
  %v177 = vld [vmem:[%s0 + $0x28] sm:$0xff]
  %v178 = vld [vmem:[%s0 + $0x30] sm:$0xff]
  %v179 = vld [vmem:[%s0 + $0x38] sm:$0xff]
  %v180 = vld [vmem:[%s0 + $0x40] sm:$0xff]
  %v181 = vld [vmem:[%s0 + $0x48] sm:$0xff]
  %v182 = vld [vmem:[%s0 + $0x50] sm:$0xff]
  %v183 = vld [vmem:[%s0 + $0x58] sm:$0xff]
  %v184 = vld [vmem:[%s0 + $0x60] sm:$0xff]
  %v185 = vld [vmem:[%s0 + $0x68] sm:$0xff]
  %v186 = vld [vmem:[%s0 + $0x70] sm:$0xff]
  %v187 = vld [vmem:[%s0 + $0x78] sm:$0xff]
  %v188 = vld [vmem:[%s0 + $0x80] sm:$0xff]
  %v189 = vld [vmem:[%s0 + $0x88] sm:$0xff]
  %v190 = vld [vmem:[%s0 + $0x90] sm:$0xff]
  %v191 = vld [vmem:[%s0 + $0x98] sm:$0xff]
  %v192 = vld [vmem:[%s0 + $0xa0] sm:$0xff]
  %v193 = vld [vmem:[%s0 + $0xa8] sm:$0xff]
  %v194 = vld [vmem:[%s0 + $0xb0] sm:$0xff]
  %v195 = vld [vmem:[%s0 + $0xb8] sm:$0xff]
  %v196 = vld [vmem:[%s0 + $0xc0] sm:$0xff]
  %v197 = vld [vmem:[%s0 + $0xc8] sm:$0xff]
  %v198 = vld [vmem:[%s0 + $0xd0] sm:$0xff]
  %v199 = vld [vmem:[%s0 + $0xd8] sm:$0xff]
  %v200 = vld [vmem:[%s0 + $0xe0] sm:$0xff]
  %v201 = vld [vmem:[%s0 + $0xe8] sm:$0xff]
  %v202 = vld [vmem:[%s0 + $0xf0] sm:$0xff]
  %v203 = vld [vmem:[%s0 + $0xf8] sm:$0xff]
  %v204 = vld [vmem:[%s0 + $0x100] sm:$0xff]
  %v205 = vld [vmem:[%s0 + $0x108] sm:$0xff]
  %v206 = vld [vmem:[%s0 + $0x110] sm:$0xff]
  %v207 = vld [vmem:[%s0 + $0x118] sm:$0xff]
  %v208 = vld [vmem:[%s0 + $0x120] sm:$0xff]
  %v209 = vld [vmem:[%s0 + $0x128] sm:$0xff]
  %v210 = vld [vmem:[%s0 + $0x130] sm:$0xff]
  %v211 = vld [vmem:[%s0 + $0x138] sm:$0xff]
  %v212 = vld [vmem:[%s0 + $0x140] sm:$0xff]
  %v213 = vld [vmem:[%s0 + $0x148] sm:$0xff]
  %v214 = vld [vmem:[%s0 + $0x150] sm:$0xff]
  %v215 = vld [vmem:[%s0 + $0x158] sm:$0xff]
  %v216 = vld [vmem:[%s0 + $0x160] sm:$0xff]
  %v217 = vld [vmem:[%s0 + $0x168] sm:$0xff]
  %v218 = vld [vmem:[%s0 + $0x170] sm:$0xff]
  %v219 = vld [vmem:[%s0 + $0x178] sm:$0xff]
  %v220 = vld [vmem:[%s0 + $0x180] sm:$0xff]
  %v221 = vld [vmem:[%s0 + $0x188] sm:$0xff]
  %v222 = vld [vmem:[%s0 + $0x190] sm:$0xff]
  %v223 = vld [vmem:[%s0 + $0x198] sm:$0xff]
  %v224 = vld [vmem:[%s0 + $0x1a0] sm:$0xff]
  %v225 = vld [vmem:[%s0 + $0x1a8] sm:$0xff]
  %v226 = vld [vmem:[%s0 + $0x1b0] sm:$0xff]
  %v227 = vld [vmem:[%s0 + $0x1b8] sm:$0xff]
  %v228 = vld [vmem:[%s0 + $0x1c0] sm:$0xff]
  %v229 = vld [vmem:[%s0 + $0x1c8] sm:$0xff]
  %v230 = vld [vmem:[%s0 + $0x1d0] sm:$0xff]
  %v231 = vld [vmem:[%s0 + $0x1d8] sm:$0xff]
  %v232 = vld [vmem:[%s0 + $0x1e0] sm:$0xff]
  %v233 = vld [vmem:[%s0 + $0x1e8] sm:$0xff]
  %v234 = vld [vmem:[%s0 + $0x1f0] sm:$0xff]
  %v235 = vld [vmem:[%s0 + $0x1f8] sm:$0xff]
  %s236 = scalar_lea.vmem [#allocation2], 32
  %237 = vst.msk [vmem:[%s236 + $0x8] sm:$0xff] %vm26, %v172
  %238 = vst.msk [vmem:[%s236 + $0x10] sm:$0xff] %vm26, %v173
  %239 = vst.msk [vmem:[%s236 + $0x28] sm:$0xff] %vm26, %v174
  %240 = vst.msk [vmem:[%s236 + $0x30] sm:$0xff] %vm26, %v175
  %241 = vst.msk [vmem:[%s236 + $0x48] sm:$0xff] %vm26, %v176
  %242 = vst.msk [vmem:[%s236 + $0x50] sm:$0xff] %vm26, %v177
  %243 = vst.msk [vmem:[%s236 + $0x68] sm:$0xff] %vm26, %v178
  %244 = vst.msk [vmem:[%s236 + $0x70] sm:$0xff] %vm26, %v179
  %245 = vst.msk [vmem:[%s236 + $0x88] sm:$0xff] %vm26, %v180
  %246 = vst.msk [vmem:[%s236 + $0x90] sm:$0xff] %vm26, %v181
  %247 = vst.msk [vmem:[%s236 + $0xa8] sm:$0xff] %vm26, %v182
  %248 = vst.msk [vmem:[%s236 + $0xb0] sm:$0xff] %vm26, %v183
  %249 = vst.msk [vmem:[%s236 + $0xc8] sm:$0xff] %vm26, %v184
  %250 = vst.msk [vmem:[%s236 + $0xd0] sm:$0xff] %vm26, %v185
  %251 = vst.msk [vmem:[%s236 + $0xe8] sm:$0xff] %vm26, %v186
  %252 = vst.msk [vmem:[%s236 + $0xf0] sm:$0xff] %vm26, %v187
  %253 = vst.msk [vmem:[%s236 + $0x108] sm:$0xff] %vm26, %v188
  %254 = vst.msk [vmem:[%s236 + $0x110] sm:$0xff] %vm26, %v189
  %255 = vst.msk [vmem:[%s236 + $0x128] sm:$0xff] %vm26, %v190
  %256 = vst.msk [vmem:[%s236 + $0x130] sm:$0xff] %vm26, %v191
  %257 = vst.msk [vmem:[%s236 + $0x148] sm:$0xff] %vm26, %v192
  %258 = vst.msk [vmem:[%s236 + $0x150] sm:$0xff] %vm26, %v193
  %259 = vst.msk [vmem:[%s236 + $0x168] sm:$0xff] %vm26, %v194
  %260 = vst.msk [vmem:[%s236 + $0x170] sm:$0xff] %vm26, %v195
  %261 = vst.msk [vmem:[%s236 + $0x188] sm:$0xff] %vm26, %v196
  %262 = vst.msk [vmem:[%s236 + $0x190] sm:$0xff] %vm26, %v197
  %263 = vst.msk [vmem:[%s236 + $0x1a8] sm:$0xff] %vm26, %v198
  %264 = vst.msk [vmem:[%s236 + $0x1b0] sm:$0xff] %vm26, %v199
  %265 = vst.msk [vmem:[%s236 + $0x1c8] sm:$0xff] %vm26, %v200
  %266 = vst.msk [vmem:[%s236 + $0x1d0] sm:$0xff] %vm26, %v201
  %267 = vst.msk [vmem:[%s236 + $0x1e8] sm:$0xff] %vm26, %v202
  %268 = vst.msk [vmem:[%s236 + $0x1f0] sm:$0xff] %vm26, %v203
  %269 = vst.msk [vmem:[%s236 + $0x248] sm:$0xff] %vm26, %v204
  %270 = vst.msk [vmem:[%s236 + $0x250] sm:$0xff] %vm26, %v205
  %271 = vst.msk [vmem:[%s236 + $0x268] sm:$0xff] %vm26, %v206
  %272 = vst.msk [vmem:[%s236 + $0x270] sm:$0xff] %vm26, %v207
  %273 = vst.msk [vmem:[%s236 + $0x288] sm:$0xff] %vm26, %v208
  %274 = vst.msk [vmem:[%s236 + $0x290] sm:$0xff] %vm26, %v209
  %275 = vst.msk [vmem:[%s236 + $0x2a8] sm:$0xff] %vm26, %v210
  %276 = vst.msk [vmem:[%s236 + $0x2b0] sm:$0xff] %vm26, %v211
  %277 = vst.msk [vmem:[%s236 + $0x2c8] sm:$0xff] %vm26, %v212
  %278 = vst.msk [vmem:[%s236 + $0x2d0] sm:$0xff] %vm26, %v213
  %279 = vst.msk [vmem:[%s236 + $0x2e8] sm:$0xff] %vm26, %v214
  %280 = vst.msk [vmem:[%s236 + $0x2f0] sm:$0xff] %vm26, %v215
  %281 = vst.msk [vmem:[%s236 + $0x308] sm:$0xff] %vm26, %v216
  %282 = vst.msk [vmem:[%s236 + $0x310] sm:$0xff] %vm26, %v217
  %283 = vst.msk [vmem:[%s236 + $0x328] sm:$0xff] %vm26, %v218
  %284 = vst.msk [vmem:[%s236 + $0x330] sm:$0xff] %vm26, %v219
  %285 = vst.msk [vmem:[%s236 + $0x348] sm:$0xff] %vm26, %v220
  %286 = vst.msk [vmem:[%s236 + $0x350] sm:$0xff] %vm26, %v221
  %287 = vst.msk [vmem:[%s236 + $0x368] sm:$0xff] %vm26, %v222
  %288 = vst.msk [vmem:[%s236 + $0x370] sm:$0xff] %vm26, %v223
  %289 = vst.msk [vmem:[%s236 + $0x388] sm:$0xff] %vm26, %v224
  %290 = vst.msk [vmem:[%s236 + $0x390] sm:$0xff] %vm26, %v225
  %291 = vst.msk [vmem:[%s236 + $0x3a8] sm:$0xff] %vm26, %v226
  %292 = vst.msk [vmem:[%s236 + $0x3b0] sm:$0xff] %vm26, %v227
  %293 = vst.msk [vmem:[%s236 + $0x3c8] sm:$0xff] %vm26, %v228
  %294 = vst.msk [vmem:[%s236 + $0x3d0] sm:$0xff] %vm26, %v229
  %295 = vst.msk [vmem:[%s236 + $0x3e8] sm:$0xff] %vm26, %v230
  %296 = vst.msk [vmem:[%s236 + $0x3f0] sm:$0xff] %vm26, %v231
  %297 = vst.msk [vmem:[%s236 + $0x408] sm:$0xff] %vm26, %v232
  %298 = vst.msk [vmem:[%s236 + $0x410] sm:$0xff] %vm26, %v233
  %299 = vst.msk [vmem:[%s236 + $0x428] sm:$0xff] %vm26, %v234
  %300 = vst.msk [vmem:[%s236 + $0x430] sm:$0xff] %vm26, %v235
  %v301 = vld [vmem:[#allocation2 + $0x7] sm:$0xff]
  %v302 = vld [vmem:[#allocation2 + $0xf] sm:$0xff]
  %v303 = vld [vmem:[#allocation2 + $0x27] sm:$0xff]
  %v304 = vld [vmem:[#allocation2 + $0x2f] sm:$0xff]
  %v305 = vld [vmem:[#allocation2 + $0x47] sm:$0xff]
  %v306 = vld [vmem:[#allocation2 + $0x4f] sm:$0xff]
  %v307 = vld [vmem:[#allocation2 + $0x67] sm:$0xff]
  %v308 = vld [vmem:[#allocation2 + $0x6f] sm:$0xff]
  %v309 = vld [vmem:[#allocation2 + $0x87] sm:$0xff]
  %v310 = vld [vmem:[#allocation2 + $0x8f] sm:$0xff]
  %v311 = vld [vmem:[#allocation2 + $0xa7] sm:$0xff]
  %v312 = vld [vmem:[#allocation2 + $0xaf] sm:$0xff]
  %v313 = vld [vmem:[#allocation2 + $0xc7] sm:$0xff]
  %v314 = vld [vmem:[#allocation2 + $0xcf] sm:$0xff]
  %v315 = vld [vmem:[#allocation2 + $0xe7] sm:$0xff]
  %v316 = vld [vmem:[#allocation2 + $0xef] sm:$0xff]
  %v317 = vld [vmem:[#allocation2 + $0x107] sm:$0xff]
  %v318 = vld [vmem:[#allocation2 + $0x10f] sm:$0xff]
  %v319 = vld [vmem:[#allocation2 + $0x127] sm:$0xff]
  %v320 = vld [vmem:[#allocation2 + $0x12f] sm:$0xff]
  %v321 = vld [vmem:[#allocation2 + $0x147] sm:$0xff]
  %v322 = vld [vmem:[#allocation2 + $0x14f] sm:$0xff]
  %v323 = vld [vmem:[#allocation2 + $0x167] sm:$0xff]
  %v324 = vld [vmem:[#allocation2 + $0x16f] sm:$0xff]
  %v325 = vld [vmem:[#allocation2 + $0x187] sm:$0xff]
  %v326 = vld [vmem:[#allocation2 + $0x18f] sm:$0xff]
  %v327 = vld [vmem:[#allocation2 + $0x1a7] sm:$0xff]
  %v328 = vld [vmem:[#allocation2 + $0x1af] sm:$0xff]
  %v329 = vld [vmem:[#allocation2 + $0x1c7] sm:$0xff]
  %v330 = vld [vmem:[#allocation2 + $0x1cf] sm:$0xff]
  %v331 = vld [vmem:[#allocation2 + $0x1e7] sm:$0xff]
  %v332 = vld [vmem:[#allocation2 + $0x1ef] sm:$0xff]
  %v333 = vld [vmem:[#allocation2 + $0x247] sm:$0xff]
  %v334 = vld [vmem:[#allocation2 + $0x24f] sm:$0xff]
  %v335 = vld [vmem:[#allocation2 + $0x267] sm:$0xff]
  %v336 = vld [vmem:[#allocation2 + $0x26f] sm:$0xff]
  %v337 = vld [vmem:[#allocation2 + $0x287] sm:$0xff]
  %v338 = vld [vmem:[#allocation2 + $0x28f] sm:$0xff]
  %v339 = vld [vmem:[#allocation2 + $0x2a7] sm:$0xff]
  %v340 = vld [vmem:[#allocation2 + $0x2af] sm:$0xff]
  %v341 = vld [vmem:[#allocation2 + $0x2c7] sm:$0xff]
  %v342 = vld [vmem:[#allocation2 + $0x2cf] sm:$0xff]
  %v343 = vld [vmem:[#allocation2 + $0x2e7] sm:$0xff]
  %v344 = vld [vmem:[#allocation2 + $0x2ef] sm:$0xff]
  %v345 = vld [vmem:[#allocation2 + $0x307] sm:$0xff]
  %v346 = vld [vmem:[#allocation2 + $0x30f] sm:$0xff]
  %v347 = vld [vmem:[#allocation2 + $0x327] sm:$0xff]
  %v348 = vld [vmem:[#allocation2 + $0x32f] sm:$0xff]
  %v349 = vld [vmem:[#allocation2 + $0x347] sm:$0xff]
  %v350 = vld [vmem:[#allocation2 + $0x34f] sm:$0xff]
  %v351 = vld [vmem:[#allocation2 + $0x367] sm:$0xff]
  %v352 = vld [vmem:[#allocation2 + $0x36f] sm:$0xff]
  %v353 = vld [vmem:[#allocation2 + $0x387] sm:$0xff]
  %v354 = vld [vmem:[#allocation2 + $0x38f] sm:$0xff]
  %v355 = vld [vmem:[#allocation2 + $0x3a7] sm:$0xff]
  %v356 = vld [vmem:[#allocation2 + $0x3af] sm:$0xff]
  %v357 = vld [vmem:[#allocation2 + $0x3c7] sm:$0xff]
  %v358 = vld [vmem:[#allocation2 + $0x3cf] sm:$0xff]
  %v359 = vld [vmem:[#allocation2 + $0x3e7] sm:$0xff]
  %v360 = vld [vmem:[#allocation2 + $0x3ef] sm:$0xff]
  %v361 = vld [vmem:[#allocation2 + $0x407] sm:$0xff]
  %v362 = vld [vmem:[#allocation2 + $0x40f] sm:$0xff]
  %v363 = vld [vmem:[#allocation2 + $0x427] sm:$0xff]
  %v364 = vld [vmem:[#allocation2 + $0x42f] sm:$0xff]
  %v365 = vld [vmem:[#allocation2 + $0x8] sm:$0xff]
  %v366 = vld [vmem:[#allocation2 + $0x10] sm:$0xff]
  %v367 = vld [vmem:[#allocation2 + $0x28] sm:$0xff]
  %v368 = vld [vmem:[#allocation2 + $0x30] sm:$0xff]
  %v369 = vld [vmem:[#allocation2 + $0x48] sm:$0xff]
  %v370 = vld [vmem:[#allocation2 + $0x50] sm:$0xff]
  %v371 = vld [vmem:[#allocation2 + $0x68] sm:$0xff]
  %v372 = vld [vmem:[#allocation2 + $0x70] sm:$0xff]
  %v373 = vld [vmem:[#allocation2 + $0x88] sm:$0xff]
  %v374 = vld [vmem:[#allocation2 + $0x90] sm:$0xff]
  %v375 = vld [vmem:[#allocation2 + $0xa8] sm:$0xff]
  %v376 = vld [vmem:[#allocation2 + $0xb0] sm:$0xff]
  %v377 = vld [vmem:[#allocation2 + $0xc8] sm:$0xff]
  %v378 = vld [vmem:[#allocation2 + $0xd0] sm:$0xff]
  %v379 = vld [vmem:[#allocation2 + $0xe8] sm:$0xff]
  %v380 = vld [vmem:[#allocation2 + $0xf0] sm:$0xff]
  %v381 = vld [vmem:[#allocation2 + $0x108] sm:$0xff]
  %v382 = vld [vmem:[#allocation2 + $0x110] sm:$0xff]
  %v383 = vld [vmem:[#allocation2 + $0x128] sm:$0xff]
  %v384 = vld [vmem:[#allocation2 + $0x130] sm:$0xff]
  %v385 = vld [vmem:[#allocation2 + $0x148] sm:$0xff]
  %v386 = vld [vmem:[#allocation2 + $0x150] sm:$0xff]
  %v387 = vld [vmem:[#allocation2 + $0x168] sm:$0xff]
  %v388 = vld [vmem:[#allocation2 + $0x170] sm:$0xff]
  %v389 = vld [vmem:[#allocation2 + $0x188] sm:$0xff]
  %v390 = vld [vmem:[#allocation2 + $0x190] sm:$0xff]
  %v391 = vld [vmem:[#allocation2 + $0x1a8] sm:$0xff]
  %v392 = vld [vmem:[#allocation2 + $0x1b0] sm:$0xff]
  %v393 = vld [vmem:[#allocation2 + $0x1c8] sm:$0xff]
  %v394 = vld [vmem:[#allocation2 + $0x1d0] sm:$0xff]
  %v395 = vld [vmem:[#allocation2 + $0x1e8] sm:$0xff]
  %v396 = vld [vmem:[#allocation2 + $0x1f0] sm:$0xff]
  %v397 = vld [vmem:[#allocation2 + $0x248] sm:$0xff]
  %v398 = vld [vmem:[#allocation2 + $0x250] sm:$0xff]
  %v399 = vld [vmem:[#allocation2 + $0x268] sm:$0xff]
  %v400 = vld [vmem:[#allocation2 + $0x270] sm:$0xff]
  %v401 = vld [vmem:[#allocation2 + $0x288] sm:$0xff]
  %v402 = vld [vmem:[#allocation2 + $0x290] sm:$0xff]
  %v403 = vld [vmem:[#allocation2 + $0x2a8] sm:$0xff]
  %v404 = vld [vmem:[#allocation2 + $0x2b0] sm:$0xff]
  %v405 = vld [vmem:[#allocation2 + $0x2c8] sm:$0xff]
  %v406 = vld [vmem:[#allocation2 + $0x2d0] sm:$0xff]
  %v407 = vld [vmem:[#allocation2 + $0x2e8] sm:$0xff]
  %v408 = vld [vmem:[#allocation2 + $0x2f0] sm:$0xff]
  %v409 = vld [vmem:[#allocation2 + $0x308] sm:$0xff]
  %v410 = vld [vmem:[#allocation2 + $0x310] sm:$0xff]
  %v411 = vld [vmem:[#allocation2 + $0x328] sm:$0xff]
  %v412 = vld [vmem:[#allocation2 + $0x330] sm:$0xff]
  %v413 = vld [vmem:[#allocation2 + $0x348] sm:$0xff]
  %v414 = vld [vmem:[#allocation2 + $0x350] sm:$0xff]
  %v415 = vld [vmem:[#allocation2 + $0x368] sm:$0xff]
  %v416 = vld [vmem:[#allocation2 + $0x370] sm:$0xff]
  %v417 = vld [vmem:[#allocation2 + $0x388] sm:$0xff]
  %v418 = vld [vmem:[#allocation2 + $0x390] sm:$0xff]
  %v419 = vld [vmem:[#allocation2 + $0x3a8] sm:$0xff]
  %v420 = vld [vmem:[#allocation2 + $0x3b0] sm:$0xff]
  %v421 = vld [vmem:[#allocation2 + $0x3c8] sm:$0xff]
  %v422 = vld [vmem:[#allocation2 + $0x3d0] sm:$0xff]
  %v423 = vld [vmem:[#allocation2 + $0x3e8] sm:$0xff]
  %v424 = vld [vmem:[#allocation2 + $0x3f0] sm:$0xff]
  %v425 = vld [vmem:[#allocation2 + $0x408] sm:$0xff]
  %v426 = vld [vmem:[#allocation2 + $0x410] sm:$0xff]
  %v427 = vld [vmem:[#allocation2 + $0x428] sm:$0xff]
  %v428 = vld [vmem:[#allocation2 + $0x430] sm:$0xff]
  %v429 = vld [vmem:[#allocation2 + $0x9] sm:$0xff]
  %v430 = vld [vmem:[#allocation2 + $0x11] sm:$0xff]
  %v431 = vld [vmem:[#allocation2 + $0x29] sm:$0xff]
  %v432 = vld [vmem:[#allocation2 + $0x31] sm:$0xff]
  %v433 = vld [vmem:[#allocation2 + $0x49] sm:$0xff]
  %v434 = vld [vmem:[#allocation2 + $0x51] sm:$0xff]
  %v435 = vld [vmem:[#allocation2 + $0x69] sm:$0xff]
  %v436 = vld [vmem:[#allocation2 + $0x71] sm:$0xff]
  %v437 = vld [vmem:[#allocation2 + $0x89] sm:$0xff]
  %v438 = vld [vmem:[#allocation2 + $0x91] sm:$0xff]
  %v439 = vld [vmem:[#allocation2 + $0xa9] sm:$0xff]
  %v440 = vld [vmem:[#allocation2 + $0xb1] sm:$0xff]
  %v441 = vld [vmem:[#allocation2 + $0xc9] sm:$0xff]
  %v442 = vld [vmem:[#allocation2 + $0xd1] sm:$0xff]
  %v443 = vld [vmem:[#allocation2 + $0xe9] sm:$0xff]
  %v444 = vld [vmem:[#allocation2 + $0xf1] sm:$0xff]
  %v445 = vld [vmem:[#allocation2 + $0x109] sm:$0xff]
  %v446 = vld [vmem:[#allocation2 + $0x111] sm:$0xff]
  %v447 = vld [vmem:[#allocation2 + $0x129] sm:$0xff]
  %v448 = vld [vmem:[#allocation2 + $0x131] sm:$0xff]
  %v449 = vld [vmem:[#allocation2 + $0x149] sm:$0xff]
  %v450 = vld [vmem:[#allocation2 + $0x151] sm:$0xff]
  %v451 = vld [vmem:[#allocation2 + $0x169] sm:$0xff]
  %v452 = vld [vmem:[#allocation2 + $0x171] sm:$0xff]
  %v453 = vld [vmem:[#allocation2 + $0x189] sm:$0xff]
  %v454 = vld [vmem:[#allocation2 + $0x191] sm:$0xff]
  %v455 = vld [vmem:[#allocation2 + $0x1a9] sm:$0xff]
  %v456 = vld [vmem:[#allocation2 + $0x1b1] sm:$0xff]
  %v457 = vld [vmem:[#allocation2 + $0x1c9] sm:$0xff]
  %v458 = vld [vmem:[#allocation2 + $0x1d1] sm:$0xff]
  %v459 = vld [vmem:[#allocation2 + $0x1e9] sm:$0xff]
  %v460 = vld [vmem:[#allocation2 + $0x1f1] sm:$0xff]
  %v461 = vld [vmem:[#allocation2 + $0x249] sm:$0xff]
  %v462 = vld [vmem:[#allocation2 + $0x251] sm:$0xff]
  %v463 = vld [vmem:[#allocation2 + $0x269] sm:$0xff]
  %v464 = vld [vmem:[#allocation2 + $0x271] sm:$0xff]
  %v465 = vld [vmem:[#allocation2 + $0x289] sm:$0xff]
  %v466 = vld [vmem:[#allocation2 + $0x291] sm:$0xff]
  %v467 = vld [vmem:[#allocation2 + $0x2a9] sm:$0xff]
  %v468 = vld [vmem:[#allocation2 + $0x2b1] sm:$0xff]
  %v469 = vld [vmem:[#allocation2 + $0x2c9] sm:$0xff]
  %v470 = vld [vmem:[#allocation2 + $0x2d1] sm:$0xff]
  %v471 = vld [vmem:[#allocation2 + $0x2e9] sm:$0xff]
  %v472 = vld [vmem:[#allocation2 + $0x2f1] sm:$0xff]
  %v473 = vld [vmem:[#allocation2 + $0x309] sm:$0xff]
  %v474 = vld [vmem:[#allocation2 + $0x311] sm:$0xff]
  %v475 = vld [vmem:[#allocation2 + $0x329] sm:$0xff]
  %v476 = vld [vmem:[#allocation2 + $0x331] sm:$0xff]
  %v477 = vld [vmem:[#allocation2 + $0x349] sm:$0xff]
  %v478 = vld [vmem:[#allocation2 + $0x351] sm:$0xff]
  %v479 = vld [vmem:[#allocation2 + $0x369] sm:$0xff]
  %v480 = vld [vmem:[#allocation2 + $0x371] sm:$0xff]
  %v481 = vld [vmem:[#allocation2 + $0x389] sm:$0xff]
  %v482 = vld [vmem:[#allocation2 + $0x391] sm:$0xff]
  %v483 = vld [vmem:[#allocation2 + $0x3a9] sm:$0xff]
  %v484 = vld [vmem:[#allocation2 + $0x3b1] sm:$0xff]
  %v485 = vld [vmem:[#allocation2 + $0x3c9] sm:$0xff]
  %v486 = vld [vmem:[#allocation2 + $0x3d1] sm:$0xff]
  %v487 = vld [vmem:[#allocation2 + $0x3e9] sm:$0xff]
  %v488 = vld [vmem:[#allocation2 + $0x3f1] sm:$0xff]
  %v489 = vld [vmem:[#allocation2 + $0x409] sm:$0xff]
  %v490 = vld [vmem:[#allocation2 + $0x411] sm:$0xff]
  %v491 = vld [vmem:[#allocation2 + $0x429] sm:$0xff]
  %v492 = vld [vmem:[#allocation2 + $0x431] sm:$0xff]
  %v493 = vld [vmem:[%s236 + $0x7] sm:$0xff]
  %v494 = vld [vmem:[%s236 + $0xf] sm:$0xff]
  %v495 = vld [vmem:[%s236 + $0x27] sm:$0xff]
  %v496 = vld [vmem:[%s236 + $0x2f] sm:$0xff]
  %v497 = vld [vmem:[%s236 + $0x47] sm:$0xff]
  %v498 = vld [vmem:[%s236 + $0x4f] sm:$0xff]
  %v499 = vld [vmem:[%s236 + $0x67] sm:$0xff]
  %v500 = vld [vmem:[%s236 + $0x6f] sm:$0xff]
  %v501 = vld [vmem:[%s236 + $0x87] sm:$0xff]
  %v502 = vld [vmem:[%s236 + $0x8f] sm:$0xff]
  %v503 = vld [vmem:[%s236 + $0xa7] sm:$0xff]
  %v504 = vld [vmem:[%s236 + $0xaf] sm:$0xff]
  %v505 = vld [vmem:[%s236 + $0xc7] sm:$0xff]
  %v506 = vld [vmem:[%s236 + $0xcf] sm:$0xff]
  %v507 = vld [vmem:[%s236 + $0xe7] sm:$0xff]
  %v508 = vld [vmem:[%s236 + $0xef] sm:$0xff]
  %v509 = vld [vmem:[%s236 + $0x107] sm:$0xff]
  %v510 = vld [vmem:[%s236 + $0x10f] sm:$0xff]
  %v511 = vld [vmem:[%s236 + $0x127] sm:$0xff]
  %v512 = vld [vmem:[%s236 + $0x12f] sm:$0xff]
  %v513 = vld [vmem:[%s236 + $0x147] sm:$0xff]
  %v514 = vld [vmem:[%s236 + $0x14f] sm:$0xff]
  %v515 = vld [vmem:[%s236 + $0x167] sm:$0xff]
  %v516 = vld [vmem:[%s236 + $0x16f] sm:$0xff]
  %v517 = vld [vmem:[%s236 + $0x187] sm:$0xff]
  %v518 = vld [vmem:[%s236 + $0x18f] sm:$0xff]
  %v519 = vld [vmem:[%s236 + $0x1a7] sm:$0xff]
  %v520 = vld [vmem:[%s236 + $0x1af] sm:$0xff]
  %v521 = vld [vmem:[%s236 + $0x1c7] sm:$0xff]
  %v522 = vld [vmem:[%s236 + $0x1cf] sm:$0xff]
  %v523 = vld [vmem:[%s236 + $0x1e7] sm:$0xff]
  %v524 = vld [vmem:[%s236 + $0x1ef] sm:$0xff]
  %v525 = vld [vmem:[%s236 + $0x247] sm:$0xff]
  %v526 = vld [vmem:[%s236 + $0x24f] sm:$0xff]
  %v527 = vld [vmem:[%s236 + $0x267] sm:$0xff]
  %v528 = vld [vmem:[%s236 + $0x26f] sm:$0xff]
  %v529 = vld [vmem:[%s236 + $0x287] sm:$0xff]
  %v530 = vld [vmem:[%s236 + $0x28f] sm:$0xff]
  %v531 = vld [vmem:[%s236 + $0x2a7] sm:$0xff]
  %v532 = vld [vmem:[%s236 + $0x2af] sm:$0xff]
  %v533 = vld [vmem:[%s236 + $0x2c7] sm:$0xff]
  %v534 = vld [vmem:[%s236 + $0x2cf] sm:$0xff]
  %v535 = vld [vmem:[%s236 + $0x2e7] sm:$0xff]
  %v536 = vld [vmem:[%s236 + $0x2ef] sm:$0xff]
  %v537 = vld [vmem:[%s236 + $0x307] sm:$0xff]
  %v538 = vld [vmem:[%s236 + $0x30f] sm:$0xff]
  %v539 = vld [vmem:[%s236 + $0x327] sm:$0xff]
  %v540 = vld [vmem:[%s236 + $0x32f] sm:$0xff]
  %v541 = vld [vmem:[%s236 + $0x347] sm:$0xff]
  %v542 = vld [vmem:[%s236 + $0x34f] sm:$0xff]
  %v543 = vld [vmem:[%s236 + $0x367] sm:$0xff]
  %v544 = vld [vmem:[%s236 + $0x36f] sm:$0xff]
  %v545 = vld [vmem:[%s236 + $0x387] sm:$0xff]
  %v546 = vld [vmem:[%s236 + $0x38f] sm:$0xff]
  %v547 = vld [vmem:[%s236 + $0x3a7] sm:$0xff]
  %v548 = vld [vmem:[%s236 + $0x3af] sm:$0xff]
  %v549 = vld [vmem:[%s236 + $0x3c7] sm:$0xff]
  %v550 = vld [vmem:[%s236 + $0x3cf] sm:$0xff]
  %v551 = vld [vmem:[%s236 + $0x3e7] sm:$0xff]
  %v552 = vld [vmem:[%s236 + $0x3ef] sm:$0xff]
  %v553 = vld [vmem:[%s236 + $0x407] sm:$0xff]
  %v554 = vld [vmem:[%s236 + $0x40f] sm:$0xff]
  %v555 = vld [vmem:[%s236 + $0x427] sm:$0xff]
  %v556 = vld [vmem:[%s236 + $0x42f] sm:$0xff]
  %v557 = vld [vmem:[%s236 + $0x8] sm:$0xff]
  %v558 = vld [vmem:[%s236 + $0x10] sm:$0xff]
  %v559 = vld [vmem:[%s236 + $0x28] sm:$0xff]
  %v560 = vld [vmem:[%s236 + $0x30] sm:$0xff]
  %v561 = vld [vmem:[%s236 + $0x48] sm:$0xff]
  %v562 = vld [vmem:[%s236 + $0x50] sm:$0xff]
  %v563 = vld [vmem:[%s236 + $0x68] sm:$0xff]
  %v564 = vld [vmem:[%s236 + $0x70] sm:$0xff]
  %v565 = vld [vmem:[%s236 + $0x88] sm:$0xff]
  %v566 = vld [vmem:[%s236 + $0x90] sm:$0xff]
  %v567 = vld [vmem:[%s236 + $0xa8] sm:$0xff]
  %v568 = vld [vmem:[%s236 + $0xb0] sm:$0xff]
  %v569 = vld [vmem:[%s236 + $0xc8] sm:$0xff]
  %v570 = vld [vmem:[%s236 + $0xd0] sm:$0xff]
  %v571 = vld [vmem:[%s236 + $0xe8] sm:$0xff]
  %v572 = vld [vmem:[%s236 + $0xf0] sm:$0xff]
  %v573 = vld [vmem:[%s236 + $0x108] sm:$0xff]
  %v574 = vld [vmem:[%s236 + $0x110] sm:$0xff]
  %v575 = vld [vmem:[%s236 + $0x128] sm:$0xff]
  %v576 = vld [vmem:[%s236 + $0x130] sm:$0xff]
  %v577 = vld [vmem:[%s236 + $0x148] sm:$0xff]
  %v578 = vld [vmem:[%s236 + $0x150] sm:$0xff]
  %v579 = vld [vmem:[%s236 + $0x168] sm:$0xff]
  %v580 = vld [vmem:[%s236 + $0x170] sm:$0xff]
  %v581 = vld [vmem:[%s236 + $0x188] sm:$0xff]
  %v582 = vld [vmem:[%s236 + $0x190] sm:$0xff]
  %v583 = vld [vmem:[%s236 + $0x1a8] sm:$0xff]
  %v584 = vld [vmem:[%s236 + $0x1b0] sm:$0xff]
  %v585 = vld [vmem:[%s236 + $0x1c8] sm:$0xff]
  %v586 = vld [vmem:[%s236 + $0x1d0] sm:$0xff]
  %v587 = vld [vmem:[%s236 + $0x1e8] sm:$0xff]
  %v588 = vld [vmem:[%s236 + $0x1f0] sm:$0xff]
  %v589 = vld [vmem:[%s236 + $0x248] sm:$0xff]
  %v590 = vld [vmem:[%s236 + $0x250] sm:$0xff]
  %v591 = vld [vmem:[%s236 + $0x268] sm:$0xff]
  %v592 = vld [vmem:[%s236 + $0x270] sm:$0xff]
  %v593 = vld [vmem:[%s236 + $0x288] sm:$0xff]
  %v594 = vld [vmem:[%s236 + $0x290] sm:$0xff]
  %v595 = vld [vmem:[%s236 + $0x2a8] sm:$0xff]
  %v596 = vld [vmem:[%s236 + $0x2b0] sm:$0xff]
  %v597 = vld [vmem:[%s236 + $0x2c8] sm:$0xff]
  %v598 = vld [vmem:[%s236 + $0x2d0] sm:$0xff]
  %v599 = vld [vmem:[%s236 + $0x2e8] sm:$0xff]
  %v600 = vld [vmem:[%s236 + $0x2f0] sm:$0xff]
  %v601 = vld [vmem:[%s236 + $0x308] sm:$0xff]
  %v602 = vld [vmem:[%s236 + $0x310] sm:$0xff]
  %v603 = vld [vmem:[%s236 + $0x328] sm:$0xff]
  %v604 = vld [vmem:[%s236 + $0x330] sm:$0xff]
  %v605 = vld [vmem:[%s236 + $0x348] sm:$0xff]
  %v606 = vld [vmem:[%s236 + $0x350] sm:$0xff]
  %v607 = vld [vmem:[%s236 + $0x368] sm:$0xff]
  %v608 = vld [vmem:[%s236 + $0x370] sm:$0xff]
  %v609 = vld [vmem:[%s236 + $0x388] sm:$0xff]
  %v610 = vld [vmem:[%s236 + $0x390] sm:$0xff]
  %v611 = vld [vmem:[%s236 + $0x3a8] sm:$0xff]
  %v612 = vld [vmem:[%s236 + $0x3b0] sm:$0xff]
  %v613 = vld [vmem:[%s236 + $0x3c8] sm:$0xff]
  %v614 = vld [vmem:[%s236 + $0x3d0] sm:$0xff]
  %v615 = vld [vmem:[%s236 + $0x3e8] sm:$0xff]
  %v616 = vld [vmem:[%s236 + $0x3f0] sm:$0xff]
  %v617 = vld [vmem:[%s236 + $0x408] sm:$0xff]
  %v618 = vld [vmem:[%s236 + $0x410] sm:$0xff]
  %v619 = vld [vmem:[%s236 + $0x428] sm:$0xff]
  %v620 = vld [vmem:[%s236 + $0x430] sm:$0xff]
  %v621 = vld [vmem:[%s236 + $0x9] sm:$0xff]
  %v622 = vld [vmem:[%s236 + $0x11] sm:$0xff]
  %v623 = vld [vmem:[%s236 + $0x29] sm:$0xff]
  %v624 = vld [vmem:[%s236 + $0x31] sm:$0xff]
  %v625 = vld [vmem:[%s236 + $0x49] sm:$0xff]
  %v626 = vld [vmem:[%s236 + $0x51] sm:$0xff]
  %v627 = vld [vmem:[%s236 + $0x69] sm:$0xff]
  %v628 = vld [vmem:[%s236 + $0x71] sm:$0xff]
  %v629 = vld [vmem:[%s236 + $0x89] sm:$0xff]
  %v630 = vld [vmem:[%s236 + $0x91] sm:$0xff]
  %v631 = vld [vmem:[%s236 + $0xa9] sm:$0xff]
  %v632 = vld [vmem:[%s236 + $0xb1] sm:$0xff]
  %v633 = vld [vmem:[%s236 + $0xc9] sm:$0xff]
  %v634 = vld [vmem:[%s236 + $0xd1] sm:$0xff]
  %v635 = vld [vmem:[%s236 + $0xe9] sm:$0xff]
  %v636 = vld [vmem:[%s236 + $0xf1] sm:$0xff]
  %v637 = vld [vmem:[%s236 + $0x109] sm:$0xff]
  %v638 = vld [vmem:[%s236 + $0x111] sm:$0xff]
  %v639 = vld [vmem:[%s236 + $0x129] sm:$0xff]
  %v640 = vld [vmem:[%s236 + $0x131] sm:$0xff]
  %v641 = vld [vmem:[%s236 + $0x149] sm:$0xff]
  %v642 = vld [vmem:[%s236 + $0x151] sm:$0xff]
  %v643 = vld [vmem:[%s236 + $0x169] sm:$0xff]
  %v644 = vld [vmem:[%s236 + $0x171] sm:$0xff]
  %v645 = vld [vmem:[%s236 + $0x189] sm:$0xff]
  %v646 = vld [vmem:[%s236 + $0x191] sm:$0xff]
  %v647 = vld [vmem:[%s236 + $0x1a9] sm:$0xff]
  %v648 = vld [vmem:[%s236 + $0x1b1] sm:$0xff]
  %v649 = vld [vmem:[%s236 + $0x1c9] sm:$0xff]
  %v650 = vld [vmem:[%s236 + $0x1d1] sm:$0xff]
  %v651 = vld [vmem:[%s236 + $0x1e9] sm:$0xff]
  %v652 = vld [vmem:[%s236 + $0x1f1] sm:$0xff]
  %v653 = vld [vmem:[%s236 + $0x249] sm:$0xff]
  %v654 = vld [vmem:[%s236 + $0x251] sm:$0xff]
  %v655 = vld [vmem:[%s236 + $0x269] sm:$0xff]
  %v656 = vld [vmem:[%s236 + $0x271] sm:$0xff]
  %v657 = vld [vmem:[%s236 + $0x289] sm:$0xff]
  %v658 = vld [vmem:[%s236 + $0x291] sm:$0xff]
  %v659 = vld [vmem:[%s236 + $0x2a9] sm:$0xff]
  %v660 = vld [vmem:[%s236 + $0x2b1] sm:$0xff]
  %v661 = vld [vmem:[%s236 + $0x2c9] sm:$0xff]
  %v662 = vld [vmem:[%s236 + $0x2d1] sm:$0xff]
  %v663 = vld [vmem:[%s236 + $0x2e9] sm:$0xff]
  %v664 = vld [vmem:[%s236 + $0x2f1] sm:$0xff]
  %v665 = vld [vmem:[%s236 + $0x309] sm:$0xff]
  %v666 = vld [vmem:[%s236 + $0x311] sm:$0xff]
  %v667 = vld [vmem:[%s236 + $0x329] sm:$0xff]
  %v668 = vld [vmem:[%s236 + $0x331] sm:$0xff]
  %v669 = vld [vmem:[%s236 + $0x349] sm:$0xff]
  %v670 = vld [vmem:[%s236 + $0x351] sm:$0xff]
  %v671 = vld [vmem:[%s236 + $0x369] sm:$0xff]
  %v672 = vld [vmem:[%s236 + $0x371] sm:$0xff]
  %v673 = vld [vmem:[%s236 + $0x389] sm:$0xff]
  %v674 = vld [vmem:[%s236 + $0x391] sm:$0xff]
  %v675 = vld [vmem:[%s236 + $0x3a9] sm:$0xff]
  %v676 = vld [vmem:[%s236 + $0x3b1] sm:$0xff]
  %v677 = vld [vmem:[%s236 + $0x3c9] sm:$0xff]
  %v678 = vld [vmem:[%s236 + $0x3d1] sm:$0xff]
  %v679 = vld [vmem:[%s236 + $0x3e9] sm:$0xff]
  %v680 = vld [vmem:[%s236 + $0x3f1] sm:$0xff]
  %v681 = vld [vmem:[%s236 + $0x409] sm:$0xff]
  %v682 = vld [vmem:[%s236 + $0x411] sm:$0xff]
  %v683 = vld [vmem:[%s236 + $0x429] sm:$0xff]
  %v684 = vld [vmem:[%s236 + $0x431] sm:$0xff]
  %s685 = scalar_lea.vmem [#allocation2], 64
  %v686 = vld [vmem:[%s685 + $0x7] sm:$0xff]
  %v687 = vld [vmem:[%s685 + $0xf] sm:$0xff]
  %v688 = vld [vmem:[%s685 + $0x27] sm:$0xff]
  %v689 = vld [vmem:[%s685 + $0x2f] sm:$0xff]
  %v690 = vld [vmem:[%s685 + $0x47] sm:$0xff]
  %v691 = vld [vmem:[%s685 + $0x4f] sm:$0xff]
  %v692 = vld [vmem:[%s685 + $0x67] sm:$0xff]
  %v693 = vld [vmem:[%s685 + $0x6f] sm:$0xff]
  %v694 = vld [vmem:[%s685 + $0x87] sm:$0xff]
  %v695 = vld [vmem:[%s685 + $0x8f] sm:$0xff]
  %v696 = vld [vmem:[%s685 + $0xa7] sm:$0xff]
  %v697 = vld [vmem:[%s685 + $0xaf] sm:$0xff]
  %v698 = vld [vmem:[%s685 + $0xc7] sm:$0xff]
  %v699 = vld [vmem:[%s685 + $0xcf] sm:$0xff]
  %v700 = vld [vmem:[%s685 + $0xe7] sm:$0xff]
  %v701 = vld [vmem:[%s685 + $0xef] sm:$0xff]
  %v702 = vld [vmem:[%s685 + $0x107] sm:$0xff]
  %v703 = vld [vmem:[%s685 + $0x10f] sm:$0xff]
  %v704 = vld [vmem:[%s685 + $0x127] sm:$0xff]
  %v705 = vld [vmem:[%s685 + $0x12f] sm:$0xff]
  %v706 = vld [vmem:[%s685 + $0x147] sm:$0xff]
  %v707 = vld [vmem:[%s685 + $0x14f] sm:$0xff]
  %v708 = vld [vmem:[%s685 + $0x167] sm:$0xff]
  %v709 = vld [vmem:[%s685 + $0x16f] sm:$0xff]
  %v710 = vld [vmem:[%s685 + $0x187] sm:$0xff]
  %v711 = vld [vmem:[%s685 + $0x18f] sm:$0xff]
  %v712 = vld [vmem:[%s685 + $0x1a7] sm:$0xff]
  %v713 = vld [vmem:[%s685 + $0x1af] sm:$0xff]
  %v714 = vld [vmem:[%s685 + $0x1c7] sm:$0xff]
  %v715 = vld [vmem:[%s685 + $0x1cf] sm:$0xff]
  %v716 = vld [vmem:[%s685 + $0x1e7] sm:$0xff]
  %v717 = vld [vmem:[%s685 + $0x1ef] sm:$0xff]
  %v718 = vld [vmem:[%s685 + $0x247] sm:$0xff]
  %v719 = vld [vmem:[%s685 + $0x24f] sm:$0xff]
  %v720 = vld [vmem:[%s685 + $0x267] sm:$0xff]
  %v721 = vld [vmem:[%s685 + $0x26f] sm:$0xff]
  %v722 = vld [vmem:[%s685 + $0x287] sm:$0xff]
  %v723 = vld [vmem:[%s685 + $0x28f] sm:$0xff]
  %v724 = vld [vmem:[%s685 + $0x2a7] sm:$0xff]
  %v725 = vld [vmem:[%s685 + $0x2af] sm:$0xff]
  %v726 = vld [vmem:[%s685 + $0x2c7] sm:$0xff]
  %v727 = vld [vmem:[%s685 + $0x2cf] sm:$0xff]
  %v728 = vld [vmem:[%s685 + $0x2e7] sm:$0xff]
  %v729 = vld [vmem:[%s685 + $0x2ef] sm:$0xff]
  %v730 = vld [vmem:[%s685 + $0x307] sm:$0xff]
  %v731 = vld [vmem:[%s685 + $0x30f] sm:$0xff]
  %v732 = vld [vmem:[%s685 + $0x327] sm:$0xff]
  %v733 = vld [vmem:[%s685 + $0x32f] sm:$0xff]
  %v734 = vld [vmem:[%s685 + $0x347] sm:$0xff]
  %v735 = vld [vmem:[%s685 + $0x34f] sm:$0xff]
  %v736 = vld [vmem:[%s685 + $0x367] sm:$0xff]
  %v737 = vld [vmem:[%s685 + $0x36f] sm:$0xff]
  %v738 = vld [vmem:[%s685 + $0x387] sm:$0xff]
  %v739 = vld [vmem:[%s685 + $0x38f] sm:$0xff]
  %v740 = vld [vmem:[%s685 + $0x3a7] sm:$0xff]
  %v741 = vld [vmem:[%s685 + $0x3af] sm:$0xff]
  %v742 = vld [vmem:[%s685 + $0x3c7] sm:$0xff]
  %v743 = vld [vmem:[%s685 + $0x3cf] sm:$0xff]
  %v744 = vld [vmem:[%s685 + $0x3e7] sm:$0xff]
  %v745 = vld [vmem:[%s685 + $0x3ef] sm:$0xff]
  %v746 = vld [vmem:[%s685 + $0x407] sm:$0xff]
  %v747 = vld [vmem:[%s685 + $0x40f] sm:$0xff]
  %v748 = vld [vmem:[%s685 + $0x427] sm:$0xff]
  %v749 = vld [vmem:[%s685 + $0x42f] sm:$0xff]
  %v750 = vld [vmem:[%s685 + $0x8] sm:$0xff]
  %v751 = vld [vmem:[%s685 + $0x10] sm:$0xff]
  %v752 = vld [vmem:[%s685 + $0x28] sm:$0xff]
  %v753 = vld [vmem:[%s685 + $0x30] sm:$0xff]
  %v754 = vld [vmem:[%s685 + $0x48] sm:$0xff]
  %v755 = vld [vmem:[%s685 + $0x50] sm:$0xff]
  %v756 = vld [vmem:[%s685 + $0x68] sm:$0xff]
  %v757 = vld [vmem:[%s685 + $0x70] sm:$0xff]
  %v758 = vld [vmem:[%s685 + $0x88] sm:$0xff]
  %v759 = vld [vmem:[%s685 + $0x90] sm:$0xff]
  %v760 = vld [vmem:[%s685 + $0xa8] sm:$0xff]
  %v761 = vld [vmem:[%s685 + $0xb0] sm:$0xff]
  %v762 = vld [vmem:[%s685 + $0xc8] sm:$0xff]
  %v763 = vld [vmem:[%s685 + $0xd0] sm:$0xff]
  %v764 = vld [vmem:[%s685 + $0xe8] sm:$0xff]
  %v765 = vld [vmem:[%s685 + $0xf0] sm:$0xff]
  %v766 = vld [vmem:[%s685 + $0x108] sm:$0xff]
  %v767 = vld [vmem:[%s685 + $0x110] sm:$0xff]
  %v768 = vld [vmem:[%s685 + $0x128] sm:$0xff]
  %v769 = vld [vmem:[%s685 + $0x130] sm:$0xff]
  %v770 = vld [vmem:[%s685 + $0x148] sm:$0xff]
  %v771 = vld [vmem:[%s685 + $0x150] sm:$0xff]
  %v772 = vld [vmem:[%s685 + $0x168] sm:$0xff]
  %v773 = vld [vmem:[%s685 + $0x170] sm:$0xff]
  %v774 = vld [vmem:[%s685 + $0x188] sm:$0xff]
  %v775 = vld [vmem:[%s685 + $0x190] sm:$0xff]
  %v776 = vld [vmem:[%s685 + $0x1a8] sm:$0xff]
  %v777 = vld [vmem:[%s685 + $0x1b0] sm:$0xff]
  %v778 = vld [vmem:[%s685 + $0x1c8] sm:$0xff]
  %v779 = vld [vmem:[%s685 + $0x1d0] sm:$0xff]
  %v780 = vld [vmem:[%s685 + $0x1e8] sm:$0xff]
  %v781 = vld [vmem:[%s685 + $0x1f0] sm:$0xff]
  %v782 = vld [vmem:[%s685 + $0x248] sm:$0xff]
  %v783 = vld [vmem:[%s685 + $0x250] sm:$0xff]
  %v784 = vld [vmem:[%s685 + $0x268] sm:$0xff]
  %v785 = vld [vmem:[%s685 + $0x270] sm:$0xff]
  %v786 = vld [vmem:[%s685 + $0x288] sm:$0xff]
  %v787 = vld [vmem:[%s685 + $0x290] sm:$0xff]
  %v788 = vld [vmem:[%s685 + $0x2a8] sm:$0xff]
  %v789 = vld [vmem:[%s685 + $0x2b0] sm:$0xff]
  %v790 = vld [vmem:[%s685 + $0x2c8] sm:$0xff]
  %v791 = vld [vmem:[%s685 + $0x2d0] sm:$0xff]
  %v792 = vld [vmem:[%s685 + $0x2e8] sm:$0xff]
  %v793 = vld [vmem:[%s685 + $0x2f0] sm:$0xff]
  %v794 = vld [vmem:[%s685 + $0x308] sm:$0xff]
  %v795 = vld [vmem:[%s685 + $0x310] sm:$0xff]
  %v796 = vld [vmem:[%s685 + $0x328] sm:$0xff]
  %v797 = vld [vmem:[%s685 + $0x330] sm:$0xff]
  %v798 = vld [vmem:[%s685 + $0x348] sm:$0xff]
  %v799 = vld [vmem:[%s685 + $0x350] sm:$0xff]
  %v800 = vld [vmem:[%s685 + $0x368] sm:$0xff]
  %v801 = vld [vmem:[%s685 + $0x370] sm:$0xff]
  %v802 = vld [vmem:[%s685 + $0x388] sm:$0xff]
  %v803 = vld [vmem:[%s685 + $0x390] sm:$0xff]
  %v804 = vld [vmem:[%s685 + $0x3a8] sm:$0xff]
  %v805 = vld [vmem:[%s685 + $0x3b0] sm:$0xff]
  %v806 = vld [vmem:[%s685 + $0x3c8] sm:$0xff]
  %v807 = vld [vmem:[%s685 + $0x3d0] sm:$0xff]
  %v808 = vld [vmem:[%s685 + $0x3e8] sm:$0xff]
  %v809 = vld [vmem:[%s685 + $0x3f0] sm:$0xff]
  %v810 = vld [vmem:[%s685 + $0x408] sm:$0xff]
  %v811 = vld [vmem:[%s685 + $0x410] sm:$0xff]
  %v812 = vld [vmem:[%s685 + $0x428] sm:$0xff]
  %v813 = vld [vmem:[%s685 + $0x430] sm:$0xff]
  %v814 = vld [vmem:[%s685 + $0x9] sm:$0xff]
  %v815 = vld [vmem:[%s685 + $0x11] sm:$0xff]
  %v816 = vld [vmem:[%s685 + $0x29] sm:$0xff]
  %v817 = vld [vmem:[%s685 + $0x31] sm:$0xff]
  %v818 = vld [vmem:[%s685 + $0x49] sm:$0xff]
  %v819 = vld [vmem:[%s685 + $0x51] sm:$0xff]
  %v820 = vld [vmem:[%s685 + $0x69] sm:$0xff]
  %v821 = vld [vmem:[%s685 + $0x71] sm:$0xff]
  %v822 = vld [vmem:[%s685 + $0x89] sm:$0xff]
  %v823 = vld [vmem:[%s685 + $0x91] sm:$0xff]
  %v824 = vld [vmem:[%s685 + $0xa9] sm:$0xff]
  %v825 = vld [vmem:[%s685 + $0xb1] sm:$0xff]
  %v826 = vld [vmem:[%s685 + $0xc9] sm:$0xff]
  %v827 = vld [vmem:[%s685 + $0xd1] sm:$0xff]
  %v828 = vld [vmem:[%s685 + $0xe9] sm:$0xff]
  %v829 = vld [vmem:[%s685 + $0xf1] sm:$0xff]
  %v830 = vld [vmem:[%s685 + $0x109] sm:$0xff]
  %v831 = vld [vmem:[%s685 + $0x111] sm:$0xff]
  %v832 = vld [vmem:[%s685 + $0x129] sm:$0xff]
  %v833 = vld [vmem:[%s685 + $0x131] sm:$0xff]
  %v834 = vld [vmem:[%s685 + $0x149] sm:$0xff]
  %v835 = vld [vmem:[%s685 + $0x151] sm:$0xff]
  %v836 = vld [vmem:[%s685 + $0x169] sm:$0xff]
  %v837 = vld [vmem:[%s685 + $0x171] sm:$0xff]
  %v838 = vld [vmem:[%s685 + $0x189] sm:$0xff]
  %v839 = vld [vmem:[%s685 + $0x191] sm:$0xff]
  %v840 = vld [vmem:[%s685 + $0x1a9] sm:$0xff]
  %v841 = vld [vmem:[%s685 + $0x1b1] sm:$0xff]
  %v842 = vld [vmem:[%s685 + $0x1c9] sm:$0xff]
  %v843 = vld [vmem:[%s685 + $0x1d1] sm:$0xff]
  %v844 = vld [vmem:[%s685 + $0x1e9] sm:$0xff]
  %v845 = vld [vmem:[%s685 + $0x1f1] sm:$0xff]
  %v846 = vld [vmem:[%s685 + $0x249] sm:$0xff]
  %v847 = vld [vmem:[%s685 + $0x251] sm:$0xff]
  %v848 = vld [vmem:[%s685 + $0x269] sm:$0xff]
  %v849 = vld [vmem:[%s685 + $0x271] sm:$0xff]
  %v850 = vld [vmem:[%s685 + $0x289] sm:$0xff]
  %v851 = vld [vmem:[%s685 + $0x291] sm:$0xff]
  %v852 = vld [vmem:[%s685 + $0x2a9] sm:$0xff]
  %v853 = vld [vmem:[%s685 + $0x2b1] sm:$0xff]
  %v854 = vld [vmem:[%s685 + $0x2c9] sm:$0xff]
  %v855 = vld [vmem:[%s685 + $0x2d1] sm:$0xff]
  %v856 = vld [vmem:[%s685 + $0x2e9] sm:$0xff]
  %v857 = vld [vmem:[%s685 + $0x2f1] sm:$0xff]
  %v858 = vld [vmem:[%s685 + $0x309] sm:$0xff]
  %v859 = vld [vmem:[%s685 + $0x311] sm:$0xff]
  %v860 = vld [vmem:[%s685 + $0x329] sm:$0xff]
  %v861 = vld [vmem:[%s685 + $0x331] sm:$0xff]
  %v862 = vld [vmem:[%s685 + $0x349] sm:$0xff]
  %v863 = vld [vmem:[%s685 + $0x351] sm:$0xff]
  %v864 = vld [vmem:[%s685 + $0x369] sm:$0xff]
  %v865 = vld [vmem:[%s685 + $0x371] sm:$0xff]
  %v866 = vld [vmem:[%s685 + $0x389] sm:$0xff]
  %v867 = vld [vmem:[%s685 + $0x391] sm:$0xff]
  %v868 = vld [vmem:[%s685 + $0x3a9] sm:$0xff]
  %v869 = vld [vmem:[%s685 + $0x3b1] sm:$0xff]
  %v870 = vld [vmem:[%s685 + $0x3c9] sm:$0xff]
  %v871 = vld [vmem:[%s685 + $0x3d1] sm:$0xff]
  %v872 = vld [vmem:[%s685 + $0x3e9] sm:$0xff]
  %v873 = vld [vmem:[%s685 + $0x3f1] sm:$0xff]
  %v874 = vld [vmem:[%s685 + $0x409] sm:$0xff]
  %v875 = vld [vmem:[%s685 + $0x411] sm:$0xff]
  %v876 = vld [vmem:[%s685 + $0x429] sm:$0xff]
  %v877 = vld [vmem:[%s685 + $0x431] sm:$0xff]
  %942 = vrot.lane.b32.xlu0 %v365, 4
  %v943 = vpop.permute.xlu0 %942
  %944 = vrot.lane.b32.xlu0 %v366, 4
  %v945 = vpop.permute.xlu0 %944
  %946 = vrot.lane.b32.xlu0 %v367, 4
  %v947 = vpop.permute.xlu0 %946
  %948 = vrot.lane.b32.xlu0 %v368, 4
  %v949 = vpop.permute.xlu0 %948
  %950 = vrot.lane.b32.xlu0 %v369, 4
  %v951 = vpop.permute.xlu0 %950
  %952 = vrot.lane.b32.xlu0 %v370, 4
  %v953 = vpop.permute.xlu0 %952
  %954 = vrot.lane.b32.xlu0 %v371, 4
  %v955 = vpop.permute.xlu0 %954
  %956 = vrot.lane.b32.xlu0 %v372, 4
  %v957 = vpop.permute.xlu0 %956
  %958 = vrot.lane.b32.xlu0 %v373, 4
  %v959 = vpop.permute.xlu0 %958
  %960 = vrot.lane.b32.xlu0 %v374, 4
  %v961 = vpop.permute.xlu0 %960
  %962 = vrot.lane.b32.xlu0 %v375, 4
  %v963 = vpop.permute.xlu0 %962
  %964 = vrot.lane.b32.xlu0 %v376, 4
  %v965 = vpop.permute.xlu0 %964
  %966 = vrot.lane.b32.xlu0 %v377, 4
  %v967 = vpop.permute.xlu0 %966
  %968 = vrot.lane.b32.xlu0 %v378, 4
  %v969 = vpop.permute.xlu0 %968
  %970 = vrot.lane.b32.xlu0 %v379, 4
  %v971 = vpop.permute.xlu0 %970
  %972 = vrot.lane.b32.xlu0 %v380, 4
  %v973 = vpop.permute.xlu0 %972
  %974 = vrot.lane.b32.xlu0 %v381, 4
  %v975 = vpop.permute.xlu0 %974
  %976 = vrot.lane.b32.xlu0 %v382, 4
  %v977 = vpop.permute.xlu0 %976
  %978 = vrot.lane.b32.xlu0 %v383, 4
  %v979 = vpop.permute.xlu0 %978
  %980 = vrot.lane.b32.xlu0 %v384, 4
  %v981 = vpop.permute.xlu0 %980
  %982 = vrot.lane.b32.xlu0 %v385, 4
  %v983 = vpop.permute.xlu0 %982
  %984 = vrot.lane.b32.xlu0 %v386, 4
  %v985 = vpop.permute.xlu0 %984
  %986 = vrot.lane.b32.xlu0 %v387, 4
  %v987 = vpop.permute.xlu0 %986
  %988 = vrot.lane.b32.xlu0 %v388, 4
  %v989 = vpop.permute.xlu0 %988
  %990 = vrot.lane.b32.xlu0 %v389, 4
  %v991 = vpop.permute.xlu0 %990
  %992 = vrot.lane.b32.xlu0 %v390, 4
  %v993 = vpop.permute.xlu0 %992
  %994 = vrot.lane.b32.xlu0 %v391, 4
  %v995 = vpop.permute.xlu0 %994
  %996 = vrot.lane.b32.xlu0 %v392, 4
  %v997 = vpop.permute.xlu0 %996
  %998 = vrot.lane.b32.xlu0 %v393, 4
  %v999 = vpop.permute.xlu0 %998
  %1000 = vrot.lane.b32.xlu0 %v394, 4
  %v1001 = vpop.permute.xlu0 %1000
  %1002 = vrot.lane.b32.xlu0 %v395, 4
  %v1003 = vpop.permute.xlu0 %1002
  %1004 = vrot.lane.b32.xlu0 %v396, 4
  %v1005 = vpop.permute.xlu0 %1004
  %1006 = vrot.lane.b32.xlu0 %v397, 4
  %v1007 = vpop.permute.xlu0 %1006
  %1008 = vrot.lane.b32.xlu0 %v398, 4
  %v1009 = vpop.permute.xlu0 %1008
  %1010 = vrot.lane.b32.xlu0 %v399, 4
  %v1011 = vpop.permute.xlu0 %1010
  %1012 = vrot.lane.b32.xlu0 %v400, 4
  %v1013 = vpop.permute.xlu0 %1012
  %1014 = vrot.lane.b32.xlu0 %v401, 4
  %v1015 = vpop.permute.xlu0 %1014
  %1016 = vrot.lane.b32.xlu0 %v402, 4
  %v1017 = vpop.permute.xlu0 %1016
  %1018 = vrot.lane.b32.xlu0 %v403, 4
  %v1019 = vpop.permute.xlu0 %1018
  %1020 = vrot.lane.b32.xlu0 %v404, 4
  %v1021 = vpop.permute.xlu0 %1020
  %1022 = vrot.lane.b32.xlu0 %v405, 4
  %v1023 = vpop.permute.xlu0 %1022
  %1024 = vrot.lane.b32.xlu0 %v406, 4
  %v1025 = vpop.permute.xlu0 %1024
  %1026 = vrot.lane.b32.xlu0 %v407, 4
  %v1027 = vpop.permute.xlu0 %1026
  %1028 = vrot.lane.b32.xlu0 %v408, 4
  %v1029 = vpop.permute.xlu0 %1028
  %1030 = vrot.lane.b32.xlu0 %v409, 4
  %v1031 = vpop.permute.xlu0 %1030
  %1032 = vrot.lane.b32.xlu0 %v410, 4
  %v1033 = vpop.permute.xlu0 %1032
  %1034 = vrot.lane.b32.xlu0 %v411, 4
  %v1035 = vpop.permute.xlu0 %1034
  %1036 = vrot.lane.b32.xlu0 %v412, 4
  %v1037 = vpop.permute.xlu0 %1036
  %1038 = vrot.lane.b32.xlu0 %v413, 4
  %v1039 = vpop.permute.xlu0 %1038
  %1040 = vrot.lane.b32.xlu0 %v414, 4
  %v1041 = vpop.permute.xlu0 %1040
  %1042 = vrot.lane.b32.xlu0 %v415, 4
  %v1043 = vpop.permute.xlu0 %1042
  %1044 = vrot.lane.b32.xlu0 %v416, 4
  %v1045 = vpop.permute.xlu0 %1044
  %1046 = vrot.lane.b32.xlu0 %v417, 4
  %v1047 = vpop.permute.xlu0 %1046
  %1048 = vrot.lane.b32.xlu0 %v418, 4
  %v1049 = vpop.permute.xlu0 %1048
  %1050 = vrot.lane.b32.xlu0 %v419, 4
  %v1051 = vpop.permute.xlu0 %1050
  %1052 = vrot.lane.b32.xlu0 %v420, 4
  %v1053 = vpop.permute.xlu0 %1052
  %1054 = vrot.lane.b32.xlu0 %v421, 4
  %v1055 = vpop.permute.xlu0 %1054
  %1056 = vrot.lane.b32.xlu0 %v422, 4
  %v1057 = vpop.permute.xlu0 %1056
  %1058 = vrot.lane.b32.xlu0 %v423, 4
  %v1059 = vpop.permute.xlu0 %1058
  %1060 = vrot.lane.b32.xlu0 %v424, 4
  %v1061 = vpop.permute.xlu0 %1060
  %1062 = vrot.lane.b32.xlu0 %v425, 4
  %v1063 = vpop.permute.xlu0 %1062
  %1064 = vrot.lane.b32.xlu0 %v426, 4
  %v1065 = vpop.permute.xlu0 %1064
  %1066 = vrot.lane.b32.xlu0 %v427, 4
  %v1067 = vpop.permute.xlu0 %1066
  %1068 = vrot.lane.b32.xlu0 %v428, 4
  %v1069 = vpop.permute.xlu0 %1068
  %1198 = vrot.lane.b32.xlu0 %v429, 8
  %v1199 = vpop.permute.xlu0 %1198
  %1200 = vrot.lane.b32.xlu0 %v430, 8
  %v1201 = vpop.permute.xlu0 %1200
  %1202 = vrot.lane.b32.xlu0 %v431, 8
  %v1203 = vpop.permute.xlu0 %1202
  %1204 = vrot.lane.b32.xlu0 %v432, 8
  %v1205 = vpop.permute.xlu0 %1204
  %1206 = vrot.lane.b32.xlu0 %v433, 8
  %v1207 = vpop.permute.xlu0 %1206
  %1208 = vrot.lane.b32.xlu0 %v434, 8
  %v1209 = vpop.permute.xlu0 %1208
  %1210 = vrot.lane.b32.xlu0 %v435, 8
  %v1211 = vpop.permute.xlu0 %1210
  %1212 = vrot.lane.b32.xlu0 %v436, 8
  %v1213 = vpop.permute.xlu0 %1212
  %1214 = vrot.lane.b32.xlu0 %v437, 8
  %v1215 = vpop.permute.xlu0 %1214
  %1216 = vrot.lane.b32.xlu0 %v438, 8
  %v1217 = vpop.permute.xlu0 %1216
  %1218 = vrot.lane.b32.xlu0 %v439, 8
  %v1219 = vpop.permute.xlu0 %1218
  %1220 = vrot.lane.b32.xlu0 %v440, 8
  %v1221 = vpop.permute.xlu0 %1220
  %1222 = vrot.lane.b32.xlu0 %v441, 8
  %v1223 = vpop.permute.xlu0 %1222
  %1224 = vrot.lane.b32.xlu0 %v442, 8
  %v1225 = vpop.permute.xlu0 %1224
  %1226 = vrot.lane.b32.xlu0 %v443, 8
  %v1227 = vpop.permute.xlu0 %1226
  %1228 = vrot.lane.b32.xlu0 %v444, 8
  %v1229 = vpop.permute.xlu0 %1228
  %1230 = vrot.lane.b32.xlu0 %v445, 8
  %v1231 = vpop.permute.xlu0 %1230
  %1232 = vrot.lane.b32.xlu0 %v446, 8
  %v1233 = vpop.permute.xlu0 %1232
  %1234 = vrot.lane.b32.xlu0 %v447, 8
  %v1235 = vpop.permute.xlu0 %1234
  %1236 = vrot.lane.b32.xlu0 %v448, 8
  %v1237 = vpop.permute.xlu0 %1236
  %1238 = vrot.lane.b32.xlu0 %v449, 8
  %v1239 = vpop.permute.xlu0 %1238
  %1240 = vrot.lane.b32.xlu0 %v450, 8
  %v1241 = vpop.permute.xlu0 %1240
  %1242 = vrot.lane.b32.xlu0 %v451, 8
  %v1243 = vpop.permute.xlu0 %1242
  %1244 = vrot.lane.b32.xlu0 %v452, 8
  %v1245 = vpop.permute.xlu0 %1244
  %1246 = vrot.lane.b32.xlu0 %v453, 8
  %v1247 = vpop.permute.xlu0 %1246
  %1248 = vrot.lane.b32.xlu0 %v454, 8
  %v1249 = vpop.permute.xlu0 %1248
  %1250 = vrot.lane.b32.xlu0 %v455, 8
  %v1251 = vpop.permute.xlu0 %1250
  %1252 = vrot.lane.b32.xlu0 %v456, 8
  %v1253 = vpop.permute.xlu0 %1252
  %1254 = vrot.lane.b32.xlu0 %v457, 8
  %v1255 = vpop.permute.xlu0 %1254
  %1256 = vrot.lane.b32.xlu0 %v458, 8
  %v1257 = vpop.permute.xlu0 %1256
  %1258 = vrot.lane.b32.xlu0 %v459, 8
  %v1259 = vpop.permute.xlu0 %1258
  %1260 = vrot.lane.b32.xlu0 %v460, 8
  %v1261 = vpop.permute.xlu0 %1260
  %1262 = vrot.lane.b32.xlu0 %v461, 8
  %v1263 = vpop.permute.xlu0 %1262
  %1264 = vrot.lane.b32.xlu0 %v462, 8
  %v1265 = vpop.permute.xlu0 %1264
  %1266 = vrot.lane.b32.xlu0 %v463, 8
  %v1267 = vpop.permute.xlu0 %1266
  %1268 = vrot.lane.b32.xlu0 %v464, 8
  %v1269 = vpop.permute.xlu0 %1268
  %1270 = vrot.lane.b32.xlu0 %v465, 8
  %v1271 = vpop.permute.xlu0 %1270
  %1272 = vrot.lane.b32.xlu0 %v466, 8
  %v1273 = vpop.permute.xlu0 %1272
  %1274 = vrot.lane.b32.xlu0 %v467, 8
  %v1275 = vpop.permute.xlu0 %1274
  %1276 = vrot.lane.b32.xlu0 %v468, 8
  %v1277 = vpop.permute.xlu0 %1276
  %1278 = vrot.lane.b32.xlu0 %v469, 8
  %v1279 = vpop.permute.xlu0 %1278
  %1280 = vrot.lane.b32.xlu0 %v470, 8
  %v1281 = vpop.permute.xlu0 %1280
  %1282 = vrot.lane.b32.xlu0 %v471, 8
  %v1283 = vpop.permute.xlu0 %1282
  %1284 = vrot.lane.b32.xlu0 %v472, 8
  %v1285 = vpop.permute.xlu0 %1284
  %1286 = vrot.lane.b32.xlu0 %v473, 8
  %v1287 = vpop.permute.xlu0 %1286
  %1288 = vrot.lane.b32.xlu0 %v474, 8
  %v1289 = vpop.permute.xlu0 %1288
  %1290 = vrot.lane.b32.xlu0 %v475, 8
  %v1291 = vpop.permute.xlu0 %1290
  %1292 = vrot.lane.b32.xlu0 %v476, 8
  %v1293 = vpop.permute.xlu0 %1292
  %1294 = vrot.lane.b32.xlu0 %v477, 8
  %v1295 = vpop.permute.xlu0 %1294
  %1296 = vrot.lane.b32.xlu0 %v478, 8
  %v1297 = vpop.permute.xlu0 %1296
  %1298 = vrot.lane.b32.xlu0 %v479, 8
  %v1299 = vpop.permute.xlu0 %1298
  %1300 = vrot.lane.b32.xlu0 %v480, 8
  %v1301 = vpop.permute.xlu0 %1300
  %1302 = vrot.lane.b32.xlu0 %v481, 8
  %v1303 = vpop.permute.xlu0 %1302
  %1304 = vrot.lane.b32.xlu0 %v482, 8
  %v1305 = vpop.permute.xlu0 %1304
  %1306 = vrot.lane.b32.xlu0 %v483, 8
  %v1307 = vpop.permute.xlu0 %1306
  %1308 = vrot.lane.b32.xlu0 %v484, 8
  %v1309 = vpop.permute.xlu0 %1308
  %1310 = vrot.lane.b32.xlu0 %v485, 8
  %v1311 = vpop.permute.xlu0 %1310
  %1312 = vrot.lane.b32.xlu0 %v486, 8
  %v1313 = vpop.permute.xlu0 %1312
  %1314 = vrot.lane.b32.xlu0 %v487, 8
  %v1315 = vpop.permute.xlu0 %1314
  %1316 = vrot.lane.b32.xlu0 %v488, 8
  %v1317 = vpop.permute.xlu0 %1316
  %1318 = vrot.lane.b32.xlu0 %v489, 8
  %v1319 = vpop.permute.xlu0 %1318
  %1320 = vrot.lane.b32.xlu0 %v490, 8
  %v1321 = vpop.permute.xlu0 %1320
  %1322 = vrot.lane.b32.xlu0 %v491, 8
  %v1323 = vpop.permute.xlu0 %1322
  %1324 = vrot.lane.b32.xlu0 %v492, 8
  %v1325 = vpop.permute.xlu0 %1324
  %1454 = vrot.lane.b32.xlu0 %v493, 12
  %v1455 = vpop.permute.xlu0 %1454
  %1456 = vrot.lane.b32.xlu0 %v494, 12
  %v1457 = vpop.permute.xlu0 %1456
  %1458 = vrot.lane.b32.xlu0 %v495, 12
  %v1459 = vpop.permute.xlu0 %1458
  %1460 = vrot.lane.b32.xlu0 %v496, 12
  %v1461 = vpop.permute.xlu0 %1460
  %1462 = vrot.lane.b32.xlu0 %v497, 12
  %v1463 = vpop.permute.xlu0 %1462
  %1464 = vrot.lane.b32.xlu0 %v498, 12
  %v1465 = vpop.permute.xlu0 %1464
  %1466 = vrot.lane.b32.xlu0 %v499, 12
  %v1467 = vpop.permute.xlu0 %1466
  %1468 = vrot.lane.b32.xlu0 %v500, 12
  %v1469 = vpop.permute.xlu0 %1468
  %1470 = vrot.lane.b32.xlu0 %v501, 12
  %v1471 = vpop.permute.xlu0 %1470
  %1472 = vrot.lane.b32.xlu0 %v502, 12
  %v1473 = vpop.permute.xlu0 %1472
  %1474 = vrot.lane.b32.xlu0 %v503, 12
  %v1475 = vpop.permute.xlu0 %1474
  %1476 = vrot.lane.b32.xlu0 %v504, 12
  %v1477 = vpop.permute.xlu0 %1476
  %1478 = vrot.lane.b32.xlu0 %v505, 12
  %v1479 = vpop.permute.xlu0 %1478
  %1480 = vrot.lane.b32.xlu0 %v506, 12
  %v1481 = vpop.permute.xlu0 %1480
  %1482 = vrot.lane.b32.xlu0 %v507, 12
  %v1483 = vpop.permute.xlu0 %1482
  %1484 = vrot.lane.b32.xlu0 %v508, 12
  %v1485 = vpop.permute.xlu0 %1484
  %1486 = vrot.lane.b32.xlu0 %v509, 12
  %v1487 = vpop.permute.xlu0 %1486
  %1488 = vrot.lane.b32.xlu0 %v510, 12
  %v1489 = vpop.permute.xlu0 %1488
  %1490 = vrot.lane.b32.xlu0 %v511, 12
  %v1491 = vpop.permute.xlu0 %1490
  %1492 = vrot.lane.b32.xlu0 %v512, 12
  %v1493 = vpop.permute.xlu0 %1492
  %1494 = vrot.lane.b32.xlu0 %v513, 12
  %v1495 = vpop.permute.xlu0 %1494
  %1496 = vrot.lane.b32.xlu0 %v514, 12
  %v1497 = vpop.permute.xlu0 %1496
  %1498 = vrot.lane.b32.xlu0 %v515, 12
  %v1499 = vpop.permute.xlu0 %1498
  %1500 = vrot.lane.b32.xlu0 %v516, 12
  %v1501 = vpop.permute.xlu0 %1500
  %1502 = vrot.lane.b32.xlu0 %v517, 12
  %v1503 = vpop.permute.xlu0 %1502
  %1504 = vrot.lane.b32.xlu0 %v518, 12
  %v1505 = vpop.permute.xlu0 %1504
  %1506 = vrot.lane.b32.xlu0 %v519, 12
  %v1507 = vpop.permute.xlu0 %1506
  %1508 = vrot.lane.b32.xlu0 %v520, 12
  %v1509 = vpop.permute.xlu0 %1508
  %1510 = vrot.lane.b32.xlu0 %v521, 12
  %v1511 = vpop.permute.xlu0 %1510
  %1512 = vrot.lane.b32.xlu0 %v522, 12
  %v1513 = vpop.permute.xlu0 %1512
  %1514 = vrot.lane.b32.xlu0 %v523, 12
  %v1515 = vpop.permute.xlu0 %1514
  %1516 = vrot.lane.b32.xlu0 %v524, 12
  %v1517 = vpop.permute.xlu0 %1516
  %1518 = vrot.lane.b32.xlu0 %v525, 12
  %v1519 = vpop.permute.xlu0 %1518
  %1520 = vrot.lane.b32.xlu0 %v526, 12
  %v1521 = vpop.permute.xlu0 %1520
  %1522 = vrot.lane.b32.xlu0 %v527, 12
  %v1523 = vpop.permute.xlu0 %1522
  %1524 = vrot.lane.b32.xlu0 %v528, 12
  %v1525 = vpop.permute.xlu0 %1524
  %1526 = vrot.lane.b32.xlu0 %v529, 12
  %v1527 = vpop.permute.xlu0 %1526
  %1528 = vrot.lane.b32.xlu0 %v530, 12
  %v1529 = vpop.permute.xlu0 %1528
  %1530 = vrot.lane.b32.xlu0 %v531, 12
  %v1531 = vpop.permute.xlu0 %1530
  %1532 = vrot.lane.b32.xlu0 %v532, 12
  %v1533 = vpop.permute.xlu0 %1532
  %1534 = vrot.lane.b32.xlu0 %v533, 12
  %v1535 = vpop.permute.xlu0 %1534
  %1536 = vrot.lane.b32.xlu0 %v534, 12
  %v1537 = vpop.permute.xlu0 %1536
  %1538 = vrot.lane.b32.xlu0 %v535, 12
  %v1539 = vpop.permute.xlu0 %1538
  %1540 = vrot.lane.b32.xlu0 %v536, 12
  %v1541 = vpop.permute.xlu0 %1540
  %1542 = vrot.lane.b32.xlu0 %v537, 12
  %v1543 = vpop.permute.xlu0 %1542
  %1544 = vrot.lane.b32.xlu0 %v538, 12
  %v1545 = vpop.permute.xlu0 %1544
  %1546 = vrot.lane.b32.xlu0 %v539, 12
  %v1547 = vpop.permute.xlu0 %1546
  %1548 = vrot.lane.b32.xlu0 %v540, 12
  %v1549 = vpop.permute.xlu0 %1548
  %1550 = vrot.lane.b32.xlu0 %v541, 12
  %v1551 = vpop.permute.xlu0 %1550
  %1552 = vrot.lane.b32.xlu0 %v542, 12
  %v1553 = vpop.permute.xlu0 %1552
  %1554 = vrot.lane.b32.xlu0 %v543, 12
  %v1555 = vpop.permute.xlu0 %1554
  %1556 = vrot.lane.b32.xlu0 %v544, 12
  %v1557 = vpop.permute.xlu0 %1556
  %1558 = vrot.lane.b32.xlu0 %v545, 12
  %v1559 = vpop.permute.xlu0 %1558
  %1560 = vrot.lane.b32.xlu0 %v546, 12
  %v1561 = vpop.permute.xlu0 %1560
  %1562 = vrot.lane.b32.xlu0 %v547, 12
  %v1563 = vpop.permute.xlu0 %1562
  %1564 = vrot.lane.b32.xlu0 %v548, 12
  %v1565 = vpop.permute.xlu0 %1564
  %1566 = vrot.lane.b32.xlu0 %v549, 12
  %v1567 = vpop.permute.xlu0 %1566
  %1568 = vrot.lane.b32.xlu0 %v550, 12
  %v1569 = vpop.permute.xlu0 %1568
  %1570 = vrot.lane.b32.xlu0 %v551, 12
  %v1571 = vpop.permute.xlu0 %1570
  %1572 = vrot.lane.b32.xlu0 %v552, 12
  %v1573 = vpop.permute.xlu0 %1572
  %1574 = vrot.lane.b32.xlu0 %v553, 12
  %v1575 = vpop.permute.xlu0 %1574
  %1576 = vrot.lane.b32.xlu0 %v554, 12
  %v1577 = vpop.permute.xlu0 %1576
  %1578 = vrot.lane.b32.xlu0 %v555, 12
  %v1579 = vpop.permute.xlu0 %1578
  %1580 = vrot.lane.b32.xlu0 %v556, 12
  %v1581 = vpop.permute.xlu0 %1580
  %1710 = vrot.lane.b32.xlu0 %v557, 16
  %v1711 = vpop.permute.xlu0 %1710
  %1712 = vrot.lane.b32.xlu0 %v558, 16
  %v1713 = vpop.permute.xlu0 %1712
  %1714 = vrot.lane.b32.xlu0 %v559, 16
  %v1715 = vpop.permute.xlu0 %1714
  %1716 = vrot.lane.b32.xlu0 %v560, 16
  %v1717 = vpop.permute.xlu0 %1716
  %1718 = vrot.lane.b32.xlu0 %v561, 16
  %v1719 = vpop.permute.xlu0 %1718
  %1720 = vrot.lane.b32.xlu0 %v562, 16
  %v1721 = vpop.permute.xlu0 %1720
  %1722 = vrot.lane.b32.xlu0 %v563, 16
  %v1723 = vpop.permute.xlu0 %1722
  %1724 = vrot.lane.b32.xlu0 %v564, 16
  %v1725 = vpop.permute.xlu0 %1724
  %1726 = vrot.lane.b32.xlu0 %v565, 16
  %v1727 = vpop.permute.xlu0 %1726
  %1728 = vrot.lane.b32.xlu0 %v566, 16
  %v1729 = vpop.permute.xlu0 %1728
  %1730 = vrot.lane.b32.xlu0 %v567, 16
  %v1731 = vpop.permute.xlu0 %1730
  %1732 = vrot.lane.b32.xlu0 %v568, 16
  %v1733 = vpop.permute.xlu0 %1732
  %1734 = vrot.lane.b32.xlu0 %v569, 16
  %v1735 = vpop.permute.xlu0 %1734
  %1736 = vrot.lane.b32.xlu0 %v570, 16
  %v1737 = vpop.permute.xlu0 %1736
  %1738 = vrot.lane.b32.xlu0 %v571, 16
  %v1739 = vpop.permute.xlu0 %1738
  %1740 = vrot.lane.b32.xlu0 %v572, 16
  %v1741 = vpop.permute.xlu0 %1740
  %1742 = vrot.lane.b32.xlu0 %v573, 16
  %v1743 = vpop.permute.xlu0 %1742
  %1744 = vrot.lane.b32.xlu0 %v574, 16
  %v1745 = vpop.permute.xlu0 %1744
  %1746 = vrot.lane.b32.xlu0 %v575, 16
  %v1747 = vpop.permute.xlu0 %1746
  %1748 = vrot.lane.b32.xlu0 %v576, 16
  %v1749 = vpop.permute.xlu0 %1748
  %1750 = vrot.lane.b32.xlu0 %v577, 16
  %v1751 = vpop.permute.xlu0 %1750
  %1752 = vrot.lane.b32.xlu0 %v578, 16
  %v1753 = vpop.permute.xlu0 %1752
  %1754 = vrot.lane.b32.xlu0 %v579, 16
  %v1755 = vpop.permute.xlu0 %1754
  %1756 = vrot.lane.b32.xlu0 %v580, 16
  %v1757 = vpop.permute.xlu0 %1756
  %1758 = vrot.lane.b32.xlu0 %v581, 16
  %v1759 = vpop.permute.xlu0 %1758
  %1760 = vrot.lane.b32.xlu0 %v582, 16
  %v1761 = vpop.permute.xlu0 %1760
  %1762 = vrot.lane.b32.xlu0 %v583, 16
  %v1763 = vpop.permute.xlu0 %1762
  %1764 = vrot.lane.b32.xlu0 %v584, 16
  %v1765 = vpop.permute.xlu0 %1764
  %1766 = vrot.lane.b32.xlu0 %v585, 16
  %v1767 = vpop.permute.xlu0 %1766
  %1768 = vrot.lane.b32.xlu0 %v586, 16
  %v1769 = vpop.permute.xlu0 %1768
  %1770 = vrot.lane.b32.xlu0 %v587, 16
  %v1771 = vpop.permute.xlu0 %1770
  %1772 = vrot.lane.b32.xlu0 %v588, 16
  %v1773 = vpop.permute.xlu0 %1772
  %1774 = vrot.lane.b32.xlu0 %v589, 16
  %v1775 = vpop.permute.xlu0 %1774
  %1776 = vrot.lane.b32.xlu0 %v590, 16
  %v1777 = vpop.permute.xlu0 %1776
  %1778 = vrot.lane.b32.xlu0 %v591, 16
  %v1779 = vpop.permute.xlu0 %1778
  %1780 = vrot.lane.b32.xlu0 %v592, 16
  %v1781 = vpop.permute.xlu0 %1780
  %1782 = vrot.lane.b32.xlu0 %v593, 16
  %v1783 = vpop.permute.xlu0 %1782
  %1784 = vrot.lane.b32.xlu0 %v594, 16
  %v1785 = vpop.permute.xlu0 %1784
  %1786 = vrot.lane.b32.xlu0 %v595, 16
  %v1787 = vpop.permute.xlu0 %1786
  %1788 = vrot.lane.b32.xlu0 %v596, 16
  %v1789 = vpop.permute.xlu0 %1788
  %1790 = vrot.lane.b32.xlu0 %v597, 16
  %v1791 = vpop.permute.xlu0 %1790
  %1792 = vrot.lane.b32.xlu0 %v598, 16
  %v1793 = vpop.permute.xlu0 %1792
  %1794 = vrot.lane.b32.xlu0 %v599, 16
  %v1795 = vpop.permute.xlu0 %1794
  %1796 = vrot.lane.b32.xlu0 %v600, 16
  %v1797 = vpop.permute.xlu0 %1796
  %1798 = vrot.lane.b32.xlu0 %v601, 16
  %v1799 = vpop.permute.xlu0 %1798
  %1800 = vrot.lane.b32.xlu0 %v602, 16
  %v1801 = vpop.permute.xlu0 %1800
  %1802 = vrot.lane.b32.xlu0 %v603, 16
  %v1803 = vpop.permute.xlu0 %1802
  %1804 = vrot.lane.b32.xlu0 %v604, 16
  %v1805 = vpop.permute.xlu0 %1804
  %1806 = vrot.lane.b32.xlu0 %v605, 16
  %v1807 = vpop.permute.xlu0 %1806
  %1808 = vrot.lane.b32.xlu0 %v606, 16
  %v1809 = vpop.permute.xlu0 %1808
  %1810 = vrot.lane.b32.xlu0 %v607, 16
  %v1811 = vpop.permute.xlu0 %1810
  %1812 = vrot.lane.b32.xlu0 %v608, 16
  %v1813 = vpop.permute.xlu0 %1812
  %1814 = vrot.lane.b32.xlu0 %v609, 16
  %v1815 = vpop.permute.xlu0 %1814
  %1816 = vrot.lane.b32.xlu0 %v610, 16
  %v1817 = vpop.permute.xlu0 %1816
  %1818 = vrot.lane.b32.xlu0 %v611, 16
  %v1819 = vpop.permute.xlu0 %1818
  %1820 = vrot.lane.b32.xlu0 %v612, 16
  %v1821 = vpop.permute.xlu0 %1820
  %1822 = vrot.lane.b32.xlu0 %v613, 16
  %v1823 = vpop.permute.xlu0 %1822
  %1824 = vrot.lane.b32.xlu0 %v614, 16
  %v1825 = vpop.permute.xlu0 %1824
  %1826 = vrot.lane.b32.xlu0 %v615, 16
  %v1827 = vpop.permute.xlu0 %1826
  %1828 = vrot.lane.b32.xlu0 %v616, 16
  %v1829 = vpop.permute.xlu0 %1828
  %1830 = vrot.lane.b32.xlu0 %v617, 16
  %v1831 = vpop.permute.xlu0 %1830
  %1832 = vrot.lane.b32.xlu0 %v618, 16
  %v1833 = vpop.permute.xlu0 %1832
  %1834 = vrot.lane.b32.xlu0 %v619, 16
  %v1835 = vpop.permute.xlu0 %1834
  %1836 = vrot.lane.b32.xlu0 %v620, 16
  %v1837 = vpop.permute.xlu0 %1836
  %1966 = vrot.lane.b32.xlu0 %v621, 20
  %v1967 = vpop.permute.xlu0 %1966
  %1968 = vrot.lane.b32.xlu0 %v622, 20
  %v1969 = vpop.permute.xlu0 %1968
  %1970 = vrot.lane.b32.xlu0 %v623, 20
  %v1971 = vpop.permute.xlu0 %1970
  %1972 = vrot.lane.b32.xlu0 %v624, 20
  %v1973 = vpop.permute.xlu0 %1972
  %1974 = vrot.lane.b32.xlu0 %v625, 20
  %v1975 = vpop.permute.xlu0 %1974
  %1976 = vrot.lane.b32.xlu0 %v626, 20
  %v1977 = vpop.permute.xlu0 %1976
  %1978 = vrot.lane.b32.xlu0 %v627, 20
  %v1979 = vpop.permute.xlu0 %1978
  %1980 = vrot.lane.b32.xlu0 %v628, 20
  %v1981 = vpop.permute.xlu0 %1980
  %1982 = vrot.lane.b32.xlu0 %v629, 20
  %v1983 = vpop.permute.xlu0 %1982
  %1984 = vrot.lane.b32.xlu0 %v630, 20
  %v1985 = vpop.permute.xlu0 %1984
  %1986 = vrot.lane.b32.xlu0 %v631, 20
  %v1987 = vpop.permute.xlu0 %1986
  %1988 = vrot.lane.b32.xlu0 %v632, 20
  %v1989 = vpop.permute.xlu0 %1988
  %1990 = vrot.lane.b32.xlu0 %v633, 20
  %v1991 = vpop.permute.xlu0 %1990
  %1992 = vrot.lane.b32.xlu0 %v634, 20
  %v1993 = vpop.permute.xlu0 %1992
  %1994 = vrot.lane.b32.xlu0 %v635, 20
  %v1995 = vpop.permute.xlu0 %1994
  %1996 = vrot.lane.b32.xlu0 %v636, 20
  %v1997 = vpop.permute.xlu0 %1996
  %1998 = vrot.lane.b32.xlu0 %v637, 20
  %v1999 = vpop.permute.xlu0 %1998
  %2000 = vrot.lane.b32.xlu0 %v638, 20
  %v2001 = vpop.permute.xlu0 %2000
  %2002 = vrot.lane.b32.xlu0 %v639, 20
  %v2003 = vpop.permute.xlu0 %2002
  %2004 = vrot.lane.b32.xlu0 %v640, 20
  %v2005 = vpop.permute.xlu0 %2004
  %2006 = vrot.lane.b32.xlu0 %v641, 20
  %v2007 = vpop.permute.xlu0 %2006
  %2008 = vrot.lane.b32.xlu0 %v642, 20
  %v2009 = vpop.permute.xlu0 %2008
  %2010 = vrot.lane.b32.xlu0 %v643, 20
  %v2011 = vpop.permute.xlu0 %2010
  %2012 = vrot.lane.b32.xlu0 %v644, 20
  %v2013 = vpop.permute.xlu0 %2012
  %2014 = vrot.lane.b32.xlu0 %v645, 20
  %v2015 = vpop.permute.xlu0 %2014
  %2016 = vrot.lane.b32.xlu0 %v646, 20
  %v2017 = vpop.permute.xlu0 %2016
  %2018 = vrot.lane.b32.xlu0 %v647, 20
  %v2019 = vpop.permute.xlu0 %2018
  %2020 = vrot.lane.b32.xlu0 %v648, 20
  %v2021 = vpop.permute.xlu0 %2020
  %2022 = vrot.lane.b32.xlu0 %v649, 20
  %v2023 = vpop.permute.xlu0 %2022
  %2024 = vrot.lane.b32.xlu0 %v650, 20
  %v2025 = vpop.permute.xlu0 %2024
  %2026 = vrot.lane.b32.xlu0 %v651, 20
  %v2027 = vpop.permute.xlu0 %2026
  %2028 = vrot.lane.b32.xlu0 %v652, 20
  %v2029 = vpop.permute.xlu0 %2028
  %2030 = vrot.lane.b32.xlu0 %v653, 20
  %v2031 = vpop.permute.xlu0 %2030
  %2032 = vrot.lane.b32.xlu0 %v654, 20
  %v2033 = vpop.permute.xlu0 %2032
  %2034 = vrot.lane.b32.xlu0 %v655, 20
  %v2035 = vpop.permute.xlu0 %2034
  %2036 = vrot.lane.b32.xlu0 %v656, 20
  %v2037 = vpop.permute.xlu0 %2036
  %2038 = vrot.lane.b32.xlu0 %v657, 20
  %v2039 = vpop.permute.xlu0 %2038
  %2040 = vrot.lane.b32.xlu0 %v658, 20
  %v2041 = vpop.permute.xlu0 %2040
  %2042 = vrot.lane.b32.xlu0 %v659, 20
  %v2043 = vpop.permute.xlu0 %2042
  %2044 = vrot.lane.b32.xlu0 %v660, 20
  %v2045 = vpop.permute.xlu0 %2044
  %2046 = vrot.lane.b32.xlu0 %v661, 20
  %v2047 = vpop.permute.xlu0 %2046
  %2048 = vrot.lane.b32.xlu0 %v662, 20
  %v2049 = vpop.permute.xlu0 %2048
  %2050 = vrot.lane.b32.xlu0 %v663, 20
  %v2051 = vpop.permute.xlu0 %2050
  %2052 = vrot.lane.b32.xlu0 %v664, 20
  %v2053 = vpop.permute.xlu0 %2052
  %2054 = vrot.lane.b32.xlu0 %v665, 20
  %v2055 = vpop.permute.xlu0 %2054
  %2056 = vrot.lane.b32.xlu0 %v666, 20
  %v2057 = vpop.permute.xlu0 %2056
  %2058 = vrot.lane.b32.xlu0 %v667, 20
  %v2059 = vpop.permute.xlu0 %2058
  %2060 = vrot.lane.b32.xlu0 %v668, 20
  %v2061 = vpop.permute.xlu0 %2060
  %2062 = vrot.lane.b32.xlu0 %v669, 20
  %v2063 = vpop.permute.xlu0 %2062
  %2064 = vrot.lane.b32.xlu0 %v670, 20
  %v2065 = vpop.permute.xlu0 %2064
  %2066 = vrot.lane.b32.xlu0 %v671, 20
  %v2067 = vpop.permute.xlu0 %2066
  %2068 = vrot.lane.b32.xlu0 %v672, 20
  %v2069 = vpop.permute.xlu0 %2068
  %2070 = vrot.lane.b32.xlu0 %v673, 20
  %v2071 = vpop.permute.xlu0 %2070
  %2072 = vrot.lane.b32.xlu0 %v674, 20
  %v2073 = vpop.permute.xlu0 %2072
  %2074 = vrot.lane.b32.xlu0 %v675, 20
  %v2075 = vpop.permute.xlu0 %2074
  %2076 = vrot.lane.b32.xlu0 %v676, 20
  %v2077 = vpop.permute.xlu0 %2076
  %2078 = vrot.lane.b32.xlu0 %v677, 20
  %v2079 = vpop.permute.xlu0 %2078
  %2080 = vrot.lane.b32.xlu0 %v678, 20
  %v2081 = vpop.permute.xlu0 %2080
  %2082 = vrot.lane.b32.xlu0 %v679, 20
  %v2083 = vpop.permute.xlu0 %2082
  %2084 = vrot.lane.b32.xlu0 %v680, 20
  %v2085 = vpop.permute.xlu0 %2084
  %2086 = vrot.lane.b32.xlu0 %v681, 20
  %v2087 = vpop.permute.xlu0 %2086
  %2088 = vrot.lane.b32.xlu0 %v682, 20
  %v2089 = vpop.permute.xlu0 %2088
  %2090 = vrot.lane.b32.xlu0 %v683, 20
  %v2091 = vpop.permute.xlu0 %2090
  %2092 = vrot.lane.b32.xlu0 %v684, 20
  %v2093 = vpop.permute.xlu0 %2092
  %2222 = vrot.lane.b32.xlu0 %v686, 24
  %v2223 = vpop.permute.xlu0 %2222
  %2224 = vrot.lane.b32.xlu0 %v687, 24
  %v2225 = vpop.permute.xlu0 %2224
  %2226 = vrot.lane.b32.xlu0 %v688, 24
  %v2227 = vpop.permute.xlu0 %2226
  %2228 = vrot.lane.b32.xlu0 %v689, 24
  %v2229 = vpop.permute.xlu0 %2228
  %2230 = vrot.lane.b32.xlu0 %v690, 24
  %v2231 = vpop.permute.xlu0 %2230
  %2232 = vrot.lane.b32.xlu0 %v691, 24
  %v2233 = vpop.permute.xlu0 %2232
  %2234 = vrot.lane.b32.xlu0 %v692, 24
  %v2235 = vpop.permute.xlu0 %2234
  %2236 = vrot.lane.b32.xlu0 %v693, 24
  %v2237 = vpop.permute.xlu0 %2236
  %2238 = vrot.lane.b32.xlu0 %v694, 24
  %v2239 = vpop.permute.xlu0 %2238
  %2240 = vrot.lane.b32.xlu0 %v695, 24
  %v2241 = vpop.permute.xlu0 %2240
  %2242 = vrot.lane.b32.xlu0 %v696, 24
  %v2243 = vpop.permute.xlu0 %2242
  %2244 = vrot.lane.b32.xlu0 %v697, 24
  %v2245 = vpop.permute.xlu0 %2244
  %2246 = vrot.lane.b32.xlu0 %v698, 24
  %v2247 = vpop.permute.xlu0 %2246
  %2248 = vrot.lane.b32.xlu0 %v699, 24
  %v2249 = vpop.permute.xlu0 %2248
  %2250 = vrot.lane.b32.xlu0 %v700, 24
  %v2251 = vpop.permute.xlu0 %2250
  %2252 = vrot.lane.b32.xlu0 %v701, 24
  %v2253 = vpop.permute.xlu0 %2252
  %2254 = vrot.lane.b32.xlu0 %v702, 24
  %v2255 = vpop.permute.xlu0 %2254
  %2256 = vrot.lane.b32.xlu0 %v703, 24
  %v2257 = vpop.permute.xlu0 %2256
  %2258 = vrot.lane.b32.xlu0 %v704, 24
  %v2259 = vpop.permute.xlu0 %2258
  %2260 = vrot.lane.b32.xlu0 %v705, 24
  %v2261 = vpop.permute.xlu0 %2260
  %2262 = vrot.lane.b32.xlu0 %v706, 24
  %v2263 = vpop.permute.xlu0 %2262
  %2264 = vrot.lane.b32.xlu0 %v707, 24
  %v2265 = vpop.permute.xlu0 %2264
  %2266 = vrot.lane.b32.xlu0 %v708, 24
  %v2267 = vpop.permute.xlu0 %2266
  %2268 = vrot.lane.b32.xlu0 %v709, 24
  %v2269 = vpop.permute.xlu0 %2268
  %2270 = vrot.lane.b32.xlu0 %v710, 24
  %v2271 = vpop.permute.xlu0 %2270
  %2272 = vrot.lane.b32.xlu0 %v711, 24
  %v2273 = vpop.permute.xlu0 %2272
  %2274 = vrot.lane.b32.xlu0 %v712, 24
  %v2275 = vpop.permute.xlu0 %2274
  %2276 = vrot.lane.b32.xlu0 %v713, 24
  %v2277 = vpop.permute.xlu0 %2276
  %2278 = vrot.lane.b32.xlu0 %v714, 24
  %v2279 = vpop.permute.xlu0 %2278
  %2280 = vrot.lane.b32.xlu0 %v715, 24
  %v2281 = vpop.permute.xlu0 %2280
  %2282 = vrot.lane.b32.xlu0 %v716, 24
  %v2283 = vpop.permute.xlu0 %2282
  %2284 = vrot.lane.b32.xlu0 %v717, 24
  %v2285 = vpop.permute.xlu0 %2284
  %2286 = vrot.lane.b32.xlu0 %v718, 24
  %v2287 = vpop.permute.xlu0 %2286
  %2288 = vrot.lane.b32.xlu0 %v719, 24
  %v2289 = vpop.permute.xlu0 %2288
  %2290 = vrot.lane.b32.xlu0 %v720, 24
  %v2291 = vpop.permute.xlu0 %2290
  %2292 = vrot.lane.b32.xlu0 %v721, 24
  %v2293 = vpop.permute.xlu0 %2292
  %2294 = vrot.lane.b32.xlu0 %v722, 24
  %v2295 = vpop.permute.xlu0 %2294
  %2296 = vrot.lane.b32.xlu0 %v723, 24
  %v2297 = vpop.permute.xlu0 %2296
  %2298 = vrot.lane.b32.xlu0 %v724, 24
  %v2299 = vpop.permute.xlu0 %2298
  %2300 = vrot.lane.b32.xlu0 %v725, 24
  %v2301 = vpop.permute.xlu0 %2300
  %2302 = vrot.lane.b32.xlu0 %v726, 24
  %v2303 = vpop.permute.xlu0 %2302
  %2304 = vrot.lane.b32.xlu0 %v727, 24
  %v2305 = vpop.permute.xlu0 %2304
  %2306 = vrot.lane.b32.xlu0 %v728, 24
  %v2307 = vpop.permute.xlu0 %2306
  %2308 = vrot.lane.b32.xlu0 %v729, 24
  %v2309 = vpop.permute.xlu0 %2308
  %2310 = vrot.lane.b32.xlu0 %v730, 24
  %v2311 = vpop.permute.xlu0 %2310
  %2312 = vrot.lane.b32.xlu0 %v731, 24
  %v2313 = vpop.permute.xlu0 %2312
  %2314 = vrot.lane.b32.xlu0 %v732, 24
  %v2315 = vpop.permute.xlu0 %2314
  %2316 = vrot.lane.b32.xlu0 %v733, 24
  %v2317 = vpop.permute.xlu0 %2316
  %2318 = vrot.lane.b32.xlu0 %v734, 24
  %v2319 = vpop.permute.xlu0 %2318
  %2320 = vrot.lane.b32.xlu0 %v735, 24
  %v2321 = vpop.permute.xlu0 %2320
  %2322 = vrot.lane.b32.xlu0 %v736, 24
  %v2323 = vpop.permute.xlu0 %2322
  %2324 = vrot.lane.b32.xlu0 %v737, 24
  %v2325 = vpop.permute.xlu0 %2324
  %2326 = vrot.lane.b32.xlu0 %v738, 24
  %v2327 = vpop.permute.xlu0 %2326
  %2328 = vrot.lane.b32.xlu0 %v739, 24
  %v2329 = vpop.permute.xlu0 %2328
  %2330 = vrot.lane.b32.xlu0 %v740, 24
  %v2331 = vpop.permute.xlu0 %2330
  %2332 = vrot.lane.b32.xlu0 %v741, 24
  %v2333 = vpop.permute.xlu0 %2332
  %2334 = vrot.lane.b32.xlu0 %v742, 24
  %v2335 = vpop.permute.xlu0 %2334
  %2336 = vrot.lane.b32.xlu0 %v743, 24
  %v2337 = vpop.permute.xlu0 %2336
  %2338 = vrot.lane.b32.xlu0 %v744, 24
  %v2339 = vpop.permute.xlu0 %2338
  %2340 = vrot.lane.b32.xlu0 %v745, 24
  %v2341 = vpop.permute.xlu0 %2340
  %2342 = vrot.lane.b32.xlu0 %v746, 24
  %v2343 = vpop.permute.xlu0 %2342
  %2344 = vrot.lane.b32.xlu0 %v747, 24
  %v2345 = vpop.permute.xlu0 %2344
  %2346 = vrot.lane.b32.xlu0 %v748, 24
  %v2347 = vpop.permute.xlu0 %2346
  %2348 = vrot.lane.b32.xlu0 %v749, 24
  %v2349 = vpop.permute.xlu0 %2348
  %2478 = vrot.lane.b32.xlu0 %v750, 28
  %v2479 = vpop.permute.xlu0 %2478
  %2480 = vrot.lane.b32.xlu0 %v751, 28
  %v2481 = vpop.permute.xlu0 %2480
  %2482 = vrot.lane.b32.xlu0 %v752, 28
  %v2483 = vpop.permute.xlu0 %2482
  %2484 = vrot.lane.b32.xlu0 %v753, 28
  %v2485 = vpop.permute.xlu0 %2484
  %2486 = vrot.lane.b32.xlu0 %v754, 28
  %v2487 = vpop.permute.xlu0 %2486
  %2488 = vrot.lane.b32.xlu0 %v755, 28
  %v2489 = vpop.permute.xlu0 %2488
  %2490 = vrot.lane.b32.xlu0 %v756, 28
  %v2491 = vpop.permute.xlu0 %2490
  %2492 = vrot.lane.b32.xlu0 %v757, 28
  %v2493 = vpop.permute.xlu0 %2492
  %2494 = vrot.lane.b32.xlu0 %v758, 28
  %v2495 = vpop.permute.xlu0 %2494
  %2496 = vrot.lane.b32.xlu0 %v759, 28
  %v2497 = vpop.permute.xlu0 %2496
  %2498 = vrot.lane.b32.xlu0 %v760, 28
  %v2499 = vpop.permute.xlu0 %2498
  %2500 = vrot.lane.b32.xlu0 %v761, 28
  %v2501 = vpop.permute.xlu0 %2500
  %2502 = vrot.lane.b32.xlu0 %v762, 28
  %v2503 = vpop.permute.xlu0 %2502
  %2504 = vrot.lane.b32.xlu0 %v763, 28
  %v2505 = vpop.permute.xlu0 %2504
  %2506 = vrot.lane.b32.xlu0 %v764, 28
  %v2507 = vpop.permute.xlu0 %2506
  %2508 = vrot.lane.b32.xlu0 %v765, 28
  %v2509 = vpop.permute.xlu0 %2508
  %2510 = vrot.lane.b32.xlu0 %v766, 28
  %v2511 = vpop.permute.xlu0 %2510
  %2512 = vrot.lane.b32.xlu0 %v767, 28
  %v2513 = vpop.permute.xlu0 %2512
  %2514 = vrot.lane.b32.xlu0 %v768, 28
  %v2515 = vpop.permute.xlu0 %2514
  %2516 = vrot.lane.b32.xlu0 %v769, 28
  %v2517 = vpop.permute.xlu0 %2516
  %2518 = vrot.lane.b32.xlu0 %v770, 28
  %v2519 = vpop.permute.xlu0 %2518
  %2520 = vrot.lane.b32.xlu0 %v771, 28
  %v2521 = vpop.permute.xlu0 %2520
  %2522 = vrot.lane.b32.xlu0 %v772, 28
  %v2523 = vpop.permute.xlu0 %2522
  %2524 = vrot.lane.b32.xlu0 %v773, 28
  %v2525 = vpop.permute.xlu0 %2524
  %2526 = vrot.lane.b32.xlu0 %v774, 28
  %v2527 = vpop.permute.xlu0 %2526
  %2528 = vrot.lane.b32.xlu0 %v775, 28
  %v2529 = vpop.permute.xlu0 %2528
  %2530 = vrot.lane.b32.xlu0 %v776, 28
  %v2531 = vpop.permute.xlu0 %2530
  %2532 = vrot.lane.b32.xlu0 %v777, 28
  %v2533 = vpop.permute.xlu0 %2532
  %2534 = vrot.lane.b32.xlu0 %v778, 28
  %v2535 = vpop.permute.xlu0 %2534
  %2536 = vrot.lane.b32.xlu0 %v779, 28
  %v2537 = vpop.permute.xlu0 %2536
  %2538 = vrot.lane.b32.xlu0 %v780, 28
  %v2539 = vpop.permute.xlu0 %2538
  %2540 = vrot.lane.b32.xlu0 %v781, 28
  %v2541 = vpop.permute.xlu0 %2540
  %2542 = vrot.lane.b32.xlu0 %v782, 28
  %v2543 = vpop.permute.xlu0 %2542
  %2544 = vrot.lane.b32.xlu0 %v783, 28
  %v2545 = vpop.permute.xlu0 %2544
  %2546 = vrot.lane.b32.xlu0 %v784, 28
  %v2547 = vpop.permute.xlu0 %2546
  %2548 = vrot.lane.b32.xlu0 %v785, 28
  %v2549 = vpop.permute.xlu0 %2548
  %2550 = vrot.lane.b32.xlu0 %v786, 28
  %v2551 = vpop.permute.xlu0 %2550
  %2552 = vrot.lane.b32.xlu0 %v787, 28
  %v2553 = vpop.permute.xlu0 %2552
  %2554 = vrot.lane.b32.xlu0 %v788, 28
  %v2555 = vpop.permute.xlu0 %2554
  %2556 = vrot.lane.b32.xlu0 %v789, 28
  %v2557 = vpop.permute.xlu0 %2556
  %2558 = vrot.lane.b32.xlu0 %v790, 28
  %v2559 = vpop.permute.xlu0 %2558
  %2560 = vrot.lane.b32.xlu0 %v791, 28
  %v2561 = vpop.permute.xlu0 %2560
  %2562 = vrot.lane.b32.xlu0 %v792, 28
  %v2563 = vpop.permute.xlu0 %2562
  %2564 = vrot.lane.b32.xlu0 %v793, 28
  %v2565 = vpop.permute.xlu0 %2564
  %2566 = vrot.lane.b32.xlu0 %v794, 28
  %v2567 = vpop.permute.xlu0 %2566
  %2568 = vrot.lane.b32.xlu0 %v795, 28
  %v2569 = vpop.permute.xlu0 %2568
  %2570 = vrot.lane.b32.xlu0 %v796, 28
  %v2571 = vpop.permute.xlu0 %2570
  %2572 = vrot.lane.b32.xlu0 %v797, 28
  %v2573 = vpop.permute.xlu0 %2572
  %2574 = vrot.lane.b32.xlu0 %v798, 28
  %v2575 = vpop.permute.xlu0 %2574
  %2576 = vrot.lane.b32.xlu0 %v799, 28
  %v2577 = vpop.permute.xlu0 %2576
  %2578 = vrot.lane.b32.xlu0 %v800, 28
  %v2579 = vpop.permute.xlu0 %2578
  %2580 = vrot.lane.b32.xlu0 %v801, 28
  %v2581 = vpop.permute.xlu0 %2580
  %2582 = vrot.lane.b32.xlu0 %v802, 28
  %v2583 = vpop.permute.xlu0 %2582
  %2584 = vrot.lane.b32.xlu0 %v803, 28
  %v2585 = vpop.permute.xlu0 %2584
  %2586 = vrot.lane.b32.xlu0 %v804, 28
  %v2587 = vpop.permute.xlu0 %2586
  %2588 = vrot.lane.b32.xlu0 %v805, 28
  %v2589 = vpop.permute.xlu0 %2588
  %2590 = vrot.lane.b32.xlu0 %v806, 28
  %v2591 = vpop.permute.xlu0 %2590
  %2592 = vrot.lane.b32.xlu0 %v807, 28
  %v2593 = vpop.permute.xlu0 %2592
  %2594 = vrot.lane.b32.xlu0 %v808, 28
  %v2595 = vpop.permute.xlu0 %2594
  %2596 = vrot.lane.b32.xlu0 %v809, 28
  %v2597 = vpop.permute.xlu0 %2596
  %2598 = vrot.lane.b32.xlu0 %v810, 28
  %v2599 = vpop.permute.xlu0 %2598
  %2600 = vrot.lane.b32.xlu0 %v811, 28
  %v2601 = vpop.permute.xlu0 %2600
  %2602 = vrot.lane.b32.xlu0 %v812, 28
  %v2603 = vpop.permute.xlu0 %2602
  %2604 = vrot.lane.b32.xlu0 %v813, 28
  %v2605 = vpop.permute.xlu0 %2604
  %2734 = vrot.lane.b32.xlu0 %v814, 32
  %v2735 = vpop.permute.xlu0 %2734
  %2736 = vrot.lane.b32.xlu0 %v815, 32
  %v2737 = vpop.permute.xlu0 %2736
  %2738 = vrot.lane.b32.xlu0 %v816, 32
  %v2739 = vpop.permute.xlu0 %2738
  %2740 = vrot.lane.b32.xlu0 %v817, 32
  %v2741 = vpop.permute.xlu0 %2740
  %2742 = vrot.lane.b32.xlu0 %v818, 32
  %v2743 = vpop.permute.xlu0 %2742
  %2744 = vrot.lane.b32.xlu0 %v819, 32
  %v2745 = vpop.permute.xlu0 %2744
  %2746 = vrot.lane.b32.xlu0 %v820, 32
  %v2747 = vpop.permute.xlu0 %2746
  %2748 = vrot.lane.b32.xlu0 %v821, 32
  %v2749 = vpop.permute.xlu0 %2748
  %2750 = vrot.lane.b32.xlu0 %v822, 32
  %v2751 = vpop.permute.xlu0 %2750
  %2752 = vrot.lane.b32.xlu0 %v823, 32
  %v2753 = vpop.permute.xlu0 %2752
  %2754 = vrot.lane.b32.xlu0 %v824, 32
  %v2755 = vpop.permute.xlu0 %2754
  %2756 = vrot.lane.b32.xlu0 %v825, 32
  %v2757 = vpop.permute.xlu0 %2756
  %2758 = vrot.lane.b32.xlu0 %v826, 32
  %v2759 = vpop.permute.xlu0 %2758
  %2760 = vrot.lane.b32.xlu0 %v827, 32
  %v2761 = vpop.permute.xlu0 %2760
  %2762 = vrot.lane.b32.xlu0 %v828, 32
  %v2763 = vpop.permute.xlu0 %2762
  %2764 = vrot.lane.b32.xlu0 %v829, 32
  %v2765 = vpop.permute.xlu0 %2764
  %2766 = vrot.lane.b32.xlu0 %v830, 32
  %v2767 = vpop.permute.xlu0 %2766
  %2768 = vrot.lane.b32.xlu0 %v831, 32
  %v2769 = vpop.permute.xlu0 %2768
  %2770 = vrot.lane.b32.xlu0 %v832, 32
  %v2771 = vpop.permute.xlu0 %2770
  %2772 = vrot.lane.b32.xlu0 %v833, 32
  %v2773 = vpop.permute.xlu0 %2772
  %2774 = vrot.lane.b32.xlu0 %v834, 32
  %v2775 = vpop.permute.xlu0 %2774
  %2776 = vrot.lane.b32.xlu0 %v835, 32
  %v2777 = vpop.permute.xlu0 %2776
  %2778 = vrot.lane.b32.xlu0 %v836, 32
  %v2779 = vpop.permute.xlu0 %2778
  %2780 = vrot.lane.b32.xlu0 %v837, 32
  %v2781 = vpop.permute.xlu0 %2780
  %2782 = vrot.lane.b32.xlu0 %v838, 32
  %v2783 = vpop.permute.xlu0 %2782
  %2784 = vrot.lane.b32.xlu0 %v839, 32
  %v2785 = vpop.permute.xlu0 %2784
  %2786 = vrot.lane.b32.xlu0 %v840, 32
  %v2787 = vpop.permute.xlu0 %2786
  %2788 = vrot.lane.b32.xlu0 %v841, 32
  %v2789 = vpop.permute.xlu0 %2788
  %2790 = vrot.lane.b32.xlu0 %v842, 32
  %v2791 = vpop.permute.xlu0 %2790
  %2792 = vrot.lane.b32.xlu0 %v843, 32
  %v2793 = vpop.permute.xlu0 %2792
  %2794 = vrot.lane.b32.xlu0 %v844, 32
  %v2795 = vpop.permute.xlu0 %2794
  %2796 = vrot.lane.b32.xlu0 %v845, 32
  %v2797 = vpop.permute.xlu0 %2796
  %2798 = vrot.lane.b32.xlu0 %v846, 32
  %v2799 = vpop.permute.xlu0 %2798
  %2800 = vrot.lane.b32.xlu0 %v847, 32
  %v2801 = vpop.permute.xlu0 %2800
  %2802 = vrot.lane.b32.xlu0 %v848, 32
  %v2803 = vpop.permute.xlu0 %2802
  %2804 = vrot.lane.b32.xlu0 %v849, 32
  %v2805 = vpop.permute.xlu0 %2804
  %2806 = vrot.lane.b32.xlu0 %v850, 32
  %v2807 = vpop.permute.xlu0 %2806
  %2808 = vrot.lane.b32.xlu0 %v851, 32
  %v2809 = vpop.permute.xlu0 %2808
  %2810 = vrot.lane.b32.xlu0 %v852, 32
  %v2811 = vpop.permute.xlu0 %2810
  %2812 = vrot.lane.b32.xlu0 %v853, 32
  %v2813 = vpop.permute.xlu0 %2812
  %2814 = vrot.lane.b32.xlu0 %v854, 32
  %v2815 = vpop.permute.xlu0 %2814
  %2816 = vrot.lane.b32.xlu0 %v855, 32
  %v2817 = vpop.permute.xlu0 %2816
  %2818 = vrot.lane.b32.xlu0 %v856, 32
  %v2819 = vpop.permute.xlu0 %2818
  %2820 = vrot.lane.b32.xlu0 %v857, 32
  %v2821 = vpop.permute.xlu0 %2820
  %2822 = vrot.lane.b32.xlu0 %v858, 32
  %v2823 = vpop.permute.xlu0 %2822
  %2824 = vrot.lane.b32.xlu0 %v859, 32
  %v2825 = vpop.permute.xlu0 %2824
  %2826 = vrot.lane.b32.xlu0 %v860, 32
  %v2827 = vpop.permute.xlu0 %2826
  %2828 = vrot.lane.b32.xlu0 %v861, 32
  %v2829 = vpop.permute.xlu0 %2828
  %2830 = vrot.lane.b32.xlu0 %v862, 32
  %v2831 = vpop.permute.xlu0 %2830
  %2832 = vrot.lane.b32.xlu0 %v863, 32
  %v2833 = vpop.permute.xlu0 %2832
  %2834 = vrot.lane.b32.xlu0 %v864, 32
  %v2835 = vpop.permute.xlu0 %2834
  %2836 = vrot.lane.b32.xlu0 %v865, 32
  %v2837 = vpop.permute.xlu0 %2836
  %2838 = vrot.lane.b32.xlu0 %v866, 32
  %v2839 = vpop.permute.xlu0 %2838
  %2840 = vrot.lane.b32.xlu0 %v867, 32
  %v2841 = vpop.permute.xlu0 %2840
  %2842 = vrot.lane.b32.xlu0 %v868, 32
  %v2843 = vpop.permute.xlu0 %2842
  %2844 = vrot.lane.b32.xlu0 %v869, 32
  %v2845 = vpop.permute.xlu0 %2844
  %2846 = vrot.lane.b32.xlu0 %v870, 32
  %v2847 = vpop.permute.xlu0 %2846
  %2848 = vrot.lane.b32.xlu0 %v871, 32
  %v2849 = vpop.permute.xlu0 %2848
  %2850 = vrot.lane.b32.xlu0 %v872, 32
  %v2851 = vpop.permute.xlu0 %2850
  %2852 = vrot.lane.b32.xlu0 %v873, 32
  %v2853 = vpop.permute.xlu0 %2852
  %2854 = vrot.lane.b32.xlu0 %v874, 32
  %v2855 = vpop.permute.xlu0 %2854
  %2856 = vrot.lane.b32.xlu0 %v875, 32
  %v2857 = vpop.permute.xlu0 %2856
  %2858 = vrot.lane.b32.xlu0 %v876, 32
  %v2859 = vpop.permute.xlu0 %2858
  %2860 = vrot.lane.b32.xlu0 %v877, 32
  %v2861 = vpop.permute.xlu0 %2860
  %v2926 = vsel %vm26, %v301, %v943
  %v2927 = vsel %vm26, %v302, %v945
  %v2928 = vsel %vm26, %v303, %v947
  %v2929 = vsel %vm26, %v304, %v949
  %v2930 = vsel %vm26, %v305, %v951
  %v2931 = vsel %vm26, %v306, %v953
  %v2932 = vsel %vm26, %v307, %v955
  %v2933 = vsel %vm26, %v308, %v957
  %v2934 = vsel %vm26, %v309, %v959
  %v2935 = vsel %vm26, %v310, %v961
  %v2936 = vsel %vm26, %v311, %v963
  %v2937 = vsel %vm26, %v312, %v965
  %v2938 = vsel %vm26, %v313, %v967
  %v2939 = vsel %vm26, %v314, %v969
  %v2940 = vsel %vm26, %v315, %v971
  %v2941 = vsel %vm26, %v316, %v973
  %v2942 = vsel %vm26, %v317, %v975
  %v2943 = vsel %vm26, %v318, %v977
  %v2944 = vsel %vm26, %v319, %v979
  %v2945 = vsel %vm26, %v320, %v981
  %v2946 = vsel %vm26, %v321, %v983
  %v2947 = vsel %vm26, %v322, %v985
  %v2948 = vsel %vm26, %v323, %v987
  %v2949 = vsel %vm26, %v324, %v989
  %v2950 = vsel %vm26, %v325, %v991
  %v2951 = vsel %vm26, %v326, %v993
  %v2952 = vsel %vm26, %v327, %v995
  %v2953 = vsel %vm26, %v328, %v997
  %v2954 = vsel %vm26, %v329, %v999
  %v2955 = vsel %vm26, %v330, %v1001
  %v2956 = vsel %vm26, %v331, %v1003
  %v2957 = vsel %vm26, %v332, %v1005
  %v2958 = vsel %vm26, %v333, %v1007
  %v2959 = vsel %vm26, %v334, %v1009
  %v2960 = vsel %vm26, %v335, %v1011
  %v2961 = vsel %vm26, %v336, %v1013
  %v2962 = vsel %vm26, %v337, %v1015
  %v2963 = vsel %vm26, %v338, %v1017
  %v2964 = vsel %vm26, %v339, %v1019
  %v2965 = vsel %vm26, %v340, %v1021
  %v2966 = vsel %vm26, %v341, %v1023
  %v2967 = vsel %vm26, %v342, %v1025
  %v2968 = vsel %vm26, %v343, %v1027
  %v2969 = vsel %vm26, %v344, %v1029
  %v2970 = vsel %vm26, %v345, %v1031
  %v2971 = vsel %vm26, %v346, %v1033
  %v2972 = vsel %vm26, %v347, %v1035
  %v2973 = vsel %vm26, %v348, %v1037
  %v2974 = vsel %vm26, %v349, %v1039
  %v2975 = vsel %vm26, %v350, %v1041
  %v2976 = vsel %vm26, %v351, %v1043
  %v2977 = vsel %vm26, %v352, %v1045
  %v2978 = vsel %vm26, %v353, %v1047
  %v2979 = vsel %vm26, %v354, %v1049
  %v2980 = vsel %vm26, %v355, %v1051
  %v2981 = vsel %vm26, %v356, %v1053
  %v2982 = vsel %vm26, %v357, %v1055
  %v2983 = vsel %vm26, %v358, %v1057
  %v2984 = vsel %vm26, %v359, %v1059
  %v2985 = vsel %vm26, %v360, %v1061
  %v2986 = vsel %vm26, %v361, %v1063
  %v2987 = vsel %vm26, %v362, %v1065
  %v2988 = vsel %vm26, %v363, %v1067
  %v2989 = vsel %vm26, %v364, %v1069
  %vm2990 = vcmask 64512
  %v2991 = vsel %vm2990, %v2926, %v1199
  %v2992 = vsel %vm2990, %v2927, %v1201
  %v2993 = vsel %vm2990, %v2928, %v1203
  %v2994 = vsel %vm2990, %v2929, %v1205
  %v2995 = vsel %vm2990, %v2930, %v1207
  %v2996 = vsel %vm2990, %v2931, %v1209
  %v2997 = vsel %vm2990, %v2932, %v1211
  %v2998 = vsel %vm2990, %v2933, %v1213
  %v2999 = vsel %vm2990, %v2934, %v1215
  %v3000 = vsel %vm2990, %v2935, %v1217
  %v3001 = vsel %vm2990, %v2936, %v1219
  %v3002 = vsel %vm2990, %v2937, %v1221
  %v3003 = vsel %vm2990, %v2938, %v1223
  %v3004 = vsel %vm2990, %v2939, %v1225
  %v3005 = vsel %vm2990, %v2940, %v1227
  %v3006 = vsel %vm2990, %v2941, %v1229
  %v3007 = vsel %vm2990, %v2942, %v1231
  %v3008 = vsel %vm2990, %v2943, %v1233
  %v3009 = vsel %vm2990, %v2944, %v1235
  %v3010 = vsel %vm2990, %v2945, %v1237
  %v3011 = vsel %vm2990, %v2946, %v1239
  %v3012 = vsel %vm2990, %v2947, %v1241
  %v3013 = vsel %vm2990, %v2948, %v1243
  %v3014 = vsel %vm2990, %v2949, %v1245
  %v3015 = vsel %vm2990, %v2950, %v1247
  %v3016 = vsel %vm2990, %v2951, %v1249
  %v3017 = vsel %vm2990, %v2952, %v1251
  %v3018 = vsel %vm2990, %v2953, %v1253
  %v3019 = vsel %vm2990, %v2954, %v1255
  %v3020 = vsel %vm2990, %v2955, %v1257
  %v3021 = vsel %vm2990, %v2956, %v1259
  %v3022 = vsel %vm2990, %v2957, %v1261
  %v3023 = vsel %vm2990, %v2958, %v1263
  %v3024 = vsel %vm2990, %v2959, %v1265
  %v3025 = vsel %vm2990, %v2960, %v1267
  %v3026 = vsel %vm2990, %v2961, %v1269
  %v3027 = vsel %vm2990, %v2962, %v1271
  %v3028 = vsel %vm2990, %v2963, %v1273
  %v3029 = vsel %vm2990, %v2964, %v1275
  %v3030 = vsel %vm2990, %v2965, %v1277
  %v3031 = vsel %vm2990, %v2966, %v1279
  %v3032 = vsel %vm2990, %v2967, %v1281
  %v3033 = vsel %vm2990, %v2968, %v1283
  %v3034 = vsel %vm2990, %v2969, %v1285
  %v3035 = vsel %vm2990, %v2970, %v1287
  %v3036 = vsel %vm2990, %v2971, %v1289
  %v3037 = vsel %vm2990, %v2972, %v1291
  %v3038 = vsel %vm2990, %v2973, %v1293
  %v3039 = vsel %vm2990, %v2974, %v1295
  %v3040 = vsel %vm2990, %v2975, %v1297
  %v3041 = vsel %vm2990, %v2976, %v1299
  %v3042 = vsel %vm2990, %v2977, %v1301
  %v3043 = vsel %vm2990, %v2978, %v1303
  %v3044 = vsel %vm2990, %v2979, %v1305
  %v3045 = vsel %vm2990, %v2980, %v1307
  %v3046 = vsel %vm2990, %v2981, %v1309
  %v3047 = vsel %vm2990, %v2982, %v1311
  %v3048 = vsel %vm2990, %v2983, %v1313
  %v3049 = vsel %vm2990, %v2984, %v1315
  %v3050 = vsel %vm2990, %v2985, %v1317
  %v3051 = vsel %vm2990, %v2986, %v1319
  %v3052 = vsel %vm2990, %v2987, %v1321
  %v3053 = vsel %vm2990, %v2988, %v1323
  %v3054 = vsel %vm2990, %v2989, %v1325
  %vm3055 = vcmask 97280
  %v3056 = vsel %vm3055, %v2991, %v1455
  %v3057 = vsel %vm3055, %v2992, %v1457
  %v3058 = vsel %vm3055, %v2993, %v1459
  %v3059 = vsel %vm3055, %v2994, %v1461
  %v3060 = vsel %vm3055, %v2995, %v1463
  %v3061 = vsel %vm3055, %v2996, %v1465
  %v3062 = vsel %vm3055, %v2997, %v1467
  %v3063 = vsel %vm3055, %v2998, %v1469
  %v3064 = vsel %vm3055, %v2999, %v1471
  %v3065 = vsel %vm3055, %v3000, %v1473
  %v3066 = vsel %vm3055, %v3001, %v1475
  %v3067 = vsel %vm3055, %v3002, %v1477
  %v3068 = vsel %vm3055, %v3003, %v1479
  %v3069 = vsel %vm3055, %v3004, %v1481
  %v3070 = vsel %vm3055, %v3005, %v1483
  %v3071 = vsel %vm3055, %v3006, %v1485
  %v3072 = vsel %vm3055, %v3007, %v1487
  %v3073 = vsel %vm3055, %v3008, %v1489
  %v3074 = vsel %vm3055, %v3009, %v1491
  %v3075 = vsel %vm3055, %v3010, %v1493
  %v3076 = vsel %vm3055, %v3011, %v1495
  %v3077 = vsel %vm3055, %v3012, %v1497
  %v3078 = vsel %vm3055, %v3013, %v1499
  %v3079 = vsel %vm3055, %v3014, %v1501
  %v3080 = vsel %vm3055, %v3015, %v1503
  %v3081 = vsel %vm3055, %v3016, %v1505
  %v3082 = vsel %vm3055, %v3017, %v1507
  %v3083 = vsel %vm3055, %v3018, %v1509
  %v3084 = vsel %vm3055, %v3019, %v1511
  %v3085 = vsel %vm3055, %v3020, %v1513
  %v3086 = vsel %vm3055, %v3021, %v1515
  %v3087 = vsel %vm3055, %v3022, %v1517
  %v3088 = vsel %vm3055, %v3023, %v1519
  %v3089 = vsel %vm3055, %v3024, %v1521
  %v3090 = vsel %vm3055, %v3025, %v1523
  %v3091 = vsel %vm3055, %v3026, %v1525
  %v3092 = vsel %vm3055, %v3027, %v1527
  %v3093 = vsel %vm3055, %v3028, %v1529
  %v3094 = vsel %vm3055, %v3029, %v1531
  %v3095 = vsel %vm3055, %v3030, %v1533
  %v3096 = vsel %vm3055, %v3031, %v1535
  %v3097 = vsel %vm3055, %v3032, %v1537
  %v3098 = vsel %vm3055, %v3033, %v1539
  %v3099 = vsel %vm3055, %v3034, %v1541
  %v3100 = vsel %vm3055, %v3035, %v1543
  %v3101 = vsel %vm3055, %v3036, %v1545
  %v3102 = vsel %vm3055, %v3037, %v1547
  %v3103 = vsel %vm3055, %v3038, %v1549
  %v3104 = vsel %vm3055, %v3039, %v1551
  %v3105 = vsel %vm3055, %v3040, %v1553
  %v3106 = vsel %vm3055, %v3041, %v1555
  %v3107 = vsel %vm3055, %v3042, %v1557
  %v3108 = vsel %vm3055, %v3043, %v1559
  %v3109 = vsel %vm3055, %v3044, %v1561
  %v3110 = vsel %vm3055, %v3045, %v1563
  %v3111 = vsel %vm3055, %v3046, %v1565
  %v3112 = vsel %vm3055, %v3047, %v1567
  %v3113 = vsel %vm3055, %v3048, %v1569
  %v3114 = vsel %vm3055, %v3049, %v1571
  %v3115 = vsel %vm3055, %v3050, %v1573
  %v3116 = vsel %vm3055, %v3051, %v1575
  %v3117 = vsel %vm3055, %v3052, %v1577
  %v3118 = vsel %vm3055, %v3053, %v1579
  %v3119 = vsel %vm3055, %v3054, %v1581
  %vm3120 = vcmask 130048
  %v3121 = vsel %vm3120, %v3056, %v1711
  %v3122 = vsel %vm3120, %v3057, %v1713
  %v3123 = vsel %vm3120, %v3058, %v1715
  %v3124 = vsel %vm3120, %v3059, %v1717
  %v3125 = vsel %vm3120, %v3060, %v1719
  %v3126 = vsel %vm3120, %v3061, %v1721
  %v3127 = vsel %vm3120, %v3062, %v1723
  %v3128 = vsel %vm3120, %v3063, %v1725
  %v3129 = vsel %vm3120, %v3064, %v1727
  %v3130 = vsel %vm3120, %v3065, %v1729
  %v3131 = vsel %vm3120, %v3066, %v1731
  %v3132 = vsel %vm3120, %v3067, %v1733
  %v3133 = vsel %vm3120, %v3068, %v1735
  %v3134 = vsel %vm3120, %v3069, %v1737
  %v3135 = vsel %vm3120, %v3070, %v1739
  %v3136 = vsel %vm3120, %v3071, %v1741
  %v3137 = vsel %vm3120, %v3072, %v1743
  %v3138 = vsel %vm3120, %v3073, %v1745
  %v3139 = vsel %vm3120, %v3074, %v1747
  %v3140 = vsel %vm3120, %v3075, %v1749
  %v3141 = vsel %vm3120, %v3076, %v1751
  %v3142 = vsel %vm3120, %v3077, %v1753
  %v3143 = vsel %vm3120, %v3078, %v1755
  %v3144 = vsel %vm3120, %v3079, %v1757
  %v3145 = vsel %vm3120, %v3080, %v1759
  %v3146 = vsel %vm3120, %v3081, %v1761
  %v3147 = vsel %vm3120, %v3082, %v1763
  %v3148 = vsel %vm3120, %v3083, %v1765
  %v3149 = vsel %vm3120, %v3084, %v1767
  %v3150 = vsel %vm3120, %v3085, %v1769
  %v3151 = vsel %vm3120, %v3086, %v1771
  %v3152 = vsel %vm3120, %v3087, %v1773
  %v3153 = vsel %vm3120, %v3088, %v1775
  %v3154 = vsel %vm3120, %v3089, %v1777
  %v3155 = vsel %vm3120, %v3090, %v1779
  %v3156 = vsel %vm3120, %v3091, %v1781
  %v3157 = vsel %vm3120, %v3092, %v1783
  %v3158 = vsel %vm3120, %v3093, %v1785
  %v3159 = vsel %vm3120, %v3094, %v1787
  %v3160 = vsel %vm3120, %v3095, %v1789
  %v3161 = vsel %vm3120, %v3096, %v1791
  %v3162 = vsel %vm3120, %v3097, %v1793
  %v3163 = vsel %vm3120, %v3098, %v1795
  %v3164 = vsel %vm3120, %v3099, %v1797
  %v3165 = vsel %vm3120, %v3100, %v1799
  %v3166 = vsel %vm3120, %v3101, %v1801
  %v3167 = vsel %vm3120, %v3102, %v1803
  %v3168 = vsel %vm3120, %v3103, %v1805
  %v3169 = vsel %vm3120, %v3104, %v1807
  %v3170 = vsel %vm3120, %v3105, %v1809
  %v3171 = vsel %vm3120, %v3106, %v1811
  %v3172 = vsel %vm3120, %v3107, %v1813
  %v3173 = vsel %vm3120, %v3108, %v1815
  %v3174 = vsel %vm3120, %v3109, %v1817
  %v3175 = vsel %vm3120, %v3110, %v1819
  %v3176 = vsel %vm3120, %v3111, %v1821
  %v3177 = vsel %vm3120, %v3112, %v1823
  %v3178 = vsel %vm3120, %v3113, %v1825
  %v3179 = vsel %vm3120, %v3114, %v1827
  %v3180 = vsel %vm3120, %v3115, %v1829
  %v3181 = vsel %vm3120, %v3116, %v1831
  %v3182 = vsel %vm3120, %v3117, %v1833
  %v3183 = vsel %vm3120, %v3118, %v1835
  %v3184 = vsel %vm3120, %v3119, %v1837
  %vm3185 = vcmask 162816
  %v3186 = vsel %vm3185, %v3121, %v1967
  %v3187 = vsel %vm3185, %v3122, %v1969
  %v3188 = vsel %vm3185, %v3123, %v1971
  %v3189 = vsel %vm3185, %v3124, %v1973
  %v3190 = vsel %vm3185, %v3125, %v1975
  %v3191 = vsel %vm3185, %v3126, %v1977
  %v3192 = vsel %vm3185, %v3127, %v1979
  %v3193 = vsel %vm3185, %v3128, %v1981
  %v3194 = vsel %vm3185, %v3129, %v1983
  %v3195 = vsel %vm3185, %v3130, %v1985
  %v3196 = vsel %vm3185, %v3131, %v1987
  %v3197 = vsel %vm3185, %v3132, %v1989
  %v3198 = vsel %vm3185, %v3133, %v1991
  %v3199 = vsel %vm3185, %v3134, %v1993
  %v3200 = vsel %vm3185, %v3135, %v1995
  %v3201 = vsel %vm3185, %v3136, %v1997
  %v3202 = vsel %vm3185, %v3137, %v1999
  %v3203 = vsel %vm3185, %v3138, %v2001
  %v3204 = vsel %vm3185, %v3139, %v2003
  %v3205 = vsel %vm3185, %v3140, %v2005
  %v3206 = vsel %vm3185, %v3141, %v2007
  %v3207 = vsel %vm3185, %v3142, %v2009
  %v3208 = vsel %vm3185, %v3143, %v2011
  %v3209 = vsel %vm3185, %v3144, %v2013
  %v3210 = vsel %vm3185, %v3145, %v2015
  %v3211 = vsel %vm3185, %v3146, %v2017
  %v3212 = vsel %vm3185, %v3147, %v2019
  %v3213 = vsel %vm3185, %v3148, %v2021
  %v3214 = vsel %vm3185, %v3149, %v2023
  %v3215 = vsel %vm3185, %v3150, %v2025
  %v3216 = vsel %vm3185, %v3151, %v2027
  %v3217 = vsel %vm3185, %v3152, %v2029
  %v3218 = vsel %vm3185, %v3153, %v2031
  %v3219 = vsel %vm3185, %v3154, %v2033
  %v3220 = vsel %vm3185, %v3155, %v2035
  %v3221 = vsel %vm3185, %v3156, %v2037
  %v3222 = vsel %vm3185, %v3157, %v2039
  %v3223 = vsel %vm3185, %v3158, %v2041
  %v3224 = vsel %vm3185, %v3159, %v2043
  %v3225 = vsel %vm3185, %v3160, %v2045
  %v3226 = vsel %vm3185, %v3161, %v2047
  %v3227 = vsel %vm3185, %v3162, %v2049
  %v3228 = vsel %vm3185, %v3163, %v2051
  %v3229 = vsel %vm3185, %v3164, %v2053
  %v3230 = vsel %vm3185, %v3165, %v2055
  %v3231 = vsel %vm3185, %v3166, %v2057
  %v3232 = vsel %vm3185, %v3167, %v2059
  %v3233 = vsel %vm3185, %v3168, %v2061
  %v3234 = vsel %vm3185, %v3169, %v2063
  %v3235 = vsel %vm3185, %v3170, %v2065
  %v3236 = vsel %vm3185, %v3171, %v2067
  %v3237 = vsel %vm3185, %v3172, %v2069
  %v3238 = vsel %vm3185, %v3173, %v2071
  %v3239 = vsel %vm3185, %v3174, %v2073
  %v3240 = vsel %vm3185, %v3175, %v2075
  %v3241 = vsel %vm3185, %v3176, %v2077
  %v3242 = vsel %vm3185, %v3177, %v2079
  %v3243 = vsel %vm3185, %v3178, %v2081
  %v3244 = vsel %vm3185, %v3179, %v2083
  %v3245 = vsel %vm3185, %v3180, %v2085
  %v3246 = vsel %vm3185, %v3181, %v2087
  %v3247 = vsel %vm3185, %v3182, %v2089
  %v3248 = vsel %vm3185, %v3183, %v2091
  %v3249 = vsel %vm3185, %v3184, %v2093
  %vm3250 = vcmask 195584
  %v3251 = vsel %vm3250, %v3186, %v2223
  %v3252 = vsel %vm3250, %v3187, %v2225
  %v3253 = vsel %vm3250, %v3188, %v2227
  %v3254 = vsel %vm3250, %v3189, %v2229
  %v3255 = vsel %vm3250, %v3190, %v2231
  %v3256 = vsel %vm3250, %v3191, %v2233
  %v3257 = vsel %vm3250, %v3192, %v2235
  %v3258 = vsel %vm3250, %v3193, %v2237
  %v3259 = vsel %vm3250, %v3194, %v2239
  %v3260 = vsel %vm3250, %v3195, %v2241
  %v3261 = vsel %vm3250, %v3196, %v2243
  %v3262 = vsel %vm3250, %v3197, %v2245
  %v3263 = vsel %vm3250, %v3198, %v2247
  %v3264 = vsel %vm3250, %v3199, %v2249
  %v3265 = vsel %vm3250, %v3200, %v2251
  %v3266 = vsel %vm3250, %v3201, %v2253
  %v3267 = vsel %vm3250, %v3202, %v2255
  %v3268 = vsel %vm3250, %v3203, %v2257
  %v3269 = vsel %vm3250, %v3204, %v2259
  %v3270 = vsel %vm3250, %v3205, %v2261
  %v3271 = vsel %vm3250, %v3206, %v2263
  %v3272 = vsel %vm3250, %v3207, %v2265
  %v3273 = vsel %vm3250, %v3208, %v2267
  %v3274 = vsel %vm3250, %v3209, %v2269
  %v3275 = vsel %vm3250, %v3210, %v2271
  %v3276 = vsel %vm3250, %v3211, %v2273
  %v3277 = vsel %vm3250, %v3212, %v2275
  %v3278 = vsel %vm3250, %v3213, %v2277
  %v3279 = vsel %vm3250, %v3214, %v2279
  %v3280 = vsel %vm3250, %v3215, %v2281
  %v3281 = vsel %vm3250, %v3216, %v2283
  %v3282 = vsel %vm3250, %v3217, %v2285
  %v3283 = vsel %vm3250, %v3218, %v2287
  %v3284 = vsel %vm3250, %v3219, %v2289
  %v3285 = vsel %vm3250, %v3220, %v2291
  %v3286 = vsel %vm3250, %v3221, %v2293
  %v3287 = vsel %vm3250, %v3222, %v2295
  %v3288 = vsel %vm3250, %v3223, %v2297
  %v3289 = vsel %vm3250, %v3224, %v2299
  %v3290 = vsel %vm3250, %v3225, %v2301
  %v3291 = vsel %vm3250, %v3226, %v2303
  %v3292 = vsel %vm3250, %v3227, %v2305
  %v3293 = vsel %vm3250, %v3228, %v2307
  %v3294 = vsel %vm3250, %v3229, %v2309
  %v3295 = vsel %vm3250, %v3230, %v2311
  %v3296 = vsel %vm3250, %v3231, %v2313
  %v3297 = vsel %vm3250, %v3232, %v2315
  %v3298 = vsel %vm3250, %v3233, %v2317
  %v3299 = vsel %vm3250, %v3234, %v2319
  %v3300 = vsel %vm3250, %v3235, %v2321
  %v3301 = vsel %vm3250, %v3236, %v2323
  %v3302 = vsel %vm3250, %v3237, %v2325
  %v3303 = vsel %vm3250, %v3238, %v2327
  %v3304 = vsel %vm3250, %v3239, %v2329
  %v3305 = vsel %vm3250, %v3240, %v2331
  %v3306 = vsel %vm3250, %v3241, %v2333
  %v3307 = vsel %vm3250, %v3242, %v2335
  %v3308 = vsel %vm3250, %v3243, %v2337
  %v3309 = vsel %vm3250, %v3244, %v2339
  %v3310 = vsel %vm3250, %v3245, %v2341
  %v3311 = vsel %vm3250, %v3246, %v2343
  %v3312 = vsel %vm3250, %v3247, %v2345
  %v3313 = vsel %vm3250, %v3248, %v2347
  %v3314 = vsel %vm3250, %v3249, %v2349
  %vm3315 = vcmask 228352
  %v3316 = vsel %vm3315, %v3251, %v2479
  %v3317 = vsel %vm3315, %v3252, %v2481
  %v3318 = vsel %vm3315, %v3253, %v2483
  %v3319 = vsel %vm3315, %v3254, %v2485
  %v3320 = vsel %vm3315, %v3255, %v2487
  %v3321 = vsel %vm3315, %v3256, %v2489
  %v3322 = vsel %vm3315, %v3257, %v2491
  %v3323 = vsel %vm3315, %v3258, %v2493
  %v3324 = vsel %vm3315, %v3259, %v2495
  %v3325 = vsel %vm3315, %v3260, %v2497
  %v3326 = vsel %vm3315, %v3261, %v2499
  %v3327 = vsel %vm3315, %v3262, %v2501
  %v3328 = vsel %vm3315, %v3263, %v2503
  %v3329 = vsel %vm3315, %v3264, %v2505
  %v3330 = vsel %vm3315, %v3265, %v2507
  %v3331 = vsel %vm3315, %v3266, %v2509
  %v3332 = vsel %vm3315, %v3267, %v2511
  %v3333 = vsel %vm3315, %v3268, %v2513
  %v3334 = vsel %vm3315, %v3269, %v2515
  %v3335 = vsel %vm3315, %v3270, %v2517
  %v3336 = vsel %vm3315, %v3271, %v2519
  %v3337 = vsel %vm3315, %v3272, %v2521
  %v3338 = vsel %vm3315, %v3273, %v2523
  %v3339 = vsel %vm3315, %v3274, %v2525
  %v3340 = vsel %vm3315, %v3275, %v2527
  %v3341 = vsel %vm3315, %v3276, %v2529
  %v3342 = vsel %vm3315, %v3277, %v2531
  %v3343 = vsel %vm3315, %v3278, %v2533
  %v3344 = vsel %vm3315, %v3279, %v2535
  %v3345 = vsel %vm3315, %v3280, %v2537
  %v3346 = vsel %vm3315, %v3281, %v2539
  %v3347 = vsel %vm3315, %v3282, %v2541
  %v3348 = vsel %vm3315, %v3283, %v2543
  %v3349 = vsel %vm3315, %v3284, %v2545
  %v3350 = vsel %vm3315, %v3285, %v2547
  %v3351 = vsel %vm3315, %v3286, %v2549
  %v3352 = vsel %vm3315, %v3287, %v2551
  %v3353 = vsel %vm3315, %v3288, %v2553
  %v3354 = vsel %vm3315, %v3289, %v2555
  %v3355 = vsel %vm3315, %v3290, %v2557
  %v3356 = vsel %vm3315, %v3291, %v2559
  %v3357 = vsel %vm3315, %v3292, %v2561
  %v3358 = vsel %vm3315, %v3293, %v2563
  %v3359 = vsel %vm3315, %v3294, %v2565
  %v3360 = vsel %vm3315, %v3295, %v2567
  %v3361 = vsel %vm3315, %v3296, %v2569
  %v3362 = vsel %vm3315, %v3297, %v2571
  %v3363 = vsel %vm3315, %v3298, %v2573
  %v3364 = vsel %vm3315, %v3299, %v2575
  %v3365 = vsel %vm3315, %v3300, %v2577
  %v3366 = vsel %vm3315, %v3301, %v2579
  %v3367 = vsel %vm3315, %v3302, %v2581
  %v3368 = vsel %vm3315, %v3303, %v2583
  %v3369 = vsel %vm3315, %v3304, %v2585
  %v3370 = vsel %vm3315, %v3305, %v2587
  %v3371 = vsel %vm3315, %v3306, %v2589
  %v3372 = vsel %vm3315, %v3307, %v2591
  %v3373 = vsel %vm3315, %v3308, %v2593
  %v3374 = vsel %vm3315, %v3309, %v2595
  %v3375 = vsel %vm3315, %v3310, %v2597
  %v3376 = vsel %vm3315, %v3311, %v2599
  %v3377 = vsel %vm3315, %v3312, %v2601
  %v3378 = vsel %vm3315, %v3313, %v2603
  %v3379 = vsel %vm3315, %v3314, %v2605
  %vm3380 = vcmask 261120
  %v3381 = vsel %vm3380, %v3316, %v2735
  %v3382 = vsel %vm3380, %v3317, %v2737
  %v3383 = vsel %vm3380, %v3318, %v2739
  %v3384 = vsel %vm3380, %v3319, %v2741
  %v3385 = vsel %vm3380, %v3320, %v2743
  %v3386 = vsel %vm3380, %v3321, %v2745
  %v3387 = vsel %vm3380, %v3322, %v2747
  %v3388 = vsel %vm3380, %v3323, %v2749
  %v3389 = vsel %vm3380, %v3324, %v2751
  %v3390 = vsel %vm3380, %v3325, %v2753
  %v3391 = vsel %vm3380, %v3326, %v2755
  %v3392 = vsel %vm3380, %v3327, %v2757
  %v3393 = vsel %vm3380, %v3328, %v2759
  %v3394 = vsel %vm3380, %v3329, %v2761
  %v3395 = vsel %vm3380, %v3330, %v2763
  %v3396 = vsel %vm3380, %v3331, %v2765
  %v3397 = vsel %vm3380, %v3332, %v2767
  %v3398 = vsel %vm3380, %v3333, %v2769
  %v3399 = vsel %vm3380, %v3334, %v2771
  %v3400 = vsel %vm3380, %v3335, %v2773
  %v3401 = vsel %vm3380, %v3336, %v2775
  %v3402 = vsel %vm3380, %v3337, %v2777
  %v3403 = vsel %vm3380, %v3338, %v2779
  %v3404 = vsel %vm3380, %v3339, %v2781
  %v3405 = vsel %vm3380, %v3340, %v2783
  %v3406 = vsel %vm3380, %v3341, %v2785
  %v3407 = vsel %vm3380, %v3342, %v2787
  %v3408 = vsel %vm3380, %v3343, %v2789
  %v3409 = vsel %vm3380, %v3344, %v2791
  %v3410 = vsel %vm3380, %v3345, %v2793
  %v3411 = vsel %vm3380, %v3346, %v2795
  %v3412 = vsel %vm3380, %v3347, %v2797
  %v3413 = vsel %vm3380, %v3348, %v2799
  %v3414 = vsel %vm3380, %v3349, %v2801
  %v3415 = vsel %vm3380, %v3350, %v2803
  %v3416 = vsel %vm3380, %v3351, %v2805
  %v3417 = vsel %vm3380, %v3352, %v2807
  %v3418 = vsel %vm3380, %v3353, %v2809
  %v3419 = vsel %vm3380, %v3354, %v2811
  %v3420 = vsel %vm3380, %v3355, %v2813
  %v3421 = vsel %vm3380, %v3356, %v2815
  %v3422 = vsel %vm3380, %v3357, %v2817
  %v3423 = vsel %vm3380, %v3358, %v2819
  %v3424 = vsel %vm3380, %v3359, %v2821
  %v3425 = vsel %vm3380, %v3360, %v2823
  %v3426 = vsel %vm3380, %v3361, %v2825
  %v3427 = vsel %vm3380, %v3362, %v2827
  %v3428 = vsel %vm3380, %v3363, %v2829
  %v3429 = vsel %vm3380, %v3364, %v2831
  %v3430 = vsel %vm3380, %v3365, %v2833
  %v3431 = vsel %vm3380, %v3366, %v2835
  %v3432 = vsel %vm3380, %v3367, %v2837
  %v3433 = vsel %vm3380, %v3368, %v2839
  %v3434 = vsel %vm3380, %v3369, %v2841
  %v3435 = vsel %vm3380, %v3370, %v2843
  %v3436 = vsel %vm3380, %v3371, %v2845
  %v3437 = vsel %vm3380, %v3372, %v2847
  %v3438 = vsel %vm3380, %v3373, %v2849
  %v3439 = vsel %vm3380, %v3374, %v2851
  %v3440 = vsel %vm3380, %v3375, %v2853
  %v3441 = vsel %vm3380, %v3376, %v2855
  %v3442 = vsel %vm3380, %v3377, %v2857
  %v3443 = vsel %vm3380, %v3378, %v2859
  %v3444 = vsel %vm3380, %v3379, %v2861
  %v3445 = vld [vmem:[%s1] sm:$0xff]
  %v3446 = vld [vmem:[%s1 + $0x8] sm:$0xff]
  %v3447 = vld [vmem:[%s1 + $0x10] sm:$0xff]
  %v3448 = vld [vmem:[%s1 + $0x18] sm:$0xff]
  %v3449 = vld [vmem:[%s1 + $0x20] sm:$0xf]
  %vm3450 = vcmask 293888
  %v3452 = vsel %vm3450, %v3381, 0
  %v3455 = vsel %vm3450, %v3382, 0
  %v3458 = vsel %vm3450, %v3383, 0
  %v3461 = vsel %vm3450, %v3384, 0
  %v3464 = vsel %vm3450, %v3385, 0
  %v3467 = vsel %vm3450, %v3386, 0
  %v3470 = vsel %vm3450, %v3387, 0
  %v3473 = vsel %vm3450, %v3388, 0
  %v3476 = vsel %vm3450, %v3389, 0
  %v3479 = vsel %vm3450, %v3390, 0
  %v3482 = vsel %vm3450, %v3391, 0
  %v3485 = vsel %vm3450, %v3392, 0
  %v3488 = vsel %vm3450, %v3393, 0
  %v3491 = vsel %vm3450, %v3394, 0
  %v3494 = vsel %vm3450, %v3395, 0
  %v3497 = vsel %vm3450, %v3396, 0
  %v3500 = vsel %vm3450, %v3397, 0
  %v3503 = vsel %vm3450, %v3398, 0
  %v3506 = vsel %vm3450, %v3399, 0
  %v3509 = vsel %vm3450, %v3400, 0
  %v3512 = vsel %vm3450, %v3401, 0
  %v3515 = vsel %vm3450, %v3402, 0
  %v3518 = vsel %vm3450, %v3403, 0
  %v3521 = vsel %vm3450, %v3404, 0
  %v3524 = vsel %vm3450, %v3405, 0
  %v3527 = vsel %vm3450, %v3406, 0
  %v3530 = vsel %vm3450, %v3407, 0
  %v3533 = vsel %vm3450, %v3408, 0
  %v3536 = vsel %vm3450, %v3409, 0
  %v3539 = vsel %vm3450, %v3410, 0
  %v3542 = vsel %vm3450, %v3411, 0
  %v3545 = vsel %vm3450, %v3412, 0
  %v3548 = vsel %vm3450, %v3413, 0
  %v3551 = vsel %vm3450, %v3414, 0
  %v3554 = vsel %vm3450, %v3415, 0
  %v3557 = vsel %vm3450, %v3416, 0
  %v3560 = vsel %vm3450, %v3417, 0
  %v3563 = vsel %vm3450, %v3418, 0
  %v3566 = vsel %vm3450, %v3419, 0
  %v3569 = vsel %vm3450, %v3420, 0
  %v3572 = vsel %vm3450, %v3421, 0
  %v3575 = vsel %vm3450, %v3422, 0
  %v3578 = vsel %vm3450, %v3423, 0
  %v3581 = vsel %vm3450, %v3424, 0
  %v3584 = vsel %vm3450, %v3425, 0
  %v3587 = vsel %vm3450, %v3426, 0
  %v3590 = vsel %vm3450, %v3427, 0
  %v3593 = vsel %vm3450, %v3428, 0
  %v3596 = vsel %vm3450, %v3429, 0
  %v3599 = vsel %vm3450, %v3430, 0
  %v3602 = vsel %vm3450, %v3431, 0
  %v3605 = vsel %vm3450, %v3432, 0
  %v3608 = vsel %vm3450, %v3433, 0
  %v3611 = vsel %vm3450, %v3434, 0
  %v3614 = vsel %vm3450, %v3435, 0
  %v3617 = vsel %vm3450, %v3436, 0
  %v3620 = vsel %vm3450, %v3437, 0
  %v3623 = vsel %vm3450, %v3438, 0
  %v3626 = vsel %vm3450, %v3439, 0
  %v3629 = vsel %vm3450, %v3440, 0
  %v3632 = vsel %vm3450, %v3441, 0
  %v3635 = vsel %vm3450, %v3442, 0
  %v3638 = vsel %vm3450, %v3443, 0
  %v3641 = vsel %vm3450, %v3444, 0
  %vm3643 = vcmask 1043456
  %v3645 = vsel %vm3643, %v3449, 0
  %3647 = vmatpush.msra.mxu0 0.0
  %3648 = vmatpush.msra.mxu0 0.0
  %3649 = vmatpush.msra.mxu0 0.0
  %3650 = vmatpush.msra.mxu0 0.0
  %3651 = vmatpush.msra.mxu0 0.0
  %3652 = vmatpush.msra.mxu0 0.0
  %3653 = vmatpush.msra.mxu0 0.0
  %3654 = vmatpush.msra.mxu0 0.0
  %3655 = vmatpush.msra.mxu0 0.0
  %3656 = vmatpush.msra.mxu0 0.0
  %3657 = vmatpush.msra.mxu0 0.0
  %3658 = vmatpush.msra.mxu0 %v3645
  %3659 = vmatpush.msra.mxu0 %v3448
  %3660 = vmatpush.msra.mxu0 %v3447
  %3661 = vmatpush.msra.mxu0 %v3446
  %3662 = vmatpush.msra.mxu0 %v3445
  %3663 = vmatmul.f32.gmra.mxu0 %v3452
  %v3664 = vpop.f32.mrf.mxu0
  %v3665 = vadd.f32 0.0, %v3664
  %3666 = vmatmul.f32.gmra.mxu0 %v3455
  %v3667 = vpop.f32.mrf.mxu0
  %v3668 = vadd.f32 0.0, %v3667
  %3669 = vmatmul.f32.gmra.mxu0 %v3458
  %v3670 = vpop.f32.mrf.mxu0
  %v3671 = vadd.f32 0.0, %v3670
  %3672 = vmatmul.f32.gmra.mxu0 %v3461
  %v3673 = vpop.f32.mrf.mxu0
  %v3674 = vadd.f32 0.0, %v3673
  %3675 = vmatmul.f32.gmra.mxu0 %v3464
  %v3676 = vpop.f32.mrf.mxu0
  %v3677 = vadd.f32 0.0, %v3676
  %3678 = vmatmul.f32.gmra.mxu0 %v3467
  %v3679 = vpop.f32.mrf.mxu0
  %v3680 = vadd.f32 0.0, %v3679
  %3681 = vmatmul.f32.gmra.mxu0 %v3470
  %v3682 = vpop.f32.mrf.mxu0
  %v3683 = vadd.f32 0.0, %v3682
  %3684 = vmatmul.f32.gmra.mxu0 %v3473
  %v3685 = vpop.f32.mrf.mxu0
  %v3686 = vadd.f32 0.0, %v3685
  %3687 = vmatmul.f32.gmra.mxu0 %v3476
  %v3688 = vpop.f32.mrf.mxu0
  %v3689 = vadd.f32 0.0, %v3688
  %3690 = vmatmul.f32.gmra.mxu0 %v3479
  %v3691 = vpop.f32.mrf.mxu0
  %v3692 = vadd.f32 0.0, %v3691
  %3693 = vmatmul.f32.gmra.mxu0 %v3482
  %v3694 = vpop.f32.mrf.mxu0
  %v3695 = vadd.f32 0.0, %v3694
  %3696 = vmatmul.f32.gmra.mxu0 %v3485
  %v3697 = vpop.f32.mrf.mxu0
  %v3698 = vadd.f32 0.0, %v3697
  %3699 = vmatmul.f32.gmra.mxu0 %v3488
  %v3700 = vpop.f32.mrf.mxu0
  %v3701 = vadd.f32 0.0, %v3700
  %3702 = vmatmul.f32.gmra.mxu0 %v3491
  %v3703 = vpop.f32.mrf.mxu0
  %v3704 = vadd.f32 0.0, %v3703
  %3705 = vmatmul.f32.gmra.mxu0 %v3494
  %v3706 = vpop.f32.mrf.mxu0
  %v3707 = vadd.f32 0.0, %v3706
  %3708 = vmatmul.f32.gmra.mxu0 %v3497
  %v3709 = vpop.f32.mrf.mxu0
  %v3710 = vadd.f32 0.0, %v3709
  %3711 = vmatmul.f32.gmra.mxu0 %v3500
  %v3712 = vpop.f32.mrf.mxu0
  %v3713 = vadd.f32 0.0, %v3712
  %3714 = vmatmul.f32.gmra.mxu0 %v3503
  %v3715 = vpop.f32.mrf.mxu0
  %v3716 = vadd.f32 0.0, %v3715
  %3717 = vmatmul.f32.gmra.mxu0 %v3506
  %v3718 = vpop.f32.mrf.mxu0
  %v3719 = vadd.f32 0.0, %v3718
  %3720 = vmatmul.f32.gmra.mxu0 %v3509
  %v3721 = vpop.f32.mrf.mxu0
  %v3722 = vadd.f32 0.0, %v3721
  %3723 = vmatmul.f32.gmra.mxu0 %v3512
  %v3724 = vpop.f32.mrf.mxu0
  %v3725 = vadd.f32 0.0, %v3724
  %3726 = vmatmul.f32.gmra.mxu0 %v3515
  %v3727 = vpop.f32.mrf.mxu0
  %v3728 = vadd.f32 0.0, %v3727
  %3729 = vmatmul.f32.gmra.mxu0 %v3518
  %v3730 = vpop.f32.mrf.mxu0
  %v3731 = vadd.f32 0.0, %v3730
  %3732 = vmatmul.f32.gmra.mxu0 %v3521
  %v3733 = vpop.f32.mrf.mxu0
  %v3734 = vadd.f32 0.0, %v3733
  %3735 = vmatmul.f32.gmra.mxu0 %v3524
  %v3736 = vpop.f32.mrf.mxu0
  %v3737 = vadd.f32 0.0, %v3736
  %3738 = vmatmul.f32.gmra.mxu0 %v3527
  %v3739 = vpop.f32.mrf.mxu0
  %v3740 = vadd.f32 0.0, %v3739
  %3741 = vmatmul.f32.gmra.mxu0 %v3530
  %v3742 = vpop.f32.mrf.mxu0
  %v3743 = vadd.f32 0.0, %v3742
  %3744 = vmatmul.f32.gmra.mxu0 %v3533
  %v3745 = vpop.f32.mrf.mxu0
  %v3746 = vadd.f32 0.0, %v3745
  %3747 = vmatmul.f32.gmra.mxu0 %v3536
  %v3748 = vpop.f32.mrf.mxu0
  %v3749 = vadd.f32 0.0, %v3748
  %3750 = vmatmul.f32.gmra.mxu0 %v3539
  %v3751 = vpop.f32.mrf.mxu0
  %v3752 = vadd.f32 0.0, %v3751
  %3753 = vmatmul.f32.gmra.mxu0 %v3542
  %v3754 = vpop.f32.mrf.mxu0
  %v3755 = vadd.f32 0.0, %v3754
  %3756 = vmatmul.f32.gmra.mxu0 %v3545
  %v3757 = vpop.f32.mrf.mxu0
  %v3758 = vadd.f32 0.0, %v3757
  %3759 = vmatmul.f32.gmra.mxu0 %v3548
  %v3760 = vpop.f32.mrf.mxu0
  %v3761 = vadd.f32 0.0, %v3760
  %3762 = vmatmul.f32.gmra.mxu0 %v3551
  %v3763 = vpop.f32.mrf.mxu0
  %v3764 = vadd.f32 0.0, %v3763
  %3765 = vmatmul.f32.gmra.mxu0 %v3554
  %v3766 = vpop.f32.mrf.mxu0
  %v3767 = vadd.f32 0.0, %v3766
  %3768 = vmatmul.f32.gmra.mxu0 %v3557
  %v3769 = vpop.f32.mrf.mxu0
  %v3770 = vadd.f32 0.0, %v3769
  %3771 = vmatmul.f32.gmra.mxu0 %v3560
  %v3772 = vpop.f32.mrf.mxu0
  %v3773 = vadd.f32 0.0, %v3772
  %3774 = vmatmul.f32.gmra.mxu0 %v3563
  %v3775 = vpop.f32.mrf.mxu0
  %v3776 = vadd.f32 0.0, %v3775
  %3777 = vmatmul.f32.gmra.mxu0 %v3566
  %v3778 = vpop.f32.mrf.mxu0
  %v3779 = vadd.f32 0.0, %v3778
  %3780 = vmatmul.f32.gmra.mxu0 %v3569
  %v3781 = vpop.f32.mrf.mxu0
  %v3782 = vadd.f32 0.0, %v3781
  %3783 = vmatmul.f32.gmra.mxu0 %v3572
  %v3784 = vpop.f32.mrf.mxu0
  %v3785 = vadd.f32 0.0, %v3784
  %3786 = vmatmul.f32.gmra.mxu0 %v3575
  %v3787 = vpop.f32.mrf.mxu0
  %v3788 = vadd.f32 0.0, %v3787
  %3789 = vmatmul.f32.gmra.mxu0 %v3578
  %v3790 = vpop.f32.mrf.mxu0
  %v3791 = vadd.f32 0.0, %v3790
  %3792 = vmatmul.f32.gmra.mxu0 %v3581
  %v3793 = vpop.f32.mrf.mxu0
  %v3794 = vadd.f32 0.0, %v3793
  %3795 = vmatmul.f32.gmra.mxu0 %v3584
  %v3796 = vpop.f32.mrf.mxu0
  %v3797 = vadd.f32 0.0, %v3796
  %3798 = vmatmul.f32.gmra.mxu0 %v3587
  %v3799 = vpop.f32.mrf.mxu0
  %v3800 = vadd.f32 0.0, %v3799
  %3801 = vmatmul.f32.gmra.mxu0 %v3590
  %v3802 = vpop.f32.mrf.mxu0
  %v3803 = vadd.f32 0.0, %v3802
  %3804 = vmatmul.f32.gmra.mxu0 %v3593
  %v3805 = vpop.f32.mrf.mxu0
  %v3806 = vadd.f32 0.0, %v3805
  %3807 = vmatmul.f32.gmra.mxu0 %v3596
  %v3808 = vpop.f32.mrf.mxu0
  %v3809 = vadd.f32 0.0, %v3808
  %3810 = vmatmul.f32.gmra.mxu0 %v3599
  %v3811 = vpop.f32.mrf.mxu0
  %v3812 = vadd.f32 0.0, %v3811
  %3813 = vmatmul.f32.gmra.mxu0 %v3602
  %v3814 = vpop.f32.mrf.mxu0
  %v3815 = vadd.f32 0.0, %v3814
  %3816 = vmatmul.f32.gmra.mxu0 %v3605
  %v3817 = vpop.f32.mrf.mxu0
  %v3818 = vadd.f32 0.0, %v3817
  %3819 = vmatmul.f32.gmra.mxu0 %v3608
  %v3820 = vpop.f32.mrf.mxu0
  %v3821 = vadd.f32 0.0, %v3820
  %3822 = vmatmul.f32.gmra.mxu0 %v3611
  %v3823 = vpop.f32.mrf.mxu0
  %v3824 = vadd.f32 0.0, %v3823
  %3825 = vmatmul.f32.gmra.mxu0 %v3614
  %v3826 = vpop.f32.mrf.mxu0
  %v3827 = vadd.f32 0.0, %v3826
  %3828 = vmatmul.f32.gmra.mxu0 %v3617
  %v3829 = vpop.f32.mrf.mxu0
  %v3830 = vadd.f32 0.0, %v3829
  %3831 = vmatmul.f32.gmra.mxu0 %v3620
  %v3832 = vpop.f32.mrf.mxu0
  %v3833 = vadd.f32 0.0, %v3832
  %3834 = vmatmul.f32.gmra.mxu0 %v3623
  %v3835 = vpop.f32.mrf.mxu0
  %v3836 = vadd.f32 0.0, %v3835
  %3837 = vmatmul.f32.gmra.mxu0 %v3626
  %v3838 = vpop.f32.mrf.mxu0
  %v3839 = vadd.f32 0.0, %v3838
  %3840 = vmatmul.f32.gmra.mxu0 %v3629
  %v3841 = vpop.f32.mrf.mxu0
  %v3842 = vadd.f32 0.0, %v3841
  %3843 = vmatmul.f32.gmra.mxu0 %v3632
  %v3844 = vpop.f32.mrf.mxu0
  %v3845 = vadd.f32 0.0, %v3844
  %3846 = vmatmul.f32.gmra.mxu0 %v3635
  %v3847 = vpop.f32.mrf.mxu0
  %v3848 = vadd.f32 0.0, %v3847
  %3849 = vmatmul.f32.gmra.mxu0 %v3638
  %v3850 = vpop.f32.mrf.mxu0
  %v3851 = vadd.f32 0.0, %v3850
  %3852 = vmatmul.f32.gmra.mxu0 %v3641
  %v3853 = vpop.f32.mrf.mxu0
  %v3854 = vadd.f32 0.0, %v3853
  %3855 = vdwg.mxu0
  %v3856 = vsel %vm26, %v3665, 0.0
  %v3857 = vsel %vm26, %v3668, 0.0
  %v3858 = vadd.f32 %v3856, %v3857
  %v3859 = vsel %vm26, %v3671, 0.0
  %v3860 = vadd.f32 %v3858, %v3859
  %v3861 = vsel %vm26, %v3674, 0.0
  %v3862 = vadd.f32 %v3860, %v3861
  %v3863 = vsel %vm26, %v3677, 0.0
  %v3864 = vadd.f32 %v3862, %v3863
  %v3865 = vsel %vm26, %v3680, 0.0
  %v3866 = vadd.f32 %v3864, %v3865
  %v3867 = vsel %vm26, %v3683, 0.0
  %v3868 = vadd.f32 %v3866, %v3867
  %v3869 = vsel %vm26, %v3686, 0.0
  %v3870 = vadd.f32 %v3868, %v3869
  %v3871 = vsel %vm26, %v3689, 0.0
  %v3872 = vadd.f32 %v3870, %v3871
  %v3873 = vsel %vm26, %v3692, 0.0
  %v3874 = vadd.f32 %v3872, %v3873
  %v3875 = vsel %vm26, %v3695, 0.0
  %v3876 = vadd.f32 %v3874, %v3875
  %v3877 = vsel %vm26, %v3698, 0.0
  %v3878 = vadd.f32 %v3876, %v3877
  %v3879 = vsel %vm26, %v3701, 0.0
  %v3880 = vadd.f32 %v3878, %v3879
  %v3881 = vsel %vm26, %v3704, 0.0
  %v3882 = vadd.f32 %v3880, %v3881
  %v3883 = vsel %vm26, %v3707, 0.0
  %v3884 = vadd.f32 %v3882, %v3883
  %v3885 = vsel %vm26, %v3710, 0.0
  %v3886 = vadd.f32 %v3884, %v3885
  %v3887 = vsel %vm26, %v3713, 0.0
  %v3888 = vadd.f32 %v3886, %v3887
  %v3889 = vsel %vm26, %v3716, 0.0
  %v3890 = vadd.f32 %v3888, %v3889
  %v3891 = vsel %vm26, %v3719, 0.0
  %v3892 = vadd.f32 %v3890, %v3891
  %v3893 = vsel %vm26, %v3722, 0.0
  %v3894 = vadd.f32 %v3892, %v3893
  %v3895 = vsel %vm26, %v3725, 0.0
  %v3896 = vadd.f32 %v3894, %v3895
  %v3897 = vsel %vm26, %v3728, 0.0
  %v3898 = vadd.f32 %v3896, %v3897
  %v3899 = vsel %vm26, %v3731, 0.0
  %v3900 = vadd.f32 %v3898, %v3899
  %v3901 = vsel %vm26, %v3734, 0.0
  %v3902 = vadd.f32 %v3900, %v3901
  %v3903 = vsel %vm26, %v3737, 0.0
  %v3904 = vadd.f32 %v3902, %v3903
  %v3905 = vsel %vm26, %v3740, 0.0
  %v3906 = vadd.f32 %v3904, %v3905
  %v3907 = vsel %vm26, %v3743, 0.0
  %v3908 = vadd.f32 %v3906, %v3907
  %v3909 = vsel %vm26, %v3746, 0.0
  %v3910 = vadd.f32 %v3908, %v3909
  %v3911 = vsel %vm26, %v3749, 0.0
  %v3912 = vadd.f32 %v3910, %v3911
  %v3913 = vsel %vm26, %v3752, 0.0
  %v3914 = vadd.f32 %v3912, %v3913
  %v3915 = vsel %vm26, %v3755, 0.0
  %v3916 = vadd.f32 %v3914, %v3915
  %v3917 = vsel %vm26, %v3758, 0.0
  %v3918 = vadd.f32 %v3916, %v3917
  %v3919 = vsel %vm26, %v3761, 0.0
  %v3920 = vadd.f32 %v3918, %v3919
  %v3921 = vsel %vm26, %v3764, 0.0
  %v3922 = vadd.f32 %v3920, %v3921
  %v3923 = vsel %vm26, %v3767, 0.0
  %v3924 = vadd.f32 %v3922, %v3923
  %v3925 = vsel %vm26, %v3770, 0.0
  %v3926 = vadd.f32 %v3924, %v3925
  %v3927 = vsel %vm26, %v3773, 0.0
  %v3928 = vadd.f32 %v3926, %v3927
  %v3929 = vsel %vm26, %v3776, 0.0
  %v3930 = vadd.f32 %v3928, %v3929
  %v3931 = vsel %vm26, %v3779, 0.0
  %v3932 = vadd.f32 %v3930, %v3931
  %v3933 = vsel %vm26, %v3782, 0.0
  %v3934 = vadd.f32 %v3932, %v3933
  %v3935 = vsel %vm26, %v3785, 0.0
  %v3936 = vadd.f32 %v3934, %v3935
  %v3937 = vsel %vm26, %v3788, 0.0
  %v3938 = vadd.f32 %v3936, %v3937
  %v3939 = vsel %vm26, %v3791, 0.0
  %v3940 = vadd.f32 %v3938, %v3939
  %v3941 = vsel %vm26, %v3794, 0.0
  %v3942 = vadd.f32 %v3940, %v3941
  %v3943 = vsel %vm26, %v3797, 0.0
  %v3944 = vadd.f32 %v3942, %v3943
  %v3945 = vsel %vm26, %v3800, 0.0
  %v3946 = vadd.f32 %v3944, %v3945
  %v3947 = vsel %vm26, %v3803, 0.0
  %v3948 = vadd.f32 %v3946, %v3947
  %v3949 = vsel %vm26, %v3806, 0.0
  %v3950 = vadd.f32 %v3948, %v3949
  %v3951 = vsel %vm26, %v3809, 0.0
  %v3952 = vadd.f32 %v3950, %v3951
  %v3953 = vsel %vm26, %v3812, 0.0
  %v3954 = vadd.f32 %v3952, %v3953
  %v3955 = vsel %vm26, %v3815, 0.0
  %v3956 = vadd.f32 %v3954, %v3955
  %v3957 = vsel %vm26, %v3818, 0.0
  %v3958 = vadd.f32 %v3956, %v3957
  %v3959 = vsel %vm26, %v3821, 0.0
  %v3960 = vadd.f32 %v3958, %v3959
  %v3961 = vsel %vm26, %v3824, 0.0
  %v3962 = vadd.f32 %v3960, %v3961
  %v3963 = vsel %vm26, %v3827, 0.0
  %v3964 = vadd.f32 %v3962, %v3963
  %v3965 = vsel %vm26, %v3830, 0.0
  %v3966 = vadd.f32 %v3964, %v3965
  %v3967 = vsel %vm26, %v3833, 0.0
  %v3968 = vadd.f32 %v3966, %v3967
  %v3969 = vsel %vm26, %v3836, 0.0
  %v3970 = vadd.f32 %v3968, %v3969
  %v3971 = vsel %vm26, %v3839, 0.0
  %v3972 = vadd.f32 %v3970, %v3971
  %v3973 = vsel %vm26, %v3842, 0.0
  %v3974 = vadd.f32 %v3972, %v3973
  %v3975 = vsel %vm26, %v3845, 0.0
  %v3976 = vadd.f32 %v3974, %v3975
  %v3977 = vsel %vm26, %v3848, 0.0
  %v3978 = vadd.f32 %v3976, %v3977
  %v3979 = vsel %vm26, %v3851, 0.0
  %v3980 = vadd.f32 %v3978, %v3979
  %v3981 = vsel %vm26, %v3854, 0.0
  %v3982 = vadd.f32 %v3980, %v3981
  %v3983 = vrot.slane %v3982, 4
  %v3984 = vadd.f32 %v3982, %v3983
  %v3985 = vrot.slane %v3984, 2
  %v3986 = vadd.f32 %v3984, %v3985
  %v3987 = vrot.slane %v3986, 1
  %v3988 = vadd.f32 %v3986, %v3987
  %v3989 = vmul.f32 %v3665, %v3665
  %v3990 = vmul.f32 %v3668, %v3668
  %v3991 = vmul.f32 %v3671, %v3671
  %v3992 = vmul.f32 %v3674, %v3674
  %v3993 = vmul.f32 %v3677, %v3677
  %v3994 = vmul.f32 %v3680, %v3680
  %v3995 = vmul.f32 %v3683, %v3683
  %v3996 = vmul.f32 %v3686, %v3686
  %v3997 = vmul.f32 %v3689, %v3689
  %v3998 = vmul.f32 %v3692, %v3692
  %v3999 = vmul.f32 %v3695, %v3695
  %v4000 = vmul.f32 %v3698, %v3698
  %v4001 = vmul.f32 %v3701, %v3701
  %v4002 = vmul.f32 %v3704, %v3704
  %v4003 = vmul.f32 %v3707, %v3707
  %v4004 = vmul.f32 %v3710, %v3710
  %v4005 = vmul.f32 %v3713, %v3713
  %v4006 = vmul.f32 %v3716, %v3716
  %v4007 = vmul.f32 %v3719, %v3719
  %v4008 = vmul.f32 %v3722, %v3722
  %v4009 = vmul.f32 %v3725, %v3725
  %v4010 = vmul.f32 %v3728, %v3728
  %v4011 = vmul.f32 %v3731, %v3731
  %v4012 = vmul.f32 %v3734, %v3734
  %v4013 = vmul.f32 %v3737, %v3737
  %v4014 = vmul.f32 %v3740, %v3740
  %v4015 = vmul.f32 %v3743, %v3743
  %v4016 = vmul.f32 %v3746, %v3746
  %v4017 = vmul.f32 %v3749, %v3749
  %v4018 = vmul.f32 %v3752, %v3752
  %v4019 = vmul.f32 %v3755, %v3755
  %v4020 = vmul.f32 %v3758, %v3758
  %v4021 = vmul.f32 %v3761, %v3761
  %v4022 = vmul.f32 %v3764, %v3764
  %v4023 = vmul.f32 %v3767, %v3767
  %v4024 = vmul.f32 %v3770, %v3770
  %v4025 = vmul.f32 %v3773, %v3773
  %v4026 = vmul.f32 %v3776, %v3776
  %v4027 = vmul.f32 %v3779, %v3779
  %v4028 = vmul.f32 %v3782, %v3782
  %v4029 = vmul.f32 %v3785, %v3785
  %v4030 = vmul.f32 %v3788, %v3788
  %v4031 = vmul.f32 %v3791, %v3791
  %v4032 = vmul.f32 %v3794, %v3794
  %v4033 = vmul.f32 %v3797, %v3797
  %v4034 = vmul.f32 %v3800, %v3800
  %v4035 = vmul.f32 %v3803, %v3803
  %v4036 = vmul.f32 %v3806, %v3806
  %v4037 = vmul.f32 %v3809, %v3809
  %v4038 = vmul.f32 %v3812, %v3812
  %v4039 = vmul.f32 %v3815, %v3815
  %v4040 = vmul.f32 %v3818, %v3818
  %v4041 = vmul.f32 %v3821, %v3821
  %v4042 = vmul.f32 %v3824, %v3824
  %v4043 = vmul.f32 %v3827, %v3827
  %v4044 = vmul.f32 %v3830, %v3830
  %v4045 = vmul.f32 %v3833, %v3833
  %v4046 = vmul.f32 %v3836, %v3836
  %v4047 = vmul.f32 %v3839, %v3839
  %v4048 = vmul.f32 %v3842, %v3842
  %v4049 = vmul.f32 %v3845, %v3845
  %v4050 = vmul.f32 %v3848, %v3848
  %v4051 = vmul.f32 %v3851, %v3851
  %v4052 = vmul.f32 %v3854, %v3854
  %v4053 = vsel %vm26, %v3989, 0.0
  %v4054 = vsel %vm26, %v3990, 0.0
  %v4055 = vadd.f32 %v4053, %v4054
  %v4056 = vsel %vm26, %v3991, 0.0
  %v4057 = vadd.f32 %v4055, %v4056
  %v4058 = vsel %vm26, %v3992, 0.0
  %v4059 = vadd.f32 %v4057, %v4058
  %v4060 = vsel %vm26, %v3993, 0.0
  %v4061 = vadd.f32 %v4059, %v4060
  %v4062 = vsel %vm26, %v3994, 0.0
  %v4063 = vadd.f32 %v4061, %v4062
  %v4064 = vsel %vm26, %v3995, 0.0
  %v4065 = vadd.f32 %v4063, %v4064
  %v4066 = vsel %vm26, %v3996, 0.0
  %v4067 = vadd.f32 %v4065, %v4066
  %v4068 = vsel %vm26, %v3997, 0.0
  %v4069 = vadd.f32 %v4067, %v4068
  %v4070 = vsel %vm26, %v3998, 0.0
  %v4071 = vadd.f32 %v4069, %v4070
  %v4072 = vsel %vm26, %v3999, 0.0
  %v4073 = vadd.f32 %v4071, %v4072
  %v4074 = vsel %vm26, %v4000, 0.0
  %v4075 = vadd.f32 %v4073, %v4074
  %v4076 = vsel %vm26, %v4001, 0.0
  %v4077 = vadd.f32 %v4075, %v4076
  %v4078 = vsel %vm26, %v4002, 0.0
  %v4079 = vadd.f32 %v4077, %v4078
  %v4080 = vsel %vm26, %v4003, 0.0
  %v4081 = vadd.f32 %v4079, %v4080
  %v4082 = vsel %vm26, %v4004, 0.0
  %v4083 = vadd.f32 %v4081, %v4082
  %v4084 = vsel %vm26, %v4005, 0.0
  %v4085 = vadd.f32 %v4083, %v4084
  %v4086 = vsel %vm26, %v4006, 0.0
  %v4087 = vadd.f32 %v4085, %v4086
  %v4088 = vsel %vm26, %v4007, 0.0
  %v4089 = vadd.f32 %v4087, %v4088
  %v4090 = vsel %vm26, %v4008, 0.0
  %v4091 = vadd.f32 %v4089, %v4090
  %v4092 = vsel %vm26, %v4009, 0.0
  %v4093 = vadd.f32 %v4091, %v4092
  %v4094 = vsel %vm26, %v4010, 0.0
  %v4095 = vadd.f32 %v4093, %v4094
  %v4096 = vsel %vm26, %v4011, 0.0
  %v4097 = vadd.f32 %v4095, %v4096
  %v4098 = vsel %vm26, %v4012, 0.0
  %v4099 = vadd.f32 %v4097, %v4098
  %v4100 = vsel %vm26, %v4013, 0.0
  %v4101 = vadd.f32 %v4099, %v4100
  %v4102 = vsel %vm26, %v4014, 0.0
  %v4103 = vadd.f32 %v4101, %v4102
  %v4104 = vsel %vm26, %v4015, 0.0
  %v4105 = vadd.f32 %v4103, %v4104
  %v4106 = vsel %vm26, %v4016, 0.0
  %v4107 = vadd.f32 %v4105, %v4106
  %v4108 = vsel %vm26, %v4017, 0.0
  %v4109 = vadd.f32 %v4107, %v4108
  %v4110 = vsel %vm26, %v4018, 0.0
  %v4111 = vadd.f32 %v4109, %v4110
  %v4112 = vsel %vm26, %v4019, 0.0
  %v4113 = vadd.f32 %v4111, %v4112
  %v4114 = vsel %vm26, %v4020, 0.0
  %v4115 = vadd.f32 %v4113, %v4114
  %v4116 = vsel %vm26, %v4021, 0.0
  %v4117 = vadd.f32 %v4115, %v4116
  %v4118 = vsel %vm26, %v4022, 0.0
  %v4119 = vadd.f32 %v4117, %v4118
  %v4120 = vsel %vm26, %v4023, 0.0
  %v4121 = vadd.f32 %v4119, %v4120
  %v4122 = vsel %vm26, %v4024, 0.0
  %v4123 = vadd.f32 %v4121, %v4122
  %v4124 = vsel %vm26, %v4025, 0.0
  %v4125 = vadd.f32 %v4123, %v4124
  %v4126 = vsel %vm26, %v4026, 0.0
  %v4127 = vadd.f32 %v4125, %v4126
  %v4128 = vsel %vm26, %v4027, 0.0
  %v4129 = vadd.f32 %v4127, %v4128
  %v4130 = vsel %vm26, %v4028, 0.0
  %v4131 = vadd.f32 %v4129, %v4130
  %v4132 = vsel %vm26, %v4029, 0.0
  %v4133 = vadd.f32 %v4131, %v4132
  %v4134 = vsel %vm26, %v4030, 0.0
  %v4135 = vadd.f32 %v4133, %v4134
  %v4136 = vsel %vm26, %v4031, 0.0
  %v4137 = vadd.f32 %v4135, %v4136
  %v4138 = vsel %vm26, %v4032, 0.0
  %v4139 = vadd.f32 %v4137, %v4138
  %v4140 = vsel %vm26, %v4033, 0.0
  %v4141 = vadd.f32 %v4139, %v4140
  %v4142 = vsel %vm26, %v4034, 0.0
  %v4143 = vadd.f32 %v4141, %v4142
  %v4144 = vsel %vm26, %v4035, 0.0
  %v4145 = vadd.f32 %v4143, %v4144
  %v4146 = vsel %vm26, %v4036, 0.0
  %v4147 = vadd.f32 %v4145, %v4146
  %v4148 = vsel %vm26, %v4037, 0.0
  %v4149 = vadd.f32 %v4147, %v4148
  %v4150 = vsel %vm26, %v4038, 0.0
  %v4151 = vadd.f32 %v4149, %v4150
  %v4152 = vsel %vm26, %v4039, 0.0
  %v4153 = vadd.f32 %v4151, %v4152
  %v4154 = vsel %vm26, %v4040, 0.0
  %v4155 = vadd.f32 %v4153, %v4154
  %v4156 = vsel %vm26, %v4041, 0.0
  %v4157 = vadd.f32 %v4155, %v4156
  %v4158 = vsel %vm26, %v4042, 0.0
  %v4159 = vadd.f32 %v4157, %v4158
  %v4160 = vsel %vm26, %v4043, 0.0
  %v4161 = vadd.f32 %v4159, %v4160
  %v4162 = vsel %vm26, %v4044, 0.0
  %v4163 = vadd.f32 %v4161, %v4162
  %v4164 = vsel %vm26, %v4045, 0.0
  %v4165 = vadd.f32 %v4163, %v4164
  %v4166 = vsel %vm26, %v4046, 0.0
  %v4167 = vadd.f32 %v4165, %v4166
  %v4168 = vsel %vm26, %v4047, 0.0
  %v4169 = vadd.f32 %v4167, %v4168
  %v4170 = vsel %vm26, %v4048, 0.0
  %v4171 = vadd.f32 %v4169, %v4170
  %v4172 = vsel %vm26, %v4049, 0.0
  %v4173 = vadd.f32 %v4171, %v4172
  %v4174 = vsel %vm26, %v4050, 0.0
  %v4175 = vadd.f32 %v4173, %v4174
  %v4176 = vsel %vm26, %v4051, 0.0
  %v4177 = vadd.f32 %v4175, %v4176
  %v4178 = vsel %vm26, %v4052, 0.0
  %v4179 = vadd.f32 %v4177, %v4178
  %v4180 = vrot.slane %v4179, 4
  %v4181 = vadd.f32 %v4179, %v4180
  %v4182 = vrot.slane %v4181, 2
  %v4183 = vadd.f32 %v4181, %v4182
  %v4184 = vrot.slane %v4183, 1
  %v4185 = vadd.f32 %v4183, %v4184
  %v4186 = vmul.f32 %v3988, 0.001953125
  %v4187 = vmul.f32 %v4185, 0.001953125
  %v4188 = vmul.f32 %v4186, %v4186
  %v4189 = vsub.f32 %v4187, %v4188
  %v4190 = vld [vmem:[%s2] sm:$0x1]
  %v4191 = vadd.f32 %v4189, 1e-05
  %v4192 = vrsqrt.pop %v4191
  %v4193 = vmul.f32 %v4192, %v4191
  %v4194 = vmul.f32 %v4193, %v4192
  %v4195 = vmul.f32 0.5, %v4194
  %v4196 = vsub.f32 1.5, %v4195
  %v4197 = vmul.f32 %v4192, %v4196
  %vm4198 = vweird.f32 %v4191
  %vm4199 = vweird.f32 %v4192
  %vm4200 = vmor %vm4198, %vm4199
  %v4201 = vsel %vm4200, %v4192, %v4197
  %v4202 = vmul.f32 %v4190, %v4201
  %v4203 = vld [vmem:[%s3] sm:$0x1]
  %v4204 = vmul.f32 %v4186, %v4202
  %v4205 = vsub.f32 %v4203, %v4204
  %v4207 = vperm.slane %v4202, 0
  %v4209 = vmul.f32 %v3665, %v4207
  %v4210 = vmul.f32 %v3668, %v4207
  %v4211 = vmul.f32 %v3671, %v4207
  %v4212 = vmul.f32 %v3674, %v4207
  %v4213 = vmul.f32 %v3677, %v4207
  %v4214 = vmul.f32 %v3680, %v4207
  %v4215 = vmul.f32 %v3683, %v4207
  %v4216 = vmul.f32 %v3686, %v4207
  %v4217 = vmul.f32 %v3689, %v4207
  %v4218 = vmul.f32 %v3692, %v4207
  %v4219 = vmul.f32 %v3695, %v4207
  %v4220 = vmul.f32 %v3698, %v4207
  %v4221 = vmul.f32 %v3701, %v4207
  %v4222 = vmul.f32 %v3704, %v4207
  %v4223 = vmul.f32 %v3707, %v4207
  %v4224 = vmul.f32 %v3710, %v4207
  %v4225 = vmul.f32 %v3713, %v4207
  %v4226 = vmul.f32 %v3716, %v4207
  %v4227 = vmul.f32 %v3719, %v4207
  %v4228 = vmul.f32 %v3722, %v4207
  %v4229 = vmul.f32 %v3725, %v4207
  %v4230 = vmul.f32 %v3728, %v4207
  %v4231 = vmul.f32 %v3731, %v4207
  %v4232 = vmul.f32 %v3734, %v4207
  %v4233 = vmul.f32 %v3737, %v4207
  %v4234 = vmul.f32 %v3740, %v4207
  %v4235 = vmul.f32 %v3743, %v4207
  %v4236 = vmul.f32 %v3746, %v4207
  %v4237 = vmul.f32 %v3749, %v4207
  %v4238 = vmul.f32 %v3752, %v4207
  %v4239 = vmul.f32 %v3755, %v4207
  %v4240 = vmul.f32 %v3758, %v4207
  %v4241 = vmul.f32 %v3761, %v4207
  %v4242 = vmul.f32 %v3764, %v4207
  %v4243 = vmul.f32 %v3767, %v4207
  %v4244 = vmul.f32 %v3770, %v4207
  %v4245 = vmul.f32 %v3773, %v4207
  %v4246 = vmul.f32 %v3776, %v4207
  %v4247 = vmul.f32 %v3779, %v4207
  %v4248 = vmul.f32 %v3782, %v4207
  %v4249 = vmul.f32 %v3785, %v4207
  %v4250 = vmul.f32 %v3788, %v4207
  %v4251 = vmul.f32 %v3791, %v4207
  %v4252 = vmul.f32 %v3794, %v4207
  %v4253 = vmul.f32 %v3797, %v4207
  %v4254 = vmul.f32 %v3800, %v4207
  %v4255 = vmul.f32 %v3803, %v4207
  %v4256 = vmul.f32 %v3806, %v4207
  %v4257 = vmul.f32 %v3809, %v4207
  %v4258 = vmul.f32 %v3812, %v4207
  %v4259 = vmul.f32 %v3815, %v4207
  %v4260 = vmul.f32 %v3818, %v4207
  %v4261 = vmul.f32 %v3821, %v4207
  %v4262 = vmul.f32 %v3824, %v4207
  %v4263 = vmul.f32 %v3827, %v4207
  %v4264 = vmul.f32 %v3830, %v4207
  %v4265 = vmul.f32 %v3833, %v4207
  %v4266 = vmul.f32 %v3836, %v4207
  %v4267 = vmul.f32 %v3839, %v4207
  %v4268 = vmul.f32 %v3842, %v4207
  %v4269 = vmul.f32 %v3845, %v4207
  %v4270 = vmul.f32 %v3848, %v4207
  %v4271 = vmul.f32 %v3851, %v4207
  %v4272 = vmul.f32 %v3854, %v4207
  %v4274 = vperm.slane %v4205, 0
  %v4276 = vadd.f32 %v4209, %v4274
  %v4277 = vadd.f32 %v4210, %v4274
  %v4278 = vadd.f32 %v4211, %v4274
  %v4279 = vadd.f32 %v4212, %v4274
  %v4280 = vadd.f32 %v4213, %v4274
  %v4281 = vadd.f32 %v4214, %v4274
  %v4282 = vadd.f32 %v4215, %v4274
  %v4283 = vadd.f32 %v4216, %v4274
  %v4284 = vadd.f32 %v4217, %v4274
  %v4285 = vadd.f32 %v4218, %v4274
  %v4286 = vadd.f32 %v4219, %v4274
  %v4287 = vadd.f32 %v4220, %v4274
  %v4288 = vadd.f32 %v4221, %v4274
  %v4289 = vadd.f32 %v4222, %v4274
  %v4290 = vadd.f32 %v4223, %v4274
  %v4291 = vadd.f32 %v4224, %v4274
  %v4292 = vadd.f32 %v4225, %v4274
  %v4293 = vadd.f32 %v4226, %v4274
  %v4294 = vadd.f32 %v4227, %v4274
  %v4295 = vadd.f32 %v4228, %v4274
  %v4296 = vadd.f32 %v4229, %v4274
  %v4297 = vadd.f32 %v4230, %v4274
  %v4298 = vadd.f32 %v4231, %v4274
  %v4299 = vadd.f32 %v4232, %v4274
  %v4300 = vadd.f32 %v4233, %v4274
  %v4301 = vadd.f32 %v4234, %v4274
  %v4302 = vadd.f32 %v4235, %v4274
  %v4303 = vadd.f32 %v4236, %v4274
  %v4304 = vadd.f32 %v4237, %v4274
  %v4305 = vadd.f32 %v4238, %v4274
  %v4306 = vadd.f32 %v4239, %v4274
  %v4307 = vadd.f32 %v4240, %v4274
  %v4308 = vadd.f32 %v4241, %v4274
  %v4309 = vadd.f32 %v4242, %v4274
  %v4310 = vadd.f32 %v4243, %v4274
  %v4311 = vadd.f32 %v4244, %v4274
  %v4312 = vadd.f32 %v4245, %v4274
  %v4313 = vadd.f32 %v4246, %v4274
  %v4314 = vadd.f32 %v4247, %v4274
  %v4315 = vadd.f32 %v4248, %v4274
  %v4316 = vadd.f32 %v4249, %v4274
  %v4317 = vadd.f32 %v4250, %v4274
  %v4318 = vadd.f32 %v4251, %v4274
  %v4319 = vadd.f32 %v4252, %v4274
  %v4320 = vadd.f32 %v4253, %v4274
  %v4321 = vadd.f32 %v4254, %v4274
  %v4322 = vadd.f32 %v4255, %v4274
  %v4323 = vadd.f32 %v4256, %v4274
  %v4324 = vadd.f32 %v4257, %v4274
  %v4325 = vadd.f32 %v4258, %v4274
  %v4326 = vadd.f32 %v4259, %v4274
  %v4327 = vadd.f32 %v4260, %v4274
  %v4328 = vadd.f32 %v4261, %v4274
  %v4329 = vadd.f32 %v4262, %v4274
  %v4330 = vadd.f32 %v4263, %v4274
  %v4331 = vadd.f32 %v4264, %v4274
  %v4332 = vadd.f32 %v4265, %v4274
  %v4333 = vadd.f32 %v4266, %v4274
  %v4334 = vadd.f32 %v4267, %v4274
  %v4335 = vadd.f32 %v4268, %v4274
  %v4336 = vadd.f32 %v4269, %v4274
  %v4337 = vadd.f32 %v4270, %v4274
  %v4338 = vadd.f32 %v4271, %v4274
  %v4339 = vadd.f32 %v4272, %v4274
  %v4340 = vmax.f32 %v4276, 0.0
  %v4341 = vmax.f32 %v4277, 0.0
  %v4342 = vmax.f32 %v4278, 0.0
  %v4343 = vmax.f32 %v4279, 0.0
  %v4344 = vmax.f32 %v4280, 0.0
  %v4345 = vmax.f32 %v4281, 0.0
  %v4346 = vmax.f32 %v4282, 0.0
  %v4347 = vmax.f32 %v4283, 0.0
  %v4348 = vmax.f32 %v4284, 0.0
  %v4349 = vmax.f32 %v4285, 0.0
  %v4350 = vmax.f32 %v4286, 0.0
  %v4351 = vmax.f32 %v4287, 0.0
  %v4352 = vmax.f32 %v4288, 0.0
  %v4353 = vmax.f32 %v4289, 0.0
  %v4354 = vmax.f32 %v4290, 0.0
  %v4355 = vmax.f32 %v4291, 0.0
  %v4356 = vmax.f32 %v4292, 0.0
  %v4357 = vmax.f32 %v4293, 0.0
  %v4358 = vmax.f32 %v4294, 0.0
  %v4359 = vmax.f32 %v4295, 0.0
  %v4360 = vmax.f32 %v4296, 0.0
  %v4361 = vmax.f32 %v4297, 0.0
  %v4362 = vmax.f32 %v4298, 0.0
  %v4363 = vmax.f32 %v4299, 0.0
  %v4364 = vmax.f32 %v4300, 0.0
  %v4365 = vmax.f32 %v4301, 0.0
  %v4366 = vmax.f32 %v4302, 0.0
  %v4367 = vmax.f32 %v4303, 0.0
  %v4368 = vmax.f32 %v4304, 0.0
  %v4369 = vmax.f32 %v4305, 0.0
  %v4370 = vmax.f32 %v4306, 0.0
  %v4371 = vmax.f32 %v4307, 0.0
  %v4372 = vmax.f32 %v4308, 0.0
  %v4373 = vmax.f32 %v4309, 0.0
  %v4374 = vmax.f32 %v4310, 0.0
  %v4375 = vmax.f32 %v4311, 0.0
  %v4376 = vmax.f32 %v4312, 0.0
  %v4377 = vmax.f32 %v4313, 0.0
  %v4378 = vmax.f32 %v4314, 0.0
  %v4379 = vmax.f32 %v4315, 0.0
  %v4380 = vmax.f32 %v4316, 0.0
  %v4381 = vmax.f32 %v4317, 0.0
  %v4382 = vmax.f32 %v4318, 0.0
  %v4383 = vmax.f32 %v4319, 0.0
  %v4384 = vmax.f32 %v4320, 0.0
  %v4385 = vmax.f32 %v4321, 0.0
  %v4386 = vmax.f32 %v4322, 0.0
  %v4387 = vmax.f32 %v4323, 0.0
  %v4388 = vmax.f32 %v4324, 0.0
  %v4389 = vmax.f32 %v4325, 0.0
  %v4390 = vmax.f32 %v4326, 0.0
  %v4391 = vmax.f32 %v4327, 0.0
  %v4392 = vmax.f32 %v4328, 0.0
  %v4393 = vmax.f32 %v4329, 0.0
  %v4394 = vmax.f32 %v4330, 0.0
  %v4395 = vmax.f32 %v4331, 0.0
  %v4396 = vmax.f32 %v4332, 0.0
  %v4397 = vmax.f32 %v4333, 0.0
  %v4398 = vmax.f32 %v4334, 0.0
  %v4399 = vmax.f32 %v4335, 0.0
  %v4400 = vmax.f32 %v4336, 0.0
  %v4401 = vmax.f32 %v4337, 0.0
  %v4402 = vmax.f32 %v4338, 0.0
  %v4403 = vmax.f32 %v4339, 0.0
  %4404 = vst.msk [vmem:[%s236 + $0x8] sm:$0xff] %vm26, %v4340
  %4405 = vst.msk [vmem:[%s236 + $0x10] sm:$0xff] %vm26, %v4341
  %4406 = vst.msk [vmem:[%s236 + $0x28] sm:$0xff] %vm26, %v4342
  %4407 = vst.msk [vmem:[%s236 + $0x30] sm:$0xff] %vm26, %v4343
  %4408 = vst.msk [vmem:[%s236 + $0x48] sm:$0xff] %vm26, %v4344
  %4409 = vst.msk [vmem:[%s236 + $0x50] sm:$0xff] %vm26, %v4345
  %4410 = vst.msk [vmem:[%s236 + $0x68] sm:$0xff] %vm26, %v4346
  %4411 = vst.msk [vmem:[%s236 + $0x70] sm:$0xff] %vm26, %v4347
  %4412 = vst.msk [vmem:[%s236 + $0x88] sm:$0xff] %vm26, %v4348
  %4413 = vst.msk [vmem:[%s236 + $0x90] sm:$0xff] %vm26, %v4349
  %4414 = vst.msk [vmem:[%s236 + $0xa8] sm:$0xff] %vm26, %v4350
  %4415 = vst.msk [vmem:[%s236 + $0xb0] sm:$0xff] %vm26, %v4351
  %4416 = vst.msk [vmem:[%s236 + $0xc8] sm:$0xff] %vm26, %v4352
  %4417 = vst.msk [vmem:[%s236 + $0xd0] sm:$0xff] %vm26, %v4353
  %4418 = vst.msk [vmem:[%s236 + $0xe8] sm:$0xff] %vm26, %v4354
  %4419 = vst.msk [vmem:[%s236 + $0xf0] sm:$0xff] %vm26, %v4355
  %4420 = vst.msk [vmem:[%s236 + $0x108] sm:$0xff] %vm26, %v4356
  %4421 = vst.msk [vmem:[%s236 + $0x110] sm:$0xff] %vm26, %v4357
  %4422 = vst.msk [vmem:[%s236 + $0x128] sm:$0xff] %vm26, %v4358
  %4423 = vst.msk [vmem:[%s236 + $0x130] sm:$0xff] %vm26, %v4359
  %4424 = vst.msk [vmem:[%s236 + $0x148] sm:$0xff] %vm26, %v4360
  %4425 = vst.msk [vmem:[%s236 + $0x150] sm:$0xff] %vm26, %v4361
  %4426 = vst.msk [vmem:[%s236 + $0x168] sm:$0xff] %vm26, %v4362
  %4427 = vst.msk [vmem:[%s236 + $0x170] sm:$0xff] %vm26, %v4363
  %4428 = vst.msk [vmem:[%s236 + $0x188] sm:$0xff] %vm26, %v4364
  %4429 = vst.msk [vmem:[%s236 + $0x190] sm:$0xff] %vm26, %v4365
  %4430 = vst.msk [vmem:[%s236 + $0x1a8] sm:$0xff] %vm26, %v4366
  %4431 = vst.msk [vmem:[%s236 + $0x1b0] sm:$0xff] %vm26, %v4367
  %4432 = vst.msk [vmem:[%s236 + $0x1c8] sm:$0xff] %vm26, %v4368
  %4433 = vst.msk [vmem:[%s236 + $0x1d0] sm:$0xff] %vm26, %v4369
  %4434 = vst.msk [vmem:[%s236 + $0x1e8] sm:$0xff] %vm26, %v4370
  %4435 = vst.msk [vmem:[%s236 + $0x1f0] sm:$0xff] %vm26, %v4371
  %4436 = vst.msk [vmem:[%s236 + $0x248] sm:$0xff] %vm26, %v4372
  %4437 = vst.msk [vmem:[%s236 + $0x250] sm:$0xff] %vm26, %v4373
  %4438 = vst.msk [vmem:[%s236 + $0x268] sm:$0xff] %vm26, %v4374
  %4439 = vst.msk [vmem:[%s236 + $0x270] sm:$0xff] %vm26, %v4375
  %4440 = vst.msk [vmem:[%s236 + $0x288] sm:$0xff] %vm26, %v4376
  %4441 = vst.msk [vmem:[%s236 + $0x290] sm:$0xff] %vm26, %v4377
  %4442 = vst.msk [vmem:[%s236 + $0x2a8] sm:$0xff] %vm26, %v4378
  %4443 = vst.msk [vmem:[%s236 + $0x2b0] sm:$0xff] %vm26, %v4379
  %4444 = vst.msk [vmem:[%s236 + $0x2c8] sm:$0xff] %vm26, %v4380
  %4445 = vst.msk [vmem:[%s236 + $0x2d0] sm:$0xff] %vm26, %v4381
  %4446 = vst.msk [vmem:[%s236 + $0x2e8] sm:$0xff] %vm26, %v4382
  %4447 = vst.msk [vmem:[%s236 + $0x2f0] sm:$0xff] %vm26, %v4383
  %4448 = vst.msk [vmem:[%s236 + $0x308] sm:$0xff] %vm26, %v4384
  %4449 = vst.msk [vmem:[%s236 + $0x310] sm:$0xff] %vm26, %v4385
  %4450 = vst.msk [vmem:[%s236 + $0x328] sm:$0xff] %vm26, %v4386
  %4451 = vst.msk [vmem:[%s236 + $0x330] sm:$0xff] %vm26, %v4387
  %4452 = vst.msk [vmem:[%s236 + $0x348] sm:$0xff] %vm26, %v4388
  %4453 = vst.msk [vmem:[%s236 + $0x350] sm:$0xff] %vm26, %v4389
  %4454 = vst.msk [vmem:[%s236 + $0x368] sm:$0xff] %vm26, %v4390
  %4455 = vst.msk [vmem:[%s236 + $0x370] sm:$0xff] %vm26, %v4391
  %4456 = vst.msk [vmem:[%s236 + $0x388] sm:$0xff] %vm26, %v4392
  %4457 = vst.msk [vmem:[%s236 + $0x390] sm:$0xff] %vm26, %v4393
  %4458 = vst.msk [vmem:[%s236 + $0x3a8] sm:$0xff] %vm26, %v4394
  %4459 = vst.msk [vmem:[%s236 + $0x3b0] sm:$0xff] %vm26, %v4395
  %4460 = vst.msk [vmem:[%s236 + $0x3c8] sm:$0xff] %vm26, %v4396
  %4461 = vst.msk [vmem:[%s236 + $0x3d0] sm:$0xff] %vm26, %v4397
  %4462 = vst.msk [vmem:[%s236 + $0x3e8] sm:$0xff] %vm26, %v4398
  %4463 = vst.msk [vmem:[%s236 + $0x3f0] sm:$0xff] %vm26, %v4399
  %4464 = vst.msk [vmem:[%s236 + $0x408] sm:$0xff] %vm26, %v4400
  %4465 = vst.msk [vmem:[%s236 + $0x410] sm:$0xff] %vm26, %v4401
  %4466 = vst.msk [vmem:[%s236 + $0x428] sm:$0xff] %vm26, %v4402
  %4467 = vst.msk [vmem:[%s236 + $0x430] sm:$0xff] %vm26, %v4403
  %v4468 = vld [vmem:[#allocation2 + $0x7] sm:$0xff]
  %v4469 = vld [vmem:[#allocation2 + $0xf] sm:$0xff]
  %v4470 = vld [vmem:[#allocation2 + $0x27] sm:$0xff]
  %v4471 = vld [vmem:[#allocation2 + $0x2f] sm:$0xff]
  %v4472 = vld [vmem:[#allocation2 + $0x47] sm:$0xff]
  %v4473 = vld [vmem:[#allocation2 + $0x4f] sm:$0xff]
  %v4474 = vld [vmem:[#allocation2 + $0x67] sm:$0xff]
  %v4475 = vld [vmem:[#allocation2 + $0x6f] sm:$0xff]
  %v4476 = vld [vmem:[#allocation2 + $0x87] sm:$0xff]
  %v4477 = vld [vmem:[#allocation2 + $0x8f] sm:$0xff]
  %v4478 = vld [vmem:[#allocation2 + $0xa7] sm:$0xff]
  %v4479 = vld [vmem:[#allocation2 + $0xaf] sm:$0xff]
  %v4480 = vld [vmem:[#allocation2 + $0xc7] sm:$0xff]
  %v4481 = vld [vmem:[#allocation2 + $0xcf] sm:$0xff]
  %v4482 = vld [vmem:[#allocation2 + $0xe7] sm:$0xff]
  %v4483 = vld [vmem:[#allocation2 + $0xef] sm:$0xff]
  %v4484 = vld [vmem:[#allocation2 + $0x107] sm:$0xff]
  %v4485 = vld [vmem:[#allocation2 + $0x10f] sm:$0xff]
  %v4486 = vld [vmem:[#allocation2 + $0x127] sm:$0xff]
  %v4487 = vld [vmem:[#allocation2 + $0x12f] sm:$0xff]
  %v4488 = vld [vmem:[#allocation2 + $0x147] sm:$0xff]
  %v4489 = vld [vmem:[#allocation2 + $0x14f] sm:$0xff]
  %v4490 = vld [vmem:[#allocation2 + $0x167] sm:$0xff]
  %v4491 = vld [vmem:[#allocation2 + $0x16f] sm:$0xff]
  %v4492 = vld [vmem:[#allocation2 + $0x187] sm:$0xff]
  %v4493 = vld [vmem:[#allocation2 + $0x18f] sm:$0xff]
  %v4494 = vld [vmem:[#allocation2 + $0x1a7] sm:$0xff]
  %v4495 = vld [vmem:[#allocation2 + $0x1af] sm:$0xff]
  %v4496 = vld [vmem:[#allocation2 + $0x1c7] sm:$0xff]
  %v4497 = vld [vmem:[#allocation2 + $0x1cf] sm:$0xff]
  %v4498 = vld [vmem:[#allocation2 + $0x1e7] sm:$0xff]
  %v4499 = vld [vmem:[#allocation2 + $0x1ef] sm:$0xff]
  %v4500 = vld [vmem:[#allocation2 + $0x247] sm:$0xff]
  %v4501 = vld [vmem:[#allocation2 + $0x24f] sm:$0xff]
  %v4502 = vld [vmem:[#allocation2 + $0x267] sm:$0xff]
  %v4503 = vld [vmem:[#allocation2 + $0x26f] sm:$0xff]
  %v4504 = vld [vmem:[#allocation2 + $0x287] sm:$0xff]
  %v4505 = vld [vmem:[#allocation2 + $0x28f] sm:$0xff]
  %v4506 = vld [vmem:[#allocation2 + $0x2a7] sm:$0xff]
  %v4507 = vld [vmem:[#allocation2 + $0x2af] sm:$0xff]
  %v4508 = vld [vmem:[#allocation2 + $0x2c7] sm:$0xff]
  %v4509 = vld [vmem:[#allocation2 + $0x2cf] sm:$0xff]
  %v4510 = vld [vmem:[#allocation2 + $0x2e7] sm:$0xff]
  %v4511 = vld [vmem:[#allocation2 + $0x2ef] sm:$0xff]
  %v4512 = vld [vmem:[#allocation2 + $0x307] sm:$0xff]
  %v4513 = vld [vmem:[#allocation2 + $0x30f] sm:$0xff]
  %v4514 = vld [vmem:[#allocation2 + $0x327] sm:$0xff]
  %v4515 = vld [vmem:[#allocation2 + $0x32f] sm:$0xff]
  %v4516 = vld [vmem:[#allocation2 + $0x347] sm:$0xff]
  %v4517 = vld [vmem:[#allocation2 + $0x34f] sm:$0xff]
  %v4518 = vld [vmem:[#allocation2 + $0x367] sm:$0xff]
  %v4519 = vld [vmem:[#allocation2 + $0x36f] sm:$0xff]
  %v4520 = vld [vmem:[#allocation2 + $0x387] sm:$0xff]
  %v4521 = vld [vmem:[#allocation2 + $0x38f] sm:$0xff]
  %v4522 = vld [vmem:[#allocation2 + $0x3a7] sm:$0xff]
  %v4523 = vld [vmem:[#allocation2 + $0x3af] sm:$0xff]
  %v4524 = vld [vmem:[#allocation2 + $0x3c7] sm:$0xff]
  %v4525 = vld [vmem:[#allocation2 + $0x3cf] sm:$0xff]
  %v4526 = vld [vmem:[#allocation2 + $0x3e7] sm:$0xff]
  %v4527 = vld [vmem:[#allocation2 + $0x3ef] sm:$0xff]
  %v4528 = vld [vmem:[#allocation2 + $0x407] sm:$0xff]
  %v4529 = vld [vmem:[#allocation2 + $0x40f] sm:$0xff]
  %v4530 = vld [vmem:[#allocation2 + $0x427] sm:$0xff]
  %v4531 = vld [vmem:[#allocation2 + $0x42f] sm:$0xff]
  %v4532 = vld [vmem:[#allocation2 + $0x8] sm:$0xff]
  %v4533 = vld [vmem:[#allocation2 + $0x10] sm:$0xff]
  %v4534 = vld [vmem:[#allocation2 + $0x28] sm:$0xff]
  %v4535 = vld [vmem:[#allocation2 + $0x30] sm:$0xff]
  %v4536 = vld [vmem:[#allocation2 + $0x48] sm:$0xff]
  %v4537 = vld [vmem:[#allocation2 + $0x50] sm:$0xff]
  %v4538 = vld [vmem:[#allocation2 + $0x68] sm:$0xff]
  %v4539 = vld [vmem:[#allocation2 + $0x70] sm:$0xff]
  %v4540 = vld [vmem:[#allocation2 + $0x88] sm:$0xff]
  %v4541 = vld [vmem:[#allocation2 + $0x90] sm:$0xff]
  %v4542 = vld [vmem:[#allocation2 + $0xa8] sm:$0xff]
  %v4543 = vld [vmem:[#allocation2 + $0xb0] sm:$0xff]
  %v4544 = vld [vmem:[#allocation2 + $0xc8] sm:$0xff]
  %v4545 = vld [vmem:[#allocation2 + $0xd0] sm:$0xff]
  %v4546 = vld [vmem:[#allocation2 + $0xe8] sm:$0xff]
  %v4547 = vld [vmem:[#allocation2 + $0xf0] sm:$0xff]
  %v4548 = vld [vmem:[#allocation2 + $0x108] sm:$0xff]
  %v4549 = vld [vmem:[#allocation2 + $0x110] sm:$0xff]
  %v4550 = vld [vmem:[#allocation2 + $0x128] sm:$0xff]
  %v4551 = vld [vmem:[#allocation2 + $0x130] sm:$0xff]
  %v4552 = vld [vmem:[#allocation2 + $0x148] sm:$0xff]
  %v4553 = vld [vmem:[#allocation2 + $0x150] sm:$0xff]
  %v4554 = vld [vmem:[#allocation2 + $0x168] sm:$0xff]
  %v4555 = vld [vmem:[#allocation2 + $0x170] sm:$0xff]
  %v4556 = vld [vmem:[#allocation2 + $0x188] sm:$0xff]
  %v4557 = vld [vmem:[#allocation2 + $0x190] sm:$0xff]
  %v4558 = vld [vmem:[#allocation2 + $0x1a8] sm:$0xff]
  %v4559 = vld [vmem:[#allocation2 + $0x1b0] sm:$0xff]
  %v4560 = vld [vmem:[#allocation2 + $0x1c8] sm:$0xff]
  %v4561 = vld [vmem:[#allocation2 + $0x1d0] sm:$0xff]
  %v4562 = vld [vmem:[#allocation2 + $0x1e8] sm:$0xff]
  %v4563 = vld [vmem:[#allocation2 + $0x1f0] sm:$0xff]
  %v4564 = vld [vmem:[#allocation2 + $0x248] sm:$0xff]
  %v4565 = vld [vmem:[#allocation2 + $0x250] sm:$0xff]
  %v4566 = vld [vmem:[#allocation2 + $0x268] sm:$0xff]
  %v4567 = vld [vmem:[#allocation2 + $0x270] sm:$0xff]
  %v4568 = vld [vmem:[#allocation2 + $0x288] sm:$0xff]
  %v4569 = vld [vmem:[#allocation2 + $0x290] sm:$0xff]
  %v4570 = vld [vmem:[#allocation2 + $0x2a8] sm:$0xff]
  %v4571 = vld [vmem:[#allocation2 + $0x2b0] sm:$0xff]
  %v4572 = vld [vmem:[#allocation2 + $0x2c8] sm:$0xff]
  %v4573 = vld [vmem:[#allocation2 + $0x2d0] sm:$0xff]
  %v4574 = vld [vmem:[#allocation2 + $0x2e8] sm:$0xff]
  %v4575 = vld [vmem:[#allocation2 + $0x2f0] sm:$0xff]
  %v4576 = vld [vmem:[#allocation2 + $0x308] sm:$0xff]
  %v4577 = vld [vmem:[#allocation2 + $0x310] sm:$0xff]
  %v4578 = vld [vmem:[#allocation2 + $0x328] sm:$0xff]
  %v4579 = vld [vmem:[#allocation2 + $0x330] sm:$0xff]
  %v4580 = vld [vmem:[#allocation2 + $0x348] sm:$0xff]
  %v4581 = vld [vmem:[#allocation2 + $0x350] sm:$0xff]
  %v4582 = vld [vmem:[#allocation2 + $0x368] sm:$0xff]
  %v4583 = vld [vmem:[#allocation2 + $0x370] sm:$0xff]
  %v4584 = vld [vmem:[#allocation2 + $0x388] sm:$0xff]
  %v4585 = vld [vmem:[#allocation2 + $0x390] sm:$0xff]
  %v4586 = vld [vmem:[#allocation2 + $0x3a8] sm:$0xff]
  %v4587 = vld [vmem:[#allocation2 + $0x3b0] sm:$0xff]
  %v4588 = vld [vmem:[#allocation2 + $0x3c8] sm:$0xff]
  %v4589 = vld [vmem:[#allocation2 + $0x3d0] sm:$0xff]
  %v4590 = vld [vmem:[#allocation2 + $0x3e8] sm:$0xff]
  %v4591 = vld [vmem:[#allocation2 + $0x3f0] sm:$0xff]
  %v4592 = vld [vmem:[#allocation2 + $0x408] sm:$0xff]
  %v4593 = vld [vmem:[#allocation2 + $0x410] sm:$0xff]
  %v4594 = vld [vmem:[#allocation2 + $0x428] sm:$0xff]
  %v4595 = vld [vmem:[#allocation2 + $0x430] sm:$0xff]
  %v4596 = vld [vmem:[#allocation2 + $0x9] sm:$0xff]
  %v4597 = vld [vmem:[#allocation2 + $0x11] sm:$0xff]
  %v4598 = vld [vmem:[#allocation2 + $0x29] sm:$0xff]
  %v4599 = vld [vmem:[#allocation2 + $0x31] sm:$0xff]
  %v4600 = vld [vmem:[#allocation2 + $0x49] sm:$0xff]
  %v4601 = vld [vmem:[#allocation2 + $0x51] sm:$0xff]
  %v4602 = vld [vmem:[#allocation2 + $0x69] sm:$0xff]
  %v4603 = vld [vmem:[#allocation2 + $0x71] sm:$0xff]
  %v4604 = vld [vmem:[#allocation2 + $0x89] sm:$0xff]
  %v4605 = vld [vmem:[#allocation2 + $0x91] sm:$0xff]
  %v4606 = vld [vmem:[#allocation2 + $0xa9] sm:$0xff]
  %v4607 = vld [vmem:[#allocation2 + $0xb1] sm:$0xff]
  %v4608 = vld [vmem:[#allocation2 + $0xc9] sm:$0xff]
  %v4609 = vld [vmem:[#allocation2 + $0xd1] sm:$0xff]
  %v4610 = vld [vmem:[#allocation2 + $0xe9] sm:$0xff]
  %v4611 = vld [vmem:[#allocation2 + $0xf1] sm:$0xff]
  %v4612 = vld [vmem:[#allocation2 + $0x109] sm:$0xff]
  %v4613 = vld [vmem:[#allocation2 + $0x111] sm:$0xff]
  %v4614 = vld [vmem:[#allocation2 + $0x129] sm:$0xff]
  %v4615 = vld [vmem:[#allocation2 + $0x131] sm:$0xff]
  %v4616 = vld [vmem:[#allocation2 + $0x149] sm:$0xff]
  %v4617 = vld [vmem:[#allocation2 + $0x151] sm:$0xff]
  %v4618 = vld [vmem:[#allocation2 + $0x169] sm:$0xff]
  %v4619 = vld [vmem:[#allocation2 + $0x171] sm:$0xff]
  %v4620 = vld [vmem:[#allocation2 + $0x189] sm:$0xff]
  %v4621 = vld [vmem:[#allocation2 + $0x191] sm:$0xff]
  %v4622 = vld [vmem:[#allocation2 + $0x1a9] sm:$0xff]
  %v4623 = vld [vmem:[#allocation2 + $0x1b1] sm:$0xff]
  %v4624 = vld [vmem:[#allocation2 + $0x1c9] sm:$0xff]
  %v4625 = vld [vmem:[#allocation2 + $0x1d1] sm:$0xff]
  %v4626 = vld [vmem:[#allocation2 + $0x1e9] sm:$0xff]
  %v4627 = vld [vmem:[#allocation2 + $0x1f1] sm:$0xff]
  %v4628 = vld [vmem:[#allocation2 + $0x249] sm:$0xff]
  %v4629 = vld [vmem:[#allocation2 + $0x251] sm:$0xff]
  %v4630 = vld [vmem:[#allocation2 + $0x269] sm:$0xff]
  %v4631 = vld [vmem:[#allocation2 + $0x271] sm:$0xff]
  %v4632 = vld [vmem:[#allocation2 + $0x289] sm:$0xff]
  %v4633 = vld [vmem:[#allocation2 + $0x291] sm:$0xff]
  %v4634 = vld [vmem:[#allocation2 + $0x2a9] sm:$0xff]
  %v4635 = vld [vmem:[#allocation2 + $0x2b1] sm:$0xff]
  %v4636 = vld [vmem:[#allocation2 + $0x2c9] sm:$0xff]
  %v4637 = vld [vmem:[#allocation2 + $0x2d1] sm:$0xff]
  %v4638 = vld [vmem:[#allocation2 + $0x2e9] sm:$0xff]
  %v4639 = vld [vmem:[#allocation2 + $0x2f1] sm:$0xff]
  %v4640 = vld [vmem:[#allocation2 + $0x309] sm:$0xff]
  %v4641 = vld [vmem:[#allocation2 + $0x311] sm:$0xff]
  %v4642 = vld [vmem:[#allocation2 + $0x329] sm:$0xff]
  %v4643 = vld [vmem:[#allocation2 + $0x331] sm:$0xff]
  %v4644 = vld [vmem:[#allocation2 + $0x349] sm:$0xff]
  %v4645 = vld [vmem:[#allocation2 + $0x351] sm:$0xff]
  %v4646 = vld [vmem:[#allocation2 + $0x369] sm:$0xff]
  %v4647 = vld [vmem:[#allocation2 + $0x371] sm:$0xff]
  %v4648 = vld [vmem:[#allocation2 + $0x389] sm:$0xff]
  %v4649 = vld [vmem:[#allocation2 + $0x391] sm:$0xff]
  %v4650 = vld [vmem:[#allocation2 + $0x3a9] sm:$0xff]
  %v4651 = vld [vmem:[#allocation2 + $0x3b1] sm:$0xff]
  %v4652 = vld [vmem:[#allocation2 + $0x3c9] sm:$0xff]
  %v4653 = vld [vmem:[#allocation2 + $0x3d1] sm:$0xff]
  %v4654 = vld [vmem:[#allocation2 + $0x3e9] sm:$0xff]
  %v4655 = vld [vmem:[#allocation2 + $0x3f1] sm:$0xff]
  %v4656 = vld [vmem:[#allocation2 + $0x409] sm:$0xff]
  %v4657 = vld [vmem:[#allocation2 + $0x411] sm:$0xff]
  %v4658 = vld [vmem:[#allocation2 + $0x429] sm:$0xff]
  %v4659 = vld [vmem:[#allocation2 + $0x431] sm:$0xff]
  %v4660 = vld [vmem:[%s236 + $0x7] sm:$0xff]
  %v4661 = vld [vmem:[%s236 + $0xf] sm:$0xff]
  %v4662 = vld [vmem:[%s236 + $0x27] sm:$0xff]
  %v4663 = vld [vmem:[%s236 + $0x2f] sm:$0xff]
  %v4664 = vld [vmem:[%s236 + $0x47] sm:$0xff]
  %v4665 = vld [vmem:[%s236 + $0x4f] sm:$0xff]
  %v4666 = vld [vmem:[%s236 + $0x67] sm:$0xff]
  %v4667 = vld [vmem:[%s236 + $0x6f] sm:$0xff]
  %v4668 = vld [vmem:[%s236 + $0x87] sm:$0xff]
  %v4669 = vld [vmem:[%s236 + $0x8f] sm:$0xff]
  %v4670 = vld [vmem:[%s236 + $0xa7] sm:$0xff]
  %v4671 = vld [vmem:[%s236 + $0xaf] sm:$0xff]
  %v4672 = vld [vmem:[%s236 + $0xc7] sm:$0xff]
  %v4673 = vld [vmem:[%s236 + $0xcf] sm:$0xff]
  %v4674 = vld [vmem:[%s236 + $0xe7] sm:$0xff]
  %v4675 = vld [vmem:[%s236 + $0xef] sm:$0xff]
  %v4676 = vld [vmem:[%s236 + $0x107] sm:$0xff]
  %v4677 = vld [vmem:[%s236 + $0x10f] sm:$0xff]
  %v4678 = vld [vmem:[%s236 + $0x127] sm:$0xff]
  %v4679 = vld [vmem:[%s236 + $0x12f] sm:$0xff]
  %v4680 = vld [vmem:[%s236 + $0x147] sm:$0xff]
  %v4681 = vld [vmem:[%s236 + $0x14f] sm:$0xff]
  %v4682 = vld [vmem:[%s236 + $0x167] sm:$0xff]
  %v4683 = vld [vmem:[%s236 + $0x16f] sm:$0xff]
  %v4684 = vld [vmem:[%s236 + $0x187] sm:$0xff]
  %v4685 = vld [vmem:[%s236 + $0x18f] sm:$0xff]
  %v4686 = vld [vmem:[%s236 + $0x1a7] sm:$0xff]
  %v4687 = vld [vmem:[%s236 + $0x1af] sm:$0xff]
  %v4688 = vld [vmem:[%s236 + $0x1c7] sm:$0xff]
  %v4689 = vld [vmem:[%s236 + $0x1cf] sm:$0xff]
  %v4690 = vld [vmem:[%s236 + $0x1e7] sm:$0xff]
  %v4691 = vld [vmem:[%s236 + $0x1ef] sm:$0xff]
  %v4692 = vld [vmem:[%s236 + $0x247] sm:$0xff]
  %v4693 = vld [vmem:[%s236 + $0x24f] sm:$0xff]
  %v4694 = vld [vmem:[%s236 + $0x267] sm:$0xff]
  %v4695 = vld [vmem:[%s236 + $0x26f] sm:$0xff]
  %v4696 = vld [vmem:[%s236 + $0x287] sm:$0xff]
  %v4697 = vld [vmem:[%s236 + $0x28f] sm:$0xff]
  %v4698 = vld [vmem:[%s236 + $0x2a7] sm:$0xff]
  %v4699 = vld [vmem:[%s236 + $0x2af] sm:$0xff]
  %v4700 = vld [vmem:[%s236 + $0x2c7] sm:$0xff]
  %v4701 = vld [vmem:[%s236 + $0x2cf] sm:$0xff]
  %v4702 = vld [vmem:[%s236 + $0x2e7] sm:$0xff]
  %v4703 = vld [vmem:[%s236 + $0x2ef] sm:$0xff]
  %v4704 = vld [vmem:[%s236 + $0x307] sm:$0xff]
  %v4705 = vld [vmem:[%s236 + $0x30f] sm:$0xff]
  %v4706 = vld [vmem:[%s236 + $0x327] sm:$0xff]
  %v4707 = vld [vmem:[%s236 + $0x32f] sm:$0xff]
  %v4708 = vld [vmem:[%s236 + $0x347] sm:$0xff]
  %v4709 = vld [vmem:[%s236 + $0x34f] sm:$0xff]
  %v4710 = vld [vmem:[%s236 + $0x367] sm:$0xff]
  %v4711 = vld [vmem:[%s236 + $0x36f] sm:$0xff]
  %v4712 = vld [vmem:[%s236 + $0x387] sm:$0xff]
  %v4713 = vld [vmem:[%s236 + $0x38f] sm:$0xff]
  %v4714 = vld [vmem:[%s236 + $0x3a7] sm:$0xff]
  %v4715 = vld [vmem:[%s236 + $0x3af] sm:$0xff]
  %v4716 = vld [vmem:[%s236 + $0x3c7] sm:$0xff]
  %v4717 = vld [vmem:[%s236 + $0x3cf] sm:$0xff]
  %v4718 = vld [vmem:[%s236 + $0x3e7] sm:$0xff]
  %v4719 = vld [vmem:[%s236 + $0x3ef] sm:$0xff]
  %v4720 = vld [vmem:[%s236 + $0x407] sm:$0xff]
  %v4721 = vld [vmem:[%s236 + $0x40f] sm:$0xff]
  %v4722 = vld [vmem:[%s236 + $0x427] sm:$0xff]
  %v4723 = vld [vmem:[%s236 + $0x42f] sm:$0xff]
  %v4724 = vld [vmem:[%s236 + $0x8] sm:$0xff]
  %v4725 = vld [vmem:[%s236 + $0x10] sm:$0xff]
  %v4726 = vld [vmem:[%s236 + $0x28] sm:$0xff]
  %v4727 = vld [vmem:[%s236 + $0x30] sm:$0xff]
  %v4728 = vld [vmem:[%s236 + $0x48] sm:$0xff]
  %v4729 = vld [vmem:[%s236 + $0x50] sm:$0xff]
  %v4730 = vld [vmem:[%s236 + $0x68] sm:$0xff]
  %v4731 = vld [vmem:[%s236 + $0x70] sm:$0xff]
  %v4732 = vld [vmem:[%s236 + $0x88] sm:$0xff]
  %v4733 = vld [vmem:[%s236 + $0x90] sm:$0xff]
  %v4734 = vld [vmem:[%s236 + $0xa8] sm:$0xff]
  %v4735 = vld [vmem:[%s236 + $0xb0] sm:$0xff]
  %v4736 = vld [vmem:[%s236 + $0xc8] sm:$0xff]
  %v4737 = vld [vmem:[%s236 + $0xd0] sm:$0xff]
  %v4738 = vld [vmem:[%s236 + $0xe8] sm:$0xff]
  %v4739 = vld [vmem:[%s236 + $0xf0] sm:$0xff]
  %v4740 = vld [vmem:[%s236 + $0x108] sm:$0xff]
  %v4741 = vld [vmem:[%s236 + $0x110] sm:$0xff]
  %v4742 = vld [vmem:[%s236 + $0x128] sm:$0xff]
  %v4743 = vld [vmem:[%s236 + $0x130] sm:$0xff]
  %v4744 = vld [vmem:[%s236 + $0x148] sm:$0xff]
  %v4745 = vld [vmem:[%s236 + $0x150] sm:$0xff]
  %v4746 = vld [vmem:[%s236 + $0x168] sm:$0xff]
  %v4747 = vld [vmem:[%s236 + $0x170] sm:$0xff]
  %v4748 = vld [vmem:[%s236 + $0x188] sm:$0xff]
  %v4749 = vld [vmem:[%s236 + $0x190] sm:$0xff]
  %v4750 = vld [vmem:[%s236 + $0x1a8] sm:$0xff]
  %v4751 = vld [vmem:[%s236 + $0x1b0] sm:$0xff]
  %v4752 = vld [vmem:[%s236 + $0x1c8] sm:$0xff]
  %v4753 = vld [vmem:[%s236 + $0x1d0] sm:$0xff]
  %v4754 = vld [vmem:[%s236 + $0x1e8] sm:$0xff]
  %v4755 = vld [vmem:[%s236 + $0x1f0] sm:$0xff]
  %v4756 = vld [vmem:[%s236 + $0x248] sm:$0xff]
  %v4757 = vld [vmem:[%s236 + $0x250] sm:$0xff]
  %v4758 = vld [vmem:[%s236 + $0x268] sm:$0xff]
  %v4759 = vld [vmem:[%s236 + $0x270] sm:$0xff]
  %v4760 = vld [vmem:[%s236 + $0x288] sm:$0xff]
  %v4761 = vld [vmem:[%s236 + $0x290] sm:$0xff]
  %v4762 = vld [vmem:[%s236 + $0x2a8] sm:$0xff]
  %v4763 = vld [vmem:[%s236 + $0x2b0] sm:$0xff]
  %v4764 = vld [vmem:[%s236 + $0x2c8] sm:$0xff]
  %v4765 = vld [vmem:[%s236 + $0x2d0] sm:$0xff]
  %v4766 = vld [vmem:[%s236 + $0x2e8] sm:$0xff]
  %v4767 = vld [vmem:[%s236 + $0x2f0] sm:$0xff]
  %v4768 = vld [vmem:[%s236 + $0x308] sm:$0xff]
  %v4769 = vld [vmem:[%s236 + $0x310] sm:$0xff]
  %v4770 = vld [vmem:[%s236 + $0x328] sm:$0xff]
  %v4771 = vld [vmem:[%s236 + $0x330] sm:$0xff]
  %v4772 = vld [vmem:[%s236 + $0x348] sm:$0xff]
  %v4773 = vld [vmem:[%s236 + $0x350] sm:$0xff]
  %v4774 = vld [vmem:[%s236 + $0x368] sm:$0xff]
  %v4775 = vld [vmem:[%s236 + $0x370] sm:$0xff]
  %v4776 = vld [vmem:[%s236 + $0x388] sm:$0xff]
  %v4777 = vld [vmem:[%s236 + $0x390] sm:$0xff]
  %v4778 = vld [vmem:[%s236 + $0x3a8] sm:$0xff]
  %v4779 = vld [vmem:[%s236 + $0x3b0] sm:$0xff]
  %v4780 = vld [vmem:[%s236 + $0x3c8] sm:$0xff]
  %v4781 = vld [vmem:[%s236 + $0x3d0] sm:$0xff]
  %v4782 = vld [vmem:[%s236 + $0x3e8] sm:$0xff]
  %v4783 = vld [vmem:[%s236 + $0x3f0] sm:$0xff]
  %v4784 = vld [vmem:[%s236 + $0x408] sm:$0xff]
  %v4785 = vld [vmem:[%s236 + $0x410] sm:$0xff]
  %v4786 = vld [vmem:[%s236 + $0x428] sm:$0xff]
  %v4787 = vld [vmem:[%s236 + $0x430] sm:$0xff]
  %v4788 = vld [vmem:[%s236 + $0x9] sm:$0xff]
  %v4789 = vld [vmem:[%s236 + $0x11] sm:$0xff]
  %v4790 = vld [vmem:[%s236 + $0x29] sm:$0xff]
  %v4791 = vld [vmem:[%s236 + $0x31] sm:$0xff]
  %v4792 = vld [vmem:[%s236 + $0x49] sm:$0xff]
  %v4793 = vld [vmem:[%s236 + $0x51] sm:$0xff]
  %v4794 = vld [vmem:[%s236 + $0x69] sm:$0xff]
  %v4795 = vld [vmem:[%s236 + $0x71] sm:$0xff]
  %v4796 = vld [vmem:[%s236 + $0x89] sm:$0xff]
  %v4797 = vld [vmem:[%s236 + $0x91] sm:$0xff]
  %v4798 = vld [vmem:[%s236 + $0xa9] sm:$0xff]
  %v4799 = vld [vmem:[%s236 + $0xb1] sm:$0xff]
  %v4800 = vld [vmem:[%s236 + $0xc9] sm:$0xff]
  %v4801 = vld [vmem:[%s236 + $0xd1] sm:$0xff]
  %v4802 = vld [vmem:[%s236 + $0xe9] sm:$0xff]
  %v4803 = vld [vmem:[%s236 + $0xf1] sm:$0xff]
  %v4804 = vld [vmem:[%s236 + $0x109] sm:$0xff]
  %v4805 = vld [vmem:[%s236 + $0x111] sm:$0xff]
  %v4806 = vld [vmem:[%s236 + $0x129] sm:$0xff]
  %v4807 = vld [vmem:[%s236 + $0x131] sm:$0xff]
  %v4808 = vld [vmem:[%s236 + $0x149] sm:$0xff]
  %v4809 = vld [vmem:[%s236 + $0x151] sm:$0xff]
  %v4810 = vld [vmem:[%s236 + $0x169] sm:$0xff]
  %v4811 = vld [vmem:[%s236 + $0x171] sm:$0xff]
  %v4812 = vld [vmem:[%s236 + $0x189] sm:$0xff]
  %v4813 = vld [vmem:[%s236 + $0x191] sm:$0xff]
  %v4814 = vld [vmem:[%s236 + $0x1a9] sm:$0xff]
  %v4815 = vld [vmem:[%s236 + $0x1b1] sm:$0xff]
  %v4816 = vld [vmem:[%s236 + $0x1c9] sm:$0xff]
  %v4817 = vld [vmem:[%s236 + $0x1d1] sm:$0xff]
  %v4818 = vld [vmem:[%s236 + $0x1e9] sm:$0xff]
  %v4819 = vld [vmem:[%s236 + $0x1f1] sm:$0xff]
  %v4820 = vld [vmem:[%s236 + $0x249] sm:$0xff]
  %v4821 = vld [vmem:[%s236 + $0x251] sm:$0xff]
  %v4822 = vld [vmem:[%s236 + $0x269] sm:$0xff]
  %v4823 = vld [vmem:[%s236 + $0x271] sm:$0xff]
  %v4824 = vld [vmem:[%s236 + $0x289] sm:$0xff]
  %v4825 = vld [vmem:[%s236 + $0x291] sm:$0xff]
  %v4826 = vld [vmem:[%s236 + $0x2a9] sm:$0xff]
  %v4827 = vld [vmem:[%s236 + $0x2b1] sm:$0xff]
  %v4828 = vld [vmem:[%s236 + $0x2c9] sm:$0xff]
  %v4829 = vld [vmem:[%s236 + $0x2d1] sm:$0xff]
  %v4830 = vld [vmem:[%s236 + $0x2e9] sm:$0xff]
  %v4831 = vld [vmem:[%s236 + $0x2f1] sm:$0xff]
  %v4832 = vld [vmem:[%s236 + $0x309] sm:$0xff]
  %v4833 = vld [vmem:[%s236 + $0x311] sm:$0xff]
  %v4834 = vld [vmem:[%s236 + $0x329] sm:$0xff]
  %v4835 = vld [vmem:[%s236 + $0x331] sm:$0xff]
  %v4836 = vld [vmem:[%s236 + $0x349] sm:$0xff]
  %v4837 = vld [vmem:[%s236 + $0x351] sm:$0xff]
  %v4838 = vld [vmem:[%s236 + $0x369] sm:$0xff]
  %v4839 = vld [vmem:[%s236 + $0x371] sm:$0xff]
  %v4840 = vld [vmem:[%s236 + $0x389] sm:$0xff]
  %v4841 = vld [vmem:[%s236 + $0x391] sm:$0xff]
  %v4842 = vld [vmem:[%s236 + $0x3a9] sm:$0xff]
  %v4843 = vld [vmem:[%s236 + $0x3b1] sm:$0xff]
  %v4844 = vld [vmem:[%s236 + $0x3c9] sm:$0xff]
  %v4845 = vld [vmem:[%s236 + $0x3d1] sm:$0xff]
  %v4846 = vld [vmem:[%s236 + $0x3e9] sm:$0xff]
  %v4847 = vld [vmem:[%s236 + $0x3f1] sm:$0xff]
  %v4848 = vld [vmem:[%s236 + $0x409] sm:$0xff]
  %v4849 = vld [vmem:[%s236 + $0x411] sm:$0xff]
  %v4850 = vld [vmem:[%s236 + $0x429] sm:$0xff]
  %v4851 = vld [vmem:[%s236 + $0x431] sm:$0xff]
  %v4852 = vld [vmem:[%s685 + $0x7] sm:$0xff]
  %v4853 = vld [vmem:[%s685 + $0xf] sm:$0xff]
  %v4854 = vld [vmem:[%s685 + $0x27] sm:$0xff]
  %v4855 = vld [vmem:[%s685 + $0x2f] sm:$0xff]
  %v4856 = vld [vmem:[%s685 + $0x47] sm:$0xff]
  %v4857 = vld [vmem:[%s685 + $0x4f] sm:$0xff]
  %v4858 = vld [vmem:[%s685 + $0x67] sm:$0xff]
  %v4859 = vld [vmem:[%s685 + $0x6f] sm:$0xff]
  %v4860 = vld [vmem:[%s685 + $0x87] sm:$0xff]
  %v4861 = vld [vmem:[%s685 + $0x8f] sm:$0xff]
  %v4862 = vld [vmem:[%s685 + $0xa7] sm:$0xff]
  %v4863 = vld [vmem:[%s685 + $0xaf] sm:$0xff]
  %v4864 = vld [vmem:[%s685 + $0xc7] sm:$0xff]
  %v4865 = vld [vmem:[%s685 + $0xcf] sm:$0xff]
  %v4866 = vld [vmem:[%s685 + $0xe7] sm:$0xff]
  %v4867 = vld [vmem:[%s685 + $0xef] sm:$0xff]
  %v4868 = vld [vmem:[%s685 + $0x107] sm:$0xff]
  %v4869 = vld [vmem:[%s685 + $0x10f] sm:$0xff]
  %v4870 = vld [vmem:[%s685 + $0x127] sm:$0xff]
  %v4871 = vld [vmem:[%s685 + $0x12f] sm:$0xff]
  %v4872 = vld [vmem:[%s685 + $0x147] sm:$0xff]
  %v4873 = vld [vmem:[%s685 + $0x14f] sm:$0xff]
  %v4874 = vld [vmem:[%s685 + $0x167] sm:$0xff]
  %v4875 = vld [vmem:[%s685 + $0x16f] sm:$0xff]
  %v4876 = vld [vmem:[%s685 + $0x187] sm:$0xff]
  %v4877 = vld [vmem:[%s685 + $0x18f] sm:$0xff]
  %v4878 = vld [vmem:[%s685 + $0x1a7] sm:$0xff]
  %v4879 = vld [vmem:[%s685 + $0x1af] sm:$0xff]
  %v4880 = vld [vmem:[%s685 + $0x1c7] sm:$0xff]
  %v4881 = vld [vmem:[%s685 + $0x1cf] sm:$0xff]
  %v4882 = vld [vmem:[%s685 + $0x1e7] sm:$0xff]
  %v4883 = vld [vmem:[%s685 + $0x1ef] sm:$0xff]
  %v4884 = vld [vmem:[%s685 + $0x247] sm:$0xff]
  %v4885 = vld [vmem:[%s685 + $0x24f] sm:$0xff]
  %v4886 = vld [vmem:[%s685 + $0x267] sm:$0xff]
  %v4887 = vld [vmem:[%s685 + $0x26f] sm:$0xff]
  %v4888 = vld [vmem:[%s685 + $0x287] sm:$0xff]
  %v4889 = vld [vmem:[%s685 + $0x28f] sm:$0xff]
  %v4890 = vld [vmem:[%s685 + $0x2a7] sm:$0xff]
  %v4891 = vld [vmem:[%s685 + $0x2af] sm:$0xff]
  %v4892 = vld [vmem:[%s685 + $0x2c7] sm:$0xff]
  %v4893 = vld [vmem:[%s685 + $0x2cf] sm:$0xff]
  %v4894 = vld [vmem:[%s685 + $0x2e7] sm:$0xff]
  %v4895 = vld [vmem:[%s685 + $0x2ef] sm:$0xff]
  %v4896 = vld [vmem:[%s685 + $0x307] sm:$0xff]
  %v4897 = vld [vmem:[%s685 + $0x30f] sm:$0xff]
  %v4898 = vld [vmem:[%s685 + $0x327] sm:$0xff]
  %v4899 = vld [vmem:[%s685 + $0x32f] sm:$0xff]
  %v4900 = vld [vmem:[%s685 + $0x347] sm:$0xff]
  %v4901 = vld [vmem:[%s685 + $0x34f] sm:$0xff]
  %v4902 = vld [vmem:[%s685 + $0x367] sm:$0xff]
  %v4903 = vld [vmem:[%s685 + $0x36f] sm:$0xff]
  %v4904 = vld [vmem:[%s685 + $0x387] sm:$0xff]
  %v4905 = vld [vmem:[%s685 + $0x38f] sm:$0xff]
  %v4906 = vld [vmem:[%s685 + $0x3a7] sm:$0xff]
  %v4907 = vld [vmem:[%s685 + $0x3af] sm:$0xff]
  %v4908 = vld [vmem:[%s685 + $0x3c7] sm:$0xff]
  %v4909 = vld [vmem:[%s685 + $0x3cf] sm:$0xff]
  %v4910 = vld [vmem:[%s685 + $0x3e7] sm:$0xff]
  %v4911 = vld [vmem:[%s685 + $0x3ef] sm:$0xff]
  %v4912 = vld [vmem:[%s685 + $0x407] sm:$0xff]
  %v4913 = vld [vmem:[%s685 + $0x40f] sm:$0xff]
  %v4914 = vld [vmem:[%s685 + $0x427] sm:$0xff]
  %v4915 = vld [vmem:[%s685 + $0x42f] sm:$0xff]
  %v4916 = vld [vmem:[%s685 + $0x8] sm:$0xff]
  %v4917 = vld [vmem:[%s685 + $0x10] sm:$0xff]
  %v4918 = vld [vmem:[%s685 + $0x28] sm:$0xff]
  %v4919 = vld [vmem:[%s685 + $0x30] sm:$0xff]
  %v4920 = vld [vmem:[%s685 + $0x48] sm:$0xff]
  %v4921 = vld [vmem:[%s685 + $0x50] sm:$0xff]
  %v4922 = vld [vmem:[%s685 + $0x68] sm:$0xff]
  %v4923 = vld [vmem:[%s685 + $0x70] sm:$0xff]
  %v4924 = vld [vmem:[%s685 + $0x88] sm:$0xff]
  %v4925 = vld [vmem:[%s685 + $0x90] sm:$0xff]
  %v4926 = vld [vmem:[%s685 + $0xa8] sm:$0xff]
  %v4927 = vld [vmem:[%s685 + $0xb0] sm:$0xff]
  %v4928 = vld [vmem:[%s685 + $0xc8] sm:$0xff]
  %v4929 = vld [vmem:[%s685 + $0xd0] sm:$0xff]
  %v4930 = vld [vmem:[%s685 + $0xe8] sm:$0xff]
  %v4931 = vld [vmem:[%s685 + $0xf0] sm:$0xff]
  %v4932 = vld [vmem:[%s685 + $0x108] sm:$0xff]
  %v4933 = vld [vmem:[%s685 + $0x110] sm:$0xff]
  %v4934 = vld [vmem:[%s685 + $0x128] sm:$0xff]
  %v4935 = vld [vmem:[%s685 + $0x130] sm:$0xff]
  %v4936 = vld [vmem:[%s685 + $0x148] sm:$0xff]
  %v4937 = vld [vmem:[%s685 + $0x150] sm:$0xff]
  %v4938 = vld [vmem:[%s685 + $0x168] sm:$0xff]
  %v4939 = vld [vmem:[%s685 + $0x170] sm:$0xff]
  %v4940 = vld [vmem:[%s685 + $0x188] sm:$0xff]
  %v4941 = vld [vmem:[%s685 + $0x190] sm:$0xff]
  %v4942 = vld [vmem:[%s685 + $0x1a8] sm:$0xff]
  %v4943 = vld [vmem:[%s685 + $0x1b0] sm:$0xff]
  %v4944 = vld [vmem:[%s685 + $0x1c8] sm:$0xff]
  %v4945 = vld [vmem:[%s685 + $0x1d0] sm:$0xff]
  %v4946 = vld [vmem:[%s685 + $0x1e8] sm:$0xff]
  %v4947 = vld [vmem:[%s685 + $0x1f0] sm:$0xff]
  %v4948 = vld [vmem:[%s685 + $0x248] sm:$0xff]
  %v4949 = vld [vmem:[%s685 + $0x250] sm:$0xff]
  %v4950 = vld [vmem:[%s685 + $0x268] sm:$0xff]
  %v4951 = vld [vmem:[%s685 + $0x270] sm:$0xff]
  %v4952 = vld [vmem:[%s685 + $0x288] sm:$0xff]
  %v4953 = vld [vmem:[%s685 + $0x290] sm:$0xff]
  %v4954 = vld [vmem:[%s685 + $0x2a8] sm:$0xff]
  %v4955 = vld [vmem:[%s685 + $0x2b0] sm:$0xff]
  %v4956 = vld [vmem:[%s685 + $0x2c8] sm:$0xff]
  %v4957 = vld [vmem:[%s685 + $0x2d0] sm:$0xff]
  %v4958 = vld [vmem:[%s685 + $0x2e8] sm:$0xff]
  %v4959 = vld [vmem:[%s685 + $0x2f0] sm:$0xff]
  %v4960 = vld [vmem:[%s685 + $0x308] sm:$0xff]
  %v4961 = vld [vmem:[%s685 + $0x310] sm:$0xff]
  %v4962 = vld [vmem:[%s685 + $0x328] sm:$0xff]
  %v4963 = vld [vmem:[%s685 + $0x330] sm:$0xff]
  %v4964 = vld [vmem:[%s685 + $0x348] sm:$0xff]
  %v4965 = vld [vmem:[%s685 + $0x350] sm:$0xff]
  %v4966 = vld [vmem:[%s685 + $0x368] sm:$0xff]
  %v4967 = vld [vmem:[%s685 + $0x370] sm:$0xff]
  %v4968 = vld [vmem:[%s685 + $0x388] sm:$0xff]
  %v4969 = vld [vmem:[%s685 + $0x390] sm:$0xff]
  %v4970 = vld [vmem:[%s685 + $0x3a8] sm:$0xff]
  %v4971 = vld [vmem:[%s685 + $0x3b0] sm:$0xff]
  %v4972 = vld [vmem:[%s685 + $0x3c8] sm:$0xff]
  %v4973 = vld [vmem:[%s685 + $0x3d0] sm:$0xff]
  %v4974 = vld [vmem:[%s685 + $0x3e8] sm:$0xff]
  %v4975 = vld [vmem:[%s685 + $0x3f0] sm:$0xff]
  %v4976 = vld [vmem:[%s685 + $0x408] sm:$0xff]
  %v4977 = vld [vmem:[%s685 + $0x410] sm:$0xff]
  %v4978 = vld [vmem:[%s685 + $0x428] sm:$0xff]
  %v4979 = vld [vmem:[%s685 + $0x430] sm:$0xff]
  %v4980 = vld [vmem:[%s685 + $0x9] sm:$0xff]
  %v4981 = vld [vmem:[%s685 + $0x11] sm:$0xff]
  %v4982 = vld [vmem:[%s685 + $0x29] sm:$0xff]
  %v4983 = vld [vmem:[%s685 + $0x31] sm:$0xff]
  %v4984 = vld [vmem:[%s685 + $0x49] sm:$0xff]
  %v4985 = vld [vmem:[%s685 + $0x51] sm:$0xff]
  %v4986 = vld [vmem:[%s685 + $0x69] sm:$0xff]
  %v4987 = vld [vmem:[%s685 + $0x71] sm:$0xff]
  %v4988 = vld [vmem:[%s685 + $0x89] sm:$0xff]
  %v4989 = vld [vmem:[%s685 + $0x91] sm:$0xff]
  %v4990 = vld [vmem:[%s685 + $0xa9] sm:$0xff]
  %v4991 = vld [vmem:[%s685 + $0xb1] sm:$0xff]
  %v4992 = vld [vmem:[%s685 + $0xc9] sm:$0xff]
  %v4993 = vld [vmem:[%s685 + $0xd1] sm:$0xff]
  %v4994 = vld [vmem:[%s685 + $0xe9] sm:$0xff]
  %v4995 = vld [vmem:[%s685 + $0xf1] sm:$0xff]
  %v4996 = vld [vmem:[%s685 + $0x109] sm:$0xff]
  %v4997 = vld [vmem:[%s685 + $0x111] sm:$0xff]
  %v4998 = vld [vmem:[%s685 + $0x129] sm:$0xff]
  %v4999 = vld [vmem:[%s685 + $0x131] sm:$0xff]
  %v5000 = vld [vmem:[%s685 + $0x149] sm:$0xff]
  %v5001 = vld [vmem:[%s685 + $0x151] sm:$0xff]
  %v5002 = vld [vmem:[%s685 + $0x169] sm:$0xff]
  %v5003 = vld [vmem:[%s685 + $0x171] sm:$0xff]
  %v5004 = vld [vmem:[%s685 + $0x189] sm:$0xff]
  %v5005 = vld [vmem:[%s685 + $0x191] sm:$0xff]
  %v5006 = vld [vmem:[%s685 + $0x1a9] sm:$0xff]
  %v5007 = vld [vmem:[%s685 + $0x1b1] sm:$0xff]
  %v5008 = vld [vmem:[%s685 + $0x1c9] sm:$0xff]
  %v5009 = vld [vmem:[%s685 + $0x1d1] sm:$0xff]
  %v5010 = vld [vmem:[%s685 + $0x1e9] sm:$0xff]
  %v5011 = vld [vmem:[%s685 + $0x1f1] sm:$0xff]
  %v5012 = vld [vmem:[%s685 + $0x249] sm:$0xff]
  %v5013 = vld [vmem:[%s685 + $0x251] sm:$0xff]
  %v5014 = vld [vmem:[%s685 + $0x269] sm:$0xff]
  %v5015 = vld [vmem:[%s685 + $0x271] sm:$0xff]
  %v5016 = vld [vmem:[%s685 + $0x289] sm:$0xff]
  %v5017 = vld [vmem:[%s685 + $0x291] sm:$0xff]
  %v5018 = vld [vmem:[%s685 + $0x2a9] sm:$0xff]
  %v5019 = vld [vmem:[%s685 + $0x2b1] sm:$0xff]
  %v5020 = vld [vmem:[%s685 + $0x2c9] sm:$0xff]
  %v5021 = vld [vmem:[%s685 + $0x2d1] sm:$0xff]
  %v5022 = vld [vmem:[%s685 + $0x2e9] sm:$0xff]
  %v5023 = vld [vmem:[%s685 + $0x2f1] sm:$0xff]
  %v5024 = vld [vmem:[%s685 + $0x309] sm:$0xff]
  %v5025 = vld [vmem:[%s685 + $0x311] sm:$0xff]
  %v5026 = vld [vmem:[%s685 + $0x329] sm:$0xff]
  %v5027 = vld [vmem:[%s685 + $0x331] sm:$0xff]
  %v5028 = vld [vmem:[%s685 + $0x349] sm:$0xff]
  %v5029 = vld [vmem:[%s685 + $0x351] sm:$0xff]
  %v5030 = vld [vmem:[%s685 + $0x369] sm:$0xff]
  %v5031 = vld [vmem:[%s685 + $0x371] sm:$0xff]
  %v5032 = vld [vmem:[%s685 + $0x389] sm:$0xff]
  %v5033 = vld [vmem:[%s685 + $0x391] sm:$0xff]
  %v5034 = vld [vmem:[%s685 + $0x3a9] sm:$0xff]
  %v5035 = vld [vmem:[%s685 + $0x3b1] sm:$0xff]
  %v5036 = vld [vmem:[%s685 + $0x3c9] sm:$0xff]
  %v5037 = vld [vmem:[%s685 + $0x3d1] sm:$0xff]
  %v5038 = vld [vmem:[%s685 + $0x3e9] sm:$0xff]
  %v5039 = vld [vmem:[%s685 + $0x3f1] sm:$0xff]
  %v5040 = vld [vmem:[%s685 + $0x409] sm:$0xff]
  %v5041 = vld [vmem:[%s685 + $0x411] sm:$0xff]
  %v5042 = vld [vmem:[%s685 + $0x429] sm:$0xff]
  %v5043 = vld [vmem:[%s685 + $0x431] sm:$0xff]
  %5108 = vrot.lane.b32.xlu0 %v4532, 4
  %v5109 = vpop.permute.xlu0 %5108
  %5110 = vrot.lane.b32.xlu0 %v4533, 4
  %v5111 = vpop.permute.xlu0 %5110
  %5112 = vrot.lane.b32.xlu0 %v4534, 4
  %v5113 = vpop.permute.xlu0 %5112
  %5114 = vrot.lane.b32.xlu0 %v4535, 4
  %v5115 = vpop.permute.xlu0 %5114
  %5116 = vrot.lane.b32.xlu0 %v4536, 4
  %v5117 = vpop.permute.xlu0 %5116
  %5118 = vrot.lane.b32.xlu0 %v4537, 4
  %v5119 = vpop.permute.xlu0 %5118
  %5120 = vrot.lane.b32.xlu0 %v4538, 4
  %v5121 = vpop.permute.xlu0 %5120
  %5122 = vrot.lane.b32.xlu0 %v4539, 4
  %v5123 = vpop.permute.xlu0 %5122
  %5124 = vrot.lane.b32.xlu0 %v4540, 4
  %v5125 = vpop.permute.xlu0 %5124
  %5126 = vrot.lane.b32.xlu0 %v4541, 4
  %v5127 = vpop.permute.xlu0 %5126
  %5128 = vrot.lane.b32.xlu0 %v4542, 4
  %v5129 = vpop.permute.xlu0 %5128
  %5130 = vrot.lane.b32.xlu0 %v4543, 4
  %v5131 = vpop.permute.xlu0 %5130
  %5132 = vrot.lane.b32.xlu0 %v4544, 4
  %v5133 = vpop.permute.xlu0 %5132
  %5134 = vrot.lane.b32.xlu0 %v4545, 4
  %v5135 = vpop.permute.xlu0 %5134
  %5136 = vrot.lane.b32.xlu0 %v4546, 4
  %v5137 = vpop.permute.xlu0 %5136
  %5138 = vrot.lane.b32.xlu0 %v4547, 4
  %v5139 = vpop.permute.xlu0 %5138
  %5140 = vrot.lane.b32.xlu0 %v4548, 4
  %v5141 = vpop.permute.xlu0 %5140
  %5142 = vrot.lane.b32.xlu0 %v4549, 4
  %v5143 = vpop.permute.xlu0 %5142
  %5144 = vrot.lane.b32.xlu0 %v4550, 4
  %v5145 = vpop.permute.xlu0 %5144
  %5146 = vrot.lane.b32.xlu0 %v4551, 4
  %v5147 = vpop.permute.xlu0 %5146
  %5148 = vrot.lane.b32.xlu0 %v4552, 4
  %v5149 = vpop.permute.xlu0 %5148
  %5150 = vrot.lane.b32.xlu0 %v4553, 4
  %v5151 = vpop.permute.xlu0 %5150
  %5152 = vrot.lane.b32.xlu0 %v4554, 4
  %v5153 = vpop.permute.xlu0 %5152
  %5154 = vrot.lane.b32.xlu0 %v4555, 4
  %v5155 = vpop.permute.xlu0 %5154
  %5156 = vrot.lane.b32.xlu0 %v4556, 4
  %v5157 = vpop.permute.xlu0 %5156
  %5158 = vrot.lane.b32.xlu0 %v4557, 4
  %v5159 = vpop.permute.xlu0 %5158
  %5160 = vrot.lane.b32.xlu0 %v4558, 4
  %v5161 = vpop.permute.xlu0 %5160
  %5162 = vrot.lane.b32.xlu0 %v4559, 4
  %v5163 = vpop.permute.xlu0 %5162
  %5164 = vrot.lane.b32.xlu0 %v4560, 4
  %v5165 = vpop.permute.xlu0 %5164
  %5166 = vrot.lane.b32.xlu0 %v4561, 4
  %v5167 = vpop.permute.xlu0 %5166
  %5168 = vrot.lane.b32.xlu0 %v4562, 4
  %v5169 = vpop.permute.xlu0 %5168
  %5170 = vrot.lane.b32.xlu0 %v4563, 4
  %v5171 = vpop.permute.xlu0 %5170
  %5172 = vrot.lane.b32.xlu0 %v4564, 4
  %v5173 = vpop.permute.xlu0 %5172
  %5174 = vrot.lane.b32.xlu0 %v4565, 4
  %v5175 = vpop.permute.xlu0 %5174
  %5176 = vrot.lane.b32.xlu0 %v4566, 4
  %v5177 = vpop.permute.xlu0 %5176
  %5178 = vrot.lane.b32.xlu0 %v4567, 4
  %v5179 = vpop.permute.xlu0 %5178
  %5180 = vrot.lane.b32.xlu0 %v4568, 4
  %v5181 = vpop.permute.xlu0 %5180
  %5182 = vrot.lane.b32.xlu0 %v4569, 4
  %v5183 = vpop.permute.xlu0 %5182
  %5184 = vrot.lane.b32.xlu0 %v4570, 4
  %v5185 = vpop.permute.xlu0 %5184
  %5186 = vrot.lane.b32.xlu0 %v4571, 4
  %v5187 = vpop.permute.xlu0 %5186
  %5188 = vrot.lane.b32.xlu0 %v4572, 4
  %v5189 = vpop.permute.xlu0 %5188
  %5190 = vrot.lane.b32.xlu0 %v4573, 4
  %v5191 = vpop.permute.xlu0 %5190
  %5192 = vrot.lane.b32.xlu0 %v4574, 4
  %v5193 = vpop.permute.xlu0 %5192
  %5194 = vrot.lane.b32.xlu0 %v4575, 4
  %v5195 = vpop.permute.xlu0 %5194
  %5196 = vrot.lane.b32.xlu0 %v4576, 4
  %v5197 = vpop.permute.xlu0 %5196
  %5198 = vrot.lane.b32.xlu0 %v4577, 4
  %v5199 = vpop.permute.xlu0 %5198
  %5200 = vrot.lane.b32.xlu0 %v4578, 4
  %v5201 = vpop.permute.xlu0 %5200
  %5202 = vrot.lane.b32.xlu0 %v4579, 4
  %v5203 = vpop.permute.xlu0 %5202
  %5204 = vrot.lane.b32.xlu0 %v4580, 4
  %v5205 = vpop.permute.xlu0 %5204
  %5206 = vrot.lane.b32.xlu0 %v4581, 4
  %v5207 = vpop.permute.xlu0 %5206
  %5208 = vrot.lane.b32.xlu0 %v4582, 4
  %v5209 = vpop.permute.xlu0 %5208
  %5210 = vrot.lane.b32.xlu0 %v4583, 4
  %v5211 = vpop.permute.xlu0 %5210
  %5212 = vrot.lane.b32.xlu0 %v4584, 4
  %v5213 = vpop.permute.xlu0 %5212
  %5214 = vrot.lane.b32.xlu0 %v4585, 4
  %v5215 = vpop.permute.xlu0 %5214
  %5216 = vrot.lane.b32.xlu0 %v4586, 4
  %v5217 = vpop.permute.xlu0 %5216
  %5218 = vrot.lane.b32.xlu0 %v4587, 4
  %v5219 = vpop.permute.xlu0 %5218
  %5220 = vrot.lane.b32.xlu0 %v4588, 4
  %v5221 = vpop.permute.xlu0 %5220
  %5222 = vrot.lane.b32.xlu0 %v4589, 4
  %v5223 = vpop.permute.xlu0 %5222
  %5224 = vrot.lane.b32.xlu0 %v4590, 4
  %v5225 = vpop.permute.xlu0 %5224
  %5226 = vrot.lane.b32.xlu0 %v4591, 4
  %v5227 = vpop.permute.xlu0 %5226
  %5228 = vrot.lane.b32.xlu0 %v4592, 4
  %v5229 = vpop.permute.xlu0 %5228
  %5230 = vrot.lane.b32.xlu0 %v4593, 4
  %v5231 = vpop.permute.xlu0 %5230
  %5232 = vrot.lane.b32.xlu0 %v4594, 4
  %v5233 = vpop.permute.xlu0 %5232
  %5234 = vrot.lane.b32.xlu0 %v4595, 4
  %v5235 = vpop.permute.xlu0 %5234
  %5364 = vrot.lane.b32.xlu0 %v4596, 8
  %v5365 = vpop.permute.xlu0 %5364
  %5366 = vrot.lane.b32.xlu0 %v4597, 8
  %v5367 = vpop.permute.xlu0 %5366
  %5368 = vrot.lane.b32.xlu0 %v4598, 8
  %v5369 = vpop.permute.xlu0 %5368
  %5370 = vrot.lane.b32.xlu0 %v4599, 8
  %v5371 = vpop.permute.xlu0 %5370
  %5372 = vrot.lane.b32.xlu0 %v4600, 8
  %v5373 = vpop.permute.xlu0 %5372
  %5374 = vrot.lane.b32.xlu0 %v4601, 8
  %v5375 = vpop.permute.xlu0 %5374
  %5376 = vrot.lane.b32.xlu0 %v4602, 8
  %v5377 = vpop.permute.xlu0 %5376
  %5378 = vrot.lane.b32.xlu0 %v4603, 8
  %v5379 = vpop.permute.xlu0 %5378
  %5380 = vrot.lane.b32.xlu0 %v4604, 8
  %v5381 = vpop.permute.xlu0 %5380
  %5382 = vrot.lane.b32.xlu0 %v4605, 8
  %v5383 = vpop.permute.xlu0 %5382
  %5384 = vrot.lane.b32.xlu0 %v4606, 8
  %v5385 = vpop.permute.xlu0 %5384
  %5386 = vrot.lane.b32.xlu0 %v4607, 8
  %v5387 = vpop.permute.xlu0 %5386
  %5388 = vrot.lane.b32.xlu0 %v4608, 8
  %v5389 = vpop.permute.xlu0 %5388
  %5390 = vrot.lane.b32.xlu0 %v4609, 8
  %v5391 = vpop.permute.xlu0 %5390
  %5392 = vrot.lane.b32.xlu0 %v4610, 8
  %v5393 = vpop.permute.xlu0 %5392
  %5394 = vrot.lane.b32.xlu0 %v4611, 8
  %v5395 = vpop.permute.xlu0 %5394
  %5396 = vrot.lane.b32.xlu0 %v4612, 8
  %v5397 = vpop.permute.xlu0 %5396
  %5398 = vrot.lane.b32.xlu0 %v4613, 8
  %v5399 = vpop.permute.xlu0 %5398
  %5400 = vrot.lane.b32.xlu0 %v4614, 8
  %v5401 = vpop.permute.xlu0 %5400
  %5402 = vrot.lane.b32.xlu0 %v4615, 8
  %v5403 = vpop.permute.xlu0 %5402
  %5404 = vrot.lane.b32.xlu0 %v4616, 8
  %v5405 = vpop.permute.xlu0 %5404
  %5406 = vrot.lane.b32.xlu0 %v4617, 8
  %v5407 = vpop.permute.xlu0 %5406
  %5408 = vrot.lane.b32.xlu0 %v4618, 8
  %v5409 = vpop.permute.xlu0 %5408
  %5410 = vrot.lane.b32.xlu0 %v4619, 8
  %v5411 = vpop.permute.xlu0 %5410
  %5412 = vrot.lane.b32.xlu0 %v4620, 8
  %v5413 = vpop.permute.xlu0 %5412
  %5414 = vrot.lane.b32.xlu0 %v4621, 8
  %v5415 = vpop.permute.xlu0 %5414
  %5416 = vrot.lane.b32.xlu0 %v4622, 8
  %v5417 = vpop.permute.xlu0 %5416
  %5418 = vrot.lane.b32.xlu0 %v4623, 8
  %v5419 = vpop.permute.xlu0 %5418
  %5420 = vrot.lane.b32.xlu0 %v4624, 8
  %v5421 = vpop.permute.xlu0 %5420
  %5422 = vrot.lane.b32.xlu0 %v4625, 8
  %v5423 = vpop.permute.xlu0 %5422
  %5424 = vrot.lane.b32.xlu0 %v4626, 8
  %v5425 = vpop.permute.xlu0 %5424
  %5426 = vrot.lane.b32.xlu0 %v4627, 8
  %v5427 = vpop.permute.xlu0 %5426
  %5428 = vrot.lane.b32.xlu0 %v4628, 8
  %v5429 = vpop.permute.xlu0 %5428
  %5430 = vrot.lane.b32.xlu0 %v4629, 8
  %v5431 = vpop.permute.xlu0 %5430
  %5432 = vrot.lane.b32.xlu0 %v4630, 8
  %v5433 = vpop.permute.xlu0 %5432
  %5434 = vrot.lane.b32.xlu0 %v4631, 8
  %v5435 = vpop.permute.xlu0 %5434
  %5436 = vrot.lane.b32.xlu0 %v4632, 8
  %v5437 = vpop.permute.xlu0 %5436
  %5438 = vrot.lane.b32.xlu0 %v4633, 8
  %v5439 = vpop.permute.xlu0 %5438
  %5440 = vrot.lane.b32.xlu0 %v4634, 8
  %v5441 = vpop.permute.xlu0 %5440
  %5442 = vrot.lane.b32.xlu0 %v4635, 8
  %v5443 = vpop.permute.xlu0 %5442
  %5444 = vrot.lane.b32.xlu0 %v4636, 8
  %v5445 = vpop.permute.xlu0 %5444
  %5446 = vrot.lane.b32.xlu0 %v4637, 8
  %v5447 = vpop.permute.xlu0 %5446
  %5448 = vrot.lane.b32.xlu0 %v4638, 8
  %v5449 = vpop.permute.xlu0 %5448
  %5450 = vrot.lane.b32.xlu0 %v4639, 8
  %v5451 = vpop.permute.xlu0 %5450
  %5452 = vrot.lane.b32.xlu0 %v4640, 8
  %v5453 = vpop.permute.xlu0 %5452
  %5454 = vrot.lane.b32.xlu0 %v4641, 8
  %v5455 = vpop.permute.xlu0 %5454
  %5456 = vrot.lane.b32.xlu0 %v4642, 8
  %v5457 = vpop.permute.xlu0 %5456
  %5458 = vrot.lane.b32.xlu0 %v4643, 8
  %v5459 = vpop.permute.xlu0 %5458
  %5460 = vrot.lane.b32.xlu0 %v4644, 8
  %v5461 = vpop.permute.xlu0 %5460
  %5462 = vrot.lane.b32.xlu0 %v4645, 8
  %v5463 = vpop.permute.xlu0 %5462
  %5464 = vrot.lane.b32.xlu0 %v4646, 8
  %v5465 = vpop.permute.xlu0 %5464
  %5466 = vrot.lane.b32.xlu0 %v4647, 8
  %v5467 = vpop.permute.xlu0 %5466
  %5468 = vrot.lane.b32.xlu0 %v4648, 8
  %v5469 = vpop.permute.xlu0 %5468
  %5470 = vrot.lane.b32.xlu0 %v4649, 8
  %v5471 = vpop.permute.xlu0 %5470
  %5472 = vrot.lane.b32.xlu0 %v4650, 8
  %v5473 = vpop.permute.xlu0 %5472
  %5474 = vrot.lane.b32.xlu0 %v4651, 8
  %v5475 = vpop.permute.xlu0 %5474
  %5476 = vrot.lane.b32.xlu0 %v4652, 8
  %v5477 = vpop.permute.xlu0 %5476
  %5478 = vrot.lane.b32.xlu0 %v4653, 8
  %v5479 = vpop.permute.xlu0 %5478
  %5480 = vrot.lane.b32.xlu0 %v4654, 8
  %v5481 = vpop.permute.xlu0 %5480
  %5482 = vrot.lane.b32.xlu0 %v4655, 8
  %v5483 = vpop.permute.xlu0 %5482
  %5484 = vrot.lane.b32.xlu0 %v4656, 8
  %v5485 = vpop.permute.xlu0 %5484
  %5486 = vrot.lane.b32.xlu0 %v4657, 8
  %v5487 = vpop.permute.xlu0 %5486
  %5488 = vrot.lane.b32.xlu0 %v4658, 8
  %v5489 = vpop.permute.xlu0 %5488
  %5490 = vrot.lane.b32.xlu0 %v4659, 8
  %v5491 = vpop.permute.xlu0 %5490
  %5620 = vrot.lane.b32.xlu0 %v4660, 12
  %v5621 = vpop.permute.xlu0 %5620
  %5622 = vrot.lane.b32.xlu0 %v4661, 12
  %v5623 = vpop.permute.xlu0 %5622
  %5624 = vrot.lane.b32.xlu0 %v4662, 12
  %v5625 = vpop.permute.xlu0 %5624
  %5626 = vrot.lane.b32.xlu0 %v4663, 12
  %v5627 = vpop.permute.xlu0 %5626
  %5628 = vrot.lane.b32.xlu0 %v4664, 12
  %v5629 = vpop.permute.xlu0 %5628
  %5630 = vrot.lane.b32.xlu0 %v4665, 12
  %v5631 = vpop.permute.xlu0 %5630
  %5632 = vrot.lane.b32.xlu0 %v4666, 12
  %v5633 = vpop.permute.xlu0 %5632
  %5634 = vrot.lane.b32.xlu0 %v4667, 12
  %v5635 = vpop.permute.xlu0 %5634
  %5636 = vrot.lane.b32.xlu0 %v4668, 12
  %v5637 = vpop.permute.xlu0 %5636
  %5638 = vrot.lane.b32.xlu0 %v4669, 12
  %v5639 = vpop.permute.xlu0 %5638
  %5640 = vrot.lane.b32.xlu0 %v4670, 12
  %v5641 = vpop.permute.xlu0 %5640
  %5642 = vrot.lane.b32.xlu0 %v4671, 12
  %v5643 = vpop.permute.xlu0 %5642
  %5644 = vrot.lane.b32.xlu0 %v4672, 12
  %v5645 = vpop.permute.xlu0 %5644
  %5646 = vrot.lane.b32.xlu0 %v4673, 12
  %v5647 = vpop.permute.xlu0 %5646
  %5648 = vrot.lane.b32.xlu0 %v4674, 12
  %v5649 = vpop.permute.xlu0 %5648
  %5650 = vrot.lane.b32.xlu0 %v4675, 12
  %v5651 = vpop.permute.xlu0 %5650
  %5652 = vrot.lane.b32.xlu0 %v4676, 12
  %v5653 = vpop.permute.xlu0 %5652
  %5654 = vrot.lane.b32.xlu0 %v4677, 12
  %v5655 = vpop.permute.xlu0 %5654
  %5656 = vrot.lane.b32.xlu0 %v4678, 12
  %v5657 = vpop.permute.xlu0 %5656
  %5658 = vrot.lane.b32.xlu0 %v4679, 12
  %v5659 = vpop.permute.xlu0 %5658
  %5660 = vrot.lane.b32.xlu0 %v4680, 12
  %v5661 = vpop.permute.xlu0 %5660
  %5662 = vrot.lane.b32.xlu0 %v4681, 12
  %v5663 = vpop.permute.xlu0 %5662
  %5664 = vrot.lane.b32.xlu0 %v4682, 12
  %v5665 = vpop.permute.xlu0 %5664
  %5666 = vrot.lane.b32.xlu0 %v4683, 12
  %v5667 = vpop.permute.xlu0 %5666
  %5668 = vrot.lane.b32.xlu0 %v4684, 12
  %v5669 = vpop.permute.xlu0 %5668
  %5670 = vrot.lane.b32.xlu0 %v4685, 12
  %v5671 = vpop.permute.xlu0 %5670
  %5672 = vrot.lane.b32.xlu0 %v4686, 12
  %v5673 = vpop.permute.xlu0 %5672
  %5674 = vrot.lane.b32.xlu0 %v4687, 12
  %v5675 = vpop.permute.xlu0 %5674
  %5676 = vrot.lane.b32.xlu0 %v4688, 12
  %v5677 = vpop.permute.xlu0 %5676
  %5678 = vrot.lane.b32.xlu0 %v4689, 12
  %v5679 = vpop.permute.xlu0 %5678
  %5680 = vrot.lane.b32.xlu0 %v4690, 12
  %v5681 = vpop.permute.xlu0 %5680
  %5682 = vrot.lane.b32.xlu0 %v4691, 12
  %v5683 = vpop.permute.xlu0 %5682
  %5684 = vrot.lane.b32.xlu0 %v4692, 12
  %v5685 = vpop.permute.xlu0 %5684
  %5686 = vrot.lane.b32.xlu0 %v4693, 12
  %v5687 = vpop.permute.xlu0 %5686
  %5688 = vrot.lane.b32.xlu0 %v4694, 12
  %v5689 = vpop.permute.xlu0 %5688
  %5690 = vrot.lane.b32.xlu0 %v4695, 12
  %v5691 = vpop.permute.xlu0 %5690
  %5692 = vrot.lane.b32.xlu0 %v4696, 12
  %v5693 = vpop.permute.xlu0 %5692
  %5694 = vrot.lane.b32.xlu0 %v4697, 12
  %v5695 = vpop.permute.xlu0 %5694
  %5696 = vrot.lane.b32.xlu0 %v4698, 12
  %v5697 = vpop.permute.xlu0 %5696
  %5698 = vrot.lane.b32.xlu0 %v4699, 12
  %v5699 = vpop.permute.xlu0 %5698
  %5700 = vrot.lane.b32.xlu0 %v4700, 12
  %v5701 = vpop.permute.xlu0 %5700
  %5702 = vrot.lane.b32.xlu0 %v4701, 12
  %v5703 = vpop.permute.xlu0 %5702
  %5704 = vrot.lane.b32.xlu0 %v4702, 12
  %v5705 = vpop.permute.xlu0 %5704
  %5706 = vrot.lane.b32.xlu0 %v4703, 12
  %v5707 = vpop.permute.xlu0 %5706
  %5708 = vrot.lane.b32.xlu0 %v4704, 12
  %v5709 = vpop.permute.xlu0 %5708
  %5710 = vrot.lane.b32.xlu0 %v4705, 12
  %v5711 = vpop.permute.xlu0 %5710
  %5712 = vrot.lane.b32.xlu0 %v4706, 12
  %v5713 = vpop.permute.xlu0 %5712
  %5714 = vrot.lane.b32.xlu0 %v4707, 12
  %v5715 = vpop.permute.xlu0 %5714
  %5716 = vrot.lane.b32.xlu0 %v4708, 12
  %v5717 = vpop.permute.xlu0 %5716
  %5718 = vrot.lane.b32.xlu0 %v4709, 12
  %v5719 = vpop.permute.xlu0 %5718
  %5720 = vrot.lane.b32.xlu0 %v4710, 12
  %v5721 = vpop.permute.xlu0 %5720
  %5722 = vrot.lane.b32.xlu0 %v4711, 12
  %v5723 = vpop.permute.xlu0 %5722
  %5724 = vrot.lane.b32.xlu0 %v4712, 12
  %v5725 = vpop.permute.xlu0 %5724
  %5726 = vrot.lane.b32.xlu0 %v4713, 12
  %v5727 = vpop.permute.xlu0 %5726
  %5728 = vrot.lane.b32.xlu0 %v4714, 12
  %v5729 = vpop.permute.xlu0 %5728
  %5730 = vrot.lane.b32.xlu0 %v4715, 12
  %v5731 = vpop.permute.xlu0 %5730
  %5732 = vrot.lane.b32.xlu0 %v4716, 12
  %v5733 = vpop.permute.xlu0 %5732
  %5734 = vrot.lane.b32.xlu0 %v4717, 12
  %v5735 = vpop.permute.xlu0 %5734
  %5736 = vrot.lane.b32.xlu0 %v4718, 12
  %v5737 = vpop.permute.xlu0 %5736
  %5738 = vrot.lane.b32.xlu0 %v4719, 12
  %v5739 = vpop.permute.xlu0 %5738
  %5740 = vrot.lane.b32.xlu0 %v4720, 12
  %v5741 = vpop.permute.xlu0 %5740
  %5742 = vrot.lane.b32.xlu0 %v4721, 12
  %v5743 = vpop.permute.xlu0 %5742
  %5744 = vrot.lane.b32.xlu0 %v4722, 12
  %v5745 = vpop.permute.xlu0 %5744
  %5746 = vrot.lane.b32.xlu0 %v4723, 12
  %v5747 = vpop.permute.xlu0 %5746
  %5876 = vrot.lane.b32.xlu0 %v4724, 16
  %v5877 = vpop.permute.xlu0 %5876
  %5878 = vrot.lane.b32.xlu0 %v4725, 16
  %v5879 = vpop.permute.xlu0 %5878
  %5880 = vrot.lane.b32.xlu0 %v4726, 16
  %v5881 = vpop.permute.xlu0 %5880
  %5882 = vrot.lane.b32.xlu0 %v4727, 16
  %v5883 = vpop.permute.xlu0 %5882
  %5884 = vrot.lane.b32.xlu0 %v4728, 16
  %v5885 = vpop.permute.xlu0 %5884
  %5886 = vrot.lane.b32.xlu0 %v4729, 16
  %v5887 = vpop.permute.xlu0 %5886
  %5888 = vrot.lane.b32.xlu0 %v4730, 16
  %v5889 = vpop.permute.xlu0 %5888
  %5890 = vrot.lane.b32.xlu0 %v4731, 16
  %v5891 = vpop.permute.xlu0 %5890
  %5892 = vrot.lane.b32.xlu0 %v4732, 16
  %v5893 = vpop.permute.xlu0 %5892
  %5894 = vrot.lane.b32.xlu0 %v4733, 16
  %v5895 = vpop.permute.xlu0 %5894
  %5896 = vrot.lane.b32.xlu0 %v4734, 16
  %v5897 = vpop.permute.xlu0 %5896
  %5898 = vrot.lane.b32.xlu0 %v4735, 16
  %v5899 = vpop.permute.xlu0 %5898
  %5900 = vrot.lane.b32.xlu0 %v4736, 16
  %v5901 = vpop.permute.xlu0 %5900
  %5902 = vrot.lane.b32.xlu0 %v4737, 16
  %v5903 = vpop.permute.xlu0 %5902
  %5904 = vrot.lane.b32.xlu0 %v4738, 16
  %v5905 = vpop.permute.xlu0 %5904
  %5906 = vrot.lane.b32.xlu0 %v4739, 16
  %v5907 = vpop.permute.xlu0 %5906
  %5908 = vrot.lane.b32.xlu0 %v4740, 16
  %v5909 = vpop.permute.xlu0 %5908
  %5910 = vrot.lane.b32.xlu0 %v4741, 16
  %v5911 = vpop.permute.xlu0 %5910
  %5912 = vrot.lane.b32.xlu0 %v4742, 16
  %v5913 = vpop.permute.xlu0 %5912
  %5914 = vrot.lane.b32.xlu0 %v4743, 16
  %v5915 = vpop.permute.xlu0 %5914
  %5916 = vrot.lane.b32.xlu0 %v4744, 16
  %v5917 = vpop.permute.xlu0 %5916
  %5918 = vrot.lane.b32.xlu0 %v4745, 16
  %v5919 = vpop.permute.xlu0 %5918
  %5920 = vrot.lane.b32.xlu0 %v4746, 16
  %v5921 = vpop.permute.xlu0 %5920
  %5922 = vrot.lane.b32.xlu0 %v4747, 16
  %v5923 = vpop.permute.xlu0 %5922
  %5924 = vrot.lane.b32.xlu0 %v4748, 16
  %v5925 = vpop.permute.xlu0 %5924
  %5926 = vrot.lane.b32.xlu0 %v4749, 16
  %v5927 = vpop.permute.xlu0 %5926
  %5928 = vrot.lane.b32.xlu0 %v4750, 16
  %v5929 = vpop.permute.xlu0 %5928
  %5930 = vrot.lane.b32.xlu0 %v4751, 16
  %v5931 = vpop.permute.xlu0 %5930
  %5932 = vrot.lane.b32.xlu0 %v4752, 16
  %v5933 = vpop.permute.xlu0 %5932
  %5934 = vrot.lane.b32.xlu0 %v4753, 16
  %v5935 = vpop.permute.xlu0 %5934
  %5936 = vrot.lane.b32.xlu0 %v4754, 16
  %v5937 = vpop.permute.xlu0 %5936
  %5938 = vrot.lane.b32.xlu0 %v4755, 16
  %v5939 = vpop.permute.xlu0 %5938
  %5940 = vrot.lane.b32.xlu0 %v4756, 16
  %v5941 = vpop.permute.xlu0 %5940
  %5942 = vrot.lane.b32.xlu0 %v4757, 16
  %v5943 = vpop.permute.xlu0 %5942
  %5944 = vrot.lane.b32.xlu0 %v4758, 16
  %v5945 = vpop.permute.xlu0 %5944
  %5946 = vrot.lane.b32.xlu0 %v4759, 16
  %v5947 = vpop.permute.xlu0 %5946
  %5948 = vrot.lane.b32.xlu0 %v4760, 16
  %v5949 = vpop.permute.xlu0 %5948
  %5950 = vrot.lane.b32.xlu0 %v4761, 16
  %v5951 = vpop.permute.xlu0 %5950
  %5952 = vrot.lane.b32.xlu0 %v4762, 16
  %v5953 = vpop.permute.xlu0 %5952
  %5954 = vrot.lane.b32.xlu0 %v4763, 16
  %v5955 = vpop.permute.xlu0 %5954
  %5956 = vrot.lane.b32.xlu0 %v4764, 16
  %v5957 = vpop.permute.xlu0 %5956
  %5958 = vrot.lane.b32.xlu0 %v4765, 16
  %v5959 = vpop.permute.xlu0 %5958
  %5960 = vrot.lane.b32.xlu0 %v4766, 16
  %v5961 = vpop.permute.xlu0 %5960
  %5962 = vrot.lane.b32.xlu0 %v4767, 16
  %v5963 = vpop.permute.xlu0 %5962
  %5964 = vrot.lane.b32.xlu0 %v4768, 16
  %v5965 = vpop.permute.xlu0 %5964
  %5966 = vrot.lane.b32.xlu0 %v4769, 16
  %v5967 = vpop.permute.xlu0 %5966
  %5968 = vrot.lane.b32.xlu0 %v4770, 16
  %v5969 = vpop.permute.xlu0 %5968
  %5970 = vrot.lane.b32.xlu0 %v4771, 16
  %v5971 = vpop.permute.xlu0 %5970
  %5972 = vrot.lane.b32.xlu0 %v4772, 16
  %v5973 = vpop.permute.xlu0 %5972
  %5974 = vrot.lane.b32.xlu0 %v4773, 16
  %v5975 = vpop.permute.xlu0 %5974
  %5976 = vrot.lane.b32.xlu0 %v4774, 16
  %v5977 = vpop.permute.xlu0 %5976
  %5978 = vrot.lane.b32.xlu0 %v4775, 16
  %v5979 = vpop.permute.xlu0 %5978
  %5980 = vrot.lane.b32.xlu0 %v4776, 16
  %v5981 = vpop.permute.xlu0 %5980
  %5982 = vrot.lane.b32.xlu0 %v4777, 16
  %v5983 = vpop.permute.xlu0 %5982
  %5984 = vrot.lane.b32.xlu0 %v4778, 16
  %v5985 = vpop.permute.xlu0 %5984
  %5986 = vrot.lane.b32.xlu0 %v4779, 16
  %v5987 = vpop.permute.xlu0 %5986
  %5988 = vrot.lane.b32.xlu0 %v4780, 16
  %v5989 = vpop.permute.xlu0 %5988
  %5990 = vrot.lane.b32.xlu0 %v4781, 16
  %v5991 = vpop.permute.xlu0 %5990
  %5992 = vrot.lane.b32.xlu0 %v4782, 16
  %v5993 = vpop.permute.xlu0 %5992
  %5994 = vrot.lane.b32.xlu0 %v4783, 16
  %v5995 = vpop.permute.xlu0 %5994
  %5996 = vrot.lane.b32.xlu0 %v4784, 16
  %v5997 = vpop.permute.xlu0 %5996
  %5998 = vrot.lane.b32.xlu0 %v4785, 16
  %v5999 = vpop.permute.xlu0 %5998
  %6000 = vrot.lane.b32.xlu0 %v4786, 16
  %v6001 = vpop.permute.xlu0 %6000
  %6002 = vrot.lane.b32.xlu0 %v4787, 16
  %v6003 = vpop.permute.xlu0 %6002
  %6132 = vrot.lane.b32.xlu0 %v4788, 20
  %v6133 = vpop.permute.xlu0 %6132
  %6134 = vrot.lane.b32.xlu0 %v4789, 20
  %v6135 = vpop.permute.xlu0 %6134
  %6136 = vrot.lane.b32.xlu0 %v4790, 20
  %v6137 = vpop.permute.xlu0 %6136
  %6138 = vrot.lane.b32.xlu0 %v4791, 20
  %v6139 = vpop.permute.xlu0 %6138
  %6140 = vrot.lane.b32.xlu0 %v4792, 20
  %v6141 = vpop.permute.xlu0 %6140
  %6142 = vrot.lane.b32.xlu0 %v4793, 20
  %v6143 = vpop.permute.xlu0 %6142
  %6144 = vrot.lane.b32.xlu0 %v4794, 20
  %v6145 = vpop.permute.xlu0 %6144
  %6146 = vrot.lane.b32.xlu0 %v4795, 20
  %v6147 = vpop.permute.xlu0 %6146
  %6148 = vrot.lane.b32.xlu0 %v4796, 20
  %v6149 = vpop.permute.xlu0 %6148
  %6150 = vrot.lane.b32.xlu0 %v4797, 20
  %v6151 = vpop.permute.xlu0 %6150
  %6152 = vrot.lane.b32.xlu0 %v4798, 20
  %v6153 = vpop.permute.xlu0 %6152
  %6154 = vrot.lane.b32.xlu0 %v4799, 20
  %v6155 = vpop.permute.xlu0 %6154
  %6156 = vrot.lane.b32.xlu0 %v4800, 20
  %v6157 = vpop.permute.xlu0 %6156
  %6158 = vrot.lane.b32.xlu0 %v4801, 20
  %v6159 = vpop.permute.xlu0 %6158
  %6160 = vrot.lane.b32.xlu0 %v4802, 20
  %v6161 = vpop.permute.xlu0 %6160
  %6162 = vrot.lane.b32.xlu0 %v4803, 20
  %v6163 = vpop.permute.xlu0 %6162
  %6164 = vrot.lane.b32.xlu0 %v4804, 20
  %v6165 = vpop.permute.xlu0 %6164
  %6166 = vrot.lane.b32.xlu0 %v4805, 20
  %v6167 = vpop.permute.xlu0 %6166
  %6168 = vrot.lane.b32.xlu0 %v4806, 20
  %v6169 = vpop.permute.xlu0 %6168
  %6170 = vrot.lane.b32.xlu0 %v4807, 20
  %v6171 = vpop.permute.xlu0 %6170
  %6172 = vrot.lane.b32.xlu0 %v4808, 20
  %v6173 = vpop.permute.xlu0 %6172
  %6174 = vrot.lane.b32.xlu0 %v4809, 20
  %v6175 = vpop.permute.xlu0 %6174
  %6176 = vrot.lane.b32.xlu0 %v4810, 20
  %v6177 = vpop.permute.xlu0 %6176
  %6178 = vrot.lane.b32.xlu0 %v4811, 20
  %v6179 = vpop.permute.xlu0 %6178
  %6180 = vrot.lane.b32.xlu0 %v4812, 20
  %v6181 = vpop.permute.xlu0 %6180
  %6182 = vrot.lane.b32.xlu0 %v4813, 20
  %v6183 = vpop.permute.xlu0 %6182
  %6184 = vrot.lane.b32.xlu0 %v4814, 20
  %v6185 = vpop.permute.xlu0 %6184
  %6186 = vrot.lane.b32.xlu0 %v4815, 20
  %v6187 = vpop.permute.xlu0 %6186
  %6188 = vrot.lane.b32.xlu0 %v4816, 20
  %v6189 = vpop.permute.xlu0 %6188
  %6190 = vrot.lane.b32.xlu0 %v4817, 20
  %v6191 = vpop.permute.xlu0 %6190
  %6192 = vrot.lane.b32.xlu0 %v4818, 20
  %v6193 = vpop.permute.xlu0 %6192
  %6194 = vrot.lane.b32.xlu0 %v4819, 20
  %v6195 = vpop.permute.xlu0 %6194
  %6196 = vrot.lane.b32.xlu0 %v4820, 20
  %v6197 = vpop.permute.xlu0 %6196
  %6198 = vrot.lane.b32.xlu0 %v4821, 20
  %v6199 = vpop.permute.xlu0 %6198
  %6200 = vrot.lane.b32.xlu0 %v4822, 20
  %v6201 = vpop.permute.xlu0 %6200
  %6202 = vrot.lane.b32.xlu0 %v4823, 20
  %v6203 = vpop.permute.xlu0 %6202
  %6204 = vrot.lane.b32.xlu0 %v4824, 20
  %v6205 = vpop.permute.xlu0 %6204
  %6206 = vrot.lane.b32.xlu0 %v4825, 20
  %v6207 = vpop.permute.xlu0 %6206
  %6208 = vrot.lane.b32.xlu0 %v4826, 20
  %v6209 = vpop.permute.xlu0 %6208
  %6210 = vrot.lane.b32.xlu0 %v4827, 20
  %v6211 = vpop.permute.xlu0 %6210
  %6212 = vrot.lane.b32.xlu0 %v4828, 20
  %v6213 = vpop.permute.xlu0 %6212
  %6214 = vrot.lane.b32.xlu0 %v4829, 20
  %v6215 = vpop.permute.xlu0 %6214
  %6216 = vrot.lane.b32.xlu0 %v4830, 20
  %v6217 = vpop.permute.xlu0 %6216
  %6218 = vrot.lane.b32.xlu0 %v4831, 20
  %v6219 = vpop.permute.xlu0 %6218
  %6220 = vrot.lane.b32.xlu0 %v4832, 20
  %v6221 = vpop.permute.xlu0 %6220
  %6222 = vrot.lane.b32.xlu0 %v4833, 20
  %v6223 = vpop.permute.xlu0 %6222
  %6224 = vrot.lane.b32.xlu0 %v4834, 20
  %v6225 = vpop.permute.xlu0 %6224
  %6226 = vrot.lane.b32.xlu0 %v4835, 20
  %v6227 = vpop.permute.xlu0 %6226
  %6228 = vrot.lane.b32.xlu0 %v4836, 20
  %v6229 = vpop.permute.xlu0 %6228
  %6230 = vrot.lane.b32.xlu0 %v4837, 20
  %v6231 = vpop.permute.xlu0 %6230
  %6232 = vrot.lane.b32.xlu0 %v4838, 20
  %v6233 = vpop.permute.xlu0 %6232
  %6234 = vrot.lane.b32.xlu0 %v4839, 20
  %v6235 = vpop.permute.xlu0 %6234
  %6236 = vrot.lane.b32.xlu0 %v4840, 20
  %v6237 = vpop.permute.xlu0 %6236
  %6238 = vrot.lane.b32.xlu0 %v4841, 20
  %v6239 = vpop.permute.xlu0 %6238
  %6240 = vrot.lane.b32.xlu0 %v4842, 20
  %v6241 = vpop.permute.xlu0 %6240
  %6242 = vrot.lane.b32.xlu0 %v4843, 20
  %v6243 = vpop.permute.xlu0 %6242
  %6244 = vrot.lane.b32.xlu0 %v4844, 20
  %v6245 = vpop.permute.xlu0 %6244
  %6246 = vrot.lane.b32.xlu0 %v4845, 20
  %v6247 = vpop.permute.xlu0 %6246
  %6248 = vrot.lane.b32.xlu0 %v4846, 20
  %v6249 = vpop.permute.xlu0 %6248
  %6250 = vrot.lane.b32.xlu0 %v4847, 20
  %v6251 = vpop.permute.xlu0 %6250
  %6252 = vrot.lane.b32.xlu0 %v4848, 20
  %v6253 = vpop.permute.xlu0 %6252
  %6254 = vrot.lane.b32.xlu0 %v4849, 20
  %v6255 = vpop.permute.xlu0 %6254
  %6256 = vrot.lane.b32.xlu0 %v4850, 20
  %v6257 = vpop.permute.xlu0 %6256
  %6258 = vrot.lane.b32.xlu0 %v4851, 20
  %v6259 = vpop.permute.xlu0 %6258
  %6388 = vrot.lane.b32.xlu0 %v4852, 24
  %v6389 = vpop.permute.xlu0 %6388
  %6390 = vrot.lane.b32.xlu0 %v4853, 24
  %v6391 = vpop.permute.xlu0 %6390
  %6392 = vrot.lane.b32.xlu0 %v4854, 24
  %v6393 = vpop.permute.xlu0 %6392
  %6394 = vrot.lane.b32.xlu0 %v4855, 24
  %v6395 = vpop.permute.xlu0 %6394
  %6396 = vrot.lane.b32.xlu0 %v4856, 24
  %v6397 = vpop.permute.xlu0 %6396
  %6398 = vrot.lane.b32.xlu0 %v4857, 24
  %v6399 = vpop.permute.xlu0 %6398
  %6400 = vrot.lane.b32.xlu0 %v4858, 24
  %v6401 = vpop.permute.xlu0 %6400
  %6402 = vrot.lane.b32.xlu0 %v4859, 24
  %v6403 = vpop.permute.xlu0 %6402
  %6404 = vrot.lane.b32.xlu0 %v4860, 24
  %v6405 = vpop.permute.xlu0 %6404
  %6406 = vrot.lane.b32.xlu0 %v4861, 24
  %v6407 = vpop.permute.xlu0 %6406
  %6408 = vrot.lane.b32.xlu0 %v4862, 24
  %v6409 = vpop.permute.xlu0 %6408
  %6410 = vrot.lane.b32.xlu0 %v4863, 24
  %v6411 = vpop.permute.xlu0 %6410
  %6412 = vrot.lane.b32.xlu0 %v4864, 24
  %v6413 = vpop.permute.xlu0 %6412
  %6414 = vrot.lane.b32.xlu0 %v4865, 24
  %v6415 = vpop.permute.xlu0 %6414
  %6416 = vrot.lane.b32.xlu0 %v4866, 24
  %v6417 = vpop.permute.xlu0 %6416
  %6418 = vrot.lane.b32.xlu0 %v4867, 24
  %v6419 = vpop.permute.xlu0 %6418
  %6420 = vrot.lane.b32.xlu0 %v4868, 24
  %v6421 = vpop.permute.xlu0 %6420
  %6422 = vrot.lane.b32.xlu0 %v4869, 24
  %v6423 = vpop.permute.xlu0 %6422
  %6424 = vrot.lane.b32.xlu0 %v4870, 24
  %v6425 = vpop.permute.xlu0 %6424
  %6426 = vrot.lane.b32.xlu0 %v4871, 24
  %v6427 = vpop.permute.xlu0 %6426
  %6428 = vrot.lane.b32.xlu0 %v4872, 24
  %v6429 = vpop.permute.xlu0 %6428
  %6430 = vrot.lane.b32.xlu0 %v4873, 24
  %v6431 = vpop.permute.xlu0 %6430
  %6432 = vrot.lane.b32.xlu0 %v4874, 24
  %v6433 = vpop.permute.xlu0 %6432
  %6434 = vrot.lane.b32.xlu0 %v4875, 24
  %v6435 = vpop.permute.xlu0 %6434
  %6436 = vrot.lane.b32.xlu0 %v4876, 24
  %v6437 = vpop.permute.xlu0 %6436
  %6438 = vrot.lane.b32.xlu0 %v4877, 24
  %v6439 = vpop.permute.xlu0 %6438
  %6440 = vrot.lane.b32.xlu0 %v4878, 24
  %v6441 = vpop.permute.xlu0 %6440
  %6442 = vrot.lane.b32.xlu0 %v4879, 24
  %v6443 = vpop.permute.xlu0 %6442
  %6444 = vrot.lane.b32.xlu0 %v4880, 24
  %v6445 = vpop.permute.xlu0 %6444
  %6446 = vrot.lane.b32.xlu0 %v4881, 24
  %v6447 = vpop.permute.xlu0 %6446
  %6448 = vrot.lane.b32.xlu0 %v4882, 24
  %v6449 = vpop.permute.xlu0 %6448
  %6450 = vrot.lane.b32.xlu0 %v4883, 24
  %v6451 = vpop.permute.xlu0 %6450
  %6452 = vrot.lane.b32.xlu0 %v4884, 24
  %v6453 = vpop.permute.xlu0 %6452
  %6454 = vrot.lane.b32.xlu0 %v4885, 24
  %v6455 = vpop.permute.xlu0 %6454
  %6456 = vrot.lane.b32.xlu0 %v4886, 24
  %v6457 = vpop.permute.xlu0 %6456
  %6458 = vrot.lane.b32.xlu0 %v4887, 24
  %v6459 = vpop.permute.xlu0 %6458
  %6460 = vrot.lane.b32.xlu0 %v4888, 24
  %v6461 = vpop.permute.xlu0 %6460
  %6462 = vrot.lane.b32.xlu0 %v4889, 24
  %v6463 = vpop.permute.xlu0 %6462
  %6464 = vrot.lane.b32.xlu0 %v4890, 24
  %v6465 = vpop.permute.xlu0 %6464
  %6466 = vrot.lane.b32.xlu0 %v4891, 24
  %v6467 = vpop.permute.xlu0 %6466
  %6468 = vrot.lane.b32.xlu0 %v4892, 24
  %v6469 = vpop.permute.xlu0 %6468
  %6470 = vrot.lane.b32.xlu0 %v4893, 24
  %v6471 = vpop.permute.xlu0 %6470
  %6472 = vrot.lane.b32.xlu0 %v4894, 24
  %v6473 = vpop.permute.xlu0 %6472
  %6474 = vrot.lane.b32.xlu0 %v4895, 24
  %v6475 = vpop.permute.xlu0 %6474
  %6476 = vrot.lane.b32.xlu0 %v4896, 24
  %v6477 = vpop.permute.xlu0 %6476
  %6478 = vrot.lane.b32.xlu0 %v4897, 24
  %v6479 = vpop.permute.xlu0 %6478
  %6480 = vrot.lane.b32.xlu0 %v4898, 24
  %v6481 = vpop.permute.xlu0 %6480
  %6482 = vrot.lane.b32.xlu0 %v4899, 24
  %v6483 = vpop.permute.xlu0 %6482
  %6484 = vrot.lane.b32.xlu0 %v4900, 24
  %v6485 = vpop.permute.xlu0 %6484
  %6486 = vrot.lane.b32.xlu0 %v4901, 24
  %v6487 = vpop.permute.xlu0 %6486
  %6488 = vrot.lane.b32.xlu0 %v4902, 24
  %v6489 = vpop.permute.xlu0 %6488
  %6490 = vrot.lane.b32.xlu0 %v4903, 24
  %v6491 = vpop.permute.xlu0 %6490
  %6492 = vrot.lane.b32.xlu0 %v4904, 24
  %v6493 = vpop.permute.xlu0 %6492
  %6494 = vrot.lane.b32.xlu0 %v4905, 24
  %v6495 = vpop.permute.xlu0 %6494
  %6496 = vrot.lane.b32.xlu0 %v4906, 24
  %v6497 = vpop.permute.xlu0 %6496
  %6498 = vrot.lane.b32.xlu0 %v4907, 24
  %v6499 = vpop.permute.xlu0 %6498
  %6500 = vrot.lane.b32.xlu0 %v4908, 24
  %v6501 = vpop.permute.xlu0 %6500
  %6502 = vrot.lane.b32.xlu0 %v4909, 24
  %v6503 = vpop.permute.xlu0 %6502
  %6504 = vrot.lane.b32.xlu0 %v4910, 24
  %v6505 = vpop.permute.xlu0 %6504
  %6506 = vrot.lane.b32.xlu0 %v4911, 24
  %v6507 = vpop.permute.xlu0 %6506
  %6508 = vrot.lane.b32.xlu0 %v4912, 24
  %v6509 = vpop.permute.xlu0 %6508
  %6510 = vrot.lane.b32.xlu0 %v4913, 24
  %v6511 = vpop.permute.xlu0 %6510
  %6512 = vrot.lane.b32.xlu0 %v4914, 24
  %v6513 = vpop.permute.xlu0 %6512
  %6514 = vrot.lane.b32.xlu0 %v4915, 24
  %v6515 = vpop.permute.xlu0 %6514
  %6644 = vrot.lane.b32.xlu0 %v4916, 28
  %v6645 = vpop.permute.xlu0 %6644
  %6646 = vrot.lane.b32.xlu0 %v4917, 28
  %v6647 = vpop.permute.xlu0 %6646
  %6648 = vrot.lane.b32.xlu0 %v4918, 28
  %v6649 = vpop.permute.xlu0 %6648
  %6650 = vrot.lane.b32.xlu0 %v4919, 28
  %v6651 = vpop.permute.xlu0 %6650
  %6652 = vrot.lane.b32.xlu0 %v4920, 28
  %v6653 = vpop.permute.xlu0 %6652
  %6654 = vrot.lane.b32.xlu0 %v4921, 28
  %v6655 = vpop.permute.xlu0 %6654
  %6656 = vrot.lane.b32.xlu0 %v4922, 28
  %v6657 = vpop.permute.xlu0 %6656
  %6658 = vrot.lane.b32.xlu0 %v4923, 28
  %v6659 = vpop.permute.xlu0 %6658
  %6660 = vrot.lane.b32.xlu0 %v4924, 28
  %v6661 = vpop.permute.xlu0 %6660
  %6662 = vrot.lane.b32.xlu0 %v4925, 28
  %v6663 = vpop.permute.xlu0 %6662
  %6664 = vrot.lane.b32.xlu0 %v4926, 28
  %v6665 = vpop.permute.xlu0 %6664
  %6666 = vrot.lane.b32.xlu0 %v4927, 28
  %v6667 = vpop.permute.xlu0 %6666
  %6668 = vrot.lane.b32.xlu0 %v4928, 28
  %v6669 = vpop.permute.xlu0 %6668
  %6670 = vrot.lane.b32.xlu0 %v4929, 28
  %v6671 = vpop.permute.xlu0 %6670
  %6672 = vrot.lane.b32.xlu0 %v4930, 28
  %v6673 = vpop.permute.xlu0 %6672
  %6674 = vrot.lane.b32.xlu0 %v4931, 28
  %v6675 = vpop.permute.xlu0 %6674
  %6676 = vrot.lane.b32.xlu0 %v4932, 28
  %v6677 = vpop.permute.xlu0 %6676
  %6678 = vrot.lane.b32.xlu0 %v4933, 28
  %v6679 = vpop.permute.xlu0 %6678
  %6680 = vrot.lane.b32.xlu0 %v4934, 28
  %v6681 = vpop.permute.xlu0 %6680
  %6682 = vrot.lane.b32.xlu0 %v4935, 28
  %v6683 = vpop.permute.xlu0 %6682
  %6684 = vrot.lane.b32.xlu0 %v4936, 28
  %v6685 = vpop.permute.xlu0 %6684
  %6686 = vrot.lane.b32.xlu0 %v4937, 28
  %v6687 = vpop.permute.xlu0 %6686
  %6688 = vrot.lane.b32.xlu0 %v4938, 28
  %v6689 = vpop.permute.xlu0 %6688
  %6690 = vrot.lane.b32.xlu0 %v4939, 28
  %v6691 = vpop.permute.xlu0 %6690
  %6692 = vrot.lane.b32.xlu0 %v4940, 28
  %v6693 = vpop.permute.xlu0 %6692
  %6694 = vrot.lane.b32.xlu0 %v4941, 28
  %v6695 = vpop.permute.xlu0 %6694
  %6696 = vrot.lane.b32.xlu0 %v4942, 28
  %v6697 = vpop.permute.xlu0 %6696
  %6698 = vrot.lane.b32.xlu0 %v4943, 28
  %v6699 = vpop.permute.xlu0 %6698
  %6700 = vrot.lane.b32.xlu0 %v4944, 28
  %v6701 = vpop.permute.xlu0 %6700
  %6702 = vrot.lane.b32.xlu0 %v4945, 28
  %v6703 = vpop.permute.xlu0 %6702
  %6704 = vrot.lane.b32.xlu0 %v4946, 28
  %v6705 = vpop.permute.xlu0 %6704
  %6706 = vrot.lane.b32.xlu0 %v4947, 28
  %v6707 = vpop.permute.xlu0 %6706
  %6708 = vrot.lane.b32.xlu0 %v4948, 28
  %v6709 = vpop.permute.xlu0 %6708
  %6710 = vrot.lane.b32.xlu0 %v4949, 28
  %v6711 = vpop.permute.xlu0 %6710
  %6712 = vrot.lane.b32.xlu0 %v4950, 28
  %v6713 = vpop.permute.xlu0 %6712
  %6714 = vrot.lane.b32.xlu0 %v4951, 28
  %v6715 = vpop.permute.xlu0 %6714
  %6716 = vrot.lane.b32.xlu0 %v4952, 28
  %v6717 = vpop.permute.xlu0 %6716
  %6718 = vrot.lane.b32.xlu0 %v4953, 28
  %v6719 = vpop.permute.xlu0 %6718
  %6720 = vrot.lane.b32.xlu0 %v4954, 28
  %v6721 = vpop.permute.xlu0 %6720
  %6722 = vrot.lane.b32.xlu0 %v4955, 28
  %v6723 = vpop.permute.xlu0 %6722
  %6724 = vrot.lane.b32.xlu0 %v4956, 28
  %v6725 = vpop.permute.xlu0 %6724
  %6726 = vrot.lane.b32.xlu0 %v4957, 28
  %v6727 = vpop.permute.xlu0 %6726
  %6728 = vrot.lane.b32.xlu0 %v4958, 28
  %v6729 = vpop.permute.xlu0 %6728
  %6730 = vrot.lane.b32.xlu0 %v4959, 28
  %v6731 = vpop.permute.xlu0 %6730
  %6732 = vrot.lane.b32.xlu0 %v4960, 28
  %v6733 = vpop.permute.xlu0 %6732
  %6734 = vrot.lane.b32.xlu0 %v4961, 28
  %v6735 = vpop.permute.xlu0 %6734
  %6736 = vrot.lane.b32.xlu0 %v4962, 28
  %v6737 = vpop.permute.xlu0 %6736
  %6738 = vrot.lane.b32.xlu0 %v4963, 28
  %v6739 = vpop.permute.xlu0 %6738
  %6740 = vrot.lane.b32.xlu0 %v4964, 28
  %v6741 = vpop.permute.xlu0 %6740
  %6742 = vrot.lane.b32.xlu0 %v4965, 28
  %v6743 = vpop.permute.xlu0 %6742
  %6744 = vrot.lane.b32.xlu0 %v4966, 28
  %v6745 = vpop.permute.xlu0 %6744
  %6746 = vrot.lane.b32.xlu0 %v4967, 28
  %v6747 = vpop.permute.xlu0 %6746
  %6748 = vrot.lane.b32.xlu0 %v4968, 28
  %v6749 = vpop.permute.xlu0 %6748
  %6750 = vrot.lane.b32.xlu0 %v4969, 28
  %v6751 = vpop.permute.xlu0 %6750
  %6752 = vrot.lane.b32.xlu0 %v4970, 28
  %v6753 = vpop.permute.xlu0 %6752
  %6754 = vrot.lane.b32.xlu0 %v4971, 28
  %v6755 = vpop.permute.xlu0 %6754
  %6756 = vrot.lane.b32.xlu0 %v4972, 28
  %v6757 = vpop.permute.xlu0 %6756
  %6758 = vrot.lane.b32.xlu0 %v4973, 28
  %v6759 = vpop.permute.xlu0 %6758
  %6760 = vrot.lane.b32.xlu0 %v4974, 28
  %v6761 = vpop.permute.xlu0 %6760
  %6762 = vrot.lane.b32.xlu0 %v4975, 28
  %v6763 = vpop.permute.xlu0 %6762
  %6764 = vrot.lane.b32.xlu0 %v4976, 28
  %v6765 = vpop.permute.xlu0 %6764
  %6766 = vrot.lane.b32.xlu0 %v4977, 28
  %v6767 = vpop.permute.xlu0 %6766
  %6768 = vrot.lane.b32.xlu0 %v4978, 28
  %v6769 = vpop.permute.xlu0 %6768
  %6770 = vrot.lane.b32.xlu0 %v4979, 28
  %v6771 = vpop.permute.xlu0 %6770
  %6900 = vrot.lane.b32.xlu0 %v4980, 32
  %v6901 = vpop.permute.xlu0 %6900
  %6902 = vrot.lane.b32.xlu0 %v4981, 32
  %v6903 = vpop.permute.xlu0 %6902
  %6904 = vrot.lane.b32.xlu0 %v4982, 32
  %v6905 = vpop.permute.xlu0 %6904
  %6906 = vrot.lane.b32.xlu0 %v4983, 32
  %v6907 = vpop.permute.xlu0 %6906
  %6908 = vrot.lane.b32.xlu0 %v4984, 32
  %v6909 = vpop.permute.xlu0 %6908
  %6910 = vrot.lane.b32.xlu0 %v4985, 32
  %v6911 = vpop.permute.xlu0 %6910
  %6912 = vrot.lane.b32.xlu0 %v4986, 32
  %v6913 = vpop.permute.xlu0 %6912
  %6914 = vrot.lane.b32.xlu0 %v4987, 32
  %v6915 = vpop.permute.xlu0 %6914
  %6916 = vrot.lane.b32.xlu0 %v4988, 32
  %v6917 = vpop.permute.xlu0 %6916
  %6918 = vrot.lane.b32.xlu0 %v4989, 32
  %v6919 = vpop.permute.xlu0 %6918
  %6920 = vrot.lane.b32.xlu0 %v4990, 32
  %v6921 = vpop.permute.xlu0 %6920
  %6922 = vrot.lane.b32.xlu0 %v4991, 32
  %v6923 = vpop.permute.xlu0 %6922
  %6924 = vrot.lane.b32.xlu0 %v4992, 32
  %v6925 = vpop.permute.xlu0 %6924
  %6926 = vrot.lane.b32.xlu0 %v4993, 32
  %v6927 = vpop.permute.xlu0 %6926
  %6928 = vrot.lane.b32.xlu0 %v4994, 32
  %v6929 = vpop.permute.xlu0 %6928
  %6930 = vrot.lane.b32.xlu0 %v4995, 32
  %v6931 = vpop.permute.xlu0 %6930
  %6932 = vrot.lane.b32.xlu0 %v4996, 32
  %v6933 = vpop.permute.xlu0 %6932
  %6934 = vrot.lane.b32.xlu0 %v4997, 32
  %v6935 = vpop.permute.xlu0 %6934
  %6936 = vrot.lane.b32.xlu0 %v4998, 32
  %v6937 = vpop.permute.xlu0 %6936
  %6938 = vrot.lane.b32.xlu0 %v4999, 32
  %v6939 = vpop.permute.xlu0 %6938
  %6940 = vrot.lane.b32.xlu0 %v5000, 32
  %v6941 = vpop.permute.xlu0 %6940
  %6942 = vrot.lane.b32.xlu0 %v5001, 32
  %v6943 = vpop.permute.xlu0 %6942
  %6944 = vrot.lane.b32.xlu0 %v5002, 32
  %v6945 = vpop.permute.xlu0 %6944
  %6946 = vrot.lane.b32.xlu0 %v5003, 32
  %v6947 = vpop.permute.xlu0 %6946
  %6948 = vrot.lane.b32.xlu0 %v5004, 32
  %v6949 = vpop.permute.xlu0 %6948
  %6950 = vrot.lane.b32.xlu0 %v5005, 32
  %v6951 = vpop.permute.xlu0 %6950
  %6952 = vrot.lane.b32.xlu0 %v5006, 32
  %v6953 = vpop.permute.xlu0 %6952
  %6954 = vrot.lane.b32.xlu0 %v5007, 32
  %v6955 = vpop.permute.xlu0 %6954
  %6956 = vrot.lane.b32.xlu0 %v5008, 32
  %v6957 = vpop.permute.xlu0 %6956
  %6958 = vrot.lane.b32.xlu0 %v5009, 32
  %v6959 = vpop.permute.xlu0 %6958
  %6960 = vrot.lane.b32.xlu0 %v5010, 32
  %v6961 = vpop.permute.xlu0 %6960
  %6962 = vrot.lane.b32.xlu0 %v5011, 32
  %v6963 = vpop.permute.xlu0 %6962
  %6964 = vrot.lane.b32.xlu0 %v5012, 32
  %v6965 = vpop.permute.xlu0 %6964
  %6966 = vrot.lane.b32.xlu0 %v5013, 32
  %v6967 = vpop.permute.xlu0 %6966
  %6968 = vrot.lane.b32.xlu0 %v5014, 32
  %v6969 = vpop.permute.xlu0 %6968
  %6970 = vrot.lane.b32.xlu0 %v5015, 32
  %v6971 = vpop.permute.xlu0 %6970
  %6972 = vrot.lane.b32.xlu0 %v5016, 32
  %v6973 = vpop.permute.xlu0 %6972
  %6974 = vrot.lane.b32.xlu0 %v5017, 32
  %v6975 = vpop.permute.xlu0 %6974
  %6976 = vrot.lane.b32.xlu0 %v5018, 32
  %v6977 = vpop.permute.xlu0 %6976
  %6978 = vrot.lane.b32.xlu0 %v5019, 32
  %v6979 = vpop.permute.xlu0 %6978
  %6980 = vrot.lane.b32.xlu0 %v5020, 32
  %v6981 = vpop.permute.xlu0 %6980
  %6982 = vrot.lane.b32.xlu0 %v5021, 32
  %v6983 = vpop.permute.xlu0 %6982
  %6984 = vrot.lane.b32.xlu0 %v5022, 32
  %v6985 = vpop.permute.xlu0 %6984
  %6986 = vrot.lane.b32.xlu0 %v5023, 32
  %v6987 = vpop.permute.xlu0 %6986
  %6988 = vrot.lane.b32.xlu0 %v5024, 32
  %v6989 = vpop.permute.xlu0 %6988
  %6990 = vrot.lane.b32.xlu0 %v5025, 32
  %v6991 = vpop.permute.xlu0 %6990
  %6992 = vrot.lane.b32.xlu0 %v5026, 32
  %v6993 = vpop.permute.xlu0 %6992
  %6994 = vrot.lane.b32.xlu0 %v5027, 32
  %v6995 = vpop.permute.xlu0 %6994
  %6996 = vrot.lane.b32.xlu0 %v5028, 32
  %v6997 = vpop.permute.xlu0 %6996
  %6998 = vrot.lane.b32.xlu0 %v5029, 32
  %v6999 = vpop.permute.xlu0 %6998
  %7000 = vrot.lane.b32.xlu0 %v5030, 32
  %v7001 = vpop.permute.xlu0 %7000
  %7002 = vrot.lane.b32.xlu0 %v5031, 32
  %v7003 = vpop.permute.xlu0 %7002
  %7004 = vrot.lane.b32.xlu0 %v5032, 32
  %v7005 = vpop.permute.xlu0 %7004
  %7006 = vrot.lane.b32.xlu0 %v5033, 32
  %v7007 = vpop.permute.xlu0 %7006
  %7008 = vrot.lane.b32.xlu0 %v5034, 32
  %v7009 = vpop.permute.xlu0 %7008
  %7010 = vrot.lane.b32.xlu0 %v5035, 32
  %v7011 = vpop.permute.xlu0 %7010
  %7012 = vrot.lane.b32.xlu0 %v5036, 32
  %v7013 = vpop.permute.xlu0 %7012
  %7014 = vrot.lane.b32.xlu0 %v5037, 32
  %v7015 = vpop.permute.xlu0 %7014
  %7016 = vrot.lane.b32.xlu0 %v5038, 32
  %v7017 = vpop.permute.xlu0 %7016
  %7018 = vrot.lane.b32.xlu0 %v5039, 32
  %v7019 = vpop.permute.xlu0 %7018
  %7020 = vrot.lane.b32.xlu0 %v5040, 32
  %v7021 = vpop.permute.xlu0 %7020
  %7022 = vrot.lane.b32.xlu0 %v5041, 32
  %v7023 = vpop.permute.xlu0 %7022
  %7024 = vrot.lane.b32.xlu0 %v5042, 32
  %v7025 = vpop.permute.xlu0 %7024
  %7026 = vrot.lane.b32.xlu0 %v5043, 32
  %v7027 = vpop.permute.xlu0 %7026
  %v7092 = vsel %vm26, %v4468, %v5109
  %v7093 = vsel %vm26, %v4469, %v5111
  %v7094 = vsel %vm26, %v4470, %v5113
  %v7095 = vsel %vm26, %v4471, %v5115
  %v7096 = vsel %vm26, %v4472, %v5117
  %v7097 = vsel %vm26, %v4473, %v5119
  %v7098 = vsel %vm26, %v4474, %v5121
  %v7099 = vsel %vm26, %v4475, %v5123
  %v7100 = vsel %vm26, %v4476, %v5125
  %v7101 = vsel %vm26, %v4477, %v5127
  %v7102 = vsel %vm26, %v4478, %v5129
  %v7103 = vsel %vm26, %v4479, %v5131
  %v7104 = vsel %vm26, %v4480, %v5133
  %v7105 = vsel %vm26, %v4481, %v5135
  %v7106 = vsel %vm26, %v4482, %v5137
  %v7107 = vsel %vm26, %v4483, %v5139
  %v7108 = vsel %vm26, %v4484, %v5141
  %v7109 = vsel %vm26, %v4485, %v5143
  %v7110 = vsel %vm26, %v4486, %v5145
  %v7111 = vsel %vm26, %v4487, %v5147
  %v7112 = vsel %vm26, %v4488, %v5149
  %v7113 = vsel %vm26, %v4489, %v5151
  %v7114 = vsel %vm26, %v4490, %v5153
  %v7115 = vsel %vm26, %v4491, %v5155
  %v7116 = vsel %vm26, %v4492, %v5157
  %v7117 = vsel %vm26, %v4493, %v5159
  %v7118 = vsel %vm26, %v4494, %v5161
  %v7119 = vsel %vm26, %v4495, %v5163
  %v7120 = vsel %vm26, %v4496, %v5165
  %v7121 = vsel %vm26, %v4497, %v5167
  %v7122 = vsel %vm26, %v4498, %v5169
  %v7123 = vsel %vm26, %v4499, %v5171
  %v7124 = vsel %vm26, %v4500, %v5173
  %v7125 = vsel %vm26, %v4501, %v5175
  %v7126 = vsel %vm26, %v4502, %v5177
  %v7127 = vsel %vm26, %v4503, %v5179
  %v7128 = vsel %vm26, %v4504, %v5181
  %v7129 = vsel %vm26, %v4505, %v5183
  %v7130 = vsel %vm26, %v4506, %v5185
  %v7131 = vsel %vm26, %v4507, %v5187
  %v7132 = vsel %vm26, %v4508, %v5189
  %v7133 = vsel %vm26, %v4509, %v5191
  %v7134 = vsel %vm26, %v4510, %v5193
  %v7135 = vsel %vm26, %v4511, %v5195
  %v7136 = vsel %vm26, %v4512, %v5197
  %v7137 = vsel %vm26, %v4513, %v5199
  %v7138 = vsel %vm26, %v4514, %v5201
  %v7139 = vsel %vm26, %v4515, %v5203
  %v7140 = vsel %vm26, %v4516, %v5205
  %v7141 = vsel %vm26, %v4517, %v5207
  %v7142 = vsel %vm26, %v4518, %v5209
  %v7143 = vsel %vm26, %v4519, %v5211
  %v7144 = vsel %vm26, %v4520, %v5213
  %v7145 = vsel %vm26, %v4521, %v5215
  %v7146 = vsel %vm26, %v4522, %v5217
  %v7147 = vsel %vm26, %v4523, %v5219
  %v7148 = vsel %vm26, %v4524, %v5221
  %v7149 = vsel %vm26, %v4525, %v5223
  %v7150 = vsel %vm26, %v4526, %v5225
  %v7151 = vsel %vm26, %v4527, %v5227
  %v7152 = vsel %vm26, %v4528, %v5229
  %v7153 = vsel %vm26, %v4529, %v5231
  %v7154 = vsel %vm26, %v4530, %v5233
  %v7155 = vsel %vm26, %v4531, %v5235
  %v7156 = vsel %vm2990, %v7092, %v5365
  %v7157 = vsel %vm2990, %v7093, %v5367
  %v7158 = vsel %vm2990, %v7094, %v5369
  %v7159 = vsel %vm2990, %v7095, %v5371
  %v7160 = vsel %vm2990, %v7096, %v5373
  %v7161 = vsel %vm2990, %v7097, %v5375
  %v7162 = vsel %vm2990, %v7098, %v5377
  %v7163 = vsel %vm2990, %v7099, %v5379
  %v7164 = vsel %vm2990, %v7100, %v5381
  %v7165 = vsel %vm2990, %v7101, %v5383
  %v7166 = vsel %vm2990, %v7102, %v5385
  %v7167 = vsel %vm2990, %v7103, %v5387
  %v7168 = vsel %vm2990, %v7104, %v5389
  %v7169 = vsel %vm2990, %v7105, %v5391
  %v7170 = vsel %vm2990, %v7106, %v5393
  %v7171 = vsel %vm2990, %v7107, %v5395
  %v7172 = vsel %vm2990, %v7108, %v5397
  %v7173 = vsel %vm2990, %v7109, %v5399
  %v7174 = vsel %vm2990, %v7110, %v5401
  %v7175 = vsel %vm2990, %v7111, %v5403
  %v7176 = vsel %vm2990, %v7112, %v5405
  %v7177 = vsel %vm2990, %v7113, %v5407
  %v7178 = vsel %vm2990, %v7114, %v5409
  %v7179 = vsel %vm2990, %v7115, %v5411
  %v7180 = vsel %vm2990, %v7116, %v5413
  %v7181 = vsel %vm2990, %v7117, %v5415
  %v7182 = vsel %vm2990, %v7118, %v5417
  %v7183 = vsel %vm2990, %v7119, %v5419
  %v7184 = vsel %vm2990, %v7120, %v5421
  %v7185 = vsel %vm2990, %v7121, %v5423
  %v7186 = vsel %vm2990, %v7122, %v5425
  %v7187 = vsel %vm2990, %v7123, %v5427
  %v7188 = vsel %vm2990, %v7124, %v5429
  %v7189 = vsel %vm2990, %v7125, %v5431
  %v7190 = vsel %vm2990, %v7126, %v5433
  %v7191 = vsel %vm2990, %v7127, %v5435
  %v7192 = vsel %vm2990, %v7128, %v5437
  %v7193 = vsel %vm2990, %v7129, %v5439
  %v7194 = vsel %vm2990, %v7130, %v5441
  %v7195 = vsel %vm2990, %v7131, %v5443
  %v7196 = vsel %vm2990, %v7132, %v5445
  %v7197 = vsel %vm2990, %v7133, %v5447
  %v7198 = vsel %vm2990, %v7134, %v5449
  %v7199 = vsel %vm2990, %v7135, %v5451
  %v7200 = vsel %vm2990, %v7136, %v5453
  %v7201 = vsel %vm2990, %v7137, %v5455
  %v7202 = vsel %vm2990, %v7138, %v5457
  %v7203 = vsel %vm2990, %v7139, %v5459
  %v7204 = vsel %vm2990, %v7140, %v5461
  %v7205 = vsel %vm2990, %v7141, %v5463
  %v7206 = vsel %vm2990, %v7142, %v5465
  %v7207 = vsel %vm2990, %v7143, %v5467
  %v7208 = vsel %vm2990, %v7144, %v5469
  %v7209 = vsel %vm2990, %v7145, %v5471
  %v7210 = vsel %vm2990, %v7146, %v5473
  %v7211 = vsel %vm2990, %v7147, %v5475
  %v7212 = vsel %vm2990, %v7148, %v5477
  %v7213 = vsel %vm2990, %v7149, %v5479
  %v7214 = vsel %vm2990, %v7150, %v5481
  %v7215 = vsel %vm2990, %v7151, %v5483
  %v7216 = vsel %vm2990, %v7152, %v5485
  %v7217 = vsel %vm2990, %v7153, %v5487
  %v7218 = vsel %vm2990, %v7154, %v5489
  %v7219 = vsel %vm2990, %v7155, %v5491
  %v7220 = vsel %vm3055, %v7156, %v5621
  %v7221 = vsel %vm3055, %v7157, %v5623
  %v7222 = vsel %vm3055, %v7158, %v5625
  %v7223 = vsel %vm3055, %v7159, %v5627
  %v7224 = vsel %vm3055, %v7160, %v5629
  %v7225 = vsel %vm3055, %v7161, %v5631
  %v7226 = vsel %vm3055, %v7162, %v5633
  %v7227 = vsel %vm3055, %v7163, %v5635
  %v7228 = vsel %vm3055, %v7164, %v5637
  %v7229 = vsel %vm3055, %v7165, %v5639
  %v7230 = vsel %vm3055, %v7166, %v5641
  %v7231 = vsel %vm3055, %v7167, %v5643
  %v7232 = vsel %vm3055, %v7168, %v5645
  %v7233 = vsel %vm3055, %v7169, %v5647
  %v7234 = vsel %vm3055, %v7170, %v5649
  %v7235 = vsel %vm3055, %v7171, %v5651
  %v7236 = vsel %vm3055, %v7172, %v5653
  %v7237 = vsel %vm3055, %v7173, %v5655
  %v7238 = vsel %vm3055, %v7174, %v5657
  %v7239 = vsel %vm3055, %v7175, %v5659
  %v7240 = vsel %vm3055, %v7176, %v5661
  %v7241 = vsel %vm3055, %v7177, %v5663
  %v7242 = vsel %vm3055, %v7178, %v5665
  %v7243 = vsel %vm3055, %v7179, %v5667
  %v7244 = vsel %vm3055, %v7180, %v5669
  %v7245 = vsel %vm3055, %v7181, %v5671
  %v7246 = vsel %vm3055, %v7182, %v5673
  %v7247 = vsel %vm3055, %v7183, %v5675
  %v7248 = vsel %vm3055, %v7184, %v5677
  %v7249 = vsel %vm3055, %v7185, %v5679
  %v7250 = vsel %vm3055, %v7186, %v5681
  %v7251 = vsel %vm3055, %v7187, %v5683
  %v7252 = vsel %vm3055, %v7188, %v5685
  %v7253 = vsel %vm3055, %v7189, %v5687
  %v7254 = vsel %vm3055, %v7190, %v5689
  %v7255 = vsel %vm3055, %v7191, %v5691
  %v7256 = vsel %vm3055, %v7192, %v5693
  %v7257 = vsel %vm3055, %v7193, %v5695
  %v7258 = vsel %vm3055, %v7194, %v5697
  %v7259 = vsel %vm3055, %v7195, %v5699
  %v7260 = vsel %vm3055, %v7196, %v5701
  %v7261 = vsel %vm3055, %v7197, %v5703
  %v7262 = vsel %vm3055, %v7198, %v5705
  %v7263 = vsel %vm3055, %v7199, %v5707
  %v7264 = vsel %vm3055, %v7200, %v5709
  %v7265 = vsel %vm3055, %v7201, %v5711
  %v7266 = vsel %vm3055, %v7202, %v5713
  %v7267 = vsel %vm3055, %v7203, %v5715
  %v7268 = vsel %vm3055, %v7204, %v5717
  %v7269 = vsel %vm3055, %v7205, %v5719
  %v7270 = vsel %vm3055, %v7206, %v5721
  %v7271 = vsel %vm3055, %v7207, %v5723
  %v7272 = vsel %vm3055, %v7208, %v5725
  %v7273 = vsel %vm3055, %v7209, %v5727
  %v7274 = vsel %vm3055, %v7210, %v5729
  %v7275 = vsel %vm3055, %v7211, %v5731
  %v7276 = vsel %vm3055, %v7212, %v5733
  %v7277 = vsel %vm3055, %v7213, %v5735
  %v7278 = vsel %vm3055, %v7214, %v5737
  %v7279 = vsel %vm3055, %v7215, %v5739
  %v7280 = vsel %vm3055, %v7216, %v5741
  %v7281 = vsel %vm3055, %v7217, %v5743
  %v7282 = vsel %vm3055, %v7218, %v5745
  %v7283 = vsel %vm3055, %v7219, %v5747
  %v7284 = vsel %vm3120, %v7220, %v5877
  %v7285 = vsel %vm3120, %v7221, %v5879
  %v7286 = vsel %vm3120, %v7222, %v5881
  %v7287 = vsel %vm3120, %v7223, %v5883
  %v7288 = vsel %vm3120, %v7224, %v5885
  %v7289 = vsel %vm3120, %v7225, %v5887
  %v7290 = vsel %vm3120, %v7226, %v5889
  %v7291 = vsel %vm3120, %v7227, %v5891
  %v7292 = vsel %vm3120, %v7228, %v5893
  %v7293 = vsel %vm3120, %v7229, %v5895
  %v7294 = vsel %vm3120, %v7230, %v5897
  %v7295 = vsel %vm3120, %v7231, %v5899
  %v7296 = vsel %vm3120, %v7232, %v5901
  %v7297 = vsel %vm3120, %v7233, %v5903
  %v7298 = vsel %vm3120, %v7234, %v5905
  %v7299 = vsel %vm3120, %v7235, %v5907
  %v7300 = vsel %vm3120, %v7236, %v5909
  %v7301 = vsel %vm3120, %v7237, %v5911
  %v7302 = vsel %vm3120, %v7238, %v5913
  %v7303 = vsel %vm3120, %v7239, %v5915
  %v7304 = vsel %vm3120, %v7240, %v5917
  %v7305 = vsel %vm3120, %v7241, %v5919
  %v7306 = vsel %vm3120, %v7242, %v5921
  %v7307 = vsel %vm3120, %v7243, %v5923
  %v7308 = vsel %vm3120, %v7244, %v5925
  %v7309 = vsel %vm3120, %v7245, %v5927
  %v7310 = vsel %vm3120, %v7246, %v5929
  %v7311 = vsel %vm3120, %v7247, %v5931
  %v7312 = vsel %vm3120, %v7248, %v5933
  %v7313 = vsel %vm3120, %v7249, %v5935
  %v7314 = vsel %vm3120, %v7250, %v5937
  %v7315 = vsel %vm3120, %v7251, %v5939
  %v7316 = vsel %vm3120, %v7252, %v5941
  %v7317 = vsel %vm3120, %v7253, %v5943
  %v7318 = vsel %vm3120, %v7254, %v5945
  %v7319 = vsel %vm3120, %v7255, %v5947
  %v7320 = vsel %vm3120, %v7256, %v5949
  %v7321 = vsel %vm3120, %v7257, %v5951
  %v7322 = vsel %vm3120, %v7258, %v5953
  %v7323 = vsel %vm3120, %v7259, %v5955
  %v7324 = vsel %vm3120, %v7260, %v5957
  %v7325 = vsel %vm3120, %v7261, %v5959
  %v7326 = vsel %vm3120, %v7262, %v5961
  %v7327 = vsel %vm3120, %v7263, %v5963
  %v7328 = vsel %vm3120, %v7264, %v5965
  %v7329 = vsel %vm3120, %v7265, %v5967
  %v7330 = vsel %vm3120, %v7266, %v5969
  %v7331 = vsel %vm3120, %v7267, %v5971
  %v7332 = vsel %vm3120, %v7268, %v5973
  %v7333 = vsel %vm3120, %v7269, %v5975
  %v7334 = vsel %vm3120, %v7270, %v5977
  %v7335 = vsel %vm3120, %v7271, %v5979
  %v7336 = vsel %vm3120, %v7272, %v5981
  %v7337 = vsel %vm3120, %v7273, %v5983
  %v7338 = vsel %vm3120, %v7274, %v5985
  %v7339 = vsel %vm3120, %v7275, %v5987
  %v7340 = vsel %vm3120, %v7276, %v5989
  %v7341 = vsel %vm3120, %v7277, %v5991
  %v7342 = vsel %vm3120, %v7278, %v5993
  %v7343 = vsel %vm3120, %v7279, %v5995
  %v7344 = vsel %vm3120, %v7280, %v5997
  %v7345 = vsel %vm3120, %v7281, %v5999
  %v7346 = vsel %vm3120, %v7282, %v6001
  %v7347 = vsel %vm3120, %v7283, %v6003
  %v7348 = vsel %vm3185, %v7284, %v6133
  %v7349 = vsel %vm3185, %v7285, %v6135
  %v7350 = vsel %vm3185, %v7286, %v6137
  %v7351 = vsel %vm3185, %v7287, %v6139
  %v7352 = vsel %vm3185, %v7288, %v6141
  %v7353 = vsel %vm3185, %v7289, %v6143
  %v7354 = vsel %vm3185, %v7290, %v6145
  %v7355 = vsel %vm3185, %v7291, %v6147
  %v7356 = vsel %vm3185, %v7292, %v6149
  %v7357 = vsel %vm3185, %v7293, %v6151
  %v7358 = vsel %vm3185, %v7294, %v6153
  %v7359 = vsel %vm3185, %v7295, %v6155
  %v7360 = vsel %vm3185, %v7296, %v6157
  %v7361 = vsel %vm3185, %v7297, %v6159
  %v7362 = vsel %vm3185, %v7298, %v6161
  %v7363 = vsel %vm3185, %v7299, %v6163
  %v7364 = vsel %vm3185, %v7300, %v6165
  %v7365 = vsel %vm3185, %v7301, %v6167
  %v7366 = vsel %vm3185, %v7302, %v6169
  %v7367 = vsel %vm3185, %v7303, %v6171
  %v7368 = vsel %vm3185, %v7304, %v6173
  %v7369 = vsel %vm3185, %v7305, %v6175
  %v7370 = vsel %vm3185, %v7306, %v6177
  %v7371 = vsel %vm3185, %v7307, %v6179
  %v7372 = vsel %vm3185, %v7308, %v6181
  %v7373 = vsel %vm3185, %v7309, %v6183
  %v7374 = vsel %vm3185, %v7310, %v6185
  %v7375 = vsel %vm3185, %v7311, %v6187
  %v7376 = vsel %vm3185, %v7312, %v6189
  %v7377 = vsel %vm3185, %v7313, %v6191
  %v7378 = vsel %vm3185, %v7314, %v6193
  %v7379 = vsel %vm3185, %v7315, %v6195
  %v7380 = vsel %vm3185, %v7316, %v6197
  %v7381 = vsel %vm3185, %v7317, %v6199
  %v7382 = vsel %vm3185, %v7318, %v6201
  %v7383 = vsel %vm3185, %v7319, %v6203
  %v7384 = vsel %vm3185, %v7320, %v6205
  %v7385 = vsel %vm3185, %v7321, %v6207
  %v7386 = vsel %vm3185, %v7322, %v6209
  %v7387 = vsel %vm3185, %v7323, %v6211
  %v7388 = vsel %vm3185, %v7324, %v6213
  %v7389 = vsel %vm3185, %v7325, %v6215
  %v7390 = vsel %vm3185, %v7326, %v6217
  %v7391 = vsel %vm3185, %v7327, %v6219
  %v7392 = vsel %vm3185, %v7328, %v6221
  %v7393 = vsel %vm3185, %v7329, %v6223
  %v7394 = vsel %vm3185, %v7330, %v6225
  %v7395 = vsel %vm3185, %v7331, %v6227
  %v7396 = vsel %vm3185, %v7332, %v6229
  %v7397 = vsel %vm3185, %v7333, %v6231
  %v7398 = vsel %vm3185, %v7334, %v6233
  %v7399 = vsel %vm3185, %v7335, %v6235
  %v7400 = vsel %vm3185, %v7336, %v6237
  %v7401 = vsel %vm3185, %v7337, %v6239
  %v7402 = vsel %vm3185, %v7338, %v6241
  %v7403 = vsel %vm3185, %v7339, %v6243
  %v7404 = vsel %vm3185, %v7340, %v6245
  %v7405 = vsel %vm3185, %v7341, %v6247
  %v7406 = vsel %vm3185, %v7342, %v6249
  %v7407 = vsel %vm3185, %v7343, %v6251
  %v7408 = vsel %vm3185, %v7344, %v6253
  %v7409 = vsel %vm3185, %v7345, %v6255
  %v7410 = vsel %vm3185, %v7346, %v6257
  %v7411 = vsel %vm3185, %v7347, %v6259
  %v7412 = vsel %vm3250, %v7348, %v6389
  %v7413 = vsel %vm3250, %v7349, %v6391
  %v7414 = vsel %vm3250, %v7350, %v6393
  %v7415 = vsel %vm3250, %v7351, %v6395
  %v7416 = vsel %vm3250, %v7352, %v6397
  %v7417 = vsel %vm3250, %v7353, %v6399
  %v7418 = vsel %vm3250, %v7354, %v6401
  %v7419 = vsel %vm3250, %v7355, %v6403
  %v7420 = vsel %vm3250, %v7356, %v6405
  %v7421 = vsel %vm3250, %v7357, %v6407
  %v7422 = vsel %vm3250, %v7358, %v6409
  %v7423 = vsel %vm3250, %v7359, %v6411
  %v7424 = vsel %vm3250, %v7360, %v6413
  %v7425 = vsel %vm3250, %v7361, %v6415
  %v7426 = vsel %vm3250, %v7362, %v6417
  %v7427 = vsel %vm3250, %v7363, %v6419
  %v7428 = vsel %vm3250, %v7364, %v6421
  %v7429 = vsel %vm3250, %v7365, %v6423
  %v7430 = vsel %vm3250, %v7366, %v6425
  %v7431 = vsel %vm3250, %v7367, %v6427
  %v7432 = vsel %vm3250, %v7368, %v6429
  %v7433 = vsel %vm3250, %v7369, %v6431
  %v7434 = vsel %vm3250, %v7370, %v6433
  %v7435 = vsel %vm3250, %v7371, %v6435
  %v7436 = vsel %vm3250, %v7372, %v6437
  %v7437 = vsel %vm3250, %v7373, %v6439
  %v7438 = vsel %vm3250, %v7374, %v6441
  %v7439 = vsel %vm3250, %v7375, %v6443
  %v7440 = vsel %vm3250, %v7376, %v6445
  %v7441 = vsel %vm3250, %v7377, %v6447
  %v7442 = vsel %vm3250, %v7378, %v6449
  %v7443 = vsel %vm3250, %v7379, %v6451
  %v7444 = vsel %vm3250, %v7380, %v6453
  %v7445 = vsel %vm3250, %v7381, %v6455
  %v7446 = vsel %vm3250, %v7382, %v6457
  %v7447 = vsel %vm3250, %v7383, %v6459
  %v7448 = vsel %vm3250, %v7384, %v6461
  %v7449 = vsel %vm3250, %v7385, %v6463
  %v7450 = vsel %vm3250, %v7386, %v6465
  %v7451 = vsel %vm3250, %v7387, %v6467
  %v7452 = vsel %vm3250, %v7388, %v6469
  %v7453 = vsel %vm3250, %v7389, %v6471
  %v7454 = vsel %vm3250, %v7390, %v6473
  %v7455 = vsel %vm3250, %v7391, %v6475
  %v7456 = vsel %vm3250, %v7392, %v6477
  %v7457 = vsel %vm3250, %v7393, %v6479
  %v7458 = vsel %vm3250, %v7394, %v6481
  %v7459 = vsel %vm3250, %v7395, %v6483
  %v7460 = vsel %vm3250, %v7396, %v6485
  %v7461 = vsel %vm3250, %v7397, %v6487
  %v7462 = vsel %vm3250, %v7398, %v6489
  %v7463 = vsel %vm3250, %v7399, %v6491
  %v7464 = vsel %vm3250, %v7400, %v6493
  %v7465 = vsel %vm3250, %v7401, %v6495
  %v7466 = vsel %vm3250, %v7402, %v6497
  %v7467 = vsel %vm3250, %v7403, %v6499
  %v7468 = vsel %vm3250, %v7404, %v6501
  %v7469 = vsel %vm3250, %v7405, %v6503
  %v7470 = vsel %vm3250, %v7406, %v6505
  %v7471 = vsel %vm3250, %v7407, %v6507
  %v7472 = vsel %vm3250, %v7408, %v6509
  %v7473 = vsel %vm3250, %v7409, %v6511
  %v7474 = vsel %vm3250, %v7410, %v6513
  %v7475 = vsel %vm3250, %v7411, %v6515
  %v7476 = vsel %vm3315, %v7412, %v6645
  %v7477 = vsel %vm3315, %v7413, %v6647
  %v7478 = vsel %vm3315, %v7414, %v6649
  %v7479 = vsel %vm3315, %v7415, %v6651
  %v7480 = vsel %vm3315, %v7416, %v6653
  %v7481 = vsel %vm3315, %v7417, %v6655
  %v7482 = vsel %vm3315, %v7418, %v6657
  %v7483 = vsel %vm3315, %v7419, %v6659
  %v7484 = vsel %vm3315, %v7420, %v6661
  %v7485 = vsel %vm3315, %v7421, %v6663
  %v7486 = vsel %vm3315, %v7422, %v6665
  %v7487 = vsel %vm3315, %v7423, %v6667
  %v7488 = vsel %vm3315, %v7424, %v6669
  %v7489 = vsel %vm3315, %v7425, %v6671
  %v7490 = vsel %vm3315, %v7426, %v6673
  %v7491 = vsel %vm3315, %v7427, %v6675
  %v7492 = vsel %vm3315, %v7428, %v6677
  %v7493 = vsel %vm3315, %v7429, %v6679
  %v7494 = vsel %vm3315, %v7430, %v6681
  %v7495 = vsel %vm3315, %v7431, %v6683
  %v7496 = vsel %vm3315, %v7432, %v6685
  %v7497 = vsel %vm3315, %v7433, %v6687
  %v7498 = vsel %vm3315, %v7434, %v6689
  %v7499 = vsel %vm3315, %v7435, %v6691
  %v7500 = vsel %vm3315, %v7436, %v6693
  %v7501 = vsel %vm3315, %v7437, %v6695
  %v7502 = vsel %vm3315, %v7438, %v6697
  %v7503 = vsel %vm3315, %v7439, %v6699
  %v7504 = vsel %vm3315, %v7440, %v6701
  %v7505 = vsel %vm3315, %v7441, %v6703
  %v7506 = vsel %vm3315, %v7442, %v6705
  %v7507 = vsel %vm3315, %v7443, %v6707
  %v7508 = vsel %vm3315, %v7444, %v6709
  %v7509 = vsel %vm3315, %v7445, %v6711
  %v7510 = vsel %vm3315, %v7446, %v6713
  %v7511 = vsel %vm3315, %v7447, %v6715
  %v7512 = vsel %vm3315, %v7448, %v6717
  %v7513 = vsel %vm3315, %v7449, %v6719
  %v7514 = vsel %vm3315, %v7450, %v6721
  %v7515 = vsel %vm3315, %v7451, %v6723
  %v7516 = vsel %vm3315, %v7452, %v6725
  %v7517 = vsel %vm3315, %v7453, %v6727
  %v7518 = vsel %vm3315, %v7454, %v6729
  %v7519 = vsel %vm3315, %v7455, %v6731
  %v7520 = vsel %vm3315, %v7456, %v6733
  %v7521 = vsel %vm3315, %v7457, %v6735
  %v7522 = vsel %vm3315, %v7458, %v6737
  %v7523 = vsel %vm3315, %v7459, %v6739
  %v7524 = vsel %vm3315, %v7460, %v6741
  %v7525 = vsel %vm3315, %v7461, %v6743
  %v7526 = vsel %vm3315, %v7462, %v6745
  %v7527 = vsel %vm3315, %v7463, %v6747
  %v7528 = vsel %vm3315, %v7464, %v6749
  %v7529 = vsel %vm3315, %v7465, %v6751
  %v7530 = vsel %vm3315, %v7466, %v6753
  %v7531 = vsel %vm3315, %v7467, %v6755
  %v7532 = vsel %vm3315, %v7468, %v6757
  %v7533 = vsel %vm3315, %v7469, %v6759
  %v7534 = vsel %vm3315, %v7470, %v6761
  %v7535 = vsel %vm3315, %v7471, %v6763
  %v7536 = vsel %vm3315, %v7472, %v6765
  %v7537 = vsel %vm3315, %v7473, %v6767
  %v7538 = vsel %vm3315, %v7474, %v6769
  %v7539 = vsel %vm3315, %v7475, %v6771
  %v7540 = vsel %vm3380, %v7476, %v6901
  %v7541 = vsel %vm3380, %v7477, %v6903
  %v7542 = vsel %vm3380, %v7478, %v6905
  %v7543 = vsel %vm3380, %v7479, %v6907
  %v7544 = vsel %vm3380, %v7480, %v6909
  %v7545 = vsel %vm3380, %v7481, %v6911
  %v7546 = vsel %vm3380, %v7482, %v6913
  %v7547 = vsel %vm3380, %v7483, %v6915
  %v7548 = vsel %vm3380, %v7484, %v6917
  %v7549 = vsel %vm3380, %v7485, %v6919
  %v7550 = vsel %vm3380, %v7486, %v6921
  %v7551 = vsel %vm3380, %v7487, %v6923
  %v7552 = vsel %vm3380, %v7488, %v6925
  %v7553 = vsel %vm3380, %v7489, %v6927
  %v7554 = vsel %vm3380, %v7490, %v6929
  %v7555 = vsel %vm3380, %v7491, %v6931
  %v7556 = vsel %vm3380, %v7492, %v6933
  %v7557 = vsel %vm3380, %v7493, %v6935
  %v7558 = vsel %vm3380, %v7494, %v6937
  %v7559 = vsel %vm3380, %v7495, %v6939
  %v7560 = vsel %vm3380, %v7496, %v6941
  %v7561 = vsel %vm3380, %v7497, %v6943
  %v7562 = vsel %vm3380, %v7498, %v6945
  %v7563 = vsel %vm3380, %v7499, %v6947
  %v7564 = vsel %vm3380, %v7500, %v6949
  %v7565 = vsel %vm3380, %v7501, %v6951
  %v7566 = vsel %vm3380, %v7502, %v6953
  %v7567 = vsel %vm3380, %v7503, %v6955
  %v7568 = vsel %vm3380, %v7504, %v6957
  %v7569 = vsel %vm3380, %v7505, %v6959
  %v7570 = vsel %vm3380, %v7506, %v6961
  %v7571 = vsel %vm3380, %v7507, %v6963
  %v7572 = vsel %vm3380, %v7508, %v6965
  %v7573 = vsel %vm3380, %v7509, %v6967
  %v7574 = vsel %vm3380, %v7510, %v6969
  %v7575 = vsel %vm3380, %v7511, %v6971
  %v7576 = vsel %vm3380, %v7512, %v6973
  %v7577 = vsel %vm3380, %v7513, %v6975
  %v7578 = vsel %vm3380, %v7514, %v6977
  %v7579 = vsel %vm3380, %v7515, %v6979
  %v7580 = vsel %vm3380, %v7516, %v6981
  %v7581 = vsel %vm3380, %v7517, %v6983
  %v7582 = vsel %vm3380, %v7518, %v6985
  %v7583 = vsel %vm3380, %v7519, %v6987
  %v7584 = vsel %vm3380, %v7520, %v6989
  %v7585 = vsel %vm3380, %v7521, %v6991
  %v7586 = vsel %vm3380, %v7522, %v6993
  %v7587 = vsel %vm3380, %v7523, %v6995
  %v7588 = vsel %vm3380, %v7524, %v6997
  %v7589 = vsel %vm3380, %v7525, %v6999
  %v7590 = vsel %vm3380, %v7526, %v7001
  %v7591 = vsel %vm3380, %v7527, %v7003
  %v7592 = vsel %vm3380, %v7528, %v7005
  %v7593 = vsel %vm3380, %v7529, %v7007
  %v7594 = vsel %vm3380, %v7530, %v7009
  %v7595 = vsel %vm3380, %v7531, %v7011
  %v7596 = vsel %vm3380, %v7532, %v7013
  %v7597 = vsel %vm3380, %v7533, %v7015
  %v7598 = vsel %vm3380, %v7534, %v7017
  %v7599 = vsel %vm3380, %v7535, %v7019
  %v7600 = vsel %vm3380, %v7536, %v7021
  %v7601 = vsel %vm3380, %v7537, %v7023
  %v7602 = vsel %vm3380, %v7538, %v7025
  %v7603 = vsel %vm3380, %v7539, %v7027
  %v7604 = vld [vmem:[%s4] sm:$0xff]
  %v7605 = vld [vmem:[%s4 + $0x8] sm:$0xff]
  %v7606 = vld [vmem:[%s4 + $0x10] sm:$0xff]
  %v7607 = vld [vmem:[%s4 + $0x18] sm:$0xff]
  %v7608 = vld [vmem:[%s4 + $0x20] sm:$0xf]
  %v7610 = vsel %vm3450, %v7540, 0
  %v7613 = vsel %vm3450, %v7541, 0
  %v7616 = vsel %vm3450, %v7542, 0
  %v7619 = vsel %vm3450, %v7543, 0
  %v7622 = vsel %vm3450, %v7544, 0
  %v7625 = vsel %vm3450, %v7545, 0
  %v7628 = vsel %vm3450, %v7546, 0
  %v7631 = vsel %vm3450, %v7547, 0
  %v7634 = vsel %vm3450, %v7548, 0
  %v7637 = vsel %vm3450, %v7549, 0
  %v7640 = vsel %vm3450, %v7550, 0
  %v7643 = vsel %vm3450, %v7551, 0
  %v7646 = vsel %vm3450, %v7552, 0
  %v7649 = vsel %vm3450, %v7553, 0
  %v7652 = vsel %vm3450, %v7554, 0
  %v7655 = vsel %vm3450, %v7555, 0
  %v7658 = vsel %vm3450, %v7556, 0
  %v7661 = vsel %vm3450, %v7557, 0
  %v7664 = vsel %vm3450, %v7558, 0
  %v7667 = vsel %vm3450, %v7559, 0
  %v7670 = vsel %vm3450, %v7560, 0
  %v7673 = vsel %vm3450, %v7561, 0
  %v7676 = vsel %vm3450, %v7562, 0
  %v7679 = vsel %vm3450, %v7563, 0
  %v7682 = vsel %vm3450, %v7564, 0
  %v7685 = vsel %vm3450, %v7565, 0
  %v7688 = vsel %vm3450, %v7566, 0
  %v7691 = vsel %vm3450, %v7567, 0
  %v7694 = vsel %vm3450, %v7568, 0
  %v7697 = vsel %vm3450, %v7569, 0
  %v7700 = vsel %vm3450, %v7570, 0
  %v7703 = vsel %vm3450, %v7571, 0
  %v7706 = vsel %vm3450, %v7572, 0
  %v7709 = vsel %vm3450, %v7573, 0
  %v7712 = vsel %vm3450, %v7574, 0
  %v7715 = vsel %vm3450, %v7575, 0
  %v7718 = vsel %vm3450, %v7576, 0
  %v7721 = vsel %vm3450, %v7577, 0
  %v7724 = vsel %vm3450, %v7578, 0
  %v7727 = vsel %vm3450, %v7579, 0
  %v7730 = vsel %vm3450, %v7580, 0
  %v7733 = vsel %vm3450, %v7581, 0
  %v7736 = vsel %vm3450, %v7582, 0
  %v7739 = vsel %vm3450, %v7583, 0
  %v7742 = vsel %vm3450, %v7584, 0
  %v7745 = vsel %vm3450, %v7585, 0
  %v7748 = vsel %vm3450, %v7586, 0
  %v7751 = vsel %vm3450, %v7587, 0
  %v7754 = vsel %vm3450, %v7588, 0
  %v7757 = vsel %vm3450, %v7589, 0
  %v7760 = vsel %vm3450, %v7590, 0
  %v7763 = vsel %vm3450, %v7591, 0
  %v7766 = vsel %vm3450, %v7592, 0
  %v7769 = vsel %vm3450, %v7593, 0
  %v7772 = vsel %vm3450, %v7594, 0
  %v7775 = vsel %vm3450, %v7595, 0
  %v7778 = vsel %vm3450, %v7596, 0
  %v7781 = vsel %vm3450, %v7597, 0
  %v7784 = vsel %vm3450, %v7598, 0
  %v7787 = vsel %vm3450, %v7599, 0
  %v7790 = vsel %vm3450, %v7600, 0
  %v7793 = vsel %vm3450, %v7601, 0
  %v7796 = vsel %vm3450, %v7602, 0
  %v7799 = vsel %vm3450, %v7603, 0
  %v7802 = vsel %vm3643, %v7608, 0
  %7804 = vmatpush.msra.mxu0 0.0
  %7805 = vmatpush.msra.mxu0 0.0
  %7806 = vmatpush.msra.mxu0 0.0
  %7807 = vmatpush.msra.mxu0 0.0
  %7808 = vmatpush.msra.mxu0 0.0
  %7809 = vmatpush.msra.mxu0 0.0
  %7810 = vmatpush.msra.mxu0 0.0
  %7811 = vmatpush.msra.mxu0 0.0
  %7812 = vmatpush.msra.mxu0 0.0
  %7813 = vmatpush.msra.mxu0 0.0
  %7814 = vmatpush.msra.mxu0 0.0
  %7815 = vmatpush.msra.mxu0 %v7802
  %7816 = vmatpush.msra.mxu0 %v7607
  %7817 = vmatpush.msra.mxu0 %v7606
  %7818 = vmatpush.msra.mxu0 %v7605
  %7819 = vmatpush.msra.mxu0 %v7604
  %7820 = vmatmul.f32.gmra.mxu0 %v7610
  %v7821 = vpop.f32.mrf.mxu0
  %v7822 = vadd.f32 0.0, %v7821
  %7823 = vmatmul.f32.gmra.mxu0 %v7613
  %v7824 = vpop.f32.mrf.mxu0
  %v7825 = vadd.f32 0.0, %v7824
  %7826 = vmatmul.f32.gmra.mxu0 %v7616
  %v7827 = vpop.f32.mrf.mxu0
  %v7828 = vadd.f32 0.0, %v7827
  %7829 = vmatmul.f32.gmra.mxu0 %v7619
  %v7830 = vpop.f32.mrf.mxu0
  %v7831 = vadd.f32 0.0, %v7830
  %7832 = vmatmul.f32.gmra.mxu0 %v7622
  %v7833 = vpop.f32.mrf.mxu0
  %v7834 = vadd.f32 0.0, %v7833
  %7835 = vmatmul.f32.gmra.mxu0 %v7625
  %v7836 = vpop.f32.mrf.mxu0
  %v7837 = vadd.f32 0.0, %v7836
  %7838 = vmatmul.f32.gmra.mxu0 %v7628
  %v7839 = vpop.f32.mrf.mxu0
  %v7840 = vadd.f32 0.0, %v7839
  %7841 = vmatmul.f32.gmra.mxu0 %v7631
  %v7842 = vpop.f32.mrf.mxu0
  %v7843 = vadd.f32 0.0, %v7842
  %7844 = vmatmul.f32.gmra.mxu0 %v7634
  %v7845 = vpop.f32.mrf.mxu0
  %v7846 = vadd.f32 0.0, %v7845
  %7847 = vmatmul.f32.gmra.mxu0 %v7637
  %v7848 = vpop.f32.mrf.mxu0
  %v7849 = vadd.f32 0.0, %v7848
  %7850 = vmatmul.f32.gmra.mxu0 %v7640
  %v7851 = vpop.f32.mrf.mxu0
  %v7852 = vadd.f32 0.0, %v7851
  %7853 = vmatmul.f32.gmra.mxu0 %v7643
  %v7854 = vpop.f32.mrf.mxu0
  %v7855 = vadd.f32 0.0, %v7854
  %7856 = vmatmul.f32.gmra.mxu0 %v7646
  %v7857 = vpop.f32.mrf.mxu0
  %v7858 = vadd.f32 0.0, %v7857
  %7859 = vmatmul.f32.gmra.mxu0 %v7649
  %v7860 = vpop.f32.mrf.mxu0
  %v7861 = vadd.f32 0.0, %v7860
  %7862 = vmatmul.f32.gmra.mxu0 %v7652
  %v7863 = vpop.f32.mrf.mxu0
  %v7864 = vadd.f32 0.0, %v7863
  %7865 = vmatmul.f32.gmra.mxu0 %v7655
  %v7866 = vpop.f32.mrf.mxu0
  %v7867 = vadd.f32 0.0, %v7866
  %7868 = vmatmul.f32.gmra.mxu0 %v7658
  %v7869 = vpop.f32.mrf.mxu0
  %v7870 = vadd.f32 0.0, %v7869
  %7871 = vmatmul.f32.gmra.mxu0 %v7661
  %v7872 = vpop.f32.mrf.mxu0
  %v7873 = vadd.f32 0.0, %v7872
  %7874 = vmatmul.f32.gmra.mxu0 %v7664
  %v7875 = vpop.f32.mrf.mxu0
  %v7876 = vadd.f32 0.0, %v7875
  %7877 = vmatmul.f32.gmra.mxu0 %v7667
  %v7878 = vpop.f32.mrf.mxu0
  %v7879 = vadd.f32 0.0, %v7878
  %7880 = vmatmul.f32.gmra.mxu0 %v7670
  %v7881 = vpop.f32.mrf.mxu0
  %v7882 = vadd.f32 0.0, %v7881
  %7883 = vmatmul.f32.gmra.mxu0 %v7673
  %v7884 = vpop.f32.mrf.mxu0
  %v7885 = vadd.f32 0.0, %v7884
  %7886 = vmatmul.f32.gmra.mxu0 %v7676
  %v7887 = vpop.f32.mrf.mxu0
  %v7888 = vadd.f32 0.0, %v7887
  %7889 = vmatmul.f32.gmra.mxu0 %v7679
  %v7890 = vpop.f32.mrf.mxu0
  %v7891 = vadd.f32 0.0, %v7890
  %7892 = vmatmul.f32.gmra.mxu0 %v7682
  %v7893 = vpop.f32.mrf.mxu0
  %v7894 = vadd.f32 0.0, %v7893
  %7895 = vmatmul.f32.gmra.mxu0 %v7685
  %v7896 = vpop.f32.mrf.mxu0
  %v7897 = vadd.f32 0.0, %v7896
  %7898 = vmatmul.f32.gmra.mxu0 %v7688
  %v7899 = vpop.f32.mrf.mxu0
  %v7900 = vadd.f32 0.0, %v7899
  %7901 = vmatmul.f32.gmra.mxu0 %v7691
  %v7902 = vpop.f32.mrf.mxu0
  %v7903 = vadd.f32 0.0, %v7902
  %7904 = vmatmul.f32.gmra.mxu0 %v7694
  %v7905 = vpop.f32.mrf.mxu0
  %v7906 = vadd.f32 0.0, %v7905
  %7907 = vmatmul.f32.gmra.mxu0 %v7697
  %v7908 = vpop.f32.mrf.mxu0
  %v7909 = vadd.f32 0.0, %v7908
  %7910 = vmatmul.f32.gmra.mxu0 %v7700
  %v7911 = vpop.f32.mrf.mxu0
  %v7912 = vadd.f32 0.0, %v7911
  %7913 = vmatmul.f32.gmra.mxu0 %v7703
  %v7914 = vpop.f32.mrf.mxu0
  %v7915 = vadd.f32 0.0, %v7914
  %7916 = vmatmul.f32.gmra.mxu0 %v7706
  %v7917 = vpop.f32.mrf.mxu0
  %v7918 = vadd.f32 0.0, %v7917
  %7919 = vmatmul.f32.gmra.mxu0 %v7709
  %v7920 = vpop.f32.mrf.mxu0
  %v7921 = vadd.f32 0.0, %v7920
  %7922 = vmatmul.f32.gmra.mxu0 %v7712
  %v7923 = vpop.f32.mrf.mxu0
  %v7924 = vadd.f32 0.0, %v7923
  %7925 = vmatmul.f32.gmra.mxu0 %v7715
  %v7926 = vpop.f32.mrf.mxu0
  %v7927 = vadd.f32 0.0, %v7926
  %7928 = vmatmul.f32.gmra.mxu0 %v7718
  %v7929 = vpop.f32.mrf.mxu0
  %v7930 = vadd.f32 0.0, %v7929
  %7931 = vmatmul.f32.gmra.mxu0 %v7721
  %v7932 = vpop.f32.mrf.mxu0
  %v7933 = vadd.f32 0.0, %v7932
  %7934 = vmatmul.f32.gmra.mxu0 %v7724
  %v7935 = vpop.f32.mrf.mxu0
  %v7936 = vadd.f32 0.0, %v7935
  %7937 = vmatmul.f32.gmra.mxu0 %v7727
  %v7938 = vpop.f32.mrf.mxu0
  %v7939 = vadd.f32 0.0, %v7938
  %7940 = vmatmul.f32.gmra.mxu0 %v7730
  %v7941 = vpop.f32.mrf.mxu0
  %v7942 = vadd.f32 0.0, %v7941
  %7943 = vmatmul.f32.gmra.mxu0 %v7733
  %v7944 = vpop.f32.mrf.mxu0
  %v7945 = vadd.f32 0.0, %v7944
  %7946 = vmatmul.f32.gmra.mxu0 %v7736
  %v7947 = vpop.f32.mrf.mxu0
  %v7948 = vadd.f32 0.0, %v7947
  %7949 = vmatmul.f32.gmra.mxu0 %v7739
  %v7950 = vpop.f32.mrf.mxu0
  %v7951 = vadd.f32 0.0, %v7950
  %7952 = vmatmul.f32.gmra.mxu0 %v7742
  %v7953 = vpop.f32.mrf.mxu0
  %v7954 = vadd.f32 0.0, %v7953
  %7955 = vmatmul.f32.gmra.mxu0 %v7745
  %v7956 = vpop.f32.mrf.mxu0
  %v7957 = vadd.f32 0.0, %v7956
  %7958 = vmatmul.f32.gmra.mxu0 %v7748
  %v7959 = vpop.f32.mrf.mxu0
  %v7960 = vadd.f32 0.0, %v7959
  %7961 = vmatmul.f32.gmra.mxu0 %v7751
  %v7962 = vpop.f32.mrf.mxu0
  %v7963 = vadd.f32 0.0, %v7962
  %7964 = vmatmul.f32.gmra.mxu0 %v7754
  %v7965 = vpop.f32.mrf.mxu0
  %v7966 = vadd.f32 0.0, %v7965
  %7967 = vmatmul.f32.gmra.mxu0 %v7757
  %v7968 = vpop.f32.mrf.mxu0
  %v7969 = vadd.f32 0.0, %v7968
  %7970 = vmatmul.f32.gmra.mxu0 %v7760
  %v7971 = vpop.f32.mrf.mxu0
  %v7972 = vadd.f32 0.0, %v7971
  %7973 = vmatmul.f32.gmra.mxu0 %v7763
  %v7974 = vpop.f32.mrf.mxu0
  %v7975 = vadd.f32 0.0, %v7974
  %7976 = vmatmul.f32.gmra.mxu0 %v7766
  %v7977 = vpop.f32.mrf.mxu0
  %v7978 = vadd.f32 0.0, %v7977
  %7979 = vmatmul.f32.gmra.mxu0 %v7769
  %v7980 = vpop.f32.mrf.mxu0
  %v7981 = vadd.f32 0.0, %v7980
  %7982 = vmatmul.f32.gmra.mxu0 %v7772
  %v7983 = vpop.f32.mrf.mxu0
  %v7984 = vadd.f32 0.0, %v7983
  %7985 = vmatmul.f32.gmra.mxu0 %v7775
  %v7986 = vpop.f32.mrf.mxu0
  %v7987 = vadd.f32 0.0, %v7986
  %7988 = vmatmul.f32.gmra.mxu0 %v7778
  %v7989 = vpop.f32.mrf.mxu0
  %v7990 = vadd.f32 0.0, %v7989
  %7991 = vmatmul.f32.gmra.mxu0 %v7781
  %v7992 = vpop.f32.mrf.mxu0
  %v7993 = vadd.f32 0.0, %v7992
  %7994 = vmatmul.f32.gmra.mxu0 %v7784
  %v7995 = vpop.f32.mrf.mxu0
  %v7996 = vadd.f32 0.0, %v7995
  %7997 = vmatmul.f32.gmra.mxu0 %v7787
  %v7998 = vpop.f32.mrf.mxu0
  %v7999 = vadd.f32 0.0, %v7998
  %8000 = vmatmul.f32.gmra.mxu0 %v7790
  %v8001 = vpop.f32.mrf.mxu0
  %v8002 = vadd.f32 0.0, %v8001
  %8003 = vmatmul.f32.gmra.mxu0 %v7793
  %v8004 = vpop.f32.mrf.mxu0
  %v8005 = vadd.f32 0.0, %v8004
  %8006 = vmatmul.f32.gmra.mxu0 %v7796
  %v8007 = vpop.f32.mrf.mxu0
  %v8008 = vadd.f32 0.0, %v8007
  %8009 = vmatmul.f32.gmra.mxu0 %v7799
  %v8010 = vpop.f32.mrf.mxu0
  %v8011 = vadd.f32 0.0, %v8010
  %8012 = vdwg.mxu0
  %v8013 = vsel %vm26, %v7822, 0.0
  %v8014 = vsel %vm26, %v7825, 0.0
  %v8015 = vadd.f32 %v8013, %v8014
  %v8016 = vsel %vm26, %v7828, 0.0
  %v8017 = vadd.f32 %v8015, %v8016
  %v8018 = vsel %vm26, %v7831, 0.0
  %v8019 = vadd.f32 %v8017, %v8018
  %v8020 = vsel %vm26, %v7834, 0.0
  %v8021 = vadd.f32 %v8019, %v8020
  %v8022 = vsel %vm26, %v7837, 0.0
  %v8023 = vadd.f32 %v8021, %v8022
  %v8024 = vsel %vm26, %v7840, 0.0
  %v8025 = vadd.f32 %v8023, %v8024
  %v8026 = vsel %vm26, %v7843, 0.0
  %v8027 = vadd.f32 %v8025, %v8026
  %v8028 = vsel %vm26, %v7846, 0.0
  %v8029 = vadd.f32 %v8027, %v8028
  %v8030 = vsel %vm26, %v7849, 0.0
  %v8031 = vadd.f32 %v8029, %v8030
  %v8032 = vsel %vm26, %v7852, 0.0
  %v8033 = vadd.f32 %v8031, %v8032
  %v8034 = vsel %vm26, %v7855, 0.0
  %v8035 = vadd.f32 %v8033, %v8034
  %v8036 = vsel %vm26, %v7858, 0.0
  %v8037 = vadd.f32 %v8035, %v8036
  %v8038 = vsel %vm26, %v7861, 0.0
  %v8039 = vadd.f32 %v8037, %v8038
  %v8040 = vsel %vm26, %v7864, 0.0
  %v8041 = vadd.f32 %v8039, %v8040
  %v8042 = vsel %vm26, %v7867, 0.0
  %v8043 = vadd.f32 %v8041, %v8042
  %v8044 = vsel %vm26, %v7870, 0.0
  %v8045 = vadd.f32 %v8043, %v8044
  %v8046 = vsel %vm26, %v7873, 0.0
  %v8047 = vadd.f32 %v8045, %v8046
  %v8048 = vsel %vm26, %v7876, 0.0
  %v8049 = vadd.f32 %v8047, %v8048
  %v8050 = vsel %vm26, %v7879, 0.0
  %v8051 = vadd.f32 %v8049, %v8050
  %v8052 = vsel %vm26, %v7882, 0.0
  %v8053 = vadd.f32 %v8051, %v8052
  %v8054 = vsel %vm26, %v7885, 0.0
  %v8055 = vadd.f32 %v8053, %v8054
  %v8056 = vsel %vm26, %v7888, 0.0
  %v8057 = vadd.f32 %v8055, %v8056
  %v8058 = vsel %vm26, %v7891, 0.0
  %v8059 = vadd.f32 %v8057, %v8058
  %v8060 = vsel %vm26, %v7894, 0.0
  %v8061 = vadd.f32 %v8059, %v8060
  %v8062 = vsel %vm26, %v7897, 0.0
  %v8063 = vadd.f32 %v8061, %v8062
  %v8064 = vsel %vm26, %v7900, 0.0
  %v8065 = vadd.f32 %v8063, %v8064
  %v8066 = vsel %vm26, %v7903, 0.0
  %v8067 = vadd.f32 %v8065, %v8066
  %v8068 = vsel %vm26, %v7906, 0.0
  %v8069 = vadd.f32 %v8067, %v8068
  %v8070 = vsel %vm26, %v7909, 0.0
  %v8071 = vadd.f32 %v8069, %v8070
  %v8072 = vsel %vm26, %v7912, 0.0
  %v8073 = vadd.f32 %v8071, %v8072
  %v8074 = vsel %vm26, %v7915, 0.0
  %v8075 = vadd.f32 %v8073, %v8074
  %v8076 = vsel %vm26, %v7918, 0.0
  %v8077 = vadd.f32 %v8075, %v8076
  %v8078 = vsel %vm26, %v7921, 0.0
  %v8079 = vadd.f32 %v8077, %v8078
  %v8080 = vsel %vm26, %v7924, 0.0
  %v8081 = vadd.f32 %v8079, %v8080
  %v8082 = vsel %vm26, %v7927, 0.0
  %v8083 = vadd.f32 %v8081, %v8082
  %v8084 = vsel %vm26, %v7930, 0.0
  %v8085 = vadd.f32 %v8083, %v8084
  %v8086 = vsel %vm26, %v7933, 0.0
  %v8087 = vadd.f32 %v8085, %v8086
  %v8088 = vsel %vm26, %v7936, 0.0
  %v8089 = vadd.f32 %v8087, %v8088
  %v8090 = vsel %vm26, %v7939, 0.0
  %v8091 = vadd.f32 %v8089, %v8090
  %v8092 = vsel %vm26, %v7942, 0.0
  %v8093 = vadd.f32 %v8091, %v8092
  %v8094 = vsel %vm26, %v7945, 0.0
  %v8095 = vadd.f32 %v8093, %v8094
  %v8096 = vsel %vm26, %v7948, 0.0
  %v8097 = vadd.f32 %v8095, %v8096
  %v8098 = vsel %vm26, %v7951, 0.0
  %v8099 = vadd.f32 %v8097, %v8098
  %v8100 = vsel %vm26, %v7954, 0.0
  %v8101 = vadd.f32 %v8099, %v8100
  %v8102 = vsel %vm26, %v7957, 0.0
  %v8103 = vadd.f32 %v8101, %v8102
  %v8104 = vsel %vm26, %v7960, 0.0
  %v8105 = vadd.f32 %v8103, %v8104
  %v8106 = vsel %vm26, %v7963, 0.0
  %v8107 = vadd.f32 %v8105, %v8106
  %v8108 = vsel %vm26, %v7966, 0.0
  %v8109 = vadd.f32 %v8107, %v8108
  %v8110 = vsel %vm26, %v7969, 0.0
  %v8111 = vadd.f32 %v8109, %v8110
  %v8112 = vsel %vm26, %v7972, 0.0
  %v8113 = vadd.f32 %v8111, %v8112
  %v8114 = vsel %vm26, %v7975, 0.0
  %v8115 = vadd.f32 %v8113, %v8114
  %v8116 = vsel %vm26, %v7978, 0.0
  %v8117 = vadd.f32 %v8115, %v8116
  %v8118 = vsel %vm26, %v7981, 0.0
  %v8119 = vadd.f32 %v8117, %v8118
  %v8120 = vsel %vm26, %v7984, 0.0
  %v8121 = vadd.f32 %v8119, %v8120
  %v8122 = vsel %vm26, %v7987, 0.0
  %v8123 = vadd.f32 %v8121, %v8122
  %v8124 = vsel %vm26, %v7990, 0.0
  %v8125 = vadd.f32 %v8123, %v8124
  %v8126 = vsel %vm26, %v7993, 0.0
  %v8127 = vadd.f32 %v8125, %v8126
  %v8128 = vsel %vm26, %v7996, 0.0
  %v8129 = vadd.f32 %v8127, %v8128
  %v8130 = vsel %vm26, %v7999, 0.0
  %v8131 = vadd.f32 %v8129, %v8130
  %v8132 = vsel %vm26, %v8002, 0.0
  %v8133 = vadd.f32 %v8131, %v8132
  %v8134 = vsel %vm26, %v8005, 0.0
  %v8135 = vadd.f32 %v8133, %v8134
  %v8136 = vsel %vm26, %v8008, 0.0
  %v8137 = vadd.f32 %v8135, %v8136
  %v8138 = vsel %vm26, %v8011, 0.0
  %v8139 = vadd.f32 %v8137, %v8138
  %v8140 = vrot.slane %v8139, 4
  %v8141 = vadd.f32 %v8139, %v8140
  %v8142 = vrot.slane %v8141, 2
  %v8143 = vadd.f32 %v8141, %v8142
  %v8144 = vrot.slane %v8143, 1
  %v8145 = vadd.f32 %v8143, %v8144
  %v8146 = vmul.f32 %v7822, %v7822
  %v8147 = vmul.f32 %v7825, %v7825
  %v8148 = vmul.f32 %v7828, %v7828
  %v8149 = vmul.f32 %v7831, %v7831
  %v8150 = vmul.f32 %v7834, %v7834
  %v8151 = vmul.f32 %v7837, %v7837
  %v8152 = vmul.f32 %v7840, %v7840
  %v8153 = vmul.f32 %v7843, %v7843
  %v8154 = vmul.f32 %v7846, %v7846
  %v8155 = vmul.f32 %v7849, %v7849
  %v8156 = vmul.f32 %v7852, %v7852
  %v8157 = vmul.f32 %v7855, %v7855
  %v8158 = vmul.f32 %v7858, %v7858
  %v8159 = vmul.f32 %v7861, %v7861
  %v8160 = vmul.f32 %v7864, %v7864
  %v8161 = vmul.f32 %v7867, %v7867
  %v8162 = vmul.f32 %v7870, %v7870
  %v8163 = vmul.f32 %v7873, %v7873
  %v8164 = vmul.f32 %v7876, %v7876
  %v8165 = vmul.f32 %v7879, %v7879
  %v8166 = vmul.f32 %v7882, %v7882
  %v8167 = vmul.f32 %v7885, %v7885
  %v8168 = vmul.f32 %v7888, %v7888
  %v8169 = vmul.f32 %v7891, %v7891
  %v8170 = vmul.f32 %v7894, %v7894
  %v8171 = vmul.f32 %v7897, %v7897
  %v8172 = vmul.f32 %v7900, %v7900
  %v8173 = vmul.f32 %v7903, %v7903
  %v8174 = vmul.f32 %v7906, %v7906
  %v8175 = vmul.f32 %v7909, %v7909
  %v8176 = vmul.f32 %v7912, %v7912
  %v8177 = vmul.f32 %v7915, %v7915
  %v8178 = vmul.f32 %v7918, %v7918
  %v8179 = vmul.f32 %v7921, %v7921
  %v8180 = vmul.f32 %v7924, %v7924
  %v8181 = vmul.f32 %v7927, %v7927
  %v8182 = vmul.f32 %v7930, %v7930
  %v8183 = vmul.f32 %v7933, %v7933
  %v8184 = vmul.f32 %v7936, %v7936
  %v8185 = vmul.f32 %v7939, %v7939
  %v8186 = vmul.f32 %v7942, %v7942
  %v8187 = vmul.f32 %v7945, %v7945
  %v8188 = vmul.f32 %v7948, %v7948
  %v8189 = vmul.f32 %v7951, %v7951
  %v8190 = vmul.f32 %v7954, %v7954
  %v8191 = vmul.f32 %v7957, %v7957
  %v8192 = vmul.f32 %v7960, %v7960
  %v8193 = vmul.f32 %v7963, %v7963
  %v8194 = vmul.f32 %v7966, %v7966
  %v8195 = vmul.f32 %v7969, %v7969
  %v8196 = vmul.f32 %v7972, %v7972
  %v8197 = vmul.f32 %v7975, %v7975
  %v8198 = vmul.f32 %v7978, %v7978
  %v8199 = vmul.f32 %v7981, %v7981
  %v8200 = vmul.f32 %v7984, %v7984
  %v8201 = vmul.f32 %v7987, %v7987
  %v8202 = vmul.f32 %v7990, %v7990
  %v8203 = vmul.f32 %v7993, %v7993
  %v8204 = vmul.f32 %v7996, %v7996
  %v8205 = vmul.f32 %v7999, %v7999
  %v8206 = vmul.f32 %v8002, %v8002
  %v8207 = vmul.f32 %v8005, %v8005
  %v8208 = vmul.f32 %v8008, %v8008
  %v8209 = vmul.f32 %v8011, %v8011
  %v8210 = vsel %vm26, %v8146, 0.0
  %v8211 = vsel %vm26, %v8147, 0.0
  %v8212 = vadd.f32 %v8210, %v8211
  %v8213 = vsel %vm26, %v8148, 0.0
  %v8214 = vadd.f32 %v8212, %v8213
  %v8215 = vsel %vm26, %v8149, 0.0
  %v8216 = vadd.f32 %v8214, %v8215
  %v8217 = vsel %vm26, %v8150, 0.0
  %v8218 = vadd.f32 %v8216, %v8217
  %v8219 = vsel %vm26, %v8151, 0.0
  %v8220 = vadd.f32 %v8218, %v8219
  %v8221 = vsel %vm26, %v8152, 0.0
  %v8222 = vadd.f32 %v8220, %v8221
  %v8223 = vsel %vm26, %v8153, 0.0
  %v8224 = vadd.f32 %v8222, %v8223
  %v8225 = vsel %vm26, %v8154, 0.0
  %v8226 = vadd.f32 %v8224, %v8225
  %v8227 = vsel %vm26, %v8155, 0.0
  %v8228 = vadd.f32 %v8226, %v8227
  %v8229 = vsel %vm26, %v8156, 0.0
  %v8230 = vadd.f32 %v8228, %v8229
  %v8231 = vsel %vm26, %v8157, 0.0
  %v8232 = vadd.f32 %v8230, %v8231
  %v8233 = vsel %vm26, %v8158, 0.0
  %v8234 = vadd.f32 %v8232, %v8233
  %v8235 = vsel %vm26, %v8159, 0.0
  %v8236 = vadd.f32 %v8234, %v8235
  %v8237 = vsel %vm26, %v8160, 0.0
  %v8238 = vadd.f32 %v8236, %v8237
  %v8239 = vsel %vm26, %v8161, 0.0
  %v8240 = vadd.f32 %v8238, %v8239
  %v8241 = vsel %vm26, %v8162, 0.0
  %v8242 = vadd.f32 %v8240, %v8241
  %v8243 = vsel %vm26, %v8163, 0.0
  %v8244 = vadd.f32 %v8242, %v8243
  %v8245 = vsel %vm26, %v8164, 0.0
  %v8246 = vadd.f32 %v8244, %v8245
  %v8247 = vsel %vm26, %v8165, 0.0
  %v8248 = vadd.f32 %v8246, %v8247
  %v8249 = vsel %vm26, %v8166, 0.0
  %v8250 = vadd.f32 %v8248, %v8249
  %v8251 = vsel %vm26, %v8167, 0.0
  %v8252 = vadd.f32 %v8250, %v8251
  %v8253 = vsel %vm26, %v8168, 0.0
  %v8254 = vadd.f32 %v8252, %v8253
  %v8255 = vsel %vm26, %v8169, 0.0
  %v8256 = vadd.f32 %v8254, %v8255
  %v8257 = vsel %vm26, %v8170, 0.0
  %v8258 = vadd.f32 %v8256, %v8257
  %v8259 = vsel %vm26, %v8171, 0.0
  %v8260 = vadd.f32 %v8258, %v8259
  %v8261 = vsel %vm26, %v8172, 0.0
  %v8262 = vadd.f32 %v8260, %v8261
  %v8263 = vsel %vm26, %v8173, 0.0
  %v8264 = vadd.f32 %v8262, %v8263
  %v8265 = vsel %vm26, %v8174, 0.0
  %v8266 = vadd.f32 %v8264, %v8265
  %v8267 = vsel %vm26, %v8175, 0.0
  %v8268 = vadd.f32 %v8266, %v8267
  %v8269 = vsel %vm26, %v8176, 0.0
  %v8270 = vadd.f32 %v8268, %v8269
  %v8271 = vsel %vm26, %v8177, 0.0
  %v8272 = vadd.f32 %v8270, %v8271
  %v8273 = vsel %vm26, %v8178, 0.0
  %v8274 = vadd.f32 %v8272, %v8273
  %v8275 = vsel %vm26, %v8179, 0.0
  %v8276 = vadd.f32 %v8274, %v8275
  %v8277 = vsel %vm26, %v8180, 0.0
  %v8278 = vadd.f32 %v8276, %v8277
  %v8279 = vsel %vm26, %v8181, 0.0
  %v8280 = vadd.f32 %v8278, %v8279
  %v8281 = vsel %vm26, %v8182, 0.0
  %v8282 = vadd.f32 %v8280, %v8281
  %v8283 = vsel %vm26, %v8183, 0.0
  %v8284 = vadd.f32 %v8282, %v8283
  %v8285 = vsel %vm26, %v8184, 0.0
  %v8286 = vadd.f32 %v8284, %v8285
  %v8287 = vsel %vm26, %v8185, 0.0
  %v8288 = vadd.f32 %v8286, %v8287
  %v8289 = vsel %vm26, %v8186, 0.0
  %v8290 = vadd.f32 %v8288, %v8289
  %v8291 = vsel %vm26, %v8187, 0.0
  %v8292 = vadd.f32 %v8290, %v8291
  %v8293 = vsel %vm26, %v8188, 0.0
  %v8294 = vadd.f32 %v8292, %v8293
  %v8295 = vsel %vm26, %v8189, 0.0
  %v8296 = vadd.f32 %v8294, %v8295
  %v8297 = vsel %vm26, %v8190, 0.0
  %v8298 = vadd.f32 %v8296, %v8297
  %v8299 = vsel %vm26, %v8191, 0.0
  %v8300 = vadd.f32 %v8298, %v8299
  %v8301 = vsel %vm26, %v8192, 0.0
  %v8302 = vadd.f32 %v8300, %v8301
  %v8303 = vsel %vm26, %v8193, 0.0
  %v8304 = vadd.f32 %v8302, %v8303
  %v8305 = vsel %vm26, %v8194, 0.0
  %v8306 = vadd.f32 %v8304, %v8305
  %v8307 = vsel %vm26, %v8195, 0.0
  %v8308 = vadd.f32 %v8306, %v8307
  %v8309 = vsel %vm26, %v8196, 0.0
  %v8310 = vadd.f32 %v8308, %v8309
  %v8311 = vsel %vm26, %v8197, 0.0
  %v8312 = vadd.f32 %v8310, %v8311
  %v8313 = vsel %vm26, %v8198, 0.0
  %v8314 = vadd.f32 %v8312, %v8313
  %v8315 = vsel %vm26, %v8199, 0.0
  %v8316 = vadd.f32 %v8314, %v8315
  %v8317 = vsel %vm26, %v8200, 0.0
  %v8318 = vadd.f32 %v8316, %v8317
  %v8319 = vsel %vm26, %v8201, 0.0
  %v8320 = vadd.f32 %v8318, %v8319
  %v8321 = vsel %vm26, %v8202, 0.0
  %v8322 = vadd.f32 %v8320, %v8321
  %v8323 = vsel %vm26, %v8203, 0.0
  %v8324 = vadd.f32 %v8322, %v8323
  %v8325 = vsel %vm26, %v8204, 0.0
  %v8326 = vadd.f32 %v8324, %v8325
  %v8327 = vsel %vm26, %v8205, 0.0
  %v8328 = vadd.f32 %v8326, %v8327
  %v8329 = vsel %vm26, %v8206, 0.0
  %v8330 = vadd.f32 %v8328, %v8329
  %v8331 = vsel %vm26, %v8207, 0.0
  %v8332 = vadd.f32 %v8330, %v8331
  %v8333 = vsel %vm26, %v8208, 0.0
  %v8334 = vadd.f32 %v8332, %v8333
  %v8335 = vsel %vm26, %v8209, 0.0
  %v8336 = vadd.f32 %v8334, %v8335
  %v8337 = vrot.slane %v8336, 4
  %v8338 = vadd.f32 %v8336, %v8337
  %v8339 = vrot.slane %v8338, 2
  %v8340 = vadd.f32 %v8338, %v8339
  %v8341 = vrot.slane %v8340, 1
  %v8342 = vadd.f32 %v8340, %v8341
  %v8343 = vmul.f32 %v8145, 0.001953125
  %v8344 = vmul.f32 %v8342, 0.001953125
  %v8345 = vmul.f32 %v8343, %v8343
  %v8346 = vsub.f32 %v8344, %v8345
  %v8347 = vld [vmem:[%s5] sm:$0x1]
  %v8348 = vadd.f32 %v8346, 1e-05
  %v8349 = vrsqrt.pop %v8348
  %v8350 = vmul.f32 %v8349, %v8348
  %v8351 = vmul.f32 %v8350, %v8349
  %v8352 = vmul.f32 0.5, %v8351
  %v8353 = vsub.f32 1.5, %v8352
  %v8354 = vmul.f32 %v8349, %v8353
  %vm8355 = vweird.f32 %v8348
  %vm8356 = vweird.f32 %v8349
  %vm8357 = vmor %vm8355, %vm8356
  %v8358 = vsel %vm8357, %v8349, %v8354
  %v8359 = vmul.f32 %v8347, %v8358
  %v8360 = vld [vmem:[%s6] sm:$0x1]
  %v8361 = vmul.f32 %v8343, %v8359
  %v8362 = vsub.f32 %v8360, %v8361
  %v8364 = vperm.slane %v8359, 0
  %v8366 = vmul.f32 %v7822, %v8364
  %v8367 = vmul.f32 %v7825, %v8364
  %v8368 = vmul.f32 %v7828, %v8364
  %v8369 = vmul.f32 %v7831, %v8364
  %v8370 = vmul.f32 %v7834, %v8364
  %v8371 = vmul.f32 %v7837, %v8364
  %v8372 = vmul.f32 %v7840, %v8364
  %v8373 = vmul.f32 %v7843, %v8364
  %v8374 = vmul.f32 %v7846, %v8364
  %v8375 = vmul.f32 %v7849, %v8364
  %v8376 = vmul.f32 %v7852, %v8364
  %v8377 = vmul.f32 %v7855, %v8364
  %v8378 = vmul.f32 %v7858, %v8364
  %v8379 = vmul.f32 %v7861, %v8364
  %v8380 = vmul.f32 %v7864, %v8364
  %v8381 = vmul.f32 %v7867, %v8364
  %v8382 = vmul.f32 %v7870, %v8364
  %v8383 = vmul.f32 %v7873, %v8364
  %v8384 = vmul.f32 %v7876, %v8364
  %v8385 = vmul.f32 %v7879, %v8364
  %v8386 = vmul.f32 %v7882, %v8364
  %v8387 = vmul.f32 %v7885, %v8364
  %v8388 = vmul.f32 %v7888, %v8364
  %v8389 = vmul.f32 %v7891, %v8364
  %v8390 = vmul.f32 %v7894, %v8364
  %v8391 = vmul.f32 %v7897, %v8364
  %v8392 = vmul.f32 %v7900, %v8364
  %v8393 = vmul.f32 %v7903, %v8364
  %v8394 = vmul.f32 %v7906, %v8364
  %v8395 = vmul.f32 %v7909, %v8364
  %v8396 = vmul.f32 %v7912, %v8364
  %v8397 = vmul.f32 %v7915, %v8364
  %v8398 = vmul.f32 %v7918, %v8364
  %v8399 = vmul.f32 %v7921, %v8364
  %v8400 = vmul.f32 %v7924, %v8364
  %v8401 = vmul.f32 %v7927, %v8364
  %v8402 = vmul.f32 %v7930, %v8364
  %v8403 = vmul.f32 %v7933, %v8364
  %v8404 = vmul.f32 %v7936, %v8364
  %v8405 = vmul.f32 %v7939, %v8364
  %v8406 = vmul.f32 %v7942, %v8364
  %v8407 = vmul.f32 %v7945, %v8364
  %v8408 = vmul.f32 %v7948, %v8364
  %v8409 = vmul.f32 %v7951, %v8364
  %v8410 = vmul.f32 %v7954, %v8364
  %v8411 = vmul.f32 %v7957, %v8364
  %v8412 = vmul.f32 %v7960, %v8364
  %v8413 = vmul.f32 %v7963, %v8364
  %v8414 = vmul.f32 %v7966, %v8364
  %v8415 = vmul.f32 %v7969, %v8364
  %v8416 = vmul.f32 %v7972, %v8364
  %v8417 = vmul.f32 %v7975, %v8364
  %v8418 = vmul.f32 %v7978, %v8364
  %v8419 = vmul.f32 %v7981, %v8364
  %v8420 = vmul.f32 %v7984, %v8364
  %v8421 = vmul.f32 %v7987, %v8364
  %v8422 = vmul.f32 %v7990, %v8364
  %v8423 = vmul.f32 %v7993, %v8364
  %v8424 = vmul.f32 %v7996, %v8364
  %v8425 = vmul.f32 %v7999, %v8364
  %v8426 = vmul.f32 %v8002, %v8364
  %v8427 = vmul.f32 %v8005, %v8364
  %v8428 = vmul.f32 %v8008, %v8364
  %v8429 = vmul.f32 %v8011, %v8364
  %v8431 = vperm.slane %v8362, 0
  %v8433 = vadd.f32 %v8366, %v8431
  %v8434 = vadd.f32 %v8367, %v8431
  %v8435 = vadd.f32 %v8368, %v8431
  %v8436 = vadd.f32 %v8369, %v8431
  %v8437 = vadd.f32 %v8370, %v8431
  %v8438 = vadd.f32 %v8371, %v8431
  %v8439 = vadd.f32 %v8372, %v8431
  %v8440 = vadd.f32 %v8373, %v8431
  %v8441 = vadd.f32 %v8374, %v8431
  %v8442 = vadd.f32 %v8375, %v8431
  %v8443 = vadd.f32 %v8376, %v8431
  %v8444 = vadd.f32 %v8377, %v8431
  %v8445 = vadd.f32 %v8378, %v8431
  %v8446 = vadd.f32 %v8379, %v8431
  %v8447 = vadd.f32 %v8380, %v8431
  %v8448 = vadd.f32 %v8381, %v8431
  %v8449 = vadd.f32 %v8382, %v8431
  %v8450 = vadd.f32 %v8383, %v8431
  %v8451 = vadd.f32 %v8384, %v8431
  %v8452 = vadd.f32 %v8385, %v8431
  %v8453 = vadd.f32 %v8386, %v8431
  %v8454 = vadd.f32 %v8387, %v8431
  %v8455 = vadd.f32 %v8388, %v8431
  %v8456 = vadd.f32 %v8389, %v8431
  %v8457 = vadd.f32 %v8390, %v8431
  %v8458 = vadd.f32 %v8391, %v8431
  %v8459 = vadd.f32 %v8392, %v8431
  %v8460 = vadd.f32 %v8393, %v8431
  %v8461 = vadd.f32 %v8394, %v8431
  %v8462 = vadd.f32 %v8395, %v8431
  %v8463 = vadd.f32 %v8396, %v8431
  %v8464 = vadd.f32 %v8397, %v8431
  %v8465 = vadd.f32 %v8398, %v8431
  %v8466 = vadd.f32 %v8399, %v8431
  %v8467 = vadd.f32 %v8400, %v8431
  %v8468 = vadd.f32 %v8401, %v8431
  %v8469 = vadd.f32 %v8402, %v8431
  %v8470 = vadd.f32 %v8403, %v8431
  %v8471 = vadd.f32 %v8404, %v8431
  %v8472 = vadd.f32 %v8405, %v8431
  %v8473 = vadd.f32 %v8406, %v8431
  %v8474 = vadd.f32 %v8407, %v8431
  %v8475 = vadd.f32 %v8408, %v8431
  %v8476 = vadd.f32 %v8409, %v8431
  %v8477 = vadd.f32 %v8410, %v8431
  %v8478 = vadd.f32 %v8411, %v8431
  %v8479 = vadd.f32 %v8412, %v8431
  %v8480 = vadd.f32 %v8413, %v8431
  %v8481 = vadd.f32 %v8414, %v8431
  %v8482 = vadd.f32 %v8415, %v8431
  %v8483 = vadd.f32 %v8416, %v8431
  %v8484 = vadd.f32 %v8417, %v8431
  %v8485 = vadd.f32 %v8418, %v8431
  %v8486 = vadd.f32 %v8419, %v8431
  %v8487 = vadd.f32 %v8420, %v8431
  %v8488 = vadd.f32 %v8421, %v8431
  %v8489 = vadd.f32 %v8422, %v8431
  %v8490 = vadd.f32 %v8423, %v8431
  %v8491 = vadd.f32 %v8424, %v8431
  %v8492 = vadd.f32 %v8425, %v8431
  %v8493 = vadd.f32 %v8426, %v8431
  %v8494 = vadd.f32 %v8427, %v8431
  %v8495 = vadd.f32 %v8428, %v8431
  %v8496 = vadd.f32 %v8429, %v8431
  %v8497 = vmax.f32 %v8433, 0.0
  %v8498 = vmax.f32 %v8434, 0.0
  %v8499 = vmax.f32 %v8435, 0.0
  %v8500 = vmax.f32 %v8436, 0.0
  %v8501 = vmax.f32 %v8437, 0.0
  %v8502 = vmax.f32 %v8438, 0.0
  %v8503 = vmax.f32 %v8439, 0.0
  %v8504 = vmax.f32 %v8440, 0.0
  %v8505 = vmax.f32 %v8441, 0.0
  %v8506 = vmax.f32 %v8442, 0.0
  %v8507 = vmax.f32 %v8443, 0.0
  %v8508 = vmax.f32 %v8444, 0.0
  %v8509 = vmax.f32 %v8445, 0.0
  %v8510 = vmax.f32 %v8446, 0.0
  %v8511 = vmax.f32 %v8447, 0.0
  %v8512 = vmax.f32 %v8448, 0.0
  %v8513 = vmax.f32 %v8449, 0.0
  %v8514 = vmax.f32 %v8450, 0.0
  %v8515 = vmax.f32 %v8451, 0.0
  %v8516 = vmax.f32 %v8452, 0.0
  %v8517 = vmax.f32 %v8453, 0.0
  %v8518 = vmax.f32 %v8454, 0.0
  %v8519 = vmax.f32 %v8455, 0.0
  %v8520 = vmax.f32 %v8456, 0.0
  %v8521 = vmax.f32 %v8457, 0.0
  %v8522 = vmax.f32 %v8458, 0.0
  %v8523 = vmax.f32 %v8459, 0.0
  %v8524 = vmax.f32 %v8460, 0.0
  %v8525 = vmax.f32 %v8461, 0.0
  %v8526 = vmax.f32 %v8462, 0.0
  %v8527 = vmax.f32 %v8463, 0.0
  %v8528 = vmax.f32 %v8464, 0.0
  %v8529 = vmax.f32 %v8465, 0.0
  %v8530 = vmax.f32 %v8466, 0.0
  %v8531 = vmax.f32 %v8467, 0.0
  %v8532 = vmax.f32 %v8468, 0.0
  %v8533 = vmax.f32 %v8469, 0.0
  %v8534 = vmax.f32 %v8470, 0.0
  %v8535 = vmax.f32 %v8471, 0.0
  %v8536 = vmax.f32 %v8472, 0.0
  %v8537 = vmax.f32 %v8473, 0.0
  %v8538 = vmax.f32 %v8474, 0.0
  %v8539 = vmax.f32 %v8475, 0.0
  %v8540 = vmax.f32 %v8476, 0.0
  %v8541 = vmax.f32 %v8477, 0.0
  %v8542 = vmax.f32 %v8478, 0.0
  %v8543 = vmax.f32 %v8479, 0.0
  %v8544 = vmax.f32 %v8480, 0.0
  %v8545 = vmax.f32 %v8481, 0.0
  %v8546 = vmax.f32 %v8482, 0.0
  %v8547 = vmax.f32 %v8483, 0.0
  %v8548 = vmax.f32 %v8484, 0.0
  %v8549 = vmax.f32 %v8485, 0.0
  %v8550 = vmax.f32 %v8486, 0.0
  %v8551 = vmax.f32 %v8487, 0.0
  %v8552 = vmax.f32 %v8488, 0.0
  %v8553 = vmax.f32 %v8489, 0.0
  %v8554 = vmax.f32 %v8490, 0.0
  %v8555 = vmax.f32 %v8491, 0.0
  %v8556 = vmax.f32 %v8492, 0.0
  %v8557 = vmax.f32 %v8493, 0.0
  %v8558 = vmax.f32 %v8494, 0.0
  %v8559 = vmax.f32 %v8495, 0.0
  %v8560 = vmax.f32 %v8496, 0.0
  %v8561 = vld [vmem:[%s0] sm:$0xff]
  %v8562 = vld [vmem:[%s0 + $0x8] sm:$0xff]
  %v8563 = vld [vmem:[%s0 + $0x10] sm:$0xff]
  %v8564 = vld [vmem:[%s0 + $0x18] sm:$0xff]
  %v8565 = vld [vmem:[%s0 + $0x20] sm:$0xff]
  %v8566 = vld [vmem:[%s0 + $0x28] sm:$0xff]
  %v8567 = vld [vmem:[%s0 + $0x30] sm:$0xff]
  %v8568 = vld [vmem:[%s0 + $0x38] sm:$0xff]
  %v8569 = vld [vmem:[%s0 + $0x40] sm:$0xff]
  %v8570 = vld [vmem:[%s0 + $0x48] sm:$0xff]
  %v8571 = vld [vmem:[%s0 + $0x50] sm:$0xff]
  %v8572 = vld [vmem:[%s0 + $0x58] sm:$0xff]
  %v8573 = vld [vmem:[%s0 + $0x60] sm:$0xff]
  %v8574 = vld [vmem:[%s0 + $0x68] sm:$0xff]
  %v8575 = vld [vmem:[%s0 + $0x70] sm:$0xff]
  %v8576 = vld [vmem:[%s0 + $0x78] sm:$0xff]
  %v8577 = vld [vmem:[%s0 + $0x80] sm:$0xff]
  %v8578 = vld [vmem:[%s0 + $0x88] sm:$0xff]
  %v8579 = vld [vmem:[%s0 + $0x90] sm:$0xff]
  %v8580 = vld [vmem:[%s0 + $0x98] sm:$0xff]
  %v8581 = vld [vmem:[%s0 + $0xa0] sm:$0xff]
  %v8582 = vld [vmem:[%s0 + $0xa8] sm:$0xff]
  %v8583 = vld [vmem:[%s0 + $0xb0] sm:$0xff]
  %v8584 = vld [vmem:[%s0 + $0xb8] sm:$0xff]
  %v8585 = vld [vmem:[%s0 + $0xc0] sm:$0xff]
  %v8586 = vld [vmem:[%s0 + $0xc8] sm:$0xff]
  %v8587 = vld [vmem:[%s0 + $0xd0] sm:$0xff]
  %v8588 = vld [vmem:[%s0 + $0xd8] sm:$0xff]
  %v8589 = vld [vmem:[%s0 + $0xe0] sm:$0xff]
  %v8590 = vld [vmem:[%s0 + $0xe8] sm:$0xff]
  %v8591 = vld [vmem:[%s0 + $0xf0] sm:$0xff]
  %v8592 = vld [vmem:[%s0 + $0xf8] sm:$0xff]
  %v8593 = vld [vmem:[%s0 + $0x100] sm:$0xff]
  %v8594 = vld [vmem:[%s0 + $0x108] sm:$0xff]
  %v8595 = vld [vmem:[%s0 + $0x110] sm:$0xff]
  %v8596 = vld [vmem:[%s0 + $0x118] sm:$0xff]
  %v8597 = vld [vmem:[%s0 + $0x120] sm:$0xff]
  %v8598 = vld [vmem:[%s0 + $0x128] sm:$0xff]
  %v8599 = vld [vmem:[%s0 + $0x130] sm:$0xff]
  %v8600 = vld [vmem:[%s0 + $0x138] sm:$0xff]
  %v8601 = vld [vmem:[%s0 + $0x140] sm:$0xff]
  %v8602 = vld [vmem:[%s0 + $0x148] sm:$0xff]
  %v8603 = vld [vmem:[%s0 + $0x150] sm:$0xff]
  %v8604 = vld [vmem:[%s0 + $0x158] sm:$0xff]
  %v8605 = vld [vmem:[%s0 + $0x160] sm:$0xff]
  %v8606 = vld [vmem:[%s0 + $0x168] sm:$0xff]
  %v8607 = vld [vmem:[%s0 + $0x170] sm:$0xff]
  %v8608 = vld [vmem:[%s0 + $0x178] sm:$0xff]
  %v8609 = vld [vmem:[%s0 + $0x180] sm:$0xff]
  %v8610 = vld [vmem:[%s0 + $0x188] sm:$0xff]
  %v8611 = vld [vmem:[%s0 + $0x190] sm:$0xff]
  %v8612 = vld [vmem:[%s0 + $0x198] sm:$0xff]
  %v8613 = vld [vmem:[%s0 + $0x1a0] sm:$0xff]
  %v8614 = vld [vmem:[%s0 + $0x1a8] sm:$0xff]
  %v8615 = vld [vmem:[%s0 + $0x1b0] sm:$0xff]
  %v8616 = vld [vmem:[%s0 + $0x1b8] sm:$0xff]
  %v8617 = vld [vmem:[%s0 + $0x1c0] sm:$0xff]
  %v8618 = vld [vmem:[%s0 + $0x1c8] sm:$0xff]
  %v8619 = vld [vmem:[%s0 + $0x1d0] sm:$0xff]
  %v8620 = vld [vmem:[%s0 + $0x1d8] sm:$0xff]
  %v8621 = vld [vmem:[%s0 + $0x1e0] sm:$0xff]
  %v8622 = vld [vmem:[%s0 + $0x1e8] sm:$0xff]
  %v8623 = vld [vmem:[%s0 + $0x1f0] sm:$0xff]
  %v8624 = vld [vmem:[%s0 + $0x1f8] sm:$0xff]
  %v8625 = vadd.f32 %v8497, %v8561
  %v8626 = vadd.f32 %v8498, %v8562
  %v8627 = vadd.f32 %v8499, %v8563
  %v8628 = vadd.f32 %v8500, %v8564
  %v8629 = vadd.f32 %v8501, %v8565
  %v8630 = vadd.f32 %v8502, %v8566
  %v8631 = vadd.f32 %v8503, %v8567
  %v8632 = vadd.f32 %v8504, %v8568
  %v8633 = vadd.f32 %v8505, %v8569
  %v8634 = vadd.f32 %v8506, %v8570
  %v8635 = vadd.f32 %v8507, %v8571
  %v8636 = vadd.f32 %v8508, %v8572
  %v8637 = vadd.f32 %v8509, %v8573
  %v8638 = vadd.f32 %v8510, %v8574
  %v8639 = vadd.f32 %v8511, %v8575
  %v8640 = vadd.f32 %v8512, %v8576
  %v8641 = vadd.f32 %v8513, %v8577
  %v8642 = vadd.f32 %v8514, %v8578
  %v8643 = vadd.f32 %v8515, %v8579
  %v8644 = vadd.f32 %v8516, %v8580
  %v8645 = vadd.f32 %v8517, %v8581
  %v8646 = vadd.f32 %v8518, %v8582
  %v8647 = vadd.f32 %v8519, %v8583
  %v8648 = vadd.f32 %v8520, %v8584
  %v8649 = vadd.f32 %v8521, %v8585
  %v8650 = vadd.f32 %v8522, %v8586
  %v8651 = vadd.f32 %v8523, %v8587
  %v8652 = vadd.f32 %v8524, %v8588
  %v8653 = vadd.f32 %v8525, %v8589
  %v8654 = vadd.f32 %v8526, %v8590
  %v8655 = vadd.f32 %v8527, %v8591
  %v8656 = vadd.f32 %v8528, %v8592
  %v8657 = vadd.f32 %v8529, %v8593
  %v8658 = vadd.f32 %v8530, %v8594
  %v8659 = vadd.f32 %v8531, %v8595
  %v8660 = vadd.f32 %v8532, %v8596
  %v8661 = vadd.f32 %v8533, %v8597
  %v8662 = vadd.f32 %v8534, %v8598
  %v8663 = vadd.f32 %v8535, %v8599
  %v8664 = vadd.f32 %v8536, %v8600
  %v8665 = vadd.f32 %v8537, %v8601
  %v8666 = vadd.f32 %v8538, %v8602
  %v8667 = vadd.f32 %v8539, %v8603
  %v8668 = vadd.f32 %v8540, %v8604
  %v8669 = vadd.f32 %v8541, %v8605
  %v8670 = vadd.f32 %v8542, %v8606
  %v8671 = vadd.f32 %v8543, %v8607
  %v8672 = vadd.f32 %v8544, %v8608
  %v8673 = vadd.f32 %v8545, %v8609
  %v8674 = vadd.f32 %v8546, %v8610
  %v8675 = vadd.f32 %v8547, %v8611
  %v8676 = vadd.f32 %v8548, %v8612
  %v8677 = vadd.f32 %v8549, %v8613
  %v8678 = vadd.f32 %v8550, %v8614
  %v8679 = vadd.f32 %v8551, %v8615
  %v8680 = vadd.f32 %v8552, %v8616
  %v8681 = vadd.f32 %v8553, %v8617
  %v8682 = vadd.f32 %v8554, %v8618
  %v8683 = vadd.f32 %v8555, %v8619
  %v8684 = vadd.f32 %v8556, %v8620
  %v8685 = vadd.f32 %v8557, %v8621
  %v8686 = vadd.f32 %v8558, %v8622
  %v8687 = vadd.f32 %v8559, %v8623
  %v8688 = vadd.f32 %v8560, %v8624
  %8689 = vst.msk [vmem:[%s7] sm:$0xff] %vm26, %v8625
  %8690 = vst.msk [vmem:[%s7 + $0x8] sm:$0xff] %vm26, %v8626
  %8691 = vst.msk [vmem:[%s7 + $0x10] sm:$0xff] %vm26, %v8627
  %8692 = vst.msk [vmem:[%s7 + $0x18] sm:$0xff] %vm26, %v8628
  %8693 = vst.msk [vmem:[%s7 + $0x20] sm:$0xff] %vm26, %v8629
  %8694 = vst.msk [vmem:[%s7 + $0x28] sm:$0xff] %vm26, %v8630
  %8695 = vst.msk [vmem:[%s7 + $0x30] sm:$0xff] %vm26, %v8631
  %8696 = vst.msk [vmem:[%s7 + $0x38] sm:$0xff] %vm26, %v8632
  %8697 = vst.msk [vmem:[%s7 + $0x40] sm:$0xff] %vm26, %v8633
  %8698 = vst.msk [vmem:[%s7 + $0x48] sm:$0xff] %vm26, %v8634
  %8699 = vst.msk [vmem:[%s7 + $0x50] sm:$0xff] %vm26, %v8635
  %8700 = vst.msk [vmem:[%s7 + $0x58] sm:$0xff] %vm26, %v8636
  %8701 = vst.msk [vmem:[%s7 + $0x60] sm:$0xff] %vm26, %v8637
  %8702 = vst.msk [vmem:[%s7 + $0x68] sm:$0xff] %vm26, %v8638
  %8703 = vst.msk [vmem:[%s7 + $0x70] sm:$0xff] %vm26, %v8639
  %8704 = vst.msk [vmem:[%s7 + $0x78] sm:$0xff] %vm26, %v8640
  %8705 = vst.msk [vmem:[%s7 + $0x80] sm:$0xff] %vm26, %v8641
  %8706 = vst.msk [vmem:[%s7 + $0x88] sm:$0xff] %vm26, %v8642
  %8707 = vst.msk [vmem:[%s7 + $0x90] sm:$0xff] %vm26, %v8643
  %8708 = vst.msk [vmem:[%s7 + $0x98] sm:$0xff] %vm26, %v8644
  %8709 = vst.msk [vmem:[%s7 + $0xa0] sm:$0xff] %vm26, %v8645
  %8710 = vst.msk [vmem:[%s7 + $0xa8] sm:$0xff] %vm26, %v8646
  %8711 = vst.msk [vmem:[%s7 + $0xb0] sm:$0xff] %vm26, %v8647
  %8712 = vst.msk [vmem:[%s7 + $0xb8] sm:$0xff] %vm26, %v8648
  %8713 = vst.msk [vmem:[%s7 + $0xc0] sm:$0xff] %vm26, %v8649
  %8714 = vst.msk [vmem:[%s7 + $0xc8] sm:$0xff] %vm26, %v8650
  %8715 = vst.msk [vmem:[%s7 + $0xd0] sm:$0xff] %vm26, %v8651
  %8716 = vst.msk [vmem:[%s7 + $0xd8] sm:$0xff] %vm26, %v8652
  %8717 = vst.msk [vmem:[%s7 + $0xe0] sm:$0xff] %vm26, %v8653
  %8718 = vst.msk [vmem:[%s7 + $0xe8] sm:$0xff] %vm26, %v8654
  %8719 = vst.msk [vmem:[%s7 + $0xf0] sm:$0xff] %vm26, %v8655
  %8720 = vst.msk [vmem:[%s7 + $0xf8] sm:$0xff] %vm26, %v8656
  %8721 = vst.msk [vmem:[%s7 + $0x100] sm:$0xff] %vm26, %v8657
  %8722 = vst.msk [vmem:[%s7 + $0x108] sm:$0xff] %vm26, %v8658
  %8723 = vst.msk [vmem:[%s7 + $0x110] sm:$0xff] %vm26, %v8659
  %8724 = vst.msk [vmem:[%s7 + $0x118] sm:$0xff] %vm26, %v8660
  %8725 = vst.msk [vmem:[%s7 + $0x120] sm:$0xff] %vm26, %v8661
  %8726 = vst.msk [vmem:[%s7 + $0x128] sm:$0xff] %vm26, %v8662
  %8727 = vst.msk [vmem:[%s7 + $0x130] sm:$0xff] %vm26, %v8663
  %8728 = vst.msk [vmem:[%s7 + $0x138] sm:$0xff] %vm26, %v8664
  %8729 = vst.msk [vmem:[%s7 + $0x140] sm:$0xff] %vm26, %v8665
  %8730 = vst.msk [vmem:[%s7 + $0x148] sm:$0xff] %vm26, %v8666
  %8731 = vst.msk [vmem:[%s7 + $0x150] sm:$0xff] %vm26, %v8667
  %8732 = vst.msk [vmem:[%s7 + $0x158] sm:$0xff] %vm26, %v8668
  %8733 = vst.msk [vmem:[%s7 + $0x160] sm:$0xff] %vm26, %v8669
  %8734 = vst.msk [vmem:[%s7 + $0x168] sm:$0xff] %vm26, %v8670
  %8735 = vst.msk [vmem:[%s7 + $0x170] sm:$0xff] %vm26, %v8671
  %8736 = vst.msk [vmem:[%s7 + $0x178] sm:$0xff] %vm26, %v8672
  %8737 = vst.msk [vmem:[%s7 + $0x180] sm:$0xff] %vm26, %v8673
  %8738 = vst.msk [vmem:[%s7 + $0x188] sm:$0xff] %vm26, %v8674
  %8739 = vst.msk [vmem:[%s7 + $0x190] sm:$0xff] %vm26, %v8675
  %8740 = vst.msk [vmem:[%s7 + $0x198] sm:$0xff] %vm26, %v8676
  %8741 = vst.msk [vmem:[%s7 + $0x1a0] sm:$0xff] %vm26, %v8677
  %8742 = vst.msk [vmem:[%s7 + $0x1a8] sm:$0xff] %vm26, %v8678
  %8743 = vst.msk [vmem:[%s7 + $0x1b0] sm:$0xff] %vm26, %v8679
  %8744 = vst.msk [vmem:[%s7 + $0x1b8] sm:$0xff] %vm26, %v8680
  %8745 = vst.msk [vmem:[%s7 + $0x1c0] sm:$0xff] %vm26, %v8681
  %8746 = vst.msk [vmem:[%s7 + $0x1c8] sm:$0xff] %vm26, %v8682
  %8747 = vst.msk [vmem:[%s7 + $0x1d0] sm:$0xff] %vm26, %v8683
  %8748 = vst.msk [vmem:[%s7 + $0x1d8] sm:$0xff] %vm26, %v8684
  %8749 = vst.msk [vmem:[%s7 + $0x1e0] sm:$0xff] %vm26, %v8685
  %8750 = vst.msk [vmem:[%s7 + $0x1e8] sm:$0xff] %vm26, %v8686
  %8751 = vst.msk [vmem:[%s7 + $0x1f0] sm:$0xff] %vm26, %v8687
  %8752 = vst.msk [vmem:[%s7 + $0x1f8] sm:$0xff] %vm26, %v8688
  // Predicated region
  $region30: #{resblock_forward.1} parent=0 // pred_check
    _
  $region31: #{resblock_forward.1} parent=0 // pred_check_branch
    %8754 = sbr.rel (0) target = $region33
  $region32: #{resblock_forward.1} parent=0 // pred_region
    _
  $region33: #{resblock_forward.1} parent=0 // pred_fallthru
    _
  // Predicated region
  $region34: #{resblock_forward.1} parent=0 // pred_check
    _
  $region35: #{resblock_forward.1} parent=0 // pred_check_branch
    %8756 = sbr.rel (0) target = $region37
  $region36: #{resblock_forward.1} parent=0 // pred_region
    _
  $region37: #{resblock_forward.1} parent=0 // pred_fallthru
    _

</llo_original>
